<compile_context>
chip_gen: v5e
topology: v5e:2x2
jax: 0.10.0
libtpu: 0.0.40
codegen_flags: <defaults>
</compile_context>

<pallas_src>
import numpy as np
import jax
import jax.numpy as jnp
from jax import lax
from jax.experimental import pallas as pl
from jax.experimental.pallas import tpu as pltpu


# ---------------------------------------------------------------------------
# Fused forward kernel
# ---------------------------------------------------------------------------

def _lenet_kernel(x_ref, w1_ref, b1_ref, w2_ref, b2_ref,
                  fc1w_ref, fc1b_ref, fc2w_ref, fc2b_ref, out_ref):
    # x_ref   : (4, 7, BN, 28) f32   x_ref[q, h4, n, w] = image[n, 4*h4 + q, w]
    # w1_ref  : (5, 28, 512)  bf16   banded conv1 weights, cols = parW*256 + wp*20 + c
    # w2_ref  : (5, 256, 512) bf16   banded conv2 weights, rows = w1*20 + ci,
    #                                cols = parW2*256 + wp2*50 + co
    # fc1w_ref: (4, 256, 500) bf16   per-h row-block of the fused fc1 weight
    BN = x_ref.shape[2]

    # ---- conv1 (banded MXU matmuls), output rows ordered (hp1, n) -----------
    # Row block (p1, par): conv1 rows ho = 4*hp1 + 2*p1 + par, hp1 = 0..5.
    def conv1_block(p1, par):
        acc = None
        for i in range(5):
            s = 2 * p1 + par + i                              # 0..7
            xs = x_ref[s % 4, s // 4: s // 4 + 6, :, :]       # (6, BN, 28) rows 4*hp1+s
            xs = xs.reshape(6 * BN, 28).astype(jnp.bfloat16)
            t = jnp.dot(xs, w1_ref[i], preferred_element_type=jnp.float32)
            acc = t if acc is None else acc + t
        return acc                                            # (6*BN, 512) f32

    a1 = []
    for p1 in range(2):                                       # pooled-H parity
        m = jnp.maximum(conv1_block(p1, 0), conv1_block(p1, 1))   # 2x1 pool over H
        m = jnp.maximum(m[:, :256], m[:, 256:])                   # 1x2 pool over W (parity halves)
        a1.append(jnp.maximum(m + b1_ref[...], 0.0).astype(jnp.bfloat16))
    # a1[p1]: (6*BN, 256) bf16, rows (hp1, n) with pooled h1 = 2*hp1 + p1,
    #         lanes wp*20 + c (240 valid, 16 zero-padded).

    # ---- conv2 (banded MXU matmuls), output rows ordered (hp2, n) ------------
    def conv2_block(par2):
        acc = None
        for i in range(5):
            s2 = par2 + i                                     # 0..5 -> h1 = 2*hp2 + s2
            src = a1[s2 % 2]
            off = (s2 // 2) * BN                              # aligned (BN % 8 == 0)
            xs = src[off: off + 4 * BN, :]                    # (4*BN, 256) bf16, zero-copy slab
            t = jnp.dot(xs, w2_ref[i], preferred_element_type=jnp.float32)
            acc = t if acc is None else acc + t
        return acc                                            # (4*BN, 512) f32

    m2 = jnp.maximum(conv2_block(0), conv2_block(1))          # 2x1 pool over H
    m2 = jnp.maximum(m2[:, :256], m2[:, 256:])                 # 1x2 pool over W (parity halves)
    a2 = jnp.maximum(m2 + b2_ref[...], 0.0).astype(jnp.bfloat16)
    # a2: (4*BN, 256) bf16, rows (h, n) h-major, lanes wp2*50 + co (200 valid).

    # ---- fc1: fused (BN, 800) x (800, 500) contraction ----------------------
    # Expressed as 4 accumulated K=200(+56 zero-pad) matmuls over the h row-blocks;
    # each slab is an aligned zero-copy row slice, so no lane repack is needed.
    h = None
    for hh in range(4):
        t = jnp.dot(a2[hh * BN:(hh + 1) * BN, :], fc1w_ref[hh],
                    preferred_element_type=jnp.float32)
        h = t if h is None else h + t
    h = jnp.maximum(h + fc1b_ref[...], 0.0).astype(jnp.bfloat16)   # (BN, 500)

    # ---- fc2: 500 -> 10 ------------------------------------------------------
    out = jnp.dot(h, fc2w_ref[...], preferred_element_type=jnp.float32) + fc2b_ref[...]
    out_ref[...] = out.astype(out_ref.dtype)


# ---------------------------------------------------------------------------
# Host-side: parameter init (PyTorch layout) + one-time packing to kernel layout
# ---------------------------------------------------------------------------

def init_params(key):
    """PyTorch-layout parameters (conv: OIHW, fc*_w stored as (in, out))."""
    k = jax.random.split(key, 8)
    s = 0.05
    return {
        "conv1_w": s * jax.random.normal(k[0], (20, 1, 5, 5), jnp.float32),
        "conv1_b": s * jax.random.normal(k[1], (20,), jnp.float32),
        "conv2_w": s * jax.random.normal(k[2], (50, 20, 5, 5), jnp.float32),
        "conv2_b": s * jax.random.normal(k[3], (50,), jnp.float32),
        "fc1_w": s * jax.random.normal(k[4], (800, 500), jnp.float32),
        "fc1_b": s * jax.random.normal(k[5], (500,), jnp.float32),
        "fc2_w": s * jax.random.normal(k[6], (500, 10), jnp.float32),
        "fc2_b": s * jax.random.normal(k[7], (10,), jnp.float32),
    }


def pack_params(p):
    """One-time conversion to the kernel's banded / parity-split / bf16 layout."""
    w1 = np.asarray(p["conv1_w"], np.float32)     # (20, 1, 5, 5)  [c, 1, i, j]
    w2 = np.asarray(p["conv2_w"], np.float32)     # (50, 20, 5, 5) [co, ci, i, j]

    # conv1 banded weights: W1[i, w, parW*256 + wp*20 + c] = w1[c, 0, i, w - wo],
    # wo = 2*wp + parW (W-parity split -> 1x2 pool = max of the two 256-lane halves).
    W1 = np.zeros((5, 28, 512), np.float32)
    for i in range(5):
        for j in range(5):
            for wp in range(12):
                for parW in range(2):
                    wo = 2 * wp + parW
                    col = parW * 256 + wp * 20
                    W1[i, wo + j, col:col + 20] = w1[:, 0, i, j]

    # conv2 banded weights: W2[i, w1*20 + ci, parW2*256 + wp2*50 + co] = w2[co, ci, i, w1 - w2o],
    # w2o = 2*wp2 + parW2.  Rows 240..255 stay zero (match a1's padded lanes).
    W2 = np.zeros((5, 256, 512), np.float32)
    for i in range(5):
        for j in range(5):
            for wp2 in range(4):
                for parW2 in range(2):
                    w2o = 2 * wp2 + parW2
                    w1v = w2o + j
                    col = parW2 * 256 + wp2 * 50
                    W2[i, w1v * 20:(w1v + 1) * 20, col:col + 50] = w2[:, :, i, j].T

    # fc1: PyTorch flatten order is (co, h, w); a2 lanes are w*50 + co, rows are h-major.
    fc1 = np.asarray(p["fc1_w"], np.float32)                       # (800, 500)
    f = fc1.reshape(50, 4, 4, 500).transpose(1, 2, 0, 3).reshape(4, 200, 500)
    fc1p = np.zeros((4, 256, 500), np.float32)
    fc1p[:, :200, :] = f                                           # rows 200..255 zero

    b1p = np.zeros((1, 256), np.float32)
    b1p[0, :240] = np.tile(np.asarray(p["conv1_b"], np.float32), 12)   # index wp*20 + c
    b2p = np.zeros((1, 256), np.float32)
    b2p[0, :200] = np.tile(np.asarray(p["conv2_b"], np.float32), 4)    # index wp2*50 + co

    return {
        "w1": jnp.asarray(W1, jnp.bfloat16),
        "b1": jnp.asarray(b1p, jnp.float32),
        "w2": jnp.asarray(W2, jnp.bfloat16),
        "b2": jnp.asarray(b2p, jnp.float32),
        "fc1w": jnp.asarray(fc1p, jnp.bfloat16),
        "fc1b": jnp.asarray(p["fc1_b"], jnp.float32).reshape(1, 500),
        "fc2w": jnp.asarray(p["fc2_w"], jnp.bfloat16),
        "fc2b": jnp.asarray(p["fc2_b"], jnp.float32).reshape(1, 10),
    }


# ---------------------------------------------------------------------------
# Wrapper
# ---------------------------------------------------------------------------

def net_forward(kp, x_nchw):
    """x_nchw: (N, 1, 28, 28) f32. Returns (N, 10) f32 logits."""
    N = x_nchw.shape[0]

    # Batch tile: multiple of 8 (alignment), capped at 64; pick it so batches that
    # allow it get >=2 grid steps (v7x megacore).  Ragged batches are zero-padded.
    if N >= 128:
        BN = 64
    elif N >= 16:
        BN = max(8, (((N + 1) // 2) + 7) // 8 * 8)   # aim for a 2-step grid
    else:
        BN = max(8, (N + 7) // 8 * 8)
    Np = ((N + BN - 1) // BN) * BN

    x = x_nchw.reshape(N, 28, 28)                    # C=1: pure metadata reshape
    if Np != N:
        x = jnp.pad(x, ((0, Np - N), (0, 0), (0, 0)))
    # Host-side layout plumbing (one cheap XLA transpose): split image rows by
    # (h mod 4) so every in-kernel conv1 operand is a contiguous slab and both
    # 2x2 pools reduce to maxes of aligned blocks.
    xq = x.reshape(Np, 7, 4, 28).transpose(2, 1, 0, 3)   # (4, 7, Np, 28)

    grid = (Np // BN,)
    flops = Np * 2 * (25 * 24 * 24 * 20        # conv1
                      + 25 * 8 * 8 * 20 * 50   # conv2
                      + 800 * 500              # fc1
                      + 500 * 10)              # fc2
    bytes_accessed = int(xq.size * 4 + Np * 10 * 4 +
                         sum(int(v.size) * v.dtype.itemsize for v in kp.values()))
    cost = pl.CostEstimate(flops=flops, transcendentals=0,
                           bytes_accessed=bytes_accessed)

    out = pl.pallas_call(
        _lenet_kernel,
        out_shape=jax.ShapeDtypeStruct((Np, 10), jnp.float32),
        grid_spec=pltpu.PrefetchScalarGridSpec(
            num_scalar_prefetch=0,
            grid=grid,
            in_specs=[
                pl.BlockSpec((4, 7, BN, 28), lambda b: (0, 0, b, 0)),   # x (batch-tiled)
                pl.BlockSpec((5, 28, 512), lambda b: (0, 0, 0)),        # conv1 banded w
                pl.BlockSpec((1, 256), lambda b: (0, 0)),               # conv1 b (tiled)
                pl.BlockSpec((5, 256, 512), lambda b: (0, 0, 0)),       # conv2 banded w
                pl.BlockSpec((1, 256), lambda b: (0, 0)),               # conv2 b (tiled)
                pl.BlockSpec((4, 256, 500), lambda b: (0, 0, 0)),       # fc1 w (row blocks)
                pl.BlockSpec((1, 500), lambda b: (0, 0)),               # fc1 b
                pl.BlockSpec((500, 10), lambda b: (0, 0)),              # fc2 w
                pl.BlockSpec((1, 10), lambda b: (0, 0)),                # fc2 b
            ],
            out_specs=pl.BlockSpec((BN, 10), lambda b: (b, 0)),
        ),
        compiler_params=pltpu.CompilerParams(
            dimension_semantics=("parallel",),       # batch axis -> both TCs on v7x
        ),
        cost_estimate=cost,
    )(xq, kp["w1"], kp["b1"], kp["w2"], kp["b2"],
      kp["fc1w"], kp["fc1b"], kp["fc2w"], kp["fc2b"])

    return out[:N]


# ---------------------------------------------------------------------------
# Pure-JAX f32 reference (PyTorch semantics) for the correctness check
# ---------------------------------------------------------------------------

def _reference_forward(p, x):
    dn = ("NCHW", "OIHW", "NCHW")
    y = lax.conv_general_dilated(x, p["conv1_w"], (1, 1), "VALID", dimension_numbers=dn)
    y = jax.nn.relu(y + p["conv1_b"][None, :, None, None])
    y = lax.reduce_window(y, -jnp.inf, lax.max, (1, 1, 2, 2), (1, 1, 2, 2), "VALID")
    y = lax.conv_general_dilated(y, p["conv2_w"], (1, 1), "VALID", dimension_numbers=dn)
    y = jax.nn.relu(y + p["conv2_b"][None, :, None, None])
    y = lax.reduce_window(y, -jnp.inf, lax.max, (1, 1, 2, 2), (1, 1, 2, 2), "VALID")
    y = y.reshape(y.shape[0], -1)                              # PyTorch (c, h, w) flatten
    y = jax.nn.relu(y @ p["fc1_w"] + p["fc1_b"])
    return y @ p["fc2_w"] + p["fc2_b"]


if __name__ == "__main__":
    key = jax.random.PRNGKey(0)
    pkey, xkey = jax.random.split(key)
    params = init_params(pkey)
    kparams = pack_params(params)
    # Batch of 6 (not a multiple of the 8-row tile) exercises the padding path;
    # 1x28x28 spatial size is dictated by fc1.in_features == 800.
    x = jax.random.normal(xkey, (6, 1, 28, 28), jnp.float32)

    out = jax.block_until_ready(jax.jit(net_forward)(kparams, x))
    assert out.shape == (6, 10) and out.dtype == jnp.float32

    ref = jax.block_until_ready(jax.jit(_reference_forward)(params, x))
    max_err = float(jnp.max(jnp.abs(out - ref)))
    # bf16 MXU operands (f32 accumulation) -> small deviation vs the f32 reference.
    assert max_err < 1e-1, f"mismatch vs reference: {max_err}"

    print("KERNEL_OK")
</pallas_src>

<mosaic_0001>
module attributes {stable_mosaic.version = 11 : i64} {
  func.func @_lenet_kernel(%arg0: i32, %arg1: memref<4x7x8x28xf32, #tpu.memory_space<vmem>>, %arg2: memref<5x28x512xbf16, #tpu.memory_space<vmem>>, %arg3: memref<1x256xf32, #tpu.memory_space<vmem>>, %arg4: memref<5x256x512xbf16, #tpu.memory_space<vmem>>, %arg5: memref<1x256xf32, #tpu.memory_space<vmem>>, %arg6: memref<4x256x500xbf16, #tpu.memory_space<vmem>>, %arg7: memref<1x500xf32, #tpu.memory_space<vmem>>, %arg8: memref<500x10xbf16, #tpu.memory_space<vmem>>, %arg9: memref<1x10xf32, #tpu.memory_space<vmem>>, %arg10: memref<8x10xf32, #tpu.memory_space<vmem>>) attributes {dimension_semantics = [#tpu.dimension_semantics<parallel>], iteration_bounds = array<i64: 1>, scalar_prefetch = 0 : i64, scratch_operands = 0 : i64, tpu.core_type = #tpu.core_type<tc>, window_params = [{transform_indices = @transform_0, window_bounds = array<i64: 4, 7, 8, 28>}, {pipeline_mode = #tpu.pipeline_mode<synchronous>, transform_indices = @transform_1, window_bounds = array<i64: 5, 28, 512>}, {pipeline_mode = #tpu.pipeline_mode<synchronous>, transform_indices = @transform_2, window_bounds = array<i64: 1, 256>}, {pipeline_mode = #tpu.pipeline_mode<synchronous>, transform_indices = @transform_3, window_bounds = array<i64: 5, 256, 512>}, {pipeline_mode = #tpu.pipeline_mode<synchronous>, transform_indices = @transform_4, window_bounds = array<i64: 1, 256>}, {pipeline_mode = #tpu.pipeline_mode<synchronous>, transform_indices = @transform_5, window_bounds = array<i64: 4, 256, 500>}, {pipeline_mode = #tpu.pipeline_mode<synchronous>, transform_indices = @transform_6, window_bounds = array<i64: 1, 500>}, {pipeline_mode = #tpu.pipeline_mode<synchronous>, transform_indices = @transform_7, window_bounds = array<i64: 500, 10>}, {pipeline_mode = #tpu.pipeline_mode<synchronous>, transform_indices = @transform_8, window_bounds = array<i64: 1, 10>}, {transform_indices = @transform_9, window_bounds = array<i64: 8, 10>}]} {
    %c0 = arith.constant 0 : index
    %c0_0 = arith.constant 0 : index
    %c0_1 = arith.constant 0 : index
    %c0_2 = arith.constant 0 : index
    %0 = vector.load %arg1[%c0, %c0_0, %c0_1, %c0_2] : memref<4x7x8x28xf32, #tpu.memory_space<vmem>>, vector<1x6x8x28xf32>
    %1 = vector.shape_cast %0 : vector<1x6x8x28xf32> to vector<6x8x28xf32>
    %2 = vector.shape_cast %1 : vector<6x8x28xf32> to vector<48x28xf32>
    %3 = arith.truncf %2 : vector<48x28xf32> to vector<48x28xbf16>
    %c0_3 = arith.constant 0 : index
    %c0_4 = arith.constant 0 : index
    %c0_5 = arith.constant 0 : index
    %4 = vector.load %arg2[%c0_3, %c0_4, %c0_5] : memref<5x28x512xbf16, #tpu.memory_space<vmem>>, vector<1x28x512xbf16>
    %5 = vector.shape_cast %4 : vector<1x28x512xbf16> to vector<28x512xbf16>
    %cst = arith.constant dense<0.000000e+00> : vector<48x512xf32>
    %6 = tpu.matmul %3, %5, %cst {dimension_numbers = #tpu.dot_dimension_numbers<[1], [0], [0], [1], [0, 0, 1, 1], [], []>} : vector<48x28xbf16>, vector<28x512xbf16>, vector<48x512xf32> -> vector<48x512xf32>
    %c1 = arith.constant 1 : index
    %c0_6 = arith.constant 0 : index
    %c0_7 = arith.constant 0 : index
    %c0_8 = arith.constant 0 : index
    %7 = vector.load %arg1[%c1, %c0_6, %c0_7, %c0_8] : memref<4x7x8x28xf32, #tpu.memory_space<vmem>>, vector<1x6x8x28xf32>
    %8 = vector.shape_cast %7 : vector<1x6x8x28xf32> to vector<6x8x28xf32>
    %9 = vector.shape_cast %8 : vector<6x8x28xf32> to vector<48x28xf32>
    %10 = arith.truncf %9 : vector<48x28xf32> to vector<48x28xbf16>
    %c1_9 = arith.constant 1 : index
    %c0_10 = arith.constant 0 : index
    %c0_11 = arith.constant 0 : index
    %11 = vector.load %arg2[%c1_9, %c0_10, %c0_11] : memref<5x28x512xbf16, #tpu.memory_space<vmem>>, vector<1x28x512xbf16>
    %12 = vector.shape_cast %11 : vector<1x28x512xbf16> to vector<28x512xbf16>
    %cst_12 = arith.constant dense<0.000000e+00> : vector<48x512xf32>
    %13 = tpu.matmul %10, %12, %cst_12 {dimension_numbers = #tpu.dot_dimension_numbers<[1], [0], [0], [1], [0, 0, 1, 1], [], []>} : vector<48x28xbf16>, vector<28x512xbf16>, vector<48x512xf32> -> vector<48x512xf32>
    %14 = arith.addf %6, %13 : vector<48x512xf32>
    %c2 = arith.constant 2 : index
    %c0_13 = arith.constant 0 : index
    %c0_14 = arith.constant 0 : index
    %c0_15 = arith.constant 0 : index
    %15 = vector.load %arg1[%c2, %c0_13, %c0_14, %c0_15] : memref<4x7x8x28xf32, #tpu.memory_space<vmem>>, vector<1x6x8x28xf32>
    %16 = vector.shape_cast %15 : vector<1x6x8x28xf32> to vector<6x8x28xf32>
    %17 = vector.shape_cast %16 : vector<6x8x28xf32> to vector<48x28xf32>
    %18 = arith.truncf %17 : vector<48x28xf32> to vector<48x28xbf16>
    %c2_16 = arith.constant 2 : index
    %c0_17 = arith.constant 0 : index
    %c0_18 = arith.constant 0 : index
    %19 = vector.load %arg2[%c2_16, %c0_17, %c0_18] : memref<5x28x512xbf16, #tpu.memory_space<vmem>>, vector<1x28x512xbf16>
    %20 = vector.shape_cast %19 : vector<1x28x512xbf16> to vector<28x512xbf16>
    %cst_19 = arith.constant dense<0.000000e+00> : vector<48x512xf32>
    %21 = tpu.matmul %18, %20, %cst_19 {dimension_numbers = #tpu.dot_dimension_numbers<[1], [0], [0], [1], [0, 0, 1, 1], [], []>} : vector<48x28xbf16>, vector<28x512xbf16>, vector<48x512xf32> -> vector<48x512xf32>
    %22 = arith.addf %14, %21 : vector<48x512xf32>
    %c3 = arith.constant 3 : index
    %c0_20 = arith.constant 0 : index
    %c0_21 = arith.constant 0 : index
    %c0_22 = arith.constant 0 : index
    %23 = vector.load %arg1[%c3, %c0_20, %c0_21, %c0_22] : memref<4x7x8x28xf32, #tpu.memory_space<vmem>>, vector<1x6x8x28xf32>
    %24 = vector.shape_cast %23 : vector<1x6x8x28xf32> to vector<6x8x28xf32>
    %25 = vector.shape_cast %24 : vector<6x8x28xf32> to vector<48x28xf32>
    %26 = arith.truncf %25 : vector<48x28xf32> to vector<48x28xbf16>
    %c3_23 = arith.constant 3 : index
    %c0_24 = arith.constant 0 : index
    %c0_25 = arith.constant 0 : index
    %27 = vector.load %arg2[%c3_23, %c0_24, %c0_25] : memref<5x28x512xbf16, #tpu.memory_space<vmem>>, vector<1x28x512xbf16>
    %28 = vector.shape_cast %27 : vector<1x28x512xbf16> to vector<28x512xbf16>
    %cst_26 = arith.constant dense<0.000000e+00> : vector<48x512xf32>
    %29 = tpu.matmul %26, %28, %cst_26 {dimension_numbers = #tpu.dot_dimension_numbers<[1], [0], [0], [1], [0, 0, 1, 1], [], []>} : vector<48x28xbf16>, vector<28x512xbf16>, vector<48x512xf32> -> vector<48x512xf32>
    %30 = arith.addf %22, %29 : vector<48x512xf32>
    %c0_27 = arith.constant 0 : index
    %c1_28 = arith.constant 1 : index
    %c0_29 = arith.constant 0 : index
    %c0_30 = arith.constant 0 : index
    %31 = vector.load %arg1[%c0_27, %c1_28, %c0_29, %c0_30] : memref<4x7x8x28xf32, #tpu.memory_space<vmem>>, vector<1x6x8x28xf32>
    %32 = vector.shape_cast %31 : vector<1x6x8x28xf32> to vector<6x8x28xf32>
    %33 = vector.shape_cast %32 : vector<6x8x28xf32> to vector<48x28xf32>
    %34 = arith.truncf %33 : vector<48x28xf32> to vector<48x28xbf16>
    %c4 = arith.constant 4 : index
    %c0_31 = arith.constant 0 : index
    %c0_32 = arith.constant 0 : index
    %35 = vector.load %arg2[%c4, %c0_31, %c0_32] : memref<5x28x512xbf16, #tpu.memory_space<vmem>>, vector<1x28x512xbf16>
    %36 = vector.shape_cast %35 : vector<1x28x512xbf16> to vector<28x512xbf16>
    %cst_33 = arith.constant dense<0.000000e+00> : vector<48x512xf32>
    %37 = tpu.matmul %34, %36, %cst_33 {dimension_numbers = #tpu.dot_dimension_numbers<[1], [0], [0], [1], [0, 0, 1, 1], [], []>} : vector<48x28xbf16>, vector<28x512xbf16>, vector<48x512xf32> -> vector<48x512xf32>
    %38 = arith.addf %30, %37 : vector<48x512xf32>
    %c1_34 = arith.constant 1 : index
    %c0_35 = arith.constant 0 : index
    %c0_36 = arith.constant 0 : index
    %c0_37 = arith.constant 0 : index
    %39 = vector.load %arg1[%c1_34, %c0_35, %c0_36, %c0_37] : memref<4x7x8x28xf32, #tpu.memory_space<vmem>>, vector<1x6x8x28xf32>
    %40 = vector.shape_cast %39 : vector<1x6x8x28xf32> to vector<6x8x28xf32>
    %41 = vector.shape_cast %40 : vector<6x8x28xf32> to vector<48x28xf32>
    %42 = arith.truncf %41 : vector<48x28xf32> to vector<48x28xbf16>
    %c0_38 = arith.constant 0 : index
    %c0_39 = arith.constant 0 : index
    %c0_40 = arith.constant 0 : index
    %43 = vector.load %arg2[%c0_38, %c0_39, %c0_40] : memref<5x28x512xbf16, #tpu.memory_space<vmem>>, vector<1x28x512xbf16>
    %44 = vector.shape_cast %43 : vector<1x28x512xbf16> to vector<28x512xbf16>
    %cst_41 = arith.constant dense<0.000000e+00> : vector<48x512xf32>
    %45 = tpu.matmul %42, %44, %cst_41 {dimension_numbers = #tpu.dot_dimension_numbers<[1], [0], [0], [1], [0, 0, 1, 1], [], []>} : vector<48x28xbf16>, vector<28x512xbf16>, vector<48x512xf32> -> vector<48x512xf32>
    %c2_42 = arith.constant 2 : index
    %c0_43 = arith.constant 0 : index
    %c0_44 = arith.constant 0 : index
    %c0_45 = arith.constant 0 : index
    %46 = vector.load %arg1[%c2_42, %c0_43, %c0_44, %c0_45] : memref<4x7x8x28xf32, #tpu.memory_space<vmem>>, vector<1x6x8x28xf32>
    %47 = vector.shape_cast %46 : vector<1x6x8x28xf32> to vector<6x8x28xf32>
    %48 = vector.shape_cast %47 : vector<6x8x28xf32> to vector<48x28xf32>
    %49 = arith.truncf %48 : vector<48x28xf32> to vector<48x28xbf16>
    %c1_46 = arith.constant 1 : index
    %c0_47 = arith.constant 0 : index
    %c0_48 = arith.constant 0 : index
    %50 = vector.load %arg2[%c1_46, %c0_47, %c0_48] : memref<5x28x512xbf16, #tpu.memory_space<vmem>>, vector<1x28x512xbf16>
    %51 = vector.shape_cast %50 : vector<1x28x512xbf16> to vector<28x512xbf16>
    %cst_49 = arith.constant dense<0.000000e+00> : vector<48x512xf32>
    %52 = tpu.matmul %49, %51, %cst_49 {dimension_numbers = #tpu.dot_dimension_numbers<[1], [0], [0], [1], [0, 0, 1, 1], [], []>} : vector<48x28xbf16>, vector<28x512xbf16>, vector<48x512xf32> -> vector<48x512xf32>
    %53 = arith.addf %45, %52 : vector<48x512xf32>
    %c3_50 = arith.constant 3 : index
    %c0_51 = arith.constant 0 : index
    %c0_52 = arith.constant 0 : index
    %c0_53 = arith.constant 0 : index
    %54 = vector.load %arg1[%c3_50, %c0_51, %c0_52, %c0_53] : memref<4x7x8x28xf32, #tpu.memory_space<vmem>>, vector<1x6x8x28xf32>
    %55 = vector.shape_cast %54 : vector<1x6x8x28xf32> to vector<6x8x28xf32>
    %56 = vector.shape_cast %55 : vector<6x8x28xf32> to vector<48x28xf32>
    %57 = arith.truncf %56 : vector<48x28xf32> to vector<48x28xbf16>
    %c2_54 = arith.constant 2 : index
    %c0_55 = arith.constant 0 : index
    %c0_56 = arith.constant 0 : index
    %58 = vector.load %arg2[%c2_54, %c0_55, %c0_56] : memref<5x28x512xbf16, #tpu.memory_space<vmem>>, vector<1x28x512xbf16>
    %59 = vector.shape_cast %58 : vector<1x28x512xbf16> to vector<28x512xbf16>
    %cst_57 = arith.constant dense<0.000000e+00> : vector<48x512xf32>
    %60 = tpu.matmul %57, %59, %cst_57 {dimension_numbers = #tpu.dot_dimension_numbers<[1], [0], [0], [1], [0, 0, 1, 1], [], []>} : vector<48x28xbf16>, vector<28x512xbf16>, vector<48x512xf32> -> vector<48x512xf32>
    %61 = arith.addf %53, %60 : vector<48x512xf32>
    %c0_58 = arith.constant 0 : index
    %c1_59 = arith.constant 1 : index
    %c0_60 = arith.constant 0 : index
    %c0_61 = arith.constant 0 : index
    %62 = vector.load %arg1[%c0_58, %c1_59, %c0_60, %c0_61] : memref<4x7x8x28xf32, #tpu.memory_space<vmem>>, vector<1x6x8x28xf32>
    %63 = vector.shape_cast %62 : vector<1x6x8x28xf32> to vector<6x8x28xf32>
    %64 = vector.shape_cast %63 : vector<6x8x28xf32> to vector<48x28xf32>
    %65 = arith.truncf %64 : vector<48x28xf32> to vector<48x28xbf16>
    %c3_62 = arith.constant 3 : index
    %c0_63 = arith.constant 0 : index
    %c0_64 = arith.constant 0 : index
    %66 = vector.load %arg2[%c3_62, %c0_63, %c0_64] : memref<5x28x512xbf16, #tpu.memory_space<vmem>>, vector<1x28x512xbf16>
    %67 = vector.shape_cast %66 : vector<1x28x512xbf16> to vector<28x512xbf16>
    %cst_65 = arith.constant dense<0.000000e+00> : vector<48x512xf32>
    %68 = tpu.matmul %65, %67, %cst_65 {dimension_numbers = #tpu.dot_dimension_numbers<[1], [0], [0], [1], [0, 0, 1, 1], [], []>} : vector<48x28xbf16>, vector<28x512xbf16>, vector<48x512xf32> -> vector<48x512xf32>
    %69 = arith.addf %61, %68 : vector<48x512xf32>
    %c1_66 = arith.constant 1 : index
    %c1_67 = arith.constant 1 : index
    %c0_68 = arith.constant 0 : index
    %c0_69 = arith.constant 0 : index
    %70 = vector.load %arg1[%c1_66, %c1_67, %c0_68, %c0_69] : memref<4x7x8x28xf32, #tpu.memory_space<vmem>>, vector<1x6x8x28xf32>
    %71 = vector.shape_cast %70 : vector<1x6x8x28xf32> to vector<6x8x28xf32>
    %72 = vector.shape_cast %71 : vector<6x8x28xf32> to vector<48x28xf32>
    %73 = arith.truncf %72 : vector<48x28xf32> to vector<48x28xbf16>
    %c4_70 = arith.constant 4 : index
    %c0_71 = arith.constant 0 : index
    %c0_72 = arith.constant 0 : index
    %74 = vector.load %arg2[%c4_70, %c0_71, %c0_72] : memref<5x28x512xbf16, #tpu.memory_space<vmem>>, vector<1x28x512xbf16>
    %75 = vector.shape_cast %74 : vector<1x28x512xbf16> to vector<28x512xbf16>
    %cst_73 = arith.constant dense<0.000000e+00> : vector<48x512xf32>
    %76 = tpu.matmul %73, %75, %cst_73 {dimension_numbers = #tpu.dot_dimension_numbers<[1], [0], [0], [1], [0, 0, 1, 1], [], []>} : vector<48x28xbf16>, vector<28x512xbf16>, vector<48x512xf32> -> vector<48x512xf32>
    %77 = arith.addf %69, %76 : vector<48x512xf32>
    %78 = arith.maximumf %38, %77 : vector<48x512xf32>
    %79 = vector.extract_strided_slice %78 {offsets = [0, 0], sizes = [48, 256], strides = [1, 1]} : vector<48x512xf32> to vector<48x256xf32>
    %80 = vector.extract_strided_slice %78 {offsets = [0, 256], sizes = [48, 256], strides = [1, 1]} : vector<48x512xf32> to vector<48x256xf32>
    %81 = arith.maximumf %79, %80 : vector<48x256xf32>
    %c0_74 = arith.constant 0 : index
    %c0_75 = arith.constant 0 : index
    %82 = vector.load %arg3[%c0_74, %c0_75] : memref<1x256xf32, #tpu.memory_space<vmem>>, vector<1x256xf32>
    %83 = vector.broadcast %82 : vector<1x256xf32> to vector<48x256xf32>
    %84 = arith.addf %81, %83 : vector<48x256xf32>
    %cst_76 = arith.constant 0.000000e+00 : f32
    %85 = vector.broadcast %cst_76 : f32 to vector<48x256xf32>
    %86 = arith.maximumf %84, %85 : vector<48x256xf32>
    %87 = arith.truncf %86 : vector<48x256xf32> to vector<48x256xbf16>
    %c2_77 = arith.constant 2 : index
    %c0_78 = arith.constant 0 : index
    %c0_79 = arith.constant 0 : index
    %c0_80 = arith.constant 0 : index
    %88 = vector.load %arg1[%c2_77, %c0_78, %c0_79, %c0_80] : memref<4x7x8x28xf32, #tpu.memory_space<vmem>>, vector<1x6x8x28xf32>
    %89 = vector.shape_cast %88 : vector<1x6x8x28xf32> to vector<6x8x28xf32>
    %90 = vector.shape_cast %89 : vector<6x8x28xf32> to vector<48x28xf32>
    %91 = arith.truncf %90 : vector<48x28xf32> to vector<48x28xbf16>
    %c0_81 = arith.constant 0 : index
    %c0_82 = arith.constant 0 : index
    %c0_83 = arith.constant 0 : index
    %92 = vector.load %arg2[%c0_81, %c0_82, %c0_83] : memref<5x28x512xbf16, #tpu.memory_space<vmem>>, vector<1x28x512xbf16>
    %93 = vector.shape_cast %92 : vector<1x28x512xbf16> to vector<28x512xbf16>
    %cst_84 = arith.constant dense<0.000000e+00> : vector<48x512xf32>
    %94 = tpu.matmul %91, %93, %cst_84 {dimension_numbers = #tpu.dot_dimension_numbers<[1], [0], [0], [1], [0, 0, 1, 1], [], []>} : vector<48x28xbf16>, vector<28x512xbf16>, vector<48x512xf32> -> vector<48x512xf32>
    %c3_85 = arith.constant 3 : index
    %c0_86 = arith.constant 0 : index
    %c0_87 = arith.constant 0 : index
    %c0_88 = arith.constant 0 : index
    %95 = vector.load %arg1[%c3_85, %c0_86, %c0_87, %c0_88] : memref<4x7x8x28xf32, #tpu.memory_space<vmem>>, vector<1x6x8x28xf32>
    %96 = vector.shape_cast %95 : vector<1x6x8x28xf32> to vector<6x8x28xf32>
    %97 = vector.shape_cast %96 : vector<6x8x28xf32> to vector<48x28xf32>
    %98 = arith.truncf %97 : vector<48x28xf32> to vector<48x28xbf16>
    %c1_89 = arith.constant 1 : index
    %c0_90 = arith.constant 0 : index
    %c0_91 = arith.constant 0 : index
    %99 = vector.load %arg2[%c1_89, %c0_90, %c0_91] : memref<5x28x512xbf16, #tpu.memory_space<vmem>>, vector<1x28x512xbf16>
    %100 = vector.shape_cast %99 : vector<1x28x512xbf16> to vector<28x512xbf16>
    %cst_92 = arith.constant dense<0.000000e+00> : vector<48x512xf32>
    %101 = tpu.matmul %98, %100, %cst_92 {dimension_numbers = #tpu.dot_dimension_numbers<[1], [0], [0], [1], [0, 0, 1, 1], [], []>} : vector<48x28xbf16>, vector<28x512xbf16>, vector<48x512xf32> -> vector<48x512xf32>
    %102 = arith.addf %94, %101 : vector<48x512xf32>
    %c0_93 = arith.constant 0 : index
    %c1_94 = arith.constant 1 : index
    %c0_95 = arith.constant 0 : index
    %c0_96 = arith.constant 0 : index
    %103 = vector.load %arg1[%c0_93, %c1_94, %c0_95, %c0_96] : memref<4x7x8x28xf32, #tpu.memory_space<vmem>>, vector<1x6x8x28xf32>
    %104 = vector.shape_cast %103 : vector<1x6x8x28xf32> to vector<6x8x28xf32>
    %105 = vector.shape_cast %104 : vector<6x8x28xf32> to vector<48x28xf32>
    %106 = arith.truncf %105 : vector<48x28xf32> to vector<48x28xbf16>
    %c2_97 = arith.constant 2 : index
    %c0_98 = arith.constant 0 : index
    %c0_99 = arith.constant 0 : index
    %107 = vector.load %arg2[%c2_97, %c0_98, %c0_99] : memref<5x28x512xbf16, #tpu.memory_space<vmem>>, vector<1x28x512xbf16>
    %108 = vector.shape_cast %107 : vector<1x28x512xbf16> to vector<28x512xbf16>
    %cst_100 = arith.constant dense<0.000000e+00> : vector<48x512xf32>
    %109 = tpu.matmul %106, %108, %cst_100 {dimension_numbers = #tpu.dot_dimension_numbers<[1], [0], [0], [1], [0, 0, 1, 1], [], []>} : vector<48x28xbf16>, vector<28x512xbf16>, vector<48x512xf32> -> vector<48x512xf32>
    %110 = arith.addf %102, %109 : vector<48x512xf32>
    %c1_101 = arith.constant 1 : index
    %c1_102 = arith.constant 1 : index
    %c0_103 = arith.constant 0 : index
    %c0_104 = arith.constant 0 : index
    %111 = vector.load %arg1[%c1_101, %c1_102, %c0_103, %c0_104] : memref<4x7x8x28xf32, #tpu.memory_space<vmem>>, vector<1x6x8x28xf32>
    %112 = vector.shape_cast %111 : vector<1x6x8x28xf32> to vector<6x8x28xf32>
    %113 = vector.shape_cast %112 : vector<6x8x28xf32> to vector<48x28xf32>
    %114 = arith.truncf %113 : vector<48x28xf32> to vector<48x28xbf16>
    %c3_105 = arith.constant 3 : index
    %c0_106 = arith.constant 0 : index
    %c0_107 = arith.constant 0 : index
    %115 = vector.load %arg2[%c3_105, %c0_106, %c0_107] : memref<5x28x512xbf16, #tpu.memory_space<vmem>>, vector<1x28x512xbf16>
    %116 = vector.shape_cast %115 : vector<1x28x512xbf16> to vector<28x512xbf16>
    %cst_108 = arith.constant dense<0.000000e+00> : vector<48x512xf32>
    %117 = tpu.matmul %114, %116, %cst_108 {dimension_numbers = #tpu.dot_dimension_numbers<[1], [0], [0], [1], [0, 0, 1, 1], [], []>} : vector<48x28xbf16>, vector<28x512xbf16>, vector<48x512xf32> -> vector<48x512xf32>
    %118 = arith.addf %110, %117 : vector<48x512xf32>
    %c2_109 = arith.constant 2 : index
    %c1_110 = arith.constant 1 : index
    %c0_111 = arith.constant 0 : index
    %c0_112 = arith.constant 0 : index
    %119 = vector.load %arg1[%c2_109, %c1_110, %c0_111, %c0_112] : memref<4x7x8x28xf32, #tpu.memory_space<vmem>>, vector<1x6x8x28xf32>
    %120 = vector.shape_cast %119 : vector<1x6x8x28xf32> to vector<6x8x28xf32>
    %121 = vector.shape_cast %120 : vector<6x8x28xf32> to vector<48x28xf32>
    %122 = arith.truncf %121 : vector<48x28xf32> to vector<48x28xbf16>
    %c4_113 = arith.constant 4 : index
    %c0_114 = arith.constant 0 : index
    %c0_115 = arith.constant 0 : index
    %123 = vector.load %arg2[%c4_113, %c0_114, %c0_115] : memref<5x28x512xbf16, #tpu.memory_space<vmem>>, vector<1x28x512xbf16>
    %124 = vector.shape_cast %123 : vector<1x28x512xbf16> to vector<28x512xbf16>
    %cst_116 = arith.constant dense<0.000000e+00> : vector<48x512xf32>
    %125 = tpu.matmul %122, %124, %cst_116 {dimension_numbers = #tpu.dot_dimension_numbers<[1], [0], [0], [1], [0, 0, 1, 1], [], []>} : vector<48x28xbf16>, vector<28x512xbf16>, vector<48x512xf32> -> vector<48x512xf32>
    %126 = arith.addf %118, %125 : vector<48x512xf32>
    %c3_117 = arith.constant 3 : index
    %c0_118 = arith.constant 0 : index
    %c0_119 = arith.constant 0 : index
    %c0_120 = arith.constant 0 : index
    %127 = vector.load %arg1[%c3_117, %c0_118, %c0_119, %c0_120] : memref<4x7x8x28xf32, #tpu.memory_space<vmem>>, vector<1x6x8x28xf32>
    %128 = vector.shape_cast %127 : vector<1x6x8x28xf32> to vector<6x8x28xf32>
    %129 = vector.shape_cast %128 : vector<6x8x28xf32> to vector<48x28xf32>
    %130 = arith.truncf %129 : vector<48x28xf32> to vector<48x28xbf16>
    %c0_121 = arith.constant 0 : index
    %c0_122 = arith.constant 0 : index
    %c0_123 = arith.constant 0 : index
    %131 = vector.load %arg2[%c0_121, %c0_122, %c0_123] : memref<5x28x512xbf16, #tpu.memory_space<vmem>>, vector<1x28x512xbf16>
    %132 = vector.shape_cast %131 : vector<1x28x512xbf16> to vector<28x512xbf16>
    %cst_124 = arith.constant dense<0.000000e+00> : vector<48x512xf32>
    %133 = tpu.matmul %130, %132, %cst_124 {dimension_numbers = #tpu.dot_dimension_numbers<[1], [0], [0], [1], [0, 0, 1, 1], [], []>} : vector<48x28xbf16>, vector<28x512xbf16>, vector<48x512xf32> -> vector<48x512xf32>
    %c0_125 = arith.constant 0 : index
    %c1_126 = arith.constant 1 : index
    %c0_127 = arith.constant 0 : index
    %c0_128 = arith.constant 0 : index
    %134 = vector.load %arg1[%c0_125, %c1_126, %c0_127, %c0_128] : memref<4x7x8x28xf32, #tpu.memory_space<vmem>>, vector<1x6x8x28xf32>
    %135 = vector.shape_cast %134 : vector<1x6x8x28xf32> to vector<6x8x28xf32>
    %136 = vector.shape_cast %135 : vector<6x8x28xf32> to vector<48x28xf32>
    %137 = arith.truncf %136 : vector<48x28xf32> to vector<48x28xbf16>
    %c1_129 = arith.constant 1 : index
    %c0_130 = arith.constant 0 : index
    %c0_131 = arith.constant 0 : index
    %138 = vector.load %arg2[%c1_129, %c0_130, %c0_131] : memref<5x28x512xbf16, #tpu.memory_space<vmem>>, vector<1x28x512xbf16>
    %139 = vector.shape_cast %138 : vector<1x28x512xbf16> to vector<28x512xbf16>
    %cst_132 = arith.constant dense<0.000000e+00> : vector<48x512xf32>
    %140 = tpu.matmul %137, %139, %cst_132 {dimension_numbers = #tpu.dot_dimension_numbers<[1], [0], [0], [1], [0, 0, 1, 1], [], []>} : vector<48x28xbf16>, vector<28x512xbf16>, vector<48x512xf32> -> vector<48x512xf32>
    %141 = arith.addf %133, %140 : vector<48x512xf32>
    %c1_133 = arith.constant 1 : index
    %c1_134 = arith.constant 1 : index
    %c0_135 = arith.constant 0 : index
    %c0_136 = arith.constant 0 : index
    %142 = vector.load %arg1[%c1_133, %c1_134, %c0_135, %c0_136] : memref<4x7x8x28xf32, #tpu.memory_space<vmem>>, vector<1x6x8x28xf32>
    %143 = vector.shape_cast %142 : vector<1x6x8x28xf32> to vector<6x8x28xf32>
    %144 = vector.shape_cast %143 : vector<6x8x28xf32> to vector<48x28xf32>
    %145 = arith.truncf %144 : vector<48x28xf32> to vector<48x28xbf16>
    %c2_137 = arith.constant 2 : index
    %c0_138 = arith.constant 0 : index
    %c0_139 = arith.constant 0 : index
    %146 = vector.load %arg2[%c2_137, %c0_138, %c0_139] : memref<5x28x512xbf16, #tpu.memory_space<vmem>>, vector<1x28x512xbf16>
    %147 = vector.shape_cast %146 : vector<1x28x512xbf16> to vector<28x512xbf16>
    %cst_140 = arith.constant dense<0.000000e+00> : vector<48x512xf32>
    %148 = tpu.matmul %145, %147, %cst_140 {dimension_numbers = #tpu.dot_dimension_numbers<[1], [0], [0], [1], [0, 0, 1, 1], [], []>} : vector<48x28xbf16>, vector<28x512xbf16>, vector<48x512xf32> -> vector<48x512xf32>
    %149 = arith.addf %141, %148 : vector<48x512xf32>
    %c2_141 = arith.constant 2 : index
    %c1_142 = arith.constant 1 : index
    %c0_143 = arith.constant 0 : index
    %c0_144 = arith.constant 0 : index
    %150 = vector.load %arg1[%c2_141, %c1_142, %c0_143, %c0_144] : memref<4x7x8x28xf32, #tpu.memory_space<vmem>>, vector<1x6x8x28xf32>
    %151 = vector.shape_cast %150 : vector<1x6x8x28xf32> to vector<6x8x28xf32>
    %152 = vector.shape_cast %151 : vector<6x8x28xf32> to vector<48x28xf32>
    %153 = arith.truncf %152 : vector<48x28xf32> to vector<48x28xbf16>
    %c3_145 = arith.constant 3 : index
    %c0_146 = arith.constant 0 : index
    %c0_147 = arith.constant 0 : index
    %154 = vector.load %arg2[%c3_145, %c0_146, %c0_147] : memref<5x28x512xbf16, #tpu.memory_space<vmem>>, vector<1x28x512xbf16>
    %155 = vector.shape_cast %154 : vector<1x28x512xbf16> to vector<28x512xbf16>
    %cst_148 = arith.constant dense<0.000000e+00> : vector<48x512xf32>
    %156 = tpu.matmul %153, %155, %cst_148 {dimension_numbers = #tpu.dot_dimension_numbers<[1], [0], [0], [1], [0, 0, 1, 1], [], []>} : vector<48x28xbf16>, vector<28x512xbf16>, vector<48x512xf32> -> vector<48x512xf32>
    %157 = arith.addf %149, %156 : vector<48x512xf32>
    %c3_149 = arith.constant 3 : index
    %c1_150 = arith.constant 1 : index
    %c0_151 = arith.constant 0 : index
    %c0_152 = arith.constant 0 : index
    %158 = vector.load %arg1[%c3_149, %c1_150, %c0_151, %c0_152] : memref<4x7x8x28xf32, #tpu.memory_space<vmem>>, vector<1x6x8x28xf32>
    %159 = vector.shape_cast %158 : vector<1x6x8x28xf32> to vector<6x8x28xf32>
    %160 = vector.shape_cast %159 : vector<6x8x28xf32> to vector<48x28xf32>
    %161 = arith.truncf %160 : vector<48x28xf32> to vector<48x28xbf16>
    %c4_153 = arith.constant 4 : index
    %c0_154 = arith.constant 0 : index
    %c0_155 = arith.constant 0 : index
    %162 = vector.load %arg2[%c4_153, %c0_154, %c0_155] : memref<5x28x512xbf16, #tpu.memory_space<vmem>>, vector<1x28x512xbf16>
    %163 = vector.shape_cast %162 : vector<1x28x512xbf16> to vector<28x512xbf16>
    %cst_156 = arith.constant dense<0.000000e+00> : vector<48x512xf32>
    %164 = tpu.matmul %161, %163, %cst_156 {dimension_numbers = #tpu.dot_dimension_numbers<[1], [0], [0], [1], [0, 0, 1, 1], [], []>} : vector<48x28xbf16>, vector<28x512xbf16>, vector<48x512xf32> -> vector<48x512xf32>
    %165 = arith.addf %157, %164 : vector<48x512xf32>
    %166 = arith.maximumf %126, %165 : vector<48x512xf32>
    %167 = vector.extract_strided_slice %166 {offsets = [0, 0], sizes = [48, 256], strides = [1, 1]} : vector<48x512xf32> to vector<48x256xf32>
    %168 = vector.extract_strided_slice %166 {offsets = [0, 256], sizes = [48, 256], strides = [1, 1]} : vector<48x512xf32> to vector<48x256xf32>
    %169 = arith.maximumf %167, %168 : vector<48x256xf32>
    %c0_157 = arith.constant 0 : index
    %c0_158 = arith.constant 0 : index
    %170 = vector.load %arg3[%c0_157, %c0_158] : memref<1x256xf32, #tpu.memory_space<vmem>>, vector<1x256xf32>
    %171 = vector.broadcast %170 : vector<1x256xf32> to vector<48x256xf32>
    %172 = arith.addf %169, %171 : vector<48x256xf32>
    %cst_159 = arith.constant 0.000000e+00 : f32
    %173 = vector.broadcast %cst_159 : f32 to vector<48x256xf32>
    %174 = arith.maximumf %172, %173 : vector<48x256xf32>
    %175 = arith.truncf %174 : vector<48x256xf32> to vector<48x256xbf16>
    %176 = vector.extract_strided_slice %87 {offsets = [0, 0], sizes = [32, 256], strides = [1, 1]} : vector<48x256xbf16> to vector<32x256xbf16>
    %c0_160 = arith.constant 0 : index
    %c0_161 = arith.constant 0 : index
    %c0_162 = arith.constant 0 : index
    %177 = vector.load %arg4[%c0_160, %c0_161, %c0_162] : memref<5x256x512xbf16, #tpu.memory_space<vmem>>, vector<1x256x512xbf16>
    %178 = vector.shape_cast %177 : vector<1x256x512xbf16> to vector<256x512xbf16>
    %cst_163 = arith.constant dense<0.000000e+00> : vector<32x512xf32>
    %179 = tpu.matmul %176, %178, %cst_163 {dimension_numbers = #tpu.dot_dimension_numbers<[1], [0], [0], [1], [0, 0, 1, 1], [], []>} : vector<32x256xbf16>, vector<256x512xbf16>, vector<32x512xf32> -> vector<32x512xf32>
    %180 = vector.extract_strided_slice %175 {offsets = [0, 0], sizes = [32, 256], strides = [1, 1]} : vector<48x256xbf16> to vector<32x256xbf16>
    %c1_164 = arith.constant 1 : index
    %c0_165 = arith.constant 0 : index
    %c0_166 = arith.constant 0 : index
    %181 = vector.load %arg4[%c1_164, %c0_165, %c0_166] : memref<5x256x512xbf16, #tpu.memory_space<vmem>>, vector<1x256x512xbf16>
    %182 = vector.shape_cast %181 : vector<1x256x512xbf16> to vector<256x512xbf16>
    %cst_167 = arith.constant dense<0.000000e+00> : vector<32x512xf32>
    %183 = tpu.matmul %180, %182, %cst_167 {dimension_numbers = #tpu.dot_dimension_numbers<[1], [0], [0], [1], [0, 0, 1, 1], [], []>} : vector<32x256xbf16>, vector<256x512xbf16>, vector<32x512xf32> -> vector<32x512xf32>
    %184 = arith.addf %179, %183 : vector<32x512xf32>
    %185 = vector.extract_strided_slice %87 {offsets = [8, 0], sizes = [32, 256], strides = [1, 1]} : vector<48x256xbf16> to vector<32x256xbf16>
    %c2_168 = arith.constant 2 : index
    %c0_169 = arith.constant 0 : index
    %c0_170 = arith.constant 0 : index
    %186 = vector.load %arg4[%c2_168, %c0_169, %c0_170] : memref<5x256x512xbf16, #tpu.memory_space<vmem>>, vector<1x256x512xbf16>
    %187 = vector.shape_cast %186 : vector<1x256x512xbf16> to vector<256x512xbf16>
    %cst_171 = arith.constant dense<0.000000e+00> : vector<32x512xf32>
    %188 = tpu.matmul %185, %187, %cst_171 {dimension_numbers = #tpu.dot_dimension_numbers<[1], [0], [0], [1], [0, 0, 1, 1], [], []>} : vector<32x256xbf16>, vector<256x512xbf16>, vector<32x512xf32> -> vector<32x512xf32>
    %189 = arith.addf %184, %188 : vector<32x512xf32>
    %190 = vector.extract_strided_slice %175 {offsets = [8, 0], sizes = [32, 256], strides = [1, 1]} : vector<48x256xbf16> to vector<32x256xbf16>
    %c3_172 = arith.constant 3 : index
    %c0_173 = arith.constant 0 : index
    %c0_174 = arith.constant 0 : index
    %191 = vector.load %arg4[%c3_172, %c0_173, %c0_174] : memref<5x256x512xbf16, #tpu.memory_space<vmem>>, vector<1x256x512xbf16>
    %192 = vector.shape_cast %191 : vector<1x256x512xbf16> to vector<256x512xbf16>
    %cst_175 = arith.constant dense<0.000000e+00> : vector<32x512xf32>
    %193 = tpu.matmul %190, %192, %cst_175 {dimension_numbers = #tpu.dot_dimension_numbers<[1], [0], [0], [1], [0, 0, 1, 1], [], []>} : vector<32x256xbf16>, vector<256x512xbf16>, vector<32x512xf32> -> vector<32x512xf32>
    %194 = arith.addf %189, %193 : vector<32x512xf32>
    %195 = vector.extract_strided_slice %87 {offsets = [16, 0], sizes = [32, 256], strides = [1, 1]} : vector<48x256xbf16> to vector<32x256xbf16>
    %c4_176 = arith.constant 4 : index
    %c0_177 = arith.constant 0 : index
    %c0_178 = arith.constant 0 : index
    %196 = vector.load %arg4[%c4_176, %c0_177, %c0_178] : memref<5x256x512xbf16, #tpu.memory_space<vmem>>, vector<1x256x512xbf16>
    %197 = vector.shape_cast %196 : vector<1x256x512xbf16> to vector<256x512xbf16>
    %cst_179 = arith.constant dense<0.000000e+00> : vector<32x512xf32>
    %198 = tpu.matmul %195, %197, %cst_179 {dimension_numbers = #tpu.dot_dimension_numbers<[1], [0], [0], [1], [0, 0, 1, 1], [], []>} : vector<32x256xbf16>, vector<256x512xbf16>, vector<32x512xf32> -> vector<32x512xf32>
    %199 = arith.addf %194, %198 : vector<32x512xf32>
    %200 = vector.extract_strided_slice %175 {offsets = [0, 0], sizes = [32, 256], strides = [1, 1]} : vector<48x256xbf16> to vector<32x256xbf16>
    %c0_180 = arith.constant 0 : index
    %c0_181 = arith.constant 0 : index
    %c0_182 = arith.constant 0 : index
    %201 = vector.load %arg4[%c0_180, %c0_181, %c0_182] : memref<5x256x512xbf16, #tpu.memory_space<vmem>>, vector<1x256x512xbf16>
    %202 = vector.shape_cast %201 : vector<1x256x512xbf16> to vector<256x512xbf16>
    %cst_183 = arith.constant dense<0.000000e+00> : vector<32x512xf32>
    %203 = tpu.matmul %200, %202, %cst_183 {dimension_numbers = #tpu.dot_dimension_numbers<[1], [0], [0], [1], [0, 0, 1, 1], [], []>} : vector<32x256xbf16>, vector<256x512xbf16>, vector<32x512xf32> -> vector<32x512xf32>
    %204 = vector.extract_strided_slice %87 {offsets = [8, 0], sizes = [32, 256], strides = [1, 1]} : vector<48x256xbf16> to vector<32x256xbf16>
    %c1_184 = arith.constant 1 : index
    %c0_185 = arith.constant 0 : index
    %c0_186 = arith.constant 0 : index
    %205 = vector.load %arg4[%c1_184, %c0_185, %c0_186] : memref<5x256x512xbf16, #tpu.memory_space<vmem>>, vector<1x256x512xbf16>
    %206 = vector.shape_cast %205 : vector<1x256x512xbf16> to vector<256x512xbf16>
    %cst_187 = arith.constant dense<0.000000e+00> : vector<32x512xf32>
    %207 = tpu.matmul %204, %206, %cst_187 {dimension_numbers = #tpu.dot_dimension_numbers<[1], [0], [0], [1], [0, 0, 1, 1], [], []>} : vector<32x256xbf16>, vector<256x512xbf16>, vector<32x512xf32> -> vector<32x512xf32>
    %208 = arith.addf %203, %207 : vector<32x512xf32>
    %209 = vector.extract_strided_slice %175 {offsets = [8, 0], sizes = [32, 256], strides = [1, 1]} : vector<48x256xbf16> to vector<32x256xbf16>
    %c2_188 = arith.constant 2 : index
    %c0_189 = arith.constant 0 : index
    %c0_190 = arith.constant 0 : index
    %210 = vector.load %arg4[%c2_188, %c0_189, %c0_190] : memref<5x256x512xbf16, #tpu.memory_space<vmem>>, vector<1x256x512xbf16>
    %211 = vector.shape_cast %210 : vector<1x256x512xbf16> to vector<256x512xbf16>
    %cst_191 = arith.constant dense<0.000000e+00> : vector<32x512xf32>
    %212 = tpu.matmul %209, %211, %cst_191 {dimension_numbers = #tpu.dot_dimension_numbers<[1], [0], [0], [1], [0, 0, 1, 1], [], []>} : vector<32x256xbf16>, vector<256x512xbf16>, vector<32x512xf32> -> vector<32x512xf32>
    %213 = arith.addf %208, %212 : vector<32x512xf32>
    %214 = vector.extract_strided_slice %87 {offsets = [16, 0], sizes = [32, 256], strides = [1, 1]} : vector<48x256xbf16> to vector<32x256xbf16>
    %c3_192 = arith.constant 3 : index
    %c0_193 = arith.constant 0 : index
    %c0_194 = arith.constant 0 : index
    %215 = vector.load %arg4[%c3_192, %c0_193, %c0_194] : memref<5x256x512xbf16, #tpu.memory_space<vmem>>, vector<1x256x512xbf16>
    %216 = vector.shape_cast %215 : vector<1x256x512xbf16> to vector<256x512xbf16>
    %cst_195 = arith.constant dense<0.000000e+00> : vector<32x512xf32>
    %217 = tpu.matmul %214, %216, %cst_195 {dimension_numbers = #tpu.dot_dimension_numbers<[1], [0], [0], [1], [0, 0, 1, 1], [], []>} : vector<32x256xbf16>, vector<256x512xbf16>, vector<32x512xf32> -> vector<32x512xf32>
    %218 = arith.addf %213, %217 : vector<32x512xf32>
    %219 = vector.extract_strided_slice %175 {offsets = [16, 0], sizes = [32, 256], strides = [1, 1]} : vector<48x256xbf16> to vector<32x256xbf16>
    %c4_196 = arith.constant 4 : index
    %c0_197 = arith.constant 0 : index
    %c0_198 = arith.constant 0 : index
    %220 = vector.load %arg4[%c4_196, %c0_197, %c0_198] : memref<5x256x512xbf16, #tpu.memory_space<vmem>>, vector<1x256x512xbf16>
    %221 = vector.shape_cast %220 : vector<1x256x512xbf16> to vector<256x512xbf16>
    %cst_199 = arith.constant dense<0.000000e+00> : vector<32x512xf32>
    %222 = tpu.matmul %219, %221, %cst_199 {dimension_numbers = #tpu.dot_dimension_numbers<[1], [0], [0], [1], [0, 0, 1, 1], [], []>} : vector<32x256xbf16>, vector<256x512xbf16>, vector<32x512xf32> -> vector<32x512xf32>
    %223 = arith.addf %218, %222 : vector<32x512xf32>
    %224 = arith.maximumf %199, %223 : vector<32x512xf32>
    %225 = vector.extract_strided_slice %224 {offsets = [0, 0], sizes = [32, 256], strides = [1, 1]} : vector<32x512xf32> to vector<32x256xf32>
    %226 = vector.extract_strided_slice %224 {offsets = [0, 256], sizes = [32, 256], strides = [1, 1]} : vector<32x512xf32> to vector<32x256xf32>
    %227 = arith.maximumf %225, %226 : vector<32x256xf32>
    %c0_200 = arith.constant 0 : index
    %c0_201 = arith.constant 0 : index
    %228 = vector.load %arg5[%c0_200, %c0_201] : memref<1x256xf32, #tpu.memory_space<vmem>>, vector<1x256xf32>
    %229 = vector.broadcast %228 : vector<1x256xf32> to vector<32x256xf32>
    %230 = arith.addf %227, %229 : vector<32x256xf32>
    %cst_202 = arith.constant 0.000000e+00 : f32
    %231 = vector.broadcast %cst_202 : f32 to vector<32x256xf32>
    %232 = arith.maximumf %230, %231 : vector<32x256xf32>
    %233 = arith.truncf %232 : vector<32x256xf32> to vector<32x256xbf16>
    %234 = vector.extract_strided_slice %233 {offsets = [0, 0], sizes = [8, 256], strides = [1, 1]} : vector<32x256xbf16> to vector<8x256xbf16>
    %c0_203 = arith.constant 0 : index
    %c0_204 = arith.constant 0 : index
    %c0_205 = arith.constant 0 : index
    %235 = vector.load %arg6[%c0_203, %c0_204, %c0_205] : memref<4x256x500xbf16, #tpu.memory_space<vmem>>, vector<1x256x500xbf16>
    %236 = vector.shape_cast %235 : vector<1x256x500xbf16> to vector<256x500xbf16>
    %cst_206 = arith.constant dense<0.000000e+00> : vector<8x500xf32>
    %237 = tpu.matmul %234, %236, %cst_206 {dimension_numbers = #tpu.dot_dimension_numbers<[1], [0], [0], [1], [0, 0, 1, 1], [], []>} : vector<8x256xbf16>, vector<256x500xbf16>, vector<8x500xf32> -> vector<8x500xf32>
    %238 = vector.extract_strided_slice %233 {offsets = [8, 0], sizes = [8, 256], strides = [1, 1]} : vector<32x256xbf16> to vector<8x256xbf16>
    %c1_207 = arith.constant 1 : index
    %c0_208 = arith.constant 0 : index
    %c0_209 = arith.constant 0 : index
    %239 = vector.load %arg6[%c1_207, %c0_208, %c0_209] : memref<4x256x500xbf16, #tpu.memory_space<vmem>>, vector<1x256x500xbf16>
    %240 = vector.shape_cast %239 : vector<1x256x500xbf16> to vector<256x500xbf16>
    %cst_210 = arith.constant dense<0.000000e+00> : vector<8x500xf32>
    %241 = tpu.matmul %238, %240, %cst_210 {dimension_numbers = #tpu.dot_dimension_numbers<[1], [0], [0], [1], [0, 0, 1, 1], [], []>} : vector<8x256xbf16>, vector<256x500xbf16>, vector<8x500xf32> -> vector<8x500xf32>
    %242 = arith.addf %237, %241 : vector<8x500xf32>
    %243 = vector.extract_strided_slice %233 {offsets = [16, 0], sizes = [8, 256], strides = [1, 1]} : vector<32x256xbf16> to vector<8x256xbf16>
    %c2_211 = arith.constant 2 : index
    %c0_212 = arith.constant 0 : index
    %c0_213 = arith.constant 0 : index
    %244 = vector.load %arg6[%c2_211, %c0_212, %c0_213] : memref<4x256x500xbf16, #tpu.memory_space<vmem>>, vector<1x256x500xbf16>
    %245 = vector.shape_cast %244 : vector<1x256x500xbf16> to vector<256x500xbf16>
    %cst_214 = arith.constant dense<0.000000e+00> : vector<8x500xf32>
    %246 = tpu.matmul %243, %245, %cst_214 {dimension_numbers = #tpu.dot_dimension_numbers<[1], [0], [0], [1], [0, 0, 1, 1], [], []>} : vector<8x256xbf16>, vector<256x500xbf16>, vector<8x500xf32> -> vector<8x500xf32>
    %247 = arith.addf %242, %246 : vector<8x500xf32>
    %248 = vector.extract_strided_slice %233 {offsets = [24, 0], sizes = [8, 256], strides = [1, 1]} : vector<32x256xbf16> to vector<8x256xbf16>
    %c3_215 = arith.constant 3 : index
    %c0_216 = arith.constant 0 : index
    %c0_217 = arith.constant 0 : index
    %249 = vector.load %arg6[%c3_215, %c0_216, %c0_217] : memref<4x256x500xbf16, #tpu.memory_space<vmem>>, vector<1x256x500xbf16>
    %250 = vector.shape_cast %249 : vector<1x256x500xbf16> to vector<256x500xbf16>
    %cst_218 = arith.constant dense<0.000000e+00> : vector<8x500xf32>
    %251 = tpu.matmul %248, %250, %cst_218 {dimension_numbers = #tpu.dot_dimension_numbers<[1], [0], [0], [1], [0, 0, 1, 1], [], []>} : vector<8x256xbf16>, vector<256x500xbf16>, vector<8x500xf32> -> vector<8x500xf32>
    %252 = arith.addf %247, %251 : vector<8x500xf32>
    %c0_219 = arith.constant 0 : index
    %c0_220 = arith.constant 0 : index
    %253 = vector.load %arg7[%c0_219, %c0_220] : memref<1x500xf32, #tpu.memory_space<vmem>>, vector<1x500xf32>
    %254 = vector.broadcast %253 : vector<1x500xf32> to vector<8x500xf32>
    %255 = arith.addf %252, %254 : vector<8x500xf32>
    %cst_221 = arith.constant 0.000000e+00 : f32
    %256 = vector.broadcast %cst_221 : f32 to vector<8x500xf32>
    %257 = arith.maximumf %255, %256 : vector<8x500xf32>
    %258 = arith.truncf %257 : vector<8x500xf32> to vector<8x500xbf16>
    %c0_222 = arith.constant 0 : index
    %c0_223 = arith.constant 0 : index
    %259 = vector.load %arg8[%c0_222, %c0_223] : memref<500x10xbf16, #tpu.memory_space<vmem>>, vector<500x10xbf16>
    %cst_224 = arith.constant dense<0.000000e+00> : vector<8x10xf32>
    %260 = tpu.matmul %258, %259, %cst_224 {dimension_numbers = #tpu.dot_dimension_numbers<[1], [0], [0], [1], [0, 0, 1, 1], [], []>} : vector<8x500xbf16>, vector<500x10xbf16>, vector<8x10xf32> -> vector<8x10xf32>
    %c0_225 = arith.constant 0 : index
    %c0_226 = arith.constant 0 : index
    %261 = vector.load %arg9[%c0_225, %c0_226] : memref<1x10xf32, #tpu.memory_space<vmem>>, vector<1x10xf32>
    %262 = vector.broadcast %261 : vector<1x10xf32> to vector<8x10xf32>
    %263 = arith.addf %260, %262 : vector<8x10xf32>
    %c0_227 = arith.constant 0 : index
    %c0_228 = arith.constant 0 : index
    %264 = vector.load %arg10[%c0_227, %c0_228] : memref<8x10xf32, #tpu.memory_space<vmem>>, vector<8x10xf32>
    tpu.vector_store %arg10[%c0_227, %c0_228], %263 {strides = array<i32>} : memref<8x10xf32, #tpu.memory_space<vmem>>, vector<8x10xf32>,
    return
  }
  func.func @transform_0(%arg0: i32) -> (i32, i32, i32, i32) {
    %c0_i32 = arith.constant 0 : i32
    %c0_i32_0 = arith.constant 0 : i32
    %c0_i32_1 = arith.constant 0 : i32
    %c0_i32_2 = arith.constant 0 : i32
    return %c0_i32, %c0_i32_0, %arg0, %c0_i32_1 : i32, i32, i32, i32
  }
  func.func @transform_1(%arg0: i32) -> (i32, i32, i32) {
    %c0_i32 = arith.constant 0 : i32
    %c0_i32_0 = arith.constant 0 : i32
    %c0_i32_1 = arith.constant 0 : i32
    %c0_i32_2 = arith.constant 0 : i32
    return %c0_i32, %c0_i32_0, %c0_i32_1 : i32, i32, i32
  }
  func.func @transform_2(%arg0: i32) -> (i32, i32) {
    %c0_i32 = arith.constant 0 : i32
    %c0_i32_0 = arith.constant 0 : i32
    %c0_i32_1 = arith.constant 0 : i32
    return %c0_i32, %c0_i32_0 : i32, i32
  }
  func.func @transform_3(%arg0: i32) -> (i32, i32, i32) {
    %c0_i32 = arith.constant 0 : i32
    %c0_i32_0 = arith.constant 0 : i32
    %c0_i32_1 = arith.constant 0 : i32
    %c0_i32_2 = arith.constant 0 : i32
    return %c0_i32, %c0_i32_0, %c0_i32_1 : i32, i32, i32
  }
  func.func @transform_4(%arg0: i32) -> (i32, i32) {
    %c0_i32 = arith.constant 0 : i32
    %c0_i32_0 = arith.constant 0 : i32
    %c0_i32_1 = arith.constant 0 : i32
    return %c0_i32, %c0_i32_0 : i32, i32
  }
  func.func @transform_5(%arg0: i32) -> (i32, i32, i32) {
    %c0_i32 = arith.constant 0 : i32
    %c0_i32_0 = arith.constant 0 : i32
    %c0_i32_1 = arith.constant 0 : i32
    %c0_i32_2 = arith.constant 0 : i32
    return %c0_i32, %c0_i32_0, %c0_i32_1 : i32, i32, i32
  }
  func.func @transform_6(%arg0: i32) -> (i32, i32) {
    %c0_i32 = arith.constant 0 : i32
    %c0_i32_0 = arith.constant 0 : i32
    %c0_i32_1 = arith.constant 0 : i32
    return %c0_i32, %c0_i32_0 : i32, i32
  }
  func.func @transform_7(%arg0: i32) -> (i32, i32) {
    %c0_i32 = arith.constant 0 : i32
    %c0_i32_0 = arith.constant 0 : i32
    %c0_i32_1 = arith.constant 0 : i32
    return %c0_i32, %c0_i32_0 : i32, i32
  }
  func.func @transform_8(%arg0: i32) -> (i32, i32) {
    %c0_i32 = arith.constant 0 : i32
    %c0_i32_0 = arith.constant 0 : i32
    %c0_i32_1 = arith.constant 0 : i32
    return %c0_i32, %c0_i32_0 : i32, i32
  }
  func.func @transform_9(%arg0: i32) -> (i32, i32) {
    %c0_i32 = arith.constant 0 : i32
    %c0_i32_0 = arith.constant 0 : i32
    return %arg0, %c0_i32 : i32, i32
  }
}

</mosaic_0001>

<llo_original>
// kernel: net_forward.1
$region0: #{net_forward.1}
  #allocation0 [shape = 'u32[]', space=smem, size = 0x4, offset = 0x4, fixed_abs, tag = 'smem constant byte address 0x4 - core index']
  #allocation1 [shape = 'u32[72,128]{1,0:T(1,128)}', space=vmem, size = 0x9000, scoped, tag = 'internal scratch']
  %s0 = inlined_call_operand.vmem [shape: f32[4,7,8,28], index: 0, kind: input, shape index: {}]
  %s1 = inlined_call_operand.vmem [shape: bf16[5,28,512], index: 1, kind: input, shape index: {}]
  %s2 = inlined_call_operand.vmem [shape: f32[1,256], index: 2, kind: input, shape index: {}]
  %s3 = inlined_call_operand.vmem [shape: bf16[5,256,512], index: 3, kind: input, shape index: {}]
  %s4 = inlined_call_operand.vmem [shape: f32[1,256], index: 4, kind: input, shape index: {}]
  %s5 = inlined_call_operand.vmem [shape: bf16[4,256,500], index: 5, kind: input, shape index: {}]
  %s6 = inlined_call_operand.vmem [shape: f32[1,500], index: 6, kind: input, shape index: {}]
  %s7 = inlined_call_operand.vmem [shape: bf16[500,10], index: 7, kind: input, shape index: {}]
  %s8 = inlined_call_operand.vmem [shape: f32[1,10], index: 8, kind: input, shape index: {}]
  %s9 = inlined_call_operand.hbm [shape: f32[8,10], index: 9, kind: output, shape index: {}]
  %s10 = sld [smem:[#allocation0]]
  $region46: #{net_forward.1} parent=0
    _
  %s12 = ssub.s32 1, %s10
  %s13 = scalar_select 0, %s12, %s10
  $region1: #{net_forward.1} parent=0
    #allocation2 [shape = 'u8[4096]{0}', space=vmem, size = 0x1000, scoped, tag = 'output window, operand 0, single buffered']
    #allocation3 [shape = 's32[1]{0}', space=sflag, size = 0x4, scoped, tag = 'scoped memory for net_forward.1']
    %14 = vsyncpa [#allocation3], 0
    // Predicated region
    $region2: #{net_forward.1} parent=1 // pred_check
      _
    $region3: #{net_forward.1} parent=1 // pred_check_branch
      %16 = sbr.rel (0) target = $region5
    $region4: #{net_forward.1} parent=1 // pred_region
      _
    $region5: #{net_forward.1} parent=1 // pred_fallthru
      _
    // Predicated region
    $region6: #{net_forward.1} parent=1 // pred_check
      _
    $region7: #{net_forward.1} parent=1 // pred_check_branch
      %18 = sbr.rel (0) target = $region9
    $region8: #{net_forward.1} parent=1 // pred_region
      _
    $region9: #{net_forward.1} parent=1 // pred_fallthru
      _
    // Predicated region
    $region10: #{net_forward.1} parent=1 // pred_check
      _
    $region11: #{net_forward.1} parent=1 // pred_check_branch
      %20 = sbr.rel (0) target = $region13
    $region12: #{net_forward.1} parent=1 // pred_region
      _
    $region13: #{net_forward.1} parent=1 // pred_fallthru
      _
    // Predicated region
    $region14: #{net_forward.1} parent=1 // pred_check
      _
    $region15: #{net_forward.1} parent=1 // pred_check_branch
      %22 = sbr.rel (0) target = $region17
    $region16: #{net_forward.1} parent=1 // pred_region
      _
    $region17: #{net_forward.1} parent=1 // pred_fallthru
      _
    // Predicated region
    $region18: #{net_forward.1} parent=1 // pred_check
      _
    $region19: #{net_forward.1} parent=1 // pred_check_branch
      %24 = sbr.rel (0) target = $region21
    $region20: #{net_forward.1} parent=1 // pred_region
      _
    $region21: #{net_forward.1} parent=1 // pred_fallthru
      _
    // Predicated region
    $region22: #{net_forward.1} parent=1 // pred_check
      _
    $region23: #{net_forward.1} parent=1 // pred_check_branch
      %26 = sbr.rel (0) target = $region25
    $region24: #{net_forward.1} parent=1 // pred_region
      _
    $region25: #{net_forward.1} parent=1 // pred_fallthru
      _
    // Predicated region
    $region26: #{net_forward.1} parent=1 // pred_check
      _
    $region27: #{net_forward.1} parent=1 // pred_check_branch
      %28 = sbr.rel (0) target = $region29
    $region28: #{net_forward.1} parent=1 // pred_region
      _
    $region29: #{net_forward.1} parent=1 // pred_fallthru
      _
    // Predicated region
    $region30: #{net_forward.1} parent=1 // pred_check
      _
    $region31: #{net_forward.1} parent=1 // pred_check_branch
      %30 = sbr.rel (0) target = $region33
    $region32: #{net_forward.1} parent=1 // pred_region
      _
    $region33: #{net_forward.1} parent=1 // pred_fallthru
      _
    // Predicated region
    $region34: #{net_forward.1} parent=1 // pred_check
      _
    $region35: #{net_forward.1} parent=1 // pred_check_branch
      %32 = sbr.rel (0) target = $region37
    $region36: #{net_forward.1} parent=1 // pred_region
      _
    $region37: #{net_forward.1} parent=1 // pred_fallthru
      _
    %v34 = vld [vmem:[%s0] sm:$0xff]
    %v35 = vld [vmem:[%s0 + $0x8] sm:$0xff]
    %v36 = vld [vmem:[%s0 + $0x10] sm:$0xff]
    %v37 = vld [vmem:[%s0 + $0x18] sm:$0xff]
    %v38 = vld [vmem:[%s0 + $0x20] sm:$0xff]
    %v39 = vld [vmem:[%s0 + $0x28] sm:$0xff]
    %v40 = vpack.c.bf16 %v35, %v34
    %v41 = vpack.c.bf16 %v37, %v36
    %v42 = vpack.c.bf16 %v39, %v38
    %v43 = vld [vmem:[%s1] sm:$0xff]
    %v44 = vld [vmem:[%s1 + $0x8] sm:$0xff]
    %v45 = vld [vmem:[%s1 + $0x10] sm:$0xff]
    %v46 = vld [vmem:[%s1 + $0x18] sm:$0xff]
    %v47 = vld [vmem:[%s1 + $0x20] sm:$0xff]
    %v48 = vld [vmem:[%s1 + $0x28] sm:$0xff]
    %v49 = vld [vmem:[%s1 + $0x30] sm:$0x33]
    %v50 = vld [vmem:[%s1 + $0x38] sm:$0x33]
    %s51 = scalar_lea.vmem %s0, 56
    %v52 = vld [vmem:[%s51] sm:$0xff]
    %v53 = vld [vmem:[%s51 + $0x8] sm:$0xff]
    %v54 = vld [vmem:[%s51 + $0x10] sm:$0xff]
    %v55 = vld [vmem:[%s51 + $0x18] sm:$0xff]
    %v56 = vld [vmem:[%s51 + $0x20] sm:$0xff]
    %v57 = vld [vmem:[%s51 + $0x28] sm:$0xff]
    %v58 = vpack.c.bf16 %v53, %v52
    %v59 = vpack.c.bf16 %v55, %v54
    %v60 = vpack.c.bf16 %v57, %v56
    %s61 = scalar_lea.vmem %s1, 64
    %v62 = vld [vmem:[%s61] sm:$0xff]
    %v63 = vld [vmem:[%s61 + $0x8] sm:$0xff]
    %v64 = vld [vmem:[%s61 + $0x10] sm:$0xff]
    %v65 = vld [vmem:[%s61 + $0x18] sm:$0xff]
    %v66 = vld [vmem:[%s61 + $0x20] sm:$0xff]
    %v67 = vld [vmem:[%s61 + $0x28] sm:$0xff]
    %v68 = vld [vmem:[%s61 + $0x30] sm:$0x33]
    %v69 = vld [vmem:[%s61 + $0x38] sm:$0x33]
    %v78 = vunpack.c.l.b16 %v62
    %v79 = vunpack.c.h.b16 %v62
    %v80 = vunpack.c.l.b16 %v63
    %v81 = vunpack.c.h.b16 %v63
    %v82 = vunpack.c.l.b16 %v64
    %v83 = vunpack.c.h.b16 %v64
    %v84 = vunpack.c.l.b16 %v65
    %v85 = vunpack.c.h.b16 %v65
    %v86 = vunpack.c.l.b16 %v66
    %v87 = vunpack.c.h.b16 %v66
    %v88 = vunpack.c.l.b16 %v67
    %v89 = vunpack.c.h.b16 %v67
    %v90 = vunpack.c.l.b16 %v68
    %v91 = vunpack.c.h.b16 %v68
    %v92 = vunpack.c.l.b16 %v69
    %v93 = vunpack.c.h.b16 %v69
    %v94 = vpack.c.b16 %v82, %v78
    %v95 = vpack.c.b16 %v83, %v79
    %v96 = vpack.c.b16 %v84, %v80
    %v97 = vpack.c.b16 %v85, %v81
    %v98 = vpack.c.b16 %v90, %v86
    %v99 = vpack.c.b16 %v91, %v87
    %v100 = vpack.c.b16 %v92, %v88
    %v101 = vpack.c.b16 %v93, %v89
    %vm106 = vcmask 228352
    %v108 = vsel %vm106, %v58, 0
    %v111 = vsel %vm106, %v59, 0
    %v114 = vsel %vm106, %v60, 0
    %vm116 = vcmask 1045504
    %v118 = vsel %vm116, %v98, 0
    %v121 = vsel %vm116, %v99, 0
    %v124 = vsel %vm116, %v100, 0
    %v127 = vsel %vm116, %v101, 0
    %129 = vmatpush.bf16.msra.mxu0 0
    %130 = vmatpush.bf16.msra.mxu0 0
    %131 = vmatpush.bf16.msra.mxu0 0
    %132 = vmatpush.bf16.msra.mxu0 0
    %133 = vmatpush.bf16.msra.mxu0 0
    %134 = vmatpush.bf16.msra.mxu0 0
    %135 = vmatpush.bf16.msra.mxu0 %v118
    %136 = vmatpush.bf16.msra.mxu0 %v94
    %137 = vmatmul.bf16.gmra.mxu0 %v108
    %v138 = vpop.f32.mrf.mxu0
    %v139 = vadd.f32 0.0, %v138
    %v140 = vpop.f32.mrf.mxu0
    %v141 = vadd.f32 0.0, %v140
    %142 = vmatmul.bf16.gmra.mxu0 %v111
    %v143 = vpop.f32.mrf.mxu0
    %v144 = vadd.f32 0.0, %v143
    %v145 = vpop.f32.mrf.mxu0
    %v146 = vadd.f32 0.0, %v145
    %147 = vmatmul.bf16.gmra.mxu0 %v114
    %v148 = vpop.f32.mrf.mxu0
    %v149 = vadd.f32 0.0, %v148
    %v150 = vpop.f32.mrf.mxu0
    %v151 = vadd.f32 0.0, %v150
    %152 = vdwg.mxu0
    %153 = vmatpush.bf16.msra.mxu0 0
    %154 = vmatpush.bf16.msra.mxu0 0
    %155 = vmatpush.bf16.msra.mxu0 0
    %156 = vmatpush.bf16.msra.mxu0 0
    %157 = vmatpush.bf16.msra.mxu0 0
    %158 = vmatpush.bf16.msra.mxu0 0
    %159 = vmatpush.bf16.msra.mxu0 %v121
    %160 = vmatpush.bf16.msra.mxu0 %v95
    %161 = vmatmul.bf16.gmra.mxu0 %v108
    %v162 = vpop.f32.mrf.mxu0
    %v163 = vadd.f32 0.0, %v162
    %v164 = vpop.f32.mrf.mxu0
    %v165 = vadd.f32 0.0, %v164
    %166 = vmatmul.bf16.gmra.mxu0 %v111
    %v167 = vpop.f32.mrf.mxu0
    %v168 = vadd.f32 0.0, %v167
    %v169 = vpop.f32.mrf.mxu0
    %v170 = vadd.f32 0.0, %v169
    %171 = vmatmul.bf16.gmra.mxu0 %v114
    %v172 = vpop.f32.mrf.mxu0
    %v173 = vadd.f32 0.0, %v172
    %v174 = vpop.f32.mrf.mxu0
    %v175 = vadd.f32 0.0, %v174
    %176 = vdwg.mxu0
    %177 = vmatpush.bf16.msra.mxu0 0
    %178 = vmatpush.bf16.msra.mxu0 0
    %179 = vmatpush.bf16.msra.mxu0 0
    %180 = vmatpush.bf16.msra.mxu0 0
    %181 = vmatpush.bf16.msra.mxu0 0
    %182 = vmatpush.bf16.msra.mxu0 0
    %183 = vmatpush.bf16.msra.mxu0 %v124
    %184 = vmatpush.bf16.msra.mxu0 %v96
    %185 = vmatmul.bf16.gmra.mxu0 %v108
    %v186 = vpop.f32.mrf.mxu0
    %v187 = vadd.f32 0.0, %v186
    %v188 = vpop.f32.mrf.mxu0
    %v189 = vadd.f32 0.0, %v188
    %190 = vmatmul.bf16.gmra.mxu0 %v111
    %v191 = vpop.f32.mrf.mxu0
    %v192 = vadd.f32 0.0, %v191
    %v193 = vpop.f32.mrf.mxu0
    %v194 = vadd.f32 0.0, %v193
    %195 = vmatmul.bf16.gmra.mxu0 %v114
    %v196 = vpop.f32.mrf.mxu0
    %v197 = vadd.f32 0.0, %v196
    %v198 = vpop.f32.mrf.mxu0
    %v199 = vadd.f32 0.0, %v198
    %200 = vdwg.mxu0
    %201 = vmatpush.bf16.msra.mxu0 0
    %202 = vmatpush.bf16.msra.mxu0 0
    %203 = vmatpush.bf16.msra.mxu0 0
    %204 = vmatpush.bf16.msra.mxu0 0
    %205 = vmatpush.bf16.msra.mxu0 0
    %206 = vmatpush.bf16.msra.mxu0 0
    %207 = vmatpush.bf16.msra.mxu0 %v127
    %208 = vmatpush.bf16.msra.mxu0 %v97
    %209 = vmatmul.bf16.gmra.mxu0 %v108
    %v210 = vpop.f32.mrf.mxu0
    %v211 = vadd.f32 0.0, %v210
    %v212 = vpop.f32.mrf.mxu0
    %v213 = vadd.f32 0.0, %v212
    %214 = vmatmul.bf16.gmra.mxu0 %v111
    %v215 = vpop.f32.mrf.mxu0
    %v216 = vadd.f32 0.0, %v215
    %v217 = vpop.f32.mrf.mxu0
    %v218 = vadd.f32 0.0, %v217
    %219 = vmatmul.bf16.gmra.mxu0 %v114
    %v220 = vpop.f32.mrf.mxu0
    %v221 = vadd.f32 0.0, %v220
    %v222 = vpop.f32.mrf.mxu0
    %v223 = vadd.f32 0.0, %v222
    %224 = vdwg.mxu0
    %v233 = vunpack.c.l.b16 %v43
    %v234 = vunpack.c.h.b16 %v43
    %v235 = vunpack.c.l.b16 %v44
    %v236 = vunpack.c.h.b16 %v44
    %v237 = vunpack.c.l.b16 %v45
    %v238 = vunpack.c.h.b16 %v45
    %v239 = vunpack.c.l.b16 %v46
    %v240 = vunpack.c.h.b16 %v46
    %v241 = vunpack.c.l.b16 %v47
    %v242 = vunpack.c.h.b16 %v47
    %v243 = vunpack.c.l.b16 %v48
    %v244 = vunpack.c.h.b16 %v48
    %v245 = vunpack.c.l.b16 %v49
    %v246 = vunpack.c.h.b16 %v49
    %v247 = vunpack.c.l.b16 %v50
    %v248 = vunpack.c.h.b16 %v50
    %v249 = vpack.c.b16 %v237, %v233
    %v250 = vpack.c.b16 %v238, %v234
    %v251 = vpack.c.b16 %v239, %v235
    %v252 = vpack.c.b16 %v240, %v236
    %v253 = vpack.c.b16 %v245, %v241
    %v254 = vpack.c.b16 %v246, %v242
    %v255 = vpack.c.b16 %v247, %v243
    %v256 = vpack.c.b16 %v248, %v244
    %v262 = vsel %vm106, %v40, 0
    %v265 = vsel %vm106, %v41, 0
    %v268 = vsel %vm106, %v42, 0
    %v271 = vsel %vm116, %v253, 0
    %v274 = vsel %vm116, %v254, 0
    %v277 = vsel %vm116, %v255, 0
    %v280 = vsel %vm116, %v256, 0
    %282 = vmatpush.bf16.msra.mxu0 0
    %283 = vmatpush.bf16.msra.mxu0 0
    %284 = vmatpush.bf16.msra.mxu0 0
    %285 = vmatpush.bf16.msra.mxu0 0
    %286 = vmatpush.bf16.msra.mxu0 0
    %287 = vmatpush.bf16.msra.mxu0 0
    %288 = vmatpush.bf16.msra.mxu0 %v271
    %289 = vmatpush.bf16.msra.mxu0 %v249
    %290 = vmatmul.bf16.gmra.mxu0 %v262
    %v291 = vpop.f32.mrf.mxu0
    %v292 = vadd.f32 %v139, %v291
    %v293 = vpop.f32.mrf.mxu0
    %v294 = vadd.f32 %v141, %v293
    %295 = vmatmul.bf16.gmra.mxu0 %v265
    %v296 = vpop.f32.mrf.mxu0
    %v297 = vadd.f32 %v144, %v296
    %v298 = vpop.f32.mrf.mxu0
    %v299 = vadd.f32 %v146, %v298
    %300 = vmatmul.bf16.gmra.mxu0 %v268
    %v301 = vpop.f32.mrf.mxu0
    %v302 = vadd.f32 %v149, %v301
    %v303 = vpop.f32.mrf.mxu0
    %v304 = vadd.f32 %v151, %v303
    %305 = vdwg.mxu0
    %306 = vmatpush.bf16.msra.mxu0 0
    %307 = vmatpush.bf16.msra.mxu0 0
    %308 = vmatpush.bf16.msra.mxu0 0
    %309 = vmatpush.bf16.msra.mxu0 0
    %310 = vmatpush.bf16.msra.mxu0 0
    %311 = vmatpush.bf16.msra.mxu0 0
    %312 = vmatpush.bf16.msra.mxu0 %v274
    %313 = vmatpush.bf16.msra.mxu0 %v250
    %314 = vmatmul.bf16.gmra.mxu0 %v262
    %v315 = vpop.f32.mrf.mxu0
    %v316 = vadd.f32 %v163, %v315
    %v317 = vpop.f32.mrf.mxu0
    %v318 = vadd.f32 %v165, %v317
    %319 = vmatmul.bf16.gmra.mxu0 %v265
    %v320 = vpop.f32.mrf.mxu0
    %v321 = vadd.f32 %v168, %v320
    %v322 = vpop.f32.mrf.mxu0
    %v323 = vadd.f32 %v170, %v322
    %324 = vmatmul.bf16.gmra.mxu0 %v268
    %v325 = vpop.f32.mrf.mxu0
    %v326 = vadd.f32 %v173, %v325
    %v327 = vpop.f32.mrf.mxu0
    %v328 = vadd.f32 %v175, %v327
    %329 = vdwg.mxu0
    %330 = vmatpush.bf16.msra.mxu0 0
    %331 = vmatpush.bf16.msra.mxu0 0
    %332 = vmatpush.bf16.msra.mxu0 0
    %333 = vmatpush.bf16.msra.mxu0 0
    %334 = vmatpush.bf16.msra.mxu0 0
    %335 = vmatpush.bf16.msra.mxu0 0
    %336 = vmatpush.bf16.msra.mxu0 %v277
    %337 = vmatpush.bf16.msra.mxu0 %v251
    %338 = vmatmul.bf16.gmra.mxu0 %v262
    %v339 = vpop.f32.mrf.mxu0
    %v340 = vadd.f32 %v187, %v339
    %v341 = vpop.f32.mrf.mxu0
    %v342 = vadd.f32 %v189, %v341
    %343 = vmatmul.bf16.gmra.mxu0 %v265
    %v344 = vpop.f32.mrf.mxu0
    %v345 = vadd.f32 %v192, %v344
    %v346 = vpop.f32.mrf.mxu0
    %v347 = vadd.f32 %v194, %v346
    %348 = vmatmul.bf16.gmra.mxu0 %v268
    %v349 = vpop.f32.mrf.mxu0
    %v350 = vadd.f32 %v197, %v349
    %v351 = vpop.f32.mrf.mxu0
    %v352 = vadd.f32 %v199, %v351
    %353 = vdwg.mxu0
    %354 = vmatpush.bf16.msra.mxu0 0
    %355 = vmatpush.bf16.msra.mxu0 0
    %356 = vmatpush.bf16.msra.mxu0 0
    %357 = vmatpush.bf16.msra.mxu0 0
    %358 = vmatpush.bf16.msra.mxu0 0
    %359 = vmatpush.bf16.msra.mxu0 0
    %360 = vmatpush.bf16.msra.mxu0 %v280
    %361 = vmatpush.bf16.msra.mxu0 %v252
    %362 = vmatmul.bf16.gmra.mxu0 %v262
    %v363 = vpop.f32.mrf.mxu0
    %v364 = vadd.f32 %v211, %v363
    %v365 = vpop.f32.mrf.mxu0
    %v366 = vadd.f32 %v213, %v365
    %367 = vmatmul.bf16.gmra.mxu0 %v265
    %v368 = vpop.f32.mrf.mxu0
    %v369 = vadd.f32 %v216, %v368
    %v370 = vpop.f32.mrf.mxu0
    %v371 = vadd.f32 %v218, %v370
    %372 = vmatmul.bf16.gmra.mxu0 %v268
    %v373 = vpop.f32.mrf.mxu0
    %v374 = vadd.f32 %v221, %v373
    %v375 = vpop.f32.mrf.mxu0
    %v376 = vadd.f32 %v223, %v375
    %377 = vdwg.mxu0
    %s378 = scalar_lea.vmem %s0, 112
    %v379 = vld [vmem:[%s378] sm:$0xff]
    %v380 = vld [vmem:[%s378 + $0x8] sm:$0xff]
    %v381 = vld [vmem:[%s378 + $0x10] sm:$0xff]
    %v382 = vld [vmem:[%s378 + $0x18] sm:$0xff]
    %v383 = vld [vmem:[%s378 + $0x20] sm:$0xff]
    %v384 = vld [vmem:[%s378 + $0x28] sm:$0xff]
    %v385 = vpack.c.bf16 %v380, %v379
    %v386 = vpack.c.bf16 %v382, %v381
    %v387 = vpack.c.bf16 %v384, %v383
    %s388 = scalar_lea.vmem %s1, 128
    %v389 = vld [vmem:[%s388] sm:$0xff]
    %v390 = vld [vmem:[%s388 + $0x8] sm:$0xff]
    %v391 = vld [vmem:[%s388 + $0x10] sm:$0xff]
    %v392 = vld [vmem:[%s388 + $0x18] sm:$0xff]
    %v393 = vld [vmem:[%s388 + $0x20] sm:$0xff]
    %v394 = vld [vmem:[%s388 + $0x28] sm:$0xff]
    %v395 = vld [vmem:[%s388 + $0x30] sm:$0x33]
    %v396 = vld [vmem:[%s388 + $0x38] sm:$0x33]
    %v405 = vunpack.c.l.b16 %v389
    %v406 = vunpack.c.h.b16 %v389
    %v407 = vunpack.c.l.b16 %v390
    %v408 = vunpack.c.h.b16 %v390
    %v409 = vunpack.c.l.b16 %v391
    %v410 = vunpack.c.h.b16 %v391
    %v411 = vunpack.c.l.b16 %v392
    %v412 = vunpack.c.h.b16 %v392
    %v413 = vunpack.c.l.b16 %v393
    %v414 = vunpack.c.h.b16 %v393
    %v415 = vunpack.c.l.b16 %v394
    %v416 = vunpack.c.h.b16 %v394
    %v417 = vunpack.c.l.b16 %v395
    %v418 = vunpack.c.h.b16 %v395
    %v419 = vunpack.c.l.b16 %v396
    %v420 = vunpack.c.h.b16 %v396
    %v421 = vpack.c.b16 %v409, %v405
    %v422 = vpack.c.b16 %v410, %v406
    %v423 = vpack.c.b16 %v411, %v407
    %v424 = vpack.c.b16 %v412, %v408
    %v425 = vpack.c.b16 %v417, %v413
    %v426 = vpack.c.b16 %v418, %v414
    %v427 = vpack.c.b16 %v419, %v415
    %v428 = vpack.c.b16 %v420, %v416
    %v434 = vsel %vm106, %v385, 0
    %v437 = vsel %vm106, %v386, 0
    %v440 = vsel %vm106, %v387, 0
    %v443 = vsel %vm116, %v425, 0
    %v446 = vsel %vm116, %v426, 0
    %v449 = vsel %vm116, %v427, 0
    %v452 = vsel %vm116, %v428, 0
    %454 = vmatpush.bf16.msra.mxu0 0
    %455 = vmatpush.bf16.msra.mxu0 0
    %456 = vmatpush.bf16.msra.mxu0 0
    %457 = vmatpush.bf16.msra.mxu0 0
    %458 = vmatpush.bf16.msra.mxu0 0
    %459 = vmatpush.bf16.msra.mxu0 0
    %460 = vmatpush.bf16.msra.mxu0 %v443
    %461 = vmatpush.bf16.msra.mxu0 %v421
    %462 = vmatmul.bf16.gmra.mxu0 %v434
    %v463 = vpop.f32.mrf.mxu0
    %v464 = vadd.f32 0.0, %v463
    %v465 = vpop.f32.mrf.mxu0
    %v466 = vadd.f32 0.0, %v465
    %467 = vmatmul.bf16.gmra.mxu0 %v437
    %v468 = vpop.f32.mrf.mxu0
    %v469 = vadd.f32 0.0, %v468
    %v470 = vpop.f32.mrf.mxu0
    %v471 = vadd.f32 0.0, %v470
    %472 = vmatmul.bf16.gmra.mxu0 %v440
    %v473 = vpop.f32.mrf.mxu0
    %v474 = vadd.f32 0.0, %v473
    %v475 = vpop.f32.mrf.mxu0
    %v476 = vadd.f32 0.0, %v475
    %477 = vdwg.mxu0
    %478 = vmatpush.bf16.msra.mxu0 0
    %479 = vmatpush.bf16.msra.mxu0 0
    %480 = vmatpush.bf16.msra.mxu0 0
    %481 = vmatpush.bf16.msra.mxu0 0
    %482 = vmatpush.bf16.msra.mxu0 0
    %483 = vmatpush.bf16.msra.mxu0 0
    %484 = vmatpush.bf16.msra.mxu0 %v446
    %485 = vmatpush.bf16.msra.mxu0 %v422
    %486 = vmatmul.bf16.gmra.mxu0 %v434
    %v487 = vpop.f32.mrf.mxu0
    %v488 = vadd.f32 0.0, %v487
    %v489 = vpop.f32.mrf.mxu0
    %v490 = vadd.f32 0.0, %v489
    %491 = vmatmul.bf16.gmra.mxu0 %v437
    %v492 = vpop.f32.mrf.mxu0
    %v493 = vadd.f32 0.0, %v492
    %v494 = vpop.f32.mrf.mxu0
    %v495 = vadd.f32 0.0, %v494
    %496 = vmatmul.bf16.gmra.mxu0 %v440
    %v497 = vpop.f32.mrf.mxu0
    %v498 = vadd.f32 0.0, %v497
    %v499 = vpop.f32.mrf.mxu0
    %v500 = vadd.f32 0.0, %v499
    %501 = vdwg.mxu0
    %502 = vmatpush.bf16.msra.mxu0 0
    %503 = vmatpush.bf16.msra.mxu0 0
    %504 = vmatpush.bf16.msra.mxu0 0
    %505 = vmatpush.bf16.msra.mxu0 0
    %506 = vmatpush.bf16.msra.mxu0 0
    %507 = vmatpush.bf16.msra.mxu0 0
    %508 = vmatpush.bf16.msra.mxu0 %v449
    %509 = vmatpush.bf16.msra.mxu0 %v423
    %510 = vmatmul.bf16.gmra.mxu0 %v434
    %v511 = vpop.f32.mrf.mxu0
    %v512 = vadd.f32 0.0, %v511
    %v513 = vpop.f32.mrf.mxu0
    %v514 = vadd.f32 0.0, %v513
    %515 = vmatmul.bf16.gmra.mxu0 %v437
    %v516 = vpop.f32.mrf.mxu0
    %v517 = vadd.f32 0.0, %v516
    %v518 = vpop.f32.mrf.mxu0
    %v519 = vadd.f32 0.0, %v518
    %520 = vmatmul.bf16.gmra.mxu0 %v440
    %v521 = vpop.f32.mrf.mxu0
    %v522 = vadd.f32 0.0, %v521
    %v523 = vpop.f32.mrf.mxu0
    %v524 = vadd.f32 0.0, %v523
    %525 = vdwg.mxu0
    %526 = vmatpush.bf16.msra.mxu0 0
    %527 = vmatpush.bf16.msra.mxu0 0
    %528 = vmatpush.bf16.msra.mxu0 0
    %529 = vmatpush.bf16.msra.mxu0 0
    %530 = vmatpush.bf16.msra.mxu0 0
    %531 = vmatpush.bf16.msra.mxu0 0
    %532 = vmatpush.bf16.msra.mxu0 %v452
    %533 = vmatpush.bf16.msra.mxu0 %v424
    %534 = vmatmul.bf16.gmra.mxu0 %v434
    %v535 = vpop.f32.mrf.mxu0
    %v536 = vadd.f32 0.0, %v535
    %v537 = vpop.f32.mrf.mxu0
    %v538 = vadd.f32 0.0, %v537
    %539 = vmatmul.bf16.gmra.mxu0 %v437
    %v540 = vpop.f32.mrf.mxu0
    %v541 = vadd.f32 0.0, %v540
    %v542 = vpop.f32.mrf.mxu0
    %v543 = vadd.f32 0.0, %v542
    %544 = vmatmul.bf16.gmra.mxu0 %v440
    %v545 = vpop.f32.mrf.mxu0
    %v546 = vadd.f32 0.0, %v545
    %v547 = vpop.f32.mrf.mxu0
    %v548 = vadd.f32 0.0, %v547
    %549 = vdwg.mxu0
    %v550 = vadd.f32 %v292, %v464
    %v551 = vadd.f32 %v316, %v488
    %v552 = vadd.f32 %v340, %v512
    %v553 = vadd.f32 %v364, %v536
    %v554 = vadd.f32 %v294, %v466
    %v555 = vadd.f32 %v318, %v490
    %v556 = vadd.f32 %v342, %v514
    %v557 = vadd.f32 %v366, %v538
    %v558 = vadd.f32 %v297, %v469
    %v559 = vadd.f32 %v321, %v493
    %v560 = vadd.f32 %v345, %v517
    %v561 = vadd.f32 %v369, %v541
    %v562 = vadd.f32 %v299, %v471
    %v563 = vadd.f32 %v323, %v495
    %v564 = vadd.f32 %v347, %v519
    %v565 = vadd.f32 %v371, %v543
    %v566 = vadd.f32 %v302, %v474
    %v567 = vadd.f32 %v326, %v498
    %v568 = vadd.f32 %v350, %v522
    %v569 = vadd.f32 %v374, %v546
    %v570 = vadd.f32 %v304, %v476
    %v571 = vadd.f32 %v328, %v500
    %v572 = vadd.f32 %v352, %v524
    %v573 = vadd.f32 %v376, %v548
    %s574 = scalar_lea.vmem %s0, 168
    %v575 = vld [vmem:[%s574] sm:$0xff]
    %v576 = vld [vmem:[%s574 + $0x8] sm:$0xff]
    %v577 = vld [vmem:[%s574 + $0x10] sm:$0xff]
    %v578 = vld [vmem:[%s574 + $0x18] sm:$0xff]
    %v579 = vld [vmem:[%s574 + $0x20] sm:$0xff]
    %v580 = vld [vmem:[%s574 + $0x28] sm:$0xff]
    %v581 = vpack.c.bf16 %v576, %v575
    %v582 = vpack.c.bf16 %v578, %v577
    %v583 = vpack.c.bf16 %v580, %v579
    %s584 = scalar_lea.vmem %s1, 192
    %v585 = vld [vmem:[%s584] sm:$0xff]
    %v586 = vld [vmem:[%s584 + $0x8] sm:$0xff]
    %v587 = vld [vmem:[%s584 + $0x10] sm:$0xff]
    %v588 = vld [vmem:[%s584 + $0x18] sm:$0xff]
    %v589 = vld [vmem:[%s584 + $0x20] sm:$0xff]
    %v590 = vld [vmem:[%s584 + $0x28] sm:$0xff]
    %v591 = vld [vmem:[%s584 + $0x30] sm:$0x33]
    %v592 = vld [vmem:[%s584 + $0x38] sm:$0x33]
    %v601 = vunpack.c.l.b16 %v585
    %v602 = vunpack.c.h.b16 %v585
    %v603 = vunpack.c.l.b16 %v586
    %v604 = vunpack.c.h.b16 %v586
    %v605 = vunpack.c.l.b16 %v587
    %v606 = vunpack.c.h.b16 %v587
    %v607 = vunpack.c.l.b16 %v588
    %v608 = vunpack.c.h.b16 %v588
    %v609 = vunpack.c.l.b16 %v589
    %v610 = vunpack.c.h.b16 %v589
    %v611 = vunpack.c.l.b16 %v590
    %v612 = vunpack.c.h.b16 %v590
    %v613 = vunpack.c.l.b16 %v591
    %v614 = vunpack.c.h.b16 %v591
    %v615 = vunpack.c.l.b16 %v592
    %v616 = vunpack.c.h.b16 %v592
    %v617 = vpack.c.b16 %v605, %v601
    %v618 = vpack.c.b16 %v606, %v602
    %v619 = vpack.c.b16 %v607, %v603
    %v620 = vpack.c.b16 %v608, %v604
    %v621 = vpack.c.b16 %v613, %v609
    %v622 = vpack.c.b16 %v614, %v610
    %v623 = vpack.c.b16 %v615, %v611
    %v624 = vpack.c.b16 %v616, %v612
    %v630 = vsel %vm106, %v581, 0
    %v633 = vsel %vm106, %v582, 0
    %v636 = vsel %vm106, %v583, 0
    %v639 = vsel %vm116, %v621, 0
    %v642 = vsel %vm116, %v622, 0
    %v645 = vsel %vm116, %v623, 0
    %v648 = vsel %vm116, %v624, 0
    %650 = vmatpush.bf16.msra.mxu0 0
    %651 = vmatpush.bf16.msra.mxu0 0
    %652 = vmatpush.bf16.msra.mxu0 0
    %653 = vmatpush.bf16.msra.mxu0 0
    %654 = vmatpush.bf16.msra.mxu0 0
    %655 = vmatpush.bf16.msra.mxu0 0
    %656 = vmatpush.bf16.msra.mxu0 %v639
    %657 = vmatpush.bf16.msra.mxu0 %v617
    %658 = vmatmul.bf16.gmra.mxu0 %v630
    %v659 = vpop.f32.mrf.mxu0
    %v660 = vadd.f32 0.0, %v659
    %v661 = vpop.f32.mrf.mxu0
    %v662 = vadd.f32 0.0, %v661
    %663 = vmatmul.bf16.gmra.mxu0 %v633
    %v664 = vpop.f32.mrf.mxu0
    %v665 = vadd.f32 0.0, %v664
    %v666 = vpop.f32.mrf.mxu0
    %v667 = vadd.f32 0.0, %v666
    %668 = vmatmul.bf16.gmra.mxu0 %v636
    %v669 = vpop.f32.mrf.mxu0
    %v670 = vadd.f32 0.0, %v669
    %v671 = vpop.f32.mrf.mxu0
    %v672 = vadd.f32 0.0, %v671
    %673 = vdwg.mxu0
    %674 = vmatpush.bf16.msra.mxu0 0
    %675 = vmatpush.bf16.msra.mxu0 0
    %676 = vmatpush.bf16.msra.mxu0 0
    %677 = vmatpush.bf16.msra.mxu0 0
    %678 = vmatpush.bf16.msra.mxu0 0
    %679 = vmatpush.bf16.msra.mxu0 0
    %680 = vmatpush.bf16.msra.mxu0 %v642
    %681 = vmatpush.bf16.msra.mxu0 %v618
    %682 = vmatmul.bf16.gmra.mxu0 %v630
    %v683 = vpop.f32.mrf.mxu0
    %v684 = vadd.f32 0.0, %v683
    %v685 = vpop.f32.mrf.mxu0
    %v686 = vadd.f32 0.0, %v685
    %687 = vmatmul.bf16.gmra.mxu0 %v633
    %v688 = vpop.f32.mrf.mxu0
    %v689 = vadd.f32 0.0, %v688
    %v690 = vpop.f32.mrf.mxu0
    %v691 = vadd.f32 0.0, %v690
    %692 = vmatmul.bf16.gmra.mxu0 %v636
    %v693 = vpop.f32.mrf.mxu0
    %v694 = vadd.f32 0.0, %v693
    %v695 = vpop.f32.mrf.mxu0
    %v696 = vadd.f32 0.0, %v695
    %697 = vdwg.mxu0
    %698 = vmatpush.bf16.msra.mxu0 0
    %699 = vmatpush.bf16.msra.mxu0 0
    %700 = vmatpush.bf16.msra.mxu0 0
    %701 = vmatpush.bf16.msra.mxu0 0
    %702 = vmatpush.bf16.msra.mxu0 0
    %703 = vmatpush.bf16.msra.mxu0 0
    %704 = vmatpush.bf16.msra.mxu0 %v645
    %705 = vmatpush.bf16.msra.mxu0 %v619
    %706 = vmatmul.bf16.gmra.mxu0 %v630
    %v707 = vpop.f32.mrf.mxu0
    %v708 = vadd.f32 0.0, %v707
    %v709 = vpop.f32.mrf.mxu0
    %v710 = vadd.f32 0.0, %v709
    %711 = vmatmul.bf16.gmra.mxu0 %v633
    %v712 = vpop.f32.mrf.mxu0
    %v713 = vadd.f32 0.0, %v712
    %v714 = vpop.f32.mrf.mxu0
    %v715 = vadd.f32 0.0, %v714
    %716 = vmatmul.bf16.gmra.mxu0 %v636
    %v717 = vpop.f32.mrf.mxu0
    %v718 = vadd.f32 0.0, %v717
    %v719 = vpop.f32.mrf.mxu0
    %v720 = vadd.f32 0.0, %v719
    %721 = vdwg.mxu0
    %722 = vmatpush.bf16.msra.mxu0 0
    %723 = vmatpush.bf16.msra.mxu0 0
    %724 = vmatpush.bf16.msra.mxu0 0
    %725 = vmatpush.bf16.msra.mxu0 0
    %726 = vmatpush.bf16.msra.mxu0 0
    %727 = vmatpush.bf16.msra.mxu0 0
    %728 = vmatpush.bf16.msra.mxu0 %v648
    %729 = vmatpush.bf16.msra.mxu0 %v620
    %730 = vmatmul.bf16.gmra.mxu0 %v630
    %v731 = vpop.f32.mrf.mxu0
    %v732 = vadd.f32 0.0, %v731
    %v733 = vpop.f32.mrf.mxu0
    %v734 = vadd.f32 0.0, %v733
    %735 = vmatmul.bf16.gmra.mxu0 %v633
    %v736 = vpop.f32.mrf.mxu0
    %v737 = vadd.f32 0.0, %v736
    %v738 = vpop.f32.mrf.mxu0
    %v739 = vadd.f32 0.0, %v738
    %740 = vmatmul.bf16.gmra.mxu0 %v636
    %v741 = vpop.f32.mrf.mxu0
    %v742 = vadd.f32 0.0, %v741
    %v743 = vpop.f32.mrf.mxu0
    %v744 = vadd.f32 0.0, %v743
    %745 = vdwg.mxu0
    %v746 = vadd.f32 %v550, %v660
    %v747 = vadd.f32 %v551, %v684
    %v748 = vadd.f32 %v552, %v708
    %v749 = vadd.f32 %v553, %v732
    %v750 = vadd.f32 %v554, %v662
    %v751 = vadd.f32 %v555, %v686
    %v752 = vadd.f32 %v556, %v710
    %v753 = vadd.f32 %v557, %v734
    %v754 = vadd.f32 %v558, %v665
    %v755 = vadd.f32 %v559, %v689
    %v756 = vadd.f32 %v560, %v713
    %v757 = vadd.f32 %v561, %v737
    %v758 = vadd.f32 %v562, %v667
    %v759 = vadd.f32 %v563, %v691
    %v760 = vadd.f32 %v564, %v715
    %v761 = vadd.f32 %v565, %v739
    %v762 = vadd.f32 %v566, %v670
    %v763 = vadd.f32 %v567, %v694
    %v764 = vadd.f32 %v568, %v718
    %v765 = vadd.f32 %v569, %v742
    %v766 = vadd.f32 %v570, %v672
    %v767 = vadd.f32 %v571, %v696
    %v768 = vadd.f32 %v572, %v720
    %v769 = vadd.f32 %v573, %v744
    %s770 = scalar_lea.vmem %s0, 8
    %v771 = vld [vmem:[%s770] sm:$0xff]
    %v772 = vld [vmem:[%s770 + $0x8] sm:$0xff]
    %v773 = vld [vmem:[%s770 + $0x10] sm:$0xff]
    %v774 = vld [vmem:[%s770 + $0x18] sm:$0xff]
    %v775 = vld [vmem:[%s770 + $0x20] sm:$0xff]
    %v776 = vld [vmem:[%s770 + $0x28] sm:$0xff]
    %v777 = vpack.c.bf16 %v772, %v771
    %v778 = vpack.c.bf16 %v774, %v773
    %v779 = vpack.c.bf16 %v776, %v775
    %s780 = scalar_lea.vmem %s1, 256
    %v781 = vld [vmem:[%s780] sm:$0xff]
    %v782 = vld [vmem:[%s780 + $0x8] sm:$0xff]
    %v783 = vld [vmem:[%s780 + $0x10] sm:$0xff]
    %v784 = vld [vmem:[%s780 + $0x18] sm:$0xff]
    %v785 = vld [vmem:[%s780 + $0x20] sm:$0xff]
    %v786 = vld [vmem:[%s780 + $0x28] sm:$0xff]
    %v787 = vld [vmem:[%s780 + $0x30] sm:$0x33]
    %v788 = vld [vmem:[%s780 + $0x38] sm:$0x33]
    %v797 = vunpack.c.l.b16 %v781
    %v798 = vunpack.c.h.b16 %v781
    %v799 = vunpack.c.l.b16 %v782
    %v800 = vunpack.c.h.b16 %v782
    %v801 = vunpack.c.l.b16 %v783
    %v802 = vunpack.c.h.b16 %v783
    %v803 = vunpack.c.l.b16 %v784
    %v804 = vunpack.c.h.b16 %v784
    %v805 = vunpack.c.l.b16 %v785
    %v806 = vunpack.c.h.b16 %v785
    %v807 = vunpack.c.l.b16 %v786
    %v808 = vunpack.c.h.b16 %v786
    %v809 = vunpack.c.l.b16 %v787
    %v810 = vunpack.c.h.b16 %v787
    %v811 = vunpack.c.l.b16 %v788
    %v812 = vunpack.c.h.b16 %v788
    %v813 = vpack.c.b16 %v801, %v797
    %v814 = vpack.c.b16 %v802, %v798
    %v815 = vpack.c.b16 %v803, %v799
    %v816 = vpack.c.b16 %v804, %v800
    %v817 = vpack.c.b16 %v809, %v805
    %v818 = vpack.c.b16 %v810, %v806
    %v819 = vpack.c.b16 %v811, %v807
    %v820 = vpack.c.b16 %v812, %v808
    %v826 = vsel %vm106, %v777, 0
    %v829 = vsel %vm106, %v778, 0
    %v832 = vsel %vm106, %v779, 0
    %v835 = vsel %vm116, %v817, 0
    %v838 = vsel %vm116, %v818, 0
    %v841 = vsel %vm116, %v819, 0
    %v844 = vsel %vm116, %v820, 0
    %846 = vmatpush.bf16.msra.mxu0 0
    %847 = vmatpush.bf16.msra.mxu0 0
    %848 = vmatpush.bf16.msra.mxu0 0
    %849 = vmatpush.bf16.msra.mxu0 0
    %850 = vmatpush.bf16.msra.mxu0 0
    %851 = vmatpush.bf16.msra.mxu0 0
    %852 = vmatpush.bf16.msra.mxu0 %v835
    %853 = vmatpush.bf16.msra.mxu0 %v813
    %854 = vmatmul.bf16.gmra.mxu0 %v826
    %v855 = vpop.f32.mrf.mxu0
    %v856 = vadd.f32 0.0, %v855
    %v857 = vpop.f32.mrf.mxu0
    %v858 = vadd.f32 0.0, %v857
    %859 = vmatmul.bf16.gmra.mxu0 %v829
    %v860 = vpop.f32.mrf.mxu0
    %v861 = vadd.f32 0.0, %v860
    %v862 = vpop.f32.mrf.mxu0
    %v863 = vadd.f32 0.0, %v862
    %864 = vmatmul.bf16.gmra.mxu0 %v832
    %v865 = vpop.f32.mrf.mxu0
    %v866 = vadd.f32 0.0, %v865
    %v867 = vpop.f32.mrf.mxu0
    %v868 = vadd.f32 0.0, %v867
    %869 = vdwg.mxu0
    %870 = vmatpush.bf16.msra.mxu0 0
    %871 = vmatpush.bf16.msra.mxu0 0
    %872 = vmatpush.bf16.msra.mxu0 0
    %873 = vmatpush.bf16.msra.mxu0 0
    %874 = vmatpush.bf16.msra.mxu0 0
    %875 = vmatpush.bf16.msra.mxu0 0
    %876 = vmatpush.bf16.msra.mxu0 %v838
    %877 = vmatpush.bf16.msra.mxu0 %v814
    %878 = vmatmul.bf16.gmra.mxu0 %v826
    %v879 = vpop.f32.mrf.mxu0
    %v880 = vadd.f32 0.0, %v879
    %v881 = vpop.f32.mrf.mxu0
    %v882 = vadd.f32 0.0, %v881
    %883 = vmatmul.bf16.gmra.mxu0 %v829
    %v884 = vpop.f32.mrf.mxu0
    %v885 = vadd.f32 0.0, %v884
    %v886 = vpop.f32.mrf.mxu0
    %v887 = vadd.f32 0.0, %v886
    %888 = vmatmul.bf16.gmra.mxu0 %v832
    %v889 = vpop.f32.mrf.mxu0
    %v890 = vadd.f32 0.0, %v889
    %v891 = vpop.f32.mrf.mxu0
    %v892 = vadd.f32 0.0, %v891
    %893 = vdwg.mxu0
    %894 = vmatpush.bf16.msra.mxu0 0
    %895 = vmatpush.bf16.msra.mxu0 0
    %896 = vmatpush.bf16.msra.mxu0 0
    %897 = vmatpush.bf16.msra.mxu0 0
    %898 = vmatpush.bf16.msra.mxu0 0
    %899 = vmatpush.bf16.msra.mxu0 0
    %900 = vmatpush.bf16.msra.mxu0 %v841
    %901 = vmatpush.bf16.msra.mxu0 %v815
    %902 = vmatmul.bf16.gmra.mxu0 %v826
    %v903 = vpop.f32.mrf.mxu0
    %v904 = vadd.f32 0.0, %v903
    %v905 = vpop.f32.mrf.mxu0
    %v906 = vadd.f32 0.0, %v905
    %907 = vmatmul.bf16.gmra.mxu0 %v829
    %v908 = vpop.f32.mrf.mxu0
    %v909 = vadd.f32 0.0, %v908
    %v910 = vpop.f32.mrf.mxu0
    %v911 = vadd.f32 0.0, %v910
    %912 = vmatmul.bf16.gmra.mxu0 %v832
    %v913 = vpop.f32.mrf.mxu0
    %v914 = vadd.f32 0.0, %v913
    %v915 = vpop.f32.mrf.mxu0
    %v916 = vadd.f32 0.0, %v915
    %917 = vdwg.mxu0
    %918 = vmatpush.bf16.msra.mxu0 0
    %919 = vmatpush.bf16.msra.mxu0 0
    %920 = vmatpush.bf16.msra.mxu0 0
    %921 = vmatpush.bf16.msra.mxu0 0
    %922 = vmatpush.bf16.msra.mxu0 0
    %923 = vmatpush.bf16.msra.mxu0 0
    %924 = vmatpush.bf16.msra.mxu0 %v844
    %925 = vmatpush.bf16.msra.mxu0 %v816
    %926 = vmatmul.bf16.gmra.mxu0 %v826
    %v927 = vpop.f32.mrf.mxu0
    %v928 = vadd.f32 0.0, %v927
    %v929 = vpop.f32.mrf.mxu0
    %v930 = vadd.f32 0.0, %v929
    %931 = vmatmul.bf16.gmra.mxu0 %v829
    %v932 = vpop.f32.mrf.mxu0
    %v933 = vadd.f32 0.0, %v932
    %v934 = vpop.f32.mrf.mxu0
    %v935 = vadd.f32 0.0, %v934
    %936 = vmatmul.bf16.gmra.mxu0 %v832
    %v937 = vpop.f32.mrf.mxu0
    %v938 = vadd.f32 0.0, %v937
    %v939 = vpop.f32.mrf.mxu0
    %v940 = vadd.f32 0.0, %v939
    %941 = vdwg.mxu0
    %v942 = vadd.f32 %v746, %v856
    %v943 = vadd.f32 %v747, %v880
    %v944 = vadd.f32 %v748, %v904
    %v945 = vadd.f32 %v749, %v928
    %v946 = vadd.f32 %v750, %v858
    %v947 = vadd.f32 %v751, %v882
    %v948 = vadd.f32 %v752, %v906
    %v949 = vadd.f32 %v753, %v930
    %v950 = vadd.f32 %v754, %v861
    %v951 = vadd.f32 %v755, %v885
    %v952 = vadd.f32 %v756, %v909
    %v953 = vadd.f32 %v757, %v933
    %v954 = vadd.f32 %v758, %v863
    %v955 = vadd.f32 %v759, %v887
    %v956 = vadd.f32 %v760, %v911
    %v957 = vadd.f32 %v761, %v935
    %v958 = vadd.f32 %v762, %v866
    %v959 = vadd.f32 %v763, %v890
    %v960 = vadd.f32 %v764, %v914
    %v961 = vadd.f32 %v765, %v938
    %v962 = vadd.f32 %v766, %v868
    %v963 = vadd.f32 %v767, %v892
    %v964 = vadd.f32 %v768, %v916
    %v965 = vadd.f32 %v769, %v940
    %966 = vmatpush.bf16.msra.mxu0 0
    %967 = vmatpush.bf16.msra.mxu0 0
    %968 = vmatpush.bf16.msra.mxu0 0
    %969 = vmatpush.bf16.msra.mxu0 0
    %970 = vmatpush.bf16.msra.mxu0 0
    %971 = vmatpush.bf16.msra.mxu0 0
    %972 = vmatpush.bf16.msra.mxu0 %v118
    %973 = vmatpush.bf16.msra.mxu0 %v94
    %974 = vmatmul.bf16.gmra.mxu0 %v434
    %v975 = vpop.f32.mrf.mxu0
    %v976 = vadd.f32 0.0, %v975
    %v977 = vpop.f32.mrf.mxu0
    %v978 = vadd.f32 0.0, %v977
    %979 = vmatmul.bf16.gmra.mxu0 %v437
    %v980 = vpop.f32.mrf.mxu0
    %v981 = vadd.f32 0.0, %v980
    %v982 = vpop.f32.mrf.mxu0
    %v983 = vadd.f32 0.0, %v982
    %984 = vmatmul.bf16.gmra.mxu0 %v440
    %v985 = vpop.f32.mrf.mxu0
    %v986 = vadd.f32 0.0, %v985
    %v987 = vpop.f32.mrf.mxu0
    %v988 = vadd.f32 0.0, %v987
    %989 = vdwg.mxu0
    %990 = vmatpush.bf16.msra.mxu0 0
    %991 = vmatpush.bf16.msra.mxu0 0
    %992 = vmatpush.bf16.msra.mxu0 0
    %993 = vmatpush.bf16.msra.mxu0 0
    %994 = vmatpush.bf16.msra.mxu0 0
    %995 = vmatpush.bf16.msra.mxu0 0
    %996 = vmatpush.bf16.msra.mxu0 %v121
    %997 = vmatpush.bf16.msra.mxu0 %v95
    %998 = vmatmul.bf16.gmra.mxu0 %v434
    %v999 = vpop.f32.mrf.mxu0
    %v1000 = vadd.f32 0.0, %v999
    %v1001 = vpop.f32.mrf.mxu0
    %v1002 = vadd.f32 0.0, %v1001
    %1003 = vmatmul.bf16.gmra.mxu0 %v437
    %v1004 = vpop.f32.mrf.mxu0
    %v1005 = vadd.f32 0.0, %v1004
    %v1006 = vpop.f32.mrf.mxu0
    %v1007 = vadd.f32 0.0, %v1006
    %1008 = vmatmul.bf16.gmra.mxu0 %v440
    %v1009 = vpop.f32.mrf.mxu0
    %v1010 = vadd.f32 0.0, %v1009
    %v1011 = vpop.f32.mrf.mxu0
    %v1012 = vadd.f32 0.0, %v1011
    %1013 = vdwg.mxu0
    %1014 = vmatpush.bf16.msra.mxu0 0
    %1015 = vmatpush.bf16.msra.mxu0 0
    %1016 = vmatpush.bf16.msra.mxu0 0
    %1017 = vmatpush.bf16.msra.mxu0 0
    %1018 = vmatpush.bf16.msra.mxu0 0
    %1019 = vmatpush.bf16.msra.mxu0 0
    %1020 = vmatpush.bf16.msra.mxu0 %v124
    %1021 = vmatpush.bf16.msra.mxu0 %v96
    %1022 = vmatmul.bf16.gmra.mxu0 %v434
    %v1023 = vpop.f32.mrf.mxu0
    %v1024 = vadd.f32 0.0, %v1023
    %v1025 = vpop.f32.mrf.mxu0
    %v1026 = vadd.f32 0.0, %v1025
    %1027 = vmatmul.bf16.gmra.mxu0 %v437
    %v1028 = vpop.f32.mrf.mxu0
    %v1029 = vadd.f32 0.0, %v1028
    %v1030 = vpop.f32.mrf.mxu0
    %v1031 = vadd.f32 0.0, %v1030
    %1032 = vmatmul.bf16.gmra.mxu0 %v440
    %v1033 = vpop.f32.mrf.mxu0
    %v1034 = vadd.f32 0.0, %v1033
    %v1035 = vpop.f32.mrf.mxu0
    %v1036 = vadd.f32 0.0, %v1035
    %1037 = vdwg.mxu0
    %1038 = vmatpush.bf16.msra.mxu0 0
    %1039 = vmatpush.bf16.msra.mxu0 0
    %1040 = vmatpush.bf16.msra.mxu0 0
    %1041 = vmatpush.bf16.msra.mxu0 0
    %1042 = vmatpush.bf16.msra.mxu0 0
    %1043 = vmatpush.bf16.msra.mxu0 0
    %1044 = vmatpush.bf16.msra.mxu0 %v127
    %1045 = vmatpush.bf16.msra.mxu0 %v97
    %1046 = vmatmul.bf16.gmra.mxu0 %v434
    %v1047 = vpop.f32.mrf.mxu0
    %v1048 = vadd.f32 0.0, %v1047
    %v1049 = vpop.f32.mrf.mxu0
    %v1050 = vadd.f32 0.0, %v1049
    %1051 = vmatmul.bf16.gmra.mxu0 %v437
    %v1052 = vpop.f32.mrf.mxu0
    %v1053 = vadd.f32 0.0, %v1052
    %v1054 = vpop.f32.mrf.mxu0
    %v1055 = vadd.f32 0.0, %v1054
    %1056 = vmatmul.bf16.gmra.mxu0 %v440
    %v1057 = vpop.f32.mrf.mxu0
    %v1058 = vadd.f32 0.0, %v1057
    %v1059 = vpop.f32.mrf.mxu0
    %v1060 = vadd.f32 0.0, %v1059
    %1061 = vdwg.mxu0
    %1062 = vmatpush.bf16.msra.mxu0 0
    %1063 = vmatpush.bf16.msra.mxu0 0
    %1064 = vmatpush.bf16.msra.mxu0 0
    %1065 = vmatpush.bf16.msra.mxu0 0
    %1066 = vmatpush.bf16.msra.mxu0 0
    %1067 = vmatpush.bf16.msra.mxu0 0
    %1068 = vmatpush.bf16.msra.mxu0 %v271
    %1069 = vmatpush.bf16.msra.mxu0 %v249
    %1070 = vmatmul.bf16.gmra.mxu0 %v108
    %v1071 = vpop.f32.mrf.mxu0
    %v1072 = vadd.f32 %v976, %v1071
    %v1073 = vpop.f32.mrf.mxu0
    %v1074 = vadd.f32 %v978, %v1073
    %1075 = vmatmul.bf16.gmra.mxu0 %v111
    %v1076 = vpop.f32.mrf.mxu0
    %v1077 = vadd.f32 %v981, %v1076
    %v1078 = vpop.f32.mrf.mxu0
    %v1079 = vadd.f32 %v983, %v1078
    %1080 = vmatmul.bf16.gmra.mxu0 %v114
    %v1081 = vpop.f32.mrf.mxu0
    %v1082 = vadd.f32 %v986, %v1081
    %v1083 = vpop.f32.mrf.mxu0
    %v1084 = vadd.f32 %v988, %v1083
    %1085 = vdwg.mxu0
    %1086 = vmatpush.bf16.msra.mxu0 0
    %1087 = vmatpush.bf16.msra.mxu0 0
    %1088 = vmatpush.bf16.msra.mxu0 0
    %1089 = vmatpush.bf16.msra.mxu0 0
    %1090 = vmatpush.bf16.msra.mxu0 0
    %1091 = vmatpush.bf16.msra.mxu0 0
    %1092 = vmatpush.bf16.msra.mxu0 %v274
    %1093 = vmatpush.bf16.msra.mxu0 %v250
    %1094 = vmatmul.bf16.gmra.mxu0 %v108
    %v1095 = vpop.f32.mrf.mxu0
    %v1096 = vadd.f32 %v1000, %v1095
    %v1097 = vpop.f32.mrf.mxu0
    %v1098 = vadd.f32 %v1002, %v1097
    %1099 = vmatmul.bf16.gmra.mxu0 %v111
    %v1100 = vpop.f32.mrf.mxu0
    %v1101 = vadd.f32 %v1005, %v1100
    %v1102 = vpop.f32.mrf.mxu0
    %v1103 = vadd.f32 %v1007, %v1102
    %1104 = vmatmul.bf16.gmra.mxu0 %v114
    %v1105 = vpop.f32.mrf.mxu0
    %v1106 = vadd.f32 %v1010, %v1105
    %v1107 = vpop.f32.mrf.mxu0
    %v1108 = vadd.f32 %v1012, %v1107
    %1109 = vdwg.mxu0
    %1110 = vmatpush.bf16.msra.mxu0 0
    %1111 = vmatpush.bf16.msra.mxu0 0
    %1112 = vmatpush.bf16.msra.mxu0 0
    %1113 = vmatpush.bf16.msra.mxu0 0
    %1114 = vmatpush.bf16.msra.mxu0 0
    %1115 = vmatpush.bf16.msra.mxu0 0
    %1116 = vmatpush.bf16.msra.mxu0 %v277
    %1117 = vmatpush.bf16.msra.mxu0 %v251
    %1118 = vmatmul.bf16.gmra.mxu0 %v108
    %v1119 = vpop.f32.mrf.mxu0
    %v1120 = vadd.f32 %v1024, %v1119
    %v1121 = vpop.f32.mrf.mxu0
    %v1122 = vadd.f32 %v1026, %v1121
    %1123 = vmatmul.bf16.gmra.mxu0 %v111
    %v1124 = vpop.f32.mrf.mxu0
    %v1125 = vadd.f32 %v1029, %v1124
    %v1126 = vpop.f32.mrf.mxu0
    %v1127 = vadd.f32 %v1031, %v1126
    %1128 = vmatmul.bf16.gmra.mxu0 %v114
    %v1129 = vpop.f32.mrf.mxu0
    %v1130 = vadd.f32 %v1034, %v1129
    %v1131 = vpop.f32.mrf.mxu0
    %v1132 = vadd.f32 %v1036, %v1131
    %1133 = vdwg.mxu0
    %1134 = vmatpush.bf16.msra.mxu0 0
    %1135 = vmatpush.bf16.msra.mxu0 0
    %1136 = vmatpush.bf16.msra.mxu0 0
    %1137 = vmatpush.bf16.msra.mxu0 0
    %1138 = vmatpush.bf16.msra.mxu0 0
    %1139 = vmatpush.bf16.msra.mxu0 0
    %1140 = vmatpush.bf16.msra.mxu0 %v280
    %1141 = vmatpush.bf16.msra.mxu0 %v252
    %1142 = vmatmul.bf16.gmra.mxu0 %v108
    %v1143 = vpop.f32.mrf.mxu0
    %v1144 = vadd.f32 %v1048, %v1143
    %v1145 = vpop.f32.mrf.mxu0
    %v1146 = vadd.f32 %v1050, %v1145
    %1147 = vmatmul.bf16.gmra.mxu0 %v111
    %v1148 = vpop.f32.mrf.mxu0
    %v1149 = vadd.f32 %v1053, %v1148
    %v1150 = vpop.f32.mrf.mxu0
    %v1151 = vadd.f32 %v1055, %v1150
    %1152 = vmatmul.bf16.gmra.mxu0 %v114
    %v1153 = vpop.f32.mrf.mxu0
    %v1154 = vadd.f32 %v1058, %v1153
    %v1155 = vpop.f32.mrf.mxu0
    %v1156 = vadd.f32 %v1060, %v1155
    %1157 = vdwg.mxu0
    %1158 = vmatpush.bf16.msra.mxu0 0
    %1159 = vmatpush.bf16.msra.mxu0 0
    %1160 = vmatpush.bf16.msra.mxu0 0
    %1161 = vmatpush.bf16.msra.mxu0 0
    %1162 = vmatpush.bf16.msra.mxu0 0
    %1163 = vmatpush.bf16.msra.mxu0 0
    %1164 = vmatpush.bf16.msra.mxu0 %v443
    %1165 = vmatpush.bf16.msra.mxu0 %v421
    %1166 = vmatmul.bf16.gmra.mxu0 %v630
    %v1167 = vpop.f32.mrf.mxu0
    %v1168 = vadd.f32 0.0, %v1167
    %v1169 = vpop.f32.mrf.mxu0
    %v1170 = vadd.f32 0.0, %v1169
    %1171 = vmatmul.bf16.gmra.mxu0 %v633
    %v1172 = vpop.f32.mrf.mxu0
    %v1173 = vadd.f32 0.0, %v1172
    %v1174 = vpop.f32.mrf.mxu0
    %v1175 = vadd.f32 0.0, %v1174
    %1176 = vmatmul.bf16.gmra.mxu0 %v636
    %v1177 = vpop.f32.mrf.mxu0
    %v1178 = vadd.f32 0.0, %v1177
    %v1179 = vpop.f32.mrf.mxu0
    %v1180 = vadd.f32 0.0, %v1179
    %1181 = vdwg.mxu0
    %1182 = vmatpush.bf16.msra.mxu0 0
    %1183 = vmatpush.bf16.msra.mxu0 0
    %1184 = vmatpush.bf16.msra.mxu0 0
    %1185 = vmatpush.bf16.msra.mxu0 0
    %1186 = vmatpush.bf16.msra.mxu0 0
    %1187 = vmatpush.bf16.msra.mxu0 0
    %1188 = vmatpush.bf16.msra.mxu0 %v446
    %1189 = vmatpush.bf16.msra.mxu0 %v422
    %1190 = vmatmul.bf16.gmra.mxu0 %v630
    %v1191 = vpop.f32.mrf.mxu0
    %v1192 = vadd.f32 0.0, %v1191
    %v1193 = vpop.f32.mrf.mxu0
    %v1194 = vadd.f32 0.0, %v1193
    %1195 = vmatmul.bf16.gmra.mxu0 %v633
    %v1196 = vpop.f32.mrf.mxu0
    %v1197 = vadd.f32 0.0, %v1196
    %v1198 = vpop.f32.mrf.mxu0
    %v1199 = vadd.f32 0.0, %v1198
    %1200 = vmatmul.bf16.gmra.mxu0 %v636
    %v1201 = vpop.f32.mrf.mxu0
    %v1202 = vadd.f32 0.0, %v1201
    %v1203 = vpop.f32.mrf.mxu0
    %v1204 = vadd.f32 0.0, %v1203
    %1205 = vdwg.mxu0
    %1206 = vmatpush.bf16.msra.mxu0 0
    %1207 = vmatpush.bf16.msra.mxu0 0
    %1208 = vmatpush.bf16.msra.mxu0 0
    %1209 = vmatpush.bf16.msra.mxu0 0
    %1210 = vmatpush.bf16.msra.mxu0 0
    %1211 = vmatpush.bf16.msra.mxu0 0
    %1212 = vmatpush.bf16.msra.mxu0 %v449
    %1213 = vmatpush.bf16.msra.mxu0 %v423
    %1214 = vmatmul.bf16.gmra.mxu0 %v630
    %v1215 = vpop.f32.mrf.mxu0
    %v1216 = vadd.f32 0.0, %v1215
    %v1217 = vpop.f32.mrf.mxu0
    %v1218 = vadd.f32 0.0, %v1217
    %1219 = vmatmul.bf16.gmra.mxu0 %v633
    %v1220 = vpop.f32.mrf.mxu0
    %v1221 = vadd.f32 0.0, %v1220
    %v1222 = vpop.f32.mrf.mxu0
    %v1223 = vadd.f32 0.0, %v1222
    %1224 = vmatmul.bf16.gmra.mxu0 %v636
    %v1225 = vpop.f32.mrf.mxu0
    %v1226 = vadd.f32 0.0, %v1225
    %v1227 = vpop.f32.mrf.mxu0
    %v1228 = vadd.f32 0.0, %v1227
    %1229 = vdwg.mxu0
    %1230 = vmatpush.bf16.msra.mxu0 0
    %1231 = vmatpush.bf16.msra.mxu0 0
    %1232 = vmatpush.bf16.msra.mxu0 0
    %1233 = vmatpush.bf16.msra.mxu0 0
    %1234 = vmatpush.bf16.msra.mxu0 0
    %1235 = vmatpush.bf16.msra.mxu0 0
    %1236 = vmatpush.bf16.msra.mxu0 %v452
    %1237 = vmatpush.bf16.msra.mxu0 %v424
    %1238 = vmatmul.bf16.gmra.mxu0 %v630
    %v1239 = vpop.f32.mrf.mxu0
    %v1240 = vadd.f32 0.0, %v1239
    %v1241 = vpop.f32.mrf.mxu0
    %v1242 = vadd.f32 0.0, %v1241
    %1243 = vmatmul.bf16.gmra.mxu0 %v633
    %v1244 = vpop.f32.mrf.mxu0
    %v1245 = vadd.f32 0.0, %v1244
    %v1246 = vpop.f32.mrf.mxu0
    %v1247 = vadd.f32 0.0, %v1246
    %1248 = vmatmul.bf16.gmra.mxu0 %v636
    %v1249 = vpop.f32.mrf.mxu0
    %v1250 = vadd.f32 0.0, %v1249
    %v1251 = vpop.f32.mrf.mxu0
    %v1252 = vadd.f32 0.0, %v1251
    %1253 = vdwg.mxu0
    %v1254 = vadd.f32 %v1072, %v1168
    %v1255 = vadd.f32 %v1096, %v1192
    %v1256 = vadd.f32 %v1120, %v1216
    %v1257 = vadd.f32 %v1144, %v1240
    %v1258 = vadd.f32 %v1074, %v1170
    %v1259 = vadd.f32 %v1098, %v1194
    %v1260 = vadd.f32 %v1122, %v1218
    %v1261 = vadd.f32 %v1146, %v1242
    %v1262 = vadd.f32 %v1077, %v1173
    %v1263 = vadd.f32 %v1101, %v1197
    %v1264 = vadd.f32 %v1125, %v1221
    %v1265 = vadd.f32 %v1149, %v1245
    %v1266 = vadd.f32 %v1079, %v1175
    %v1267 = vadd.f32 %v1103, %v1199
    %v1268 = vadd.f32 %v1127, %v1223
    %v1269 = vadd.f32 %v1151, %v1247
    %v1270 = vadd.f32 %v1082, %v1178
    %v1271 = vadd.f32 %v1106, %v1202
    %v1272 = vadd.f32 %v1130, %v1226
    %v1273 = vadd.f32 %v1154, %v1250
    %v1274 = vadd.f32 %v1084, %v1180
    %v1275 = vadd.f32 %v1108, %v1204
    %v1276 = vadd.f32 %v1132, %v1228
    %v1277 = vadd.f32 %v1156, %v1252
    %1278 = vmatpush.bf16.msra.mxu0 0
    %1279 = vmatpush.bf16.msra.mxu0 0
    %1280 = vmatpush.bf16.msra.mxu0 0
    %1281 = vmatpush.bf16.msra.mxu0 0
    %1282 = vmatpush.bf16.msra.mxu0 0
    %1283 = vmatpush.bf16.msra.mxu0 0
    %1284 = vmatpush.bf16.msra.mxu0 %v639
    %1285 = vmatpush.bf16.msra.mxu0 %v617
    %1286 = vmatmul.bf16.gmra.mxu0 %v826
    %v1287 = vpop.f32.mrf.mxu0
    %v1288 = vadd.f32 0.0, %v1287
    %v1289 = vpop.f32.mrf.mxu0
    %v1290 = vadd.f32 0.0, %v1289
    %1291 = vmatmul.bf16.gmra.mxu0 %v829
    %v1292 = vpop.f32.mrf.mxu0
    %v1293 = vadd.f32 0.0, %v1292
    %v1294 = vpop.f32.mrf.mxu0
    %v1295 = vadd.f32 0.0, %v1294
    %1296 = vmatmul.bf16.gmra.mxu0 %v832
    %v1297 = vpop.f32.mrf.mxu0
    %v1298 = vadd.f32 0.0, %v1297
    %v1299 = vpop.f32.mrf.mxu0
    %v1300 = vadd.f32 0.0, %v1299
    %1301 = vdwg.mxu0
    %1302 = vmatpush.bf16.msra.mxu0 0
    %1303 = vmatpush.bf16.msra.mxu0 0
    %1304 = vmatpush.bf16.msra.mxu0 0
    %1305 = vmatpush.bf16.msra.mxu0 0
    %1306 = vmatpush.bf16.msra.mxu0 0
    %1307 = vmatpush.bf16.msra.mxu0 0
    %1308 = vmatpush.bf16.msra.mxu0 %v642
    %1309 = vmatpush.bf16.msra.mxu0 %v618
    %1310 = vmatmul.bf16.gmra.mxu0 %v826
    %v1311 = vpop.f32.mrf.mxu0
    %v1312 = vadd.f32 0.0, %v1311
    %v1313 = vpop.f32.mrf.mxu0
    %v1314 = vadd.f32 0.0, %v1313
    %1315 = vmatmul.bf16.gmra.mxu0 %v829
    %v1316 = vpop.f32.mrf.mxu0
    %v1317 = vadd.f32 0.0, %v1316
    %v1318 = vpop.f32.mrf.mxu0
    %v1319 = vadd.f32 0.0, %v1318
    %1320 = vmatmul.bf16.gmra.mxu0 %v832
    %v1321 = vpop.f32.mrf.mxu0
    %v1322 = vadd.f32 0.0, %v1321
    %v1323 = vpop.f32.mrf.mxu0
    %v1324 = vadd.f32 0.0, %v1323
    %1325 = vdwg.mxu0
    %1326 = vmatpush.bf16.msra.mxu0 0
    %1327 = vmatpush.bf16.msra.mxu0 0
    %1328 = vmatpush.bf16.msra.mxu0 0
    %1329 = vmatpush.bf16.msra.mxu0 0
    %1330 = vmatpush.bf16.msra.mxu0 0
    %1331 = vmatpush.bf16.msra.mxu0 0
    %1332 = vmatpush.bf16.msra.mxu0 %v645
    %1333 = vmatpush.bf16.msra.mxu0 %v619
    %1334 = vmatmul.bf16.gmra.mxu0 %v826
    %v1335 = vpop.f32.mrf.mxu0
    %v1336 = vadd.f32 0.0, %v1335
    %v1337 = vpop.f32.mrf.mxu0
    %v1338 = vadd.f32 0.0, %v1337
    %1339 = vmatmul.bf16.gmra.mxu0 %v829
    %v1340 = vpop.f32.mrf.mxu0
    %v1341 = vadd.f32 0.0, %v1340
    %v1342 = vpop.f32.mrf.mxu0
    %v1343 = vadd.f32 0.0, %v1342
    %1344 = vmatmul.bf16.gmra.mxu0 %v832
    %v1345 = vpop.f32.mrf.mxu0
    %v1346 = vadd.f32 0.0, %v1345
    %v1347 = vpop.f32.mrf.mxu0
    %v1348 = vadd.f32 0.0, %v1347
    %1349 = vdwg.mxu0
    %1350 = vmatpush.bf16.msra.mxu0 0
    %1351 = vmatpush.bf16.msra.mxu0 0
    %1352 = vmatpush.bf16.msra.mxu0 0
    %1353 = vmatpush.bf16.msra.mxu0 0
    %1354 = vmatpush.bf16.msra.mxu0 0
    %1355 = vmatpush.bf16.msra.mxu0 0
    %1356 = vmatpush.bf16.msra.mxu0 %v648
    %1357 = vmatpush.bf16.msra.mxu0 %v620
    %1358 = vmatmul.bf16.gmra.mxu0 %v826
    %v1359 = vpop.f32.mrf.mxu0
    %v1360 = vadd.f32 0.0, %v1359
    %v1361 = vpop.f32.mrf.mxu0
    %v1362 = vadd.f32 0.0, %v1361
    %1363 = vmatmul.bf16.gmra.mxu0 %v829
    %v1364 = vpop.f32.mrf.mxu0
    %v1365 = vadd.f32 0.0, %v1364
    %v1366 = vpop.f32.mrf.mxu0
    %v1367 = vadd.f32 0.0, %v1366
    %1368 = vmatmul.bf16.gmra.mxu0 %v832
    %v1369 = vpop.f32.mrf.mxu0
    %v1370 = vadd.f32 0.0, %v1369
    %v1371 = vpop.f32.mrf.mxu0
    %v1372 = vadd.f32 0.0, %v1371
    %1373 = vdwg.mxu0
    %v1374 = vadd.f32 %v1254, %v1288
    %v1375 = vadd.f32 %v1255, %v1312
    %v1376 = vadd.f32 %v1256, %v1336
    %v1377 = vadd.f32 %v1257, %v1360
    %v1378 = vadd.f32 %v1258, %v1290
    %v1379 = vadd.f32 %v1259, %v1314
    %v1380 = vadd.f32 %v1260, %v1338
    %v1381 = vadd.f32 %v1261, %v1362
    %v1382 = vadd.f32 %v1262, %v1293
    %v1383 = vadd.f32 %v1263, %v1317
    %v1384 = vadd.f32 %v1264, %v1341
    %v1385 = vadd.f32 %v1265, %v1365
    %v1386 = vadd.f32 %v1266, %v1295
    %v1387 = vadd.f32 %v1267, %v1319
    %v1388 = vadd.f32 %v1268, %v1343
    %v1389 = vadd.f32 %v1269, %v1367
    %v1390 = vadd.f32 %v1270, %v1298
    %v1391 = vadd.f32 %v1271, %v1322
    %v1392 = vadd.f32 %v1272, %v1346
    %v1393 = vadd.f32 %v1273, %v1370
    %v1394 = vadd.f32 %v1274, %v1300
    %v1395 = vadd.f32 %v1275, %v1324
    %v1396 = vadd.f32 %v1276, %v1348
    %v1397 = vadd.f32 %v1277, %v1372
    %s1398 = scalar_lea.vmem %s0, 64
    %v1399 = vld [vmem:[%s1398] sm:$0xff]
    %v1400 = vld [vmem:[%s1398 + $0x8] sm:$0xff]
    %v1401 = vld [vmem:[%s1398 + $0x10] sm:$0xff]
    %v1402 = vld [vmem:[%s1398 + $0x18] sm:$0xff]
    %v1403 = vld [vmem:[%s1398 + $0x20] sm:$0xff]
    %v1404 = vld [vmem:[%s1398 + $0x28] sm:$0xff]
    %v1405 = vpack.c.bf16 %v1400, %v1399
    %v1406 = vpack.c.bf16 %v1402, %v1401
    %v1407 = vpack.c.bf16 %v1404, %v1403
    %v1409 = vsel %vm106, %v1405, 0
    %v1412 = vsel %vm106, %v1406, 0
    %v1415 = vsel %vm106, %v1407, 0
    %1417 = vmatpush.bf16.msra.mxu0 0
    %1418 = vmatpush.bf16.msra.mxu0 0
    %1419 = vmatpush.bf16.msra.mxu0 0
    %1420 = vmatpush.bf16.msra.mxu0 0
    %1421 = vmatpush.bf16.msra.mxu0 0
    %1422 = vmatpush.bf16.msra.mxu0 0
    %1423 = vmatpush.bf16.msra.mxu0 %v835
    %1424 = vmatpush.bf16.msra.mxu0 %v813
    %1425 = vmatmul.bf16.gmra.mxu0 %v1409
    %v1426 = vpop.f32.mrf.mxu0
    %v1427 = vadd.f32 0.0, %v1426
    %v1428 = vpop.f32.mrf.mxu0
    %v1429 = vadd.f32 0.0, %v1428
    %1430 = vmatmul.bf16.gmra.mxu0 %v1412
    %v1431 = vpop.f32.mrf.mxu0
    %v1432 = vadd.f32 0.0, %v1431
    %v1433 = vpop.f32.mrf.mxu0
    %v1434 = vadd.f32 0.0, %v1433
    %1435 = vmatmul.bf16.gmra.mxu0 %v1415
    %v1436 = vpop.f32.mrf.mxu0
    %v1437 = vadd.f32 0.0, %v1436
    %v1438 = vpop.f32.mrf.mxu0
    %v1439 = vadd.f32 0.0, %v1438
    %1440 = vdwg.mxu0
    %1441 = vmatpush.bf16.msra.mxu0 0
    %1442 = vmatpush.bf16.msra.mxu0 0
    %1443 = vmatpush.bf16.msra.mxu0 0
    %1444 = vmatpush.bf16.msra.mxu0 0
    %1445 = vmatpush.bf16.msra.mxu0 0
    %1446 = vmatpush.bf16.msra.mxu0 0
    %1447 = vmatpush.bf16.msra.mxu0 %v838
    %1448 = vmatpush.bf16.msra.mxu0 %v814
    %1449 = vmatmul.bf16.gmra.mxu0 %v1409
    %v1450 = vpop.f32.mrf.mxu0
    %v1451 = vadd.f32 0.0, %v1450
    %v1452 = vpop.f32.mrf.mxu0
    %v1453 = vadd.f32 0.0, %v1452
    %1454 = vmatmul.bf16.gmra.mxu0 %v1412
    %v1455 = vpop.f32.mrf.mxu0
    %v1456 = vadd.f32 0.0, %v1455
    %v1457 = vpop.f32.mrf.mxu0
    %v1458 = vadd.f32 0.0, %v1457
    %1459 = vmatmul.bf16.gmra.mxu0 %v1415
    %v1460 = vpop.f32.mrf.mxu0
    %v1461 = vadd.f32 0.0, %v1460
    %v1462 = vpop.f32.mrf.mxu0
    %v1463 = vadd.f32 0.0, %v1462
    %1464 = vdwg.mxu0
    %1465 = vmatpush.bf16.msra.mxu0 0
    %1466 = vmatpush.bf16.msra.mxu0 0
    %1467 = vmatpush.bf16.msra.mxu0 0
    %1468 = vmatpush.bf16.msra.mxu0 0
    %1469 = vmatpush.bf16.msra.mxu0 0
    %1470 = vmatpush.bf16.msra.mxu0 0
    %1471 = vmatpush.bf16.msra.mxu0 %v841
    %1472 = vmatpush.bf16.msra.mxu0 %v815
    %1473 = vmatmul.bf16.gmra.mxu0 %v1409
    %v1474 = vpop.f32.mrf.mxu0
    %v1475 = vadd.f32 0.0, %v1474
    %v1476 = vpop.f32.mrf.mxu0
    %v1477 = vadd.f32 0.0, %v1476
    %1478 = vmatmul.bf16.gmra.mxu0 %v1412
    %v1479 = vpop.f32.mrf.mxu0
    %v1480 = vadd.f32 0.0, %v1479
    %v1481 = vpop.f32.mrf.mxu0
    %v1482 = vadd.f32 0.0, %v1481
    %1483 = vmatmul.bf16.gmra.mxu0 %v1415
    %v1484 = vpop.f32.mrf.mxu0
    %v1485 = vadd.f32 0.0, %v1484
    %v1486 = vpop.f32.mrf.mxu0
    %v1487 = vadd.f32 0.0, %v1486
    %1488 = vdwg.mxu0
    %1489 = vmatpush.bf16.msra.mxu0 0
    %1490 = vmatpush.bf16.msra.mxu0 0
    %1491 = vmatpush.bf16.msra.mxu0 0
    %1492 = vmatpush.bf16.msra.mxu0 0
    %1493 = vmatpush.bf16.msra.mxu0 0
    %1494 = vmatpush.bf16.msra.mxu0 0
    %1495 = vmatpush.bf16.msra.mxu0 %v844
    %1496 = vmatpush.bf16.msra.mxu0 %v816
    %1497 = vmatmul.bf16.gmra.mxu0 %v1409
    %v1498 = vpop.f32.mrf.mxu0
    %v1499 = vadd.f32 0.0, %v1498
    %v1500 = vpop.f32.mrf.mxu0
    %v1501 = vadd.f32 0.0, %v1500
    %1502 = vmatmul.bf16.gmra.mxu0 %v1412
    %v1503 = vpop.f32.mrf.mxu0
    %v1504 = vadd.f32 0.0, %v1503
    %v1505 = vpop.f32.mrf.mxu0
    %v1506 = vadd.f32 0.0, %v1505
    %1507 = vmatmul.bf16.gmra.mxu0 %v1415
    %v1508 = vpop.f32.mrf.mxu0
    %v1509 = vadd.f32 0.0, %v1508
    %v1510 = vpop.f32.mrf.mxu0
    %v1511 = vadd.f32 0.0, %v1510
    %1512 = vdwg.mxu0
    %v1513 = vadd.f32 %v1374, %v1427
    %v1514 = vadd.f32 %v1375, %v1451
    %v1515 = vadd.f32 %v1376, %v1475
    %v1516 = vadd.f32 %v1377, %v1499
    %v1517 = vadd.f32 %v1378, %v1429
    %v1518 = vadd.f32 %v1379, %v1453
    %v1519 = vadd.f32 %v1380, %v1477
    %v1520 = vadd.f32 %v1381, %v1501
    %v1521 = vadd.f32 %v1382, %v1432
    %v1522 = vadd.f32 %v1383, %v1456
    %v1523 = vadd.f32 %v1384, %v1480
    %v1524 = vadd.f32 %v1385, %v1504
    %v1525 = vadd.f32 %v1386, %v1434
    %v1526 = vadd.f32 %v1387, %v1458
    %v1527 = vadd.f32 %v1388, %v1482
    %v1528 = vadd.f32 %v1389, %v1506
    %v1529 = vadd.f32 %v1390, %v1437
    %v1530 = vadd.f32 %v1391, %v1461
    %v1531 = vadd.f32 %v1392, %v1485
    %v1532 = vadd.f32 %v1393, %v1509
    %v1533 = vadd.f32 %v1394, %v1439
    %v1534 = vadd.f32 %v1395, %v1463
    %v1535 = vadd.f32 %v1396, %v1487
    %v1536 = vadd.f32 %v1397, %v1511
    %v1537 = vmax.f32 %v942, %v1513
    %v1538 = vmax.f32 %v943, %v1514
    %v1539 = vmax.f32 %v944, %v1515
    %v1540 = vmax.f32 %v945, %v1516
    %v1541 = vmax.f32 %v946, %v1517
    %v1542 = vmax.f32 %v947, %v1518
    %v1543 = vmax.f32 %v948, %v1519
    %v1544 = vmax.f32 %v949, %v1520
    %v1545 = vmax.f32 %v950, %v1521
    %v1546 = vmax.f32 %v951, %v1522
    %v1547 = vmax.f32 %v952, %v1523
    %v1548 = vmax.f32 %v953, %v1524
    %v1549 = vmax.f32 %v954, %v1525
    %v1550 = vmax.f32 %v955, %v1526
    %v1551 = vmax.f32 %v956, %v1527
    %v1552 = vmax.f32 %v957, %v1528
    %v1553 = vmax.f32 %v958, %v1529
    %v1554 = vmax.f32 %v959, %v1530
    %v1555 = vmax.f32 %v960, %v1531
    %v1556 = vmax.f32 %v961, %v1532
    %v1557 = vmax.f32 %v962, %v1533
    %v1558 = vmax.f32 %v963, %v1534
    %v1559 = vmax.f32 %v964, %v1535
    %v1560 = vmax.f32 %v965, %v1536
    %v1561 = vmax.f32 %v1537, %v1539
    %v1562 = vmax.f32 %v1538, %v1540
    %v1563 = vmax.f32 %v1541, %v1543
    %v1564 = vmax.f32 %v1542, %v1544
    %v1565 = vmax.f32 %v1545, %v1547
    %v1566 = vmax.f32 %v1546, %v1548
    %v1567 = vmax.f32 %v1549, %v1551
    %v1568 = vmax.f32 %v1550, %v1552
    %v1569 = vmax.f32 %v1553, %v1555
    %v1570 = vmax.f32 %v1554, %v1556
    %v1571 = vmax.f32 %v1557, %v1559
    %v1572 = vmax.f32 %v1558, %v1560
    %v1573 = vld [vmem:[%s2] sm:$0x3]
    %v1575 = vperm.slane %v1573, 0
    %v1576 = vperm.slane %v1573, 1
    %v1579 = vadd.f32 %v1561, %v1575
    %v1580 = vadd.f32 %v1562, %v1576
    %v1581 = vadd.f32 %v1563, %v1575
    %v1582 = vadd.f32 %v1564, %v1576
    %v1583 = vadd.f32 %v1565, %v1575
    %v1584 = vadd.f32 %v1566, %v1576
    %v1585 = vadd.f32 %v1567, %v1575
    %v1586 = vadd.f32 %v1568, %v1576
    %v1587 = vadd.f32 %v1569, %v1575
    %v1588 = vadd.f32 %v1570, %v1576
    %v1589 = vadd.f32 %v1571, %v1575
    %v1590 = vadd.f32 %v1572, %v1576
    %v1591 = vmax.f32 %v1579, 0.0
    %v1592 = vmax.f32 %v1580, 0.0
    %v1593 = vmax.f32 %v1581, 0.0
    %v1594 = vmax.f32 %v1582, 0.0
    %v1595 = vmax.f32 %v1583, 0.0
    %v1596 = vmax.f32 %v1584, 0.0
    %v1597 = vmax.f32 %v1585, 0.0
    %v1598 = vmax.f32 %v1586, 0.0
    %v1599 = vmax.f32 %v1587, 0.0
    %v1600 = vmax.f32 %v1588, 0.0
    %v1601 = vmax.f32 %v1589, 0.0
    %v1602 = vmax.f32 %v1590, 0.0
    %v1603 = vpack.c.bf16 %v1592, %v1591
    %v1604 = vpack.c.bf16 %v1594, %v1593
    %v1605 = vpack.c.bf16 %v1596, %v1595
    %v1606 = vpack.c.bf16 %v1598, %v1597
    %v1607 = vpack.c.bf16 %v1600, %v1599
    %v1608 = vpack.c.bf16 %v1602, %v1601
    %1609 = vmatpush.bf16.msra.mxu0 0
    %1610 = vmatpush.bf16.msra.mxu0 0
    %1611 = vmatpush.bf16.msra.mxu0 0
    %1612 = vmatpush.bf16.msra.mxu0 0
    %1613 = vmatpush.bf16.msra.mxu0 0
    %1614 = vmatpush.bf16.msra.mxu0 0
    %1615 = vmatpush.bf16.msra.mxu0 %v118
    %1616 = vmatpush.bf16.msra.mxu0 %v94
    %1617 = vmatmul.bf16.gmra.mxu0 %v630
    %v1618 = vpop.f32.mrf.mxu0
    %v1619 = vadd.f32 0.0, %v1618
    %v1620 = vpop.f32.mrf.mxu0
    %v1621 = vadd.f32 0.0, %v1620
    %1622 = vmatmul.bf16.gmra.mxu0 %v633
    %v1623 = vpop.f32.mrf.mxu0
    %v1624 = vadd.f32 0.0, %v1623
    %v1625 = vpop.f32.mrf.mxu0
    %v1626 = vadd.f32 0.0, %v1625
    %1627 = vmatmul.bf16.gmra.mxu0 %v636
    %v1628 = vpop.f32.mrf.mxu0
    %v1629 = vadd.f32 0.0, %v1628
    %v1630 = vpop.f32.mrf.mxu0
    %v1631 = vadd.f32 0.0, %v1630
    %1632 = vdwg.mxu0
    %1633 = vmatpush.bf16.msra.mxu0 0
    %1634 = vmatpush.bf16.msra.mxu0 0
    %1635 = vmatpush.bf16.msra.mxu0 0
    %1636 = vmatpush.bf16.msra.mxu0 0
    %1637 = vmatpush.bf16.msra.mxu0 0
    %1638 = vmatpush.bf16.msra.mxu0 0
    %1639 = vmatpush.bf16.msra.mxu0 %v121
    %1640 = vmatpush.bf16.msra.mxu0 %v95
    %1641 = vmatmul.bf16.gmra.mxu0 %v630
    %v1642 = vpop.f32.mrf.mxu0
    %v1643 = vadd.f32 0.0, %v1642
    %v1644 = vpop.f32.mrf.mxu0
    %v1645 = vadd.f32 0.0, %v1644
    %1646 = vmatmul.bf16.gmra.mxu0 %v633
    %v1647 = vpop.f32.mrf.mxu0
    %v1648 = vadd.f32 0.0, %v1647
    %v1649 = vpop.f32.mrf.mxu0
    %v1650 = vadd.f32 0.0, %v1649
    %1651 = vmatmul.bf16.gmra.mxu0 %v636
    %v1652 = vpop.f32.mrf.mxu0
    %v1653 = vadd.f32 0.0, %v1652
    %v1654 = vpop.f32.mrf.mxu0
    %v1655 = vadd.f32 0.0, %v1654
    %1656 = vdwg.mxu0
    %1657 = vmatpush.bf16.msra.mxu0 0
    %1658 = vmatpush.bf16.msra.mxu0 0
    %1659 = vmatpush.bf16.msra.mxu0 0
    %1660 = vmatpush.bf16.msra.mxu0 0
    %1661 = vmatpush.bf16.msra.mxu0 0
    %1662 = vmatpush.bf16.msra.mxu0 0
    %1663 = vmatpush.bf16.msra.mxu0 %v124
    %1664 = vmatpush.bf16.msra.mxu0 %v96
    %1665 = vmatmul.bf16.gmra.mxu0 %v630
    %v1666 = vpop.f32.mrf.mxu0
    %v1667 = vadd.f32 0.0, %v1666
    %v1668 = vpop.f32.mrf.mxu0
    %v1669 = vadd.f32 0.0, %v1668
    %1670 = vmatmul.bf16.gmra.mxu0 %v633
    %v1671 = vpop.f32.mrf.mxu0
    %v1672 = vadd.f32 0.0, %v1671
    %v1673 = vpop.f32.mrf.mxu0
    %v1674 = vadd.f32 0.0, %v1673
    %1675 = vmatmul.bf16.gmra.mxu0 %v636
    %v1676 = vpop.f32.mrf.mxu0
    %v1677 = vadd.f32 0.0, %v1676
    %v1678 = vpop.f32.mrf.mxu0
    %v1679 = vadd.f32 0.0, %v1678
    %1680 = vdwg.mxu0
    %1681 = vmatpush.bf16.msra.mxu0 0
    %1682 = vmatpush.bf16.msra.mxu0 0
    %1683 = vmatpush.bf16.msra.mxu0 0
    %1684 = vmatpush.bf16.msra.mxu0 0
    %1685 = vmatpush.bf16.msra.mxu0 0
    %1686 = vmatpush.bf16.msra.mxu0 0
    %1687 = vmatpush.bf16.msra.mxu0 %v127
    %1688 = vmatpush.bf16.msra.mxu0 %v97
    %1689 = vmatmul.bf16.gmra.mxu0 %v630
    %v1690 = vpop.f32.mrf.mxu0
    %v1691 = vadd.f32 0.0, %v1690
    %v1692 = vpop.f32.mrf.mxu0
    %v1693 = vadd.f32 0.0, %v1692
    %1694 = vmatmul.bf16.gmra.mxu0 %v633
    %v1695 = vpop.f32.mrf.mxu0
    %v1696 = vadd.f32 0.0, %v1695
    %v1697 = vpop.f32.mrf.mxu0
    %v1698 = vadd.f32 0.0, %v1697
    %1699 = vmatmul.bf16.gmra.mxu0 %v636
    %v1700 = vpop.f32.mrf.mxu0
    %v1701 = vadd.f32 0.0, %v1700
    %v1702 = vpop.f32.mrf.mxu0
    %v1703 = vadd.f32 0.0, %v1702
    %1704 = vdwg.mxu0
    %1705 = vmatpush.bf16.msra.mxu0 0
    %1706 = vmatpush.bf16.msra.mxu0 0
    %1707 = vmatpush.bf16.msra.mxu0 0
    %1708 = vmatpush.bf16.msra.mxu0 0
    %1709 = vmatpush.bf16.msra.mxu0 0
    %1710 = vmatpush.bf16.msra.mxu0 0
    %1711 = vmatpush.bf16.msra.mxu0 %v271
    %1712 = vmatpush.bf16.msra.mxu0 %v249
    %1713 = vmatmul.bf16.gmra.mxu0 %v434
    %v1714 = vpop.f32.mrf.mxu0
    %v1715 = vadd.f32 %v1619, %v1714
    %v1716 = vpop.f32.mrf.mxu0
    %v1717 = vadd.f32 %v1621, %v1716
    %1718 = vmatmul.bf16.gmra.mxu0 %v437
    %v1719 = vpop.f32.mrf.mxu0
    %v1720 = vadd.f32 %v1624, %v1719
    %v1721 = vpop.f32.mrf.mxu0
    %v1722 = vadd.f32 %v1626, %v1721
    %1723 = vmatmul.bf16.gmra.mxu0 %v440
    %v1724 = vpop.f32.mrf.mxu0
    %v1725 = vadd.f32 %v1629, %v1724
    %v1726 = vpop.f32.mrf.mxu0
    %v1727 = vadd.f32 %v1631, %v1726
    %1728 = vdwg.mxu0
    %1729 = vmatpush.bf16.msra.mxu0 0
    %1730 = vmatpush.bf16.msra.mxu0 0
    %1731 = vmatpush.bf16.msra.mxu0 0
    %1732 = vmatpush.bf16.msra.mxu0 0
    %1733 = vmatpush.bf16.msra.mxu0 0
    %1734 = vmatpush.bf16.msra.mxu0 0
    %1735 = vmatpush.bf16.msra.mxu0 %v274
    %1736 = vmatpush.bf16.msra.mxu0 %v250
    %1737 = vmatmul.bf16.gmra.mxu0 %v434
    %v1738 = vpop.f32.mrf.mxu0
    %v1739 = vadd.f32 %v1643, %v1738
    %v1740 = vpop.f32.mrf.mxu0
    %v1741 = vadd.f32 %v1645, %v1740
    %1742 = vmatmul.bf16.gmra.mxu0 %v437
    %v1743 = vpop.f32.mrf.mxu0
    %v1744 = vadd.f32 %v1648, %v1743
    %v1745 = vpop.f32.mrf.mxu0
    %v1746 = vadd.f32 %v1650, %v1745
    %1747 = vmatmul.bf16.gmra.mxu0 %v440
    %v1748 = vpop.f32.mrf.mxu0
    %v1749 = vadd.f32 %v1653, %v1748
    %v1750 = vpop.f32.mrf.mxu0
    %v1751 = vadd.f32 %v1655, %v1750
    %1752 = vdwg.mxu0
    %1753 = vmatpush.bf16.msra.mxu0 0
    %1754 = vmatpush.bf16.msra.mxu0 0
    %1755 = vmatpush.bf16.msra.mxu0 0
    %1756 = vmatpush.bf16.msra.mxu0 0
    %1757 = vmatpush.bf16.msra.mxu0 0
    %1758 = vmatpush.bf16.msra.mxu0 0
    %1759 = vmatpush.bf16.msra.mxu0 %v277
    %1760 = vmatpush.bf16.msra.mxu0 %v251
    %1761 = vmatmul.bf16.gmra.mxu0 %v434
    %v1762 = vpop.f32.mrf.mxu0
    %v1763 = vadd.f32 %v1667, %v1762
    %v1764 = vpop.f32.mrf.mxu0
    %v1765 = vadd.f32 %v1669, %v1764
    %1766 = vmatmul.bf16.gmra.mxu0 %v437
    %v1767 = vpop.f32.mrf.mxu0
    %v1768 = vadd.f32 %v1672, %v1767
    %v1769 = vpop.f32.mrf.mxu0
    %v1770 = vadd.f32 %v1674, %v1769
    %1771 = vmatmul.bf16.gmra.mxu0 %v440
    %v1772 = vpop.f32.mrf.mxu0
    %v1773 = vadd.f32 %v1677, %v1772
    %v1774 = vpop.f32.mrf.mxu0
    %v1775 = vadd.f32 %v1679, %v1774
    %1776 = vdwg.mxu0
    %1777 = vmatpush.bf16.msra.mxu0 0
    %1778 = vmatpush.bf16.msra.mxu0 0
    %1779 = vmatpush.bf16.msra.mxu0 0
    %1780 = vmatpush.bf16.msra.mxu0 0
    %1781 = vmatpush.bf16.msra.mxu0 0
    %1782 = vmatpush.bf16.msra.mxu0 0
    %1783 = vmatpush.bf16.msra.mxu0 %v280
    %1784 = vmatpush.bf16.msra.mxu0 %v252
    %1785 = vmatmul.bf16.gmra.mxu0 %v434
    %v1786 = vpop.f32.mrf.mxu0
    %v1787 = vadd.f32 %v1691, %v1786
    %v1788 = vpop.f32.mrf.mxu0
    %v1789 = vadd.f32 %v1693, %v1788
    %1790 = vmatmul.bf16.gmra.mxu0 %v437
    %v1791 = vpop.f32.mrf.mxu0
    %v1792 = vadd.f32 %v1696, %v1791
    %v1793 = vpop.f32.mrf.mxu0
    %v1794 = vadd.f32 %v1698, %v1793
    %1795 = vmatmul.bf16.gmra.mxu0 %v440
    %v1796 = vpop.f32.mrf.mxu0
    %v1797 = vadd.f32 %v1701, %v1796
    %v1798 = vpop.f32.mrf.mxu0
    %v1799 = vadd.f32 %v1703, %v1798
    %1800 = vdwg.mxu0
    %1801 = vmatpush.bf16.msra.mxu0 0
    %1802 = vmatpush.bf16.msra.mxu0 0
    %1803 = vmatpush.bf16.msra.mxu0 0
    %1804 = vmatpush.bf16.msra.mxu0 0
    %1805 = vmatpush.bf16.msra.mxu0 0
    %1806 = vmatpush.bf16.msra.mxu0 0
    %1807 = vmatpush.bf16.msra.mxu0 %v443
    %1808 = vmatpush.bf16.msra.mxu0 %v421
    %1809 = vmatmul.bf16.gmra.mxu0 %v826
    %v1810 = vpop.f32.mrf.mxu0
    %v1811 = vadd.f32 0.0, %v1810
    %v1812 = vpop.f32.mrf.mxu0
    %v1813 = vadd.f32 0.0, %v1812
    %1814 = vmatmul.bf16.gmra.mxu0 %v829
    %v1815 = vpop.f32.mrf.mxu0
    %v1816 = vadd.f32 0.0, %v1815
    %v1817 = vpop.f32.mrf.mxu0
    %v1818 = vadd.f32 0.0, %v1817
    %1819 = vmatmul.bf16.gmra.mxu0 %v832
    %v1820 = vpop.f32.mrf.mxu0
    %v1821 = vadd.f32 0.0, %v1820
    %v1822 = vpop.f32.mrf.mxu0
    %v1823 = vadd.f32 0.0, %v1822
    %1824 = vdwg.mxu0
    %1825 = vmatpush.bf16.msra.mxu0 0
    %1826 = vmatpush.bf16.msra.mxu0 0
    %1827 = vmatpush.bf16.msra.mxu0 0
    %1828 = vmatpush.bf16.msra.mxu0 0
    %1829 = vmatpush.bf16.msra.mxu0 0
    %1830 = vmatpush.bf16.msra.mxu0 0
    %1831 = vmatpush.bf16.msra.mxu0 %v446
    %1832 = vmatpush.bf16.msra.mxu0 %v422
    %1833 = vmatmul.bf16.gmra.mxu0 %v826
    %v1834 = vpop.f32.mrf.mxu0
    %v1835 = vadd.f32 0.0, %v1834
    %v1836 = vpop.f32.mrf.mxu0
    %v1837 = vadd.f32 0.0, %v1836
    %1838 = vmatmul.bf16.gmra.mxu0 %v829
    %v1839 = vpop.f32.mrf.mxu0
    %v1840 = vadd.f32 0.0, %v1839
    %v1841 = vpop.f32.mrf.mxu0
    %v1842 = vadd.f32 0.0, %v1841
    %1843 = vmatmul.bf16.gmra.mxu0 %v832
    %v1844 = vpop.f32.mrf.mxu0
    %v1845 = vadd.f32 0.0, %v1844
    %v1846 = vpop.f32.mrf.mxu0
    %v1847 = vadd.f32 0.0, %v1846
    %1848 = vdwg.mxu0
    %1849 = vmatpush.bf16.msra.mxu0 0
    %1850 = vmatpush.bf16.msra.mxu0 0
    %1851 = vmatpush.bf16.msra.mxu0 0
    %1852 = vmatpush.bf16.msra.mxu0 0
    %1853 = vmatpush.bf16.msra.mxu0 0
    %1854 = vmatpush.bf16.msra.mxu0 0
    %1855 = vmatpush.bf16.msra.mxu0 %v449
    %1856 = vmatpush.bf16.msra.mxu0 %v423
    %1857 = vmatmul.bf16.gmra.mxu0 %v826
    %v1858 = vpop.f32.mrf.mxu0
    %v1859 = vadd.f32 0.0, %v1858
    %v1860 = vpop.f32.mrf.mxu0
    %v1861 = vadd.f32 0.0, %v1860
    %1862 = vmatmul.bf16.gmra.mxu0 %v829
    %v1863 = vpop.f32.mrf.mxu0
    %v1864 = vadd.f32 0.0, %v1863
    %v1865 = vpop.f32.mrf.mxu0
    %v1866 = vadd.f32 0.0, %v1865
    %1867 = vmatmul.bf16.gmra.mxu0 %v832
    %v1868 = vpop.f32.mrf.mxu0
    %v1869 = vadd.f32 0.0, %v1868
    %v1870 = vpop.f32.mrf.mxu0
    %v1871 = vadd.f32 0.0, %v1870
    %1872 = vdwg.mxu0
    %1873 = vmatpush.bf16.msra.mxu0 0
    %1874 = vmatpush.bf16.msra.mxu0 0
    %1875 = vmatpush.bf16.msra.mxu0 0
    %1876 = vmatpush.bf16.msra.mxu0 0
    %1877 = vmatpush.bf16.msra.mxu0 0
    %1878 = vmatpush.bf16.msra.mxu0 0
    %1879 = vmatpush.bf16.msra.mxu0 %v452
    %1880 = vmatpush.bf16.msra.mxu0 %v424
    %1881 = vmatmul.bf16.gmra.mxu0 %v826
    %v1882 = vpop.f32.mrf.mxu0
    %v1883 = vadd.f32 0.0, %v1882
    %v1884 = vpop.f32.mrf.mxu0
    %v1885 = vadd.f32 0.0, %v1884
    %1886 = vmatmul.bf16.gmra.mxu0 %v829
    %v1887 = vpop.f32.mrf.mxu0
    %v1888 = vadd.f32 0.0, %v1887
    %v1889 = vpop.f32.mrf.mxu0
    %v1890 = vadd.f32 0.0, %v1889
    %1891 = vmatmul.bf16.gmra.mxu0 %v832
    %v1892 = vpop.f32.mrf.mxu0
    %v1893 = vadd.f32 0.0, %v1892
    %v1894 = vpop.f32.mrf.mxu0
    %v1895 = vadd.f32 0.0, %v1894
    %1896 = vdwg.mxu0
    %v1897 = vadd.f32 %v1715, %v1811
    %v1898 = vadd.f32 %v1739, %v1835
    %v1899 = vadd.f32 %v1763, %v1859
    %v1900 = vadd.f32 %v1787, %v1883
    %v1901 = vadd.f32 %v1717, %v1813
    %v1902 = vadd.f32 %v1741, %v1837
    %v1903 = vadd.f32 %v1765, %v1861
    %v1904 = vadd.f32 %v1789, %v1885
    %v1905 = vadd.f32 %v1720, %v1816
    %v1906 = vadd.f32 %v1744, %v1840
    %v1907 = vadd.f32 %v1768, %v1864
    %v1908 = vadd.f32 %v1792, %v1888
    %v1909 = vadd.f32 %v1722, %v1818
    %v1910 = vadd.f32 %v1746, %v1842
    %v1911 = vadd.f32 %v1770, %v1866
    %v1912 = vadd.f32 %v1794, %v1890
    %v1913 = vadd.f32 %v1725, %v1821
    %v1914 = vadd.f32 %v1749, %v1845
    %v1915 = vadd.f32 %v1773, %v1869
    %v1916 = vadd.f32 %v1797, %v1893
    %v1917 = vadd.f32 %v1727, %v1823
    %v1918 = vadd.f32 %v1751, %v1847
    %v1919 = vadd.f32 %v1775, %v1871
    %v1920 = vadd.f32 %v1799, %v1895
    %1921 = vmatpush.bf16.msra.mxu0 0
    %1922 = vmatpush.bf16.msra.mxu0 0
    %1923 = vmatpush.bf16.msra.mxu0 0
    %1924 = vmatpush.bf16.msra.mxu0 0
    %1925 = vmatpush.bf16.msra.mxu0 0
    %1926 = vmatpush.bf16.msra.mxu0 0
    %1927 = vmatpush.bf16.msra.mxu0 %v639
    %1928 = vmatpush.bf16.msra.mxu0 %v617
    %1929 = vmatmul.bf16.gmra.mxu0 %v1409
    %v1930 = vpop.f32.mrf.mxu0
    %v1931 = vadd.f32 0.0, %v1930
    %v1932 = vpop.f32.mrf.mxu0
    %v1933 = vadd.f32 0.0, %v1932
    %1934 = vmatmul.bf16.gmra.mxu0 %v1412
    %v1935 = vpop.f32.mrf.mxu0
    %v1936 = vadd.f32 0.0, %v1935
    %v1937 = vpop.f32.mrf.mxu0
    %v1938 = vadd.f32 0.0, %v1937
    %1939 = vmatmul.bf16.gmra.mxu0 %v1415
    %v1940 = vpop.f32.mrf.mxu0
    %v1941 = vadd.f32 0.0, %v1940
    %v1942 = vpop.f32.mrf.mxu0
    %v1943 = vadd.f32 0.0, %v1942
    %1944 = vdwg.mxu0
    %1945 = vmatpush.bf16.msra.mxu0 0
    %1946 = vmatpush.bf16.msra.mxu0 0
    %1947 = vmatpush.bf16.msra.mxu0 0
    %1948 = vmatpush.bf16.msra.mxu0 0
    %1949 = vmatpush.bf16.msra.mxu0 0
    %1950 = vmatpush.bf16.msra.mxu0 0
    %1951 = vmatpush.bf16.msra.mxu0 %v642
    %1952 = vmatpush.bf16.msra.mxu0 %v618
    %1953 = vmatmul.bf16.gmra.mxu0 %v1409
    %v1954 = vpop.f32.mrf.mxu0
    %v1955 = vadd.f32 0.0, %v1954
    %v1956 = vpop.f32.mrf.mxu0
    %v1957 = vadd.f32 0.0, %v1956
    %1958 = vmatmul.bf16.gmra.mxu0 %v1412
    %v1959 = vpop.f32.mrf.mxu0
    %v1960 = vadd.f32 0.0, %v1959
    %v1961 = vpop.f32.mrf.mxu0
    %v1962 = vadd.f32 0.0, %v1961
    %1963 = vmatmul.bf16.gmra.mxu0 %v1415
    %v1964 = vpop.f32.mrf.mxu0
    %v1965 = vadd.f32 0.0, %v1964
    %v1966 = vpop.f32.mrf.mxu0
    %v1967 = vadd.f32 0.0, %v1966
    %1968 = vdwg.mxu0
    %1969 = vmatpush.bf16.msra.mxu0 0
    %1970 = vmatpush.bf16.msra.mxu0 0
    %1971 = vmatpush.bf16.msra.mxu0 0
    %1972 = vmatpush.bf16.msra.mxu0 0
    %1973 = vmatpush.bf16.msra.mxu0 0
    %1974 = vmatpush.bf16.msra.mxu0 0
    %1975 = vmatpush.bf16.msra.mxu0 %v645
    %1976 = vmatpush.bf16.msra.mxu0 %v619
    %1977 = vmatmul.bf16.gmra.mxu0 %v1409
    %v1978 = vpop.f32.mrf.mxu0
    %v1979 = vadd.f32 0.0, %v1978
    %v1980 = vpop.f32.mrf.mxu0
    %v1981 = vadd.f32 0.0, %v1980
    %1982 = vmatmul.bf16.gmra.mxu0 %v1412
    %v1983 = vpop.f32.mrf.mxu0
    %v1984 = vadd.f32 0.0, %v1983
    %v1985 = vpop.f32.mrf.mxu0
    %v1986 = vadd.f32 0.0, %v1985
    %1987 = vmatmul.bf16.gmra.mxu0 %v1415
    %v1988 = vpop.f32.mrf.mxu0
    %v1989 = vadd.f32 0.0, %v1988
    %v1990 = vpop.f32.mrf.mxu0
    %v1991 = vadd.f32 0.0, %v1990
    %1992 = vdwg.mxu0
    %1993 = vmatpush.bf16.msra.mxu0 0
    %1994 = vmatpush.bf16.msra.mxu0 0
    %1995 = vmatpush.bf16.msra.mxu0 0
    %1996 = vmatpush.bf16.msra.mxu0 0
    %1997 = vmatpush.bf16.msra.mxu0 0
    %1998 = vmatpush.bf16.msra.mxu0 0
    %1999 = vmatpush.bf16.msra.mxu0 %v648
    %2000 = vmatpush.bf16.msra.mxu0 %v620
    %2001 = vmatmul.bf16.gmra.mxu0 %v1409
    %v2002 = vpop.f32.mrf.mxu0
    %v2003 = vadd.f32 0.0, %v2002
    %v2004 = vpop.f32.mrf.mxu0
    %v2005 = vadd.f32 0.0, %v2004
    %2006 = vmatmul.bf16.gmra.mxu0 %v1412
    %v2007 = vpop.f32.mrf.mxu0
    %v2008 = vadd.f32 0.0, %v2007
    %v2009 = vpop.f32.mrf.mxu0
    %v2010 = vadd.f32 0.0, %v2009
    %2011 = vmatmul.bf16.gmra.mxu0 %v1415
    %v2012 = vpop.f32.mrf.mxu0
    %v2013 = vadd.f32 0.0, %v2012
    %v2014 = vpop.f32.mrf.mxu0
    %v2015 = vadd.f32 0.0, %v2014
    %2016 = vdwg.mxu0
    %v2017 = vadd.f32 %v1897, %v1931
    %v2018 = vadd.f32 %v1898, %v1955
    %v2019 = vadd.f32 %v1899, %v1979
    %v2020 = vadd.f32 %v1900, %v2003
    %v2021 = vadd.f32 %v1901, %v1933
    %v2022 = vadd.f32 %v1902, %v1957
    %v2023 = vadd.f32 %v1903, %v1981
    %v2024 = vadd.f32 %v1904, %v2005
    %v2025 = vadd.f32 %v1905, %v1936
    %v2026 = vadd.f32 %v1906, %v1960
    %v2027 = vadd.f32 %v1907, %v1984
    %v2028 = vadd.f32 %v1908, %v2008
    %v2029 = vadd.f32 %v1909, %v1938
    %v2030 = vadd.f32 %v1910, %v1962
    %v2031 = vadd.f32 %v1911, %v1986
    %v2032 = vadd.f32 %v1912, %v2010
    %v2033 = vadd.f32 %v1913, %v1941
    %v2034 = vadd.f32 %v1914, %v1965
    %v2035 = vadd.f32 %v1915, %v1989
    %v2036 = vadd.f32 %v1916, %v2013
    %v2037 = vadd.f32 %v1917, %v1943
    %v2038 = vadd.f32 %v1918, %v1967
    %v2039 = vadd.f32 %v1919, %v1991
    %v2040 = vadd.f32 %v1920, %v2015
    %s2041 = scalar_lea.vmem %s0, 120
    %v2042 = vld [vmem:[%s2041] sm:$0xff]
    %v2043 = vld [vmem:[%s2041 + $0x8] sm:$0xff]
    %v2044 = vld [vmem:[%s2041 + $0x10] sm:$0xff]
    %v2045 = vld [vmem:[%s2041 + $0x18] sm:$0xff]
    %v2046 = vld [vmem:[%s2041 + $0x20] sm:$0xff]
    %v2047 = vld [vmem:[%s2041 + $0x28] sm:$0xff]
    %v2048 = vpack.c.bf16 %v2043, %v2042
    %v2049 = vpack.c.bf16 %v2045, %v2044
    %v2050 = vpack.c.bf16 %v2047, %v2046
    %v2052 = vsel %vm106, %v2048, 0
    %v2055 = vsel %vm106, %v2049, 0
    %v2058 = vsel %vm106, %v2050, 0
    %2060 = vmatpush.bf16.msra.mxu0 0
    %2061 = vmatpush.bf16.msra.mxu0 0
    %2062 = vmatpush.bf16.msra.mxu0 0
    %2063 = vmatpush.bf16.msra.mxu0 0
    %2064 = vmatpush.bf16.msra.mxu0 0
    %2065 = vmatpush.bf16.msra.mxu0 0
    %2066 = vmatpush.bf16.msra.mxu0 %v835
    %2067 = vmatpush.bf16.msra.mxu0 %v813
    %2068 = vmatmul.bf16.gmra.mxu0 %v2052
    %v2069 = vpop.f32.mrf.mxu0
    %v2070 = vadd.f32 0.0, %v2069
    %v2071 = vpop.f32.mrf.mxu0
    %v2072 = vadd.f32 0.0, %v2071
    %2073 = vmatmul.bf16.gmra.mxu0 %v2055
    %v2074 = vpop.f32.mrf.mxu0
    %v2075 = vadd.f32 0.0, %v2074
    %v2076 = vpop.f32.mrf.mxu0
    %v2077 = vadd.f32 0.0, %v2076
    %2078 = vmatmul.bf16.gmra.mxu0 %v2058
    %v2079 = vpop.f32.mrf.mxu0
    %v2080 = vadd.f32 0.0, %v2079
    %v2081 = vpop.f32.mrf.mxu0
    %v2082 = vadd.f32 0.0, %v2081
    %2083 = vdwg.mxu0
    %2084 = vmatpush.bf16.msra.mxu0 0
    %2085 = vmatpush.bf16.msra.mxu0 0
    %2086 = vmatpush.bf16.msra.mxu0 0
    %2087 = vmatpush.bf16.msra.mxu0 0
    %2088 = vmatpush.bf16.msra.mxu0 0
    %2089 = vmatpush.bf16.msra.mxu0 0
    %2090 = vmatpush.bf16.msra.mxu0 %v838
    %2091 = vmatpush.bf16.msra.mxu0 %v814
    %2092 = vmatmul.bf16.gmra.mxu0 %v2052
    %v2093 = vpop.f32.mrf.mxu0
    %v2094 = vadd.f32 0.0, %v2093
    %v2095 = vpop.f32.mrf.mxu0
    %v2096 = vadd.f32 0.0, %v2095
    %2097 = vmatmul.bf16.gmra.mxu0 %v2055
    %v2098 = vpop.f32.mrf.mxu0
    %v2099 = vadd.f32 0.0, %v2098
    %v2100 = vpop.f32.mrf.mxu0
    %v2101 = vadd.f32 0.0, %v2100
    %2102 = vmatmul.bf16.gmra.mxu0 %v2058
    %v2103 = vpop.f32.mrf.mxu0
    %v2104 = vadd.f32 0.0, %v2103
    %v2105 = vpop.f32.mrf.mxu0
    %v2106 = vadd.f32 0.0, %v2105
    %2107 = vdwg.mxu0
    %2108 = vmatpush.bf16.msra.mxu0 0
    %2109 = vmatpush.bf16.msra.mxu0 0
    %2110 = vmatpush.bf16.msra.mxu0 0
    %2111 = vmatpush.bf16.msra.mxu0 0
    %2112 = vmatpush.bf16.msra.mxu0 0
    %2113 = vmatpush.bf16.msra.mxu0 0
    %2114 = vmatpush.bf16.msra.mxu0 %v841
    %2115 = vmatpush.bf16.msra.mxu0 %v815
    %2116 = vmatmul.bf16.gmra.mxu0 %v2052
    %v2117 = vpop.f32.mrf.mxu0
    %v2118 = vadd.f32 0.0, %v2117
    %v2119 = vpop.f32.mrf.mxu0
    %v2120 = vadd.f32 0.0, %v2119
    %2121 = vmatmul.bf16.gmra.mxu0 %v2055
    %v2122 = vpop.f32.mrf.mxu0
    %v2123 = vadd.f32 0.0, %v2122
    %v2124 = vpop.f32.mrf.mxu0
    %v2125 = vadd.f32 0.0, %v2124
    %2126 = vmatmul.bf16.gmra.mxu0 %v2058
    %v2127 = vpop.f32.mrf.mxu0
    %v2128 = vadd.f32 0.0, %v2127
    %v2129 = vpop.f32.mrf.mxu0
    %v2130 = vadd.f32 0.0, %v2129
    %2131 = vdwg.mxu0
    %2132 = vmatpush.bf16.msra.mxu0 0
    %2133 = vmatpush.bf16.msra.mxu0 0
    %2134 = vmatpush.bf16.msra.mxu0 0
    %2135 = vmatpush.bf16.msra.mxu0 0
    %2136 = vmatpush.bf16.msra.mxu0 0
    %2137 = vmatpush.bf16.msra.mxu0 0
    %2138 = vmatpush.bf16.msra.mxu0 %v844
    %2139 = vmatpush.bf16.msra.mxu0 %v816
    %2140 = vmatmul.bf16.gmra.mxu0 %v2052
    %v2141 = vpop.f32.mrf.mxu0
    %v2142 = vadd.f32 0.0, %v2141
    %v2143 = vpop.f32.mrf.mxu0
    %v2144 = vadd.f32 0.0, %v2143
    %2145 = vmatmul.bf16.gmra.mxu0 %v2055
    %v2146 = vpop.f32.mrf.mxu0
    %v2147 = vadd.f32 0.0, %v2146
    %v2148 = vpop.f32.mrf.mxu0
    %v2149 = vadd.f32 0.0, %v2148
    %2150 = vmatmul.bf16.gmra.mxu0 %v2058
    %v2151 = vpop.f32.mrf.mxu0
    %v2152 = vadd.f32 0.0, %v2151
    %v2153 = vpop.f32.mrf.mxu0
    %v2154 = vadd.f32 0.0, %v2153
    %2155 = vdwg.mxu0
    %v2156 = vadd.f32 %v2017, %v2070
    %v2157 = vadd.f32 %v2018, %v2094
    %v2158 = vadd.f32 %v2019, %v2118
    %v2159 = vadd.f32 %v2020, %v2142
    %v2160 = vadd.f32 %v2021, %v2072
    %v2161 = vadd.f32 %v2022, %v2096
    %v2162 = vadd.f32 %v2023, %v2120
    %v2163 = vadd.f32 %v2024, %v2144
    %v2164 = vadd.f32 %v2025, %v2075
    %v2165 = vadd.f32 %v2026, %v2099
    %v2166 = vadd.f32 %v2027, %v2123
    %v2167 = vadd.f32 %v2028, %v2147
    %v2168 = vadd.f32 %v2029, %v2077
    %v2169 = vadd.f32 %v2030, %v2101
    %v2170 = vadd.f32 %v2031, %v2125
    %v2171 = vadd.f32 %v2032, %v2149
    %v2172 = vadd.f32 %v2033, %v2080
    %v2173 = vadd.f32 %v2034, %v2104
    %v2174 = vadd.f32 %v2035, %v2128
    %v2175 = vadd.f32 %v2036, %v2152
    %v2176 = vadd.f32 %v2037, %v2082
    %v2177 = vadd.f32 %v2038, %v2106
    %v2178 = vadd.f32 %v2039, %v2130
    %v2179 = vadd.f32 %v2040, %v2154
    %2180 = vmatpush.bf16.msra.mxu0 0
    %2181 = vmatpush.bf16.msra.mxu0 0
    %2182 = vmatpush.bf16.msra.mxu0 0
    %2183 = vmatpush.bf16.msra.mxu0 0
    %2184 = vmatpush.bf16.msra.mxu0 0
    %2185 = vmatpush.bf16.msra.mxu0 0
    %2186 = vmatpush.bf16.msra.mxu0 %v118
    %2187 = vmatpush.bf16.msra.mxu0 %v94
    %2188 = vmatmul.bf16.gmra.mxu0 %v826
    %v2189 = vpop.f32.mrf.mxu0
    %v2190 = vadd.f32 0.0, %v2189
    %v2191 = vpop.f32.mrf.mxu0
    %v2192 = vadd.f32 0.0, %v2191
    %2193 = vmatmul.bf16.gmra.mxu0 %v829
    %v2194 = vpop.f32.mrf.mxu0
    %v2195 = vadd.f32 0.0, %v2194
    %v2196 = vpop.f32.mrf.mxu0
    %v2197 = vadd.f32 0.0, %v2196
    %2198 = vmatmul.bf16.gmra.mxu0 %v832
    %v2199 = vpop.f32.mrf.mxu0
    %v2200 = vadd.f32 0.0, %v2199
    %v2201 = vpop.f32.mrf.mxu0
    %v2202 = vadd.f32 0.0, %v2201
    %2203 = vdwg.mxu0
    %2204 = vmatpush.bf16.msra.mxu0 0
    %2205 = vmatpush.bf16.msra.mxu0 0
    %2206 = vmatpush.bf16.msra.mxu0 0
    %2207 = vmatpush.bf16.msra.mxu0 0
    %2208 = vmatpush.bf16.msra.mxu0 0
    %2209 = vmatpush.bf16.msra.mxu0 0
    %2210 = vmatpush.bf16.msra.mxu0 %v121
    %2211 = vmatpush.bf16.msra.mxu0 %v95
    %2212 = vmatmul.bf16.gmra.mxu0 %v826
    %v2213 = vpop.f32.mrf.mxu0
    %v2214 = vadd.f32 0.0, %v2213
    %v2215 = vpop.f32.mrf.mxu0
    %v2216 = vadd.f32 0.0, %v2215
    %2217 = vmatmul.bf16.gmra.mxu0 %v829
    %v2218 = vpop.f32.mrf.mxu0
    %v2219 = vadd.f32 0.0, %v2218
    %v2220 = vpop.f32.mrf.mxu0
    %v2221 = vadd.f32 0.0, %v2220
    %2222 = vmatmul.bf16.gmra.mxu0 %v832
    %v2223 = vpop.f32.mrf.mxu0
    %v2224 = vadd.f32 0.0, %v2223
    %v2225 = vpop.f32.mrf.mxu0
    %v2226 = vadd.f32 0.0, %v2225
    %2227 = vdwg.mxu0
    %2228 = vmatpush.bf16.msra.mxu0 0
    %2229 = vmatpush.bf16.msra.mxu0 0
    %2230 = vmatpush.bf16.msra.mxu0 0
    %2231 = vmatpush.bf16.msra.mxu0 0
    %2232 = vmatpush.bf16.msra.mxu0 0
    %2233 = vmatpush.bf16.msra.mxu0 0
    %2234 = vmatpush.bf16.msra.mxu0 %v124
    %2235 = vmatpush.bf16.msra.mxu0 %v96
    %2236 = vmatmul.bf16.gmra.mxu0 %v826
    %v2237 = vpop.f32.mrf.mxu0
    %v2238 = vadd.f32 0.0, %v2237
    %v2239 = vpop.f32.mrf.mxu0
    %v2240 = vadd.f32 0.0, %v2239
    %2241 = vmatmul.bf16.gmra.mxu0 %v829
    %v2242 = vpop.f32.mrf.mxu0
    %v2243 = vadd.f32 0.0, %v2242
    %v2244 = vpop.f32.mrf.mxu0
    %v2245 = vadd.f32 0.0, %v2244
    %2246 = vmatmul.bf16.gmra.mxu0 %v832
    %v2247 = vpop.f32.mrf.mxu0
    %v2248 = vadd.f32 0.0, %v2247
    %v2249 = vpop.f32.mrf.mxu0
    %v2250 = vadd.f32 0.0, %v2249
    %2251 = vdwg.mxu0
    %2252 = vmatpush.bf16.msra.mxu0 0
    %2253 = vmatpush.bf16.msra.mxu0 0
    %2254 = vmatpush.bf16.msra.mxu0 0
    %2255 = vmatpush.bf16.msra.mxu0 0
    %2256 = vmatpush.bf16.msra.mxu0 0
    %2257 = vmatpush.bf16.msra.mxu0 0
    %2258 = vmatpush.bf16.msra.mxu0 %v127
    %2259 = vmatpush.bf16.msra.mxu0 %v97
    %2260 = vmatmul.bf16.gmra.mxu0 %v826
    %v2261 = vpop.f32.mrf.mxu0
    %v2262 = vadd.f32 0.0, %v2261
    %v2263 = vpop.f32.mrf.mxu0
    %v2264 = vadd.f32 0.0, %v2263
    %2265 = vmatmul.bf16.gmra.mxu0 %v829
    %v2266 = vpop.f32.mrf.mxu0
    %v2267 = vadd.f32 0.0, %v2266
    %v2268 = vpop.f32.mrf.mxu0
    %v2269 = vadd.f32 0.0, %v2268
    %2270 = vmatmul.bf16.gmra.mxu0 %v832
    %v2271 = vpop.f32.mrf.mxu0
    %v2272 = vadd.f32 0.0, %v2271
    %v2273 = vpop.f32.mrf.mxu0
    %v2274 = vadd.f32 0.0, %v2273
    %2275 = vdwg.mxu0
    %2276 = vmatpush.bf16.msra.mxu0 0
    %2277 = vmatpush.bf16.msra.mxu0 0
    %2278 = vmatpush.bf16.msra.mxu0 0
    %2279 = vmatpush.bf16.msra.mxu0 0
    %2280 = vmatpush.bf16.msra.mxu0 0
    %2281 = vmatpush.bf16.msra.mxu0 0
    %2282 = vmatpush.bf16.msra.mxu0 %v271
    %2283 = vmatpush.bf16.msra.mxu0 %v249
    %2284 = vmatmul.bf16.gmra.mxu0 %v630
    %v2285 = vpop.f32.mrf.mxu0
    %v2286 = vadd.f32 %v2190, %v2285
    %v2287 = vpop.f32.mrf.mxu0
    %v2288 = vadd.f32 %v2192, %v2287
    %2289 = vmatmul.bf16.gmra.mxu0 %v633
    %v2290 = vpop.f32.mrf.mxu0
    %v2291 = vadd.f32 %v2195, %v2290
    %v2292 = vpop.f32.mrf.mxu0
    %v2293 = vadd.f32 %v2197, %v2292
    %2294 = vmatmul.bf16.gmra.mxu0 %v636
    %v2295 = vpop.f32.mrf.mxu0
    %v2296 = vadd.f32 %v2200, %v2295
    %v2297 = vpop.f32.mrf.mxu0
    %v2298 = vadd.f32 %v2202, %v2297
    %2299 = vdwg.mxu0
    %2300 = vmatpush.bf16.msra.mxu0 0
    %2301 = vmatpush.bf16.msra.mxu0 0
    %2302 = vmatpush.bf16.msra.mxu0 0
    %2303 = vmatpush.bf16.msra.mxu0 0
    %2304 = vmatpush.bf16.msra.mxu0 0
    %2305 = vmatpush.bf16.msra.mxu0 0
    %2306 = vmatpush.bf16.msra.mxu0 %v274
    %2307 = vmatpush.bf16.msra.mxu0 %v250
    %2308 = vmatmul.bf16.gmra.mxu0 %v630
    %v2309 = vpop.f32.mrf.mxu0
    %v2310 = vadd.f32 %v2214, %v2309
    %v2311 = vpop.f32.mrf.mxu0
    %v2312 = vadd.f32 %v2216, %v2311
    %2313 = vmatmul.bf16.gmra.mxu0 %v633
    %v2314 = vpop.f32.mrf.mxu0
    %v2315 = vadd.f32 %v2219, %v2314
    %v2316 = vpop.f32.mrf.mxu0
    %v2317 = vadd.f32 %v2221, %v2316
    %2318 = vmatmul.bf16.gmra.mxu0 %v636
    %v2319 = vpop.f32.mrf.mxu0
    %v2320 = vadd.f32 %v2224, %v2319
    %v2321 = vpop.f32.mrf.mxu0
    %v2322 = vadd.f32 %v2226, %v2321
    %2323 = vdwg.mxu0
    %2324 = vmatpush.bf16.msra.mxu0 0
    %2325 = vmatpush.bf16.msra.mxu0 0
    %2326 = vmatpush.bf16.msra.mxu0 0
    %2327 = vmatpush.bf16.msra.mxu0 0
    %2328 = vmatpush.bf16.msra.mxu0 0
    %2329 = vmatpush.bf16.msra.mxu0 0
    %2330 = vmatpush.bf16.msra.mxu0 %v277
    %2331 = vmatpush.bf16.msra.mxu0 %v251
    %2332 = vmatmul.bf16.gmra.mxu0 %v630
    %v2333 = vpop.f32.mrf.mxu0
    %v2334 = vadd.f32 %v2238, %v2333
    %v2335 = vpop.f32.mrf.mxu0
    %v2336 = vadd.f32 %v2240, %v2335
    %2337 = vmatmul.bf16.gmra.mxu0 %v633
    %v2338 = vpop.f32.mrf.mxu0
    %v2339 = vadd.f32 %v2243, %v2338
    %v2340 = vpop.f32.mrf.mxu0
    %v2341 = vadd.f32 %v2245, %v2340
    %2342 = vmatmul.bf16.gmra.mxu0 %v636
    %v2343 = vpop.f32.mrf.mxu0
    %v2344 = vadd.f32 %v2248, %v2343
    %v2345 = vpop.f32.mrf.mxu0
    %v2346 = vadd.f32 %v2250, %v2345
    %2347 = vdwg.mxu0
    %2348 = vmatpush.bf16.msra.mxu0 0
    %2349 = vmatpush.bf16.msra.mxu0 0
    %2350 = vmatpush.bf16.msra.mxu0 0
    %2351 = vmatpush.bf16.msra.mxu0 0
    %2352 = vmatpush.bf16.msra.mxu0 0
    %2353 = vmatpush.bf16.msra.mxu0 0
    %2354 = vmatpush.bf16.msra.mxu0 %v280
    %2355 = vmatpush.bf16.msra.mxu0 %v252
    %2356 = vmatmul.bf16.gmra.mxu0 %v630
    %v2357 = vpop.f32.mrf.mxu0
    %v2358 = vadd.f32 %v2262, %v2357
    %v2359 = vpop.f32.mrf.mxu0
    %v2360 = vadd.f32 %v2264, %v2359
    %2361 = vmatmul.bf16.gmra.mxu0 %v633
    %v2362 = vpop.f32.mrf.mxu0
    %v2363 = vadd.f32 %v2267, %v2362
    %v2364 = vpop.f32.mrf.mxu0
    %v2365 = vadd.f32 %v2269, %v2364
    %2366 = vmatmul.bf16.gmra.mxu0 %v636
    %v2367 = vpop.f32.mrf.mxu0
    %v2368 = vadd.f32 %v2272, %v2367
    %v2369 = vpop.f32.mrf.mxu0
    %v2370 = vadd.f32 %v2274, %v2369
    %2371 = vdwg.mxu0
    %2372 = vmatpush.bf16.msra.mxu0 0
    %2373 = vmatpush.bf16.msra.mxu0 0
    %2374 = vmatpush.bf16.msra.mxu0 0
    %2375 = vmatpush.bf16.msra.mxu0 0
    %2376 = vmatpush.bf16.msra.mxu0 0
    %2377 = vmatpush.bf16.msra.mxu0 0
    %2378 = vmatpush.bf16.msra.mxu0 %v443
    %2379 = vmatpush.bf16.msra.mxu0 %v421
    %2380 = vmatmul.bf16.gmra.mxu0 %v1409
    %v2381 = vpop.f32.mrf.mxu0
    %v2382 = vadd.f32 0.0, %v2381
    %v2383 = vpop.f32.mrf.mxu0
    %v2384 = vadd.f32 0.0, %v2383
    %2385 = vmatmul.bf16.gmra.mxu0 %v1412
    %v2386 = vpop.f32.mrf.mxu0
    %v2387 = vadd.f32 0.0, %v2386
    %v2388 = vpop.f32.mrf.mxu0
    %v2389 = vadd.f32 0.0, %v2388
    %2390 = vmatmul.bf16.gmra.mxu0 %v1415
    %v2391 = vpop.f32.mrf.mxu0
    %v2392 = vadd.f32 0.0, %v2391
    %v2393 = vpop.f32.mrf.mxu0
    %v2394 = vadd.f32 0.0, %v2393
    %2395 = vdwg.mxu0
    %2396 = vmatpush.bf16.msra.mxu0 0
    %2397 = vmatpush.bf16.msra.mxu0 0
    %2398 = vmatpush.bf16.msra.mxu0 0
    %2399 = vmatpush.bf16.msra.mxu0 0
    %2400 = vmatpush.bf16.msra.mxu0 0
    %2401 = vmatpush.bf16.msra.mxu0 0
    %2402 = vmatpush.bf16.msra.mxu0 %v446
    %2403 = vmatpush.bf16.msra.mxu0 %v422
    %2404 = vmatmul.bf16.gmra.mxu0 %v1409
    %v2405 = vpop.f32.mrf.mxu0
    %v2406 = vadd.f32 0.0, %v2405
    %v2407 = vpop.f32.mrf.mxu0
    %v2408 = vadd.f32 0.0, %v2407
    %2409 = vmatmul.bf16.gmra.mxu0 %v1412
    %v2410 = vpop.f32.mrf.mxu0
    %v2411 = vadd.f32 0.0, %v2410
    %v2412 = vpop.f32.mrf.mxu0
    %v2413 = vadd.f32 0.0, %v2412
    %2414 = vmatmul.bf16.gmra.mxu0 %v1415
    %v2415 = vpop.f32.mrf.mxu0
    %v2416 = vadd.f32 0.0, %v2415
    %v2417 = vpop.f32.mrf.mxu0
    %v2418 = vadd.f32 0.0, %v2417
    %2419 = vdwg.mxu0
    %2420 = vmatpush.bf16.msra.mxu0 0
    %2421 = vmatpush.bf16.msra.mxu0 0
    %2422 = vmatpush.bf16.msra.mxu0 0
    %2423 = vmatpush.bf16.msra.mxu0 0
    %2424 = vmatpush.bf16.msra.mxu0 0
    %2425 = vmatpush.bf16.msra.mxu0 0
    %2426 = vmatpush.bf16.msra.mxu0 %v449
    %2427 = vmatpush.bf16.msra.mxu0 %v423
    %2428 = vmatmul.bf16.gmra.mxu0 %v1409
    %v2429 = vpop.f32.mrf.mxu0
    %v2430 = vadd.f32 0.0, %v2429
    %v2431 = vpop.f32.mrf.mxu0
    %v2432 = vadd.f32 0.0, %v2431
    %2433 = vmatmul.bf16.gmra.mxu0 %v1412
    %v2434 = vpop.f32.mrf.mxu0
    %v2435 = vadd.f32 0.0, %v2434
    %v2436 = vpop.f32.mrf.mxu0
    %v2437 = vadd.f32 0.0, %v2436
    %2438 = vmatmul.bf16.gmra.mxu0 %v1415
    %v2439 = vpop.f32.mrf.mxu0
    %v2440 = vadd.f32 0.0, %v2439
    %v2441 = vpop.f32.mrf.mxu0
    %v2442 = vadd.f32 0.0, %v2441
    %2443 = vdwg.mxu0
    %2444 = vmatpush.bf16.msra.mxu0 0
    %2445 = vmatpush.bf16.msra.mxu0 0
    %2446 = vmatpush.bf16.msra.mxu0 0
    %2447 = vmatpush.bf16.msra.mxu0 0
    %2448 = vmatpush.bf16.msra.mxu0 0
    %2449 = vmatpush.bf16.msra.mxu0 0
    %2450 = vmatpush.bf16.msra.mxu0 %v452
    %2451 = vmatpush.bf16.msra.mxu0 %v424
    %2452 = vmatmul.bf16.gmra.mxu0 %v1409
    %v2453 = vpop.f32.mrf.mxu0
    %v2454 = vadd.f32 0.0, %v2453
    %v2455 = vpop.f32.mrf.mxu0
    %v2456 = vadd.f32 0.0, %v2455
    %2457 = vmatmul.bf16.gmra.mxu0 %v1412
    %v2458 = vpop.f32.mrf.mxu0
    %v2459 = vadd.f32 0.0, %v2458
    %v2460 = vpop.f32.mrf.mxu0
    %v2461 = vadd.f32 0.0, %v2460
    %2462 = vmatmul.bf16.gmra.mxu0 %v1415
    %v2463 = vpop.f32.mrf.mxu0
    %v2464 = vadd.f32 0.0, %v2463
    %v2465 = vpop.f32.mrf.mxu0
    %v2466 = vadd.f32 0.0, %v2465
    %2467 = vdwg.mxu0
    %v2468 = vadd.f32 %v2286, %v2382
    %v2469 = vadd.f32 %v2310, %v2406
    %v2470 = vadd.f32 %v2334, %v2430
    %v2471 = vadd.f32 %v2358, %v2454
    %v2472 = vadd.f32 %v2288, %v2384
    %v2473 = vadd.f32 %v2312, %v2408
    %v2474 = vadd.f32 %v2336, %v2432
    %v2475 = vadd.f32 %v2360, %v2456
    %v2476 = vadd.f32 %v2291, %v2387
    %v2477 = vadd.f32 %v2315, %v2411
    %v2478 = vadd.f32 %v2339, %v2435
    %v2479 = vadd.f32 %v2363, %v2459
    %v2480 = vadd.f32 %v2293, %v2389
    %v2481 = vadd.f32 %v2317, %v2413
    %v2482 = vadd.f32 %v2341, %v2437
    %v2483 = vadd.f32 %v2365, %v2461
    %v2484 = vadd.f32 %v2296, %v2392
    %v2485 = vadd.f32 %v2320, %v2416
    %v2486 = vadd.f32 %v2344, %v2440
    %v2487 = vadd.f32 %v2368, %v2464
    %v2488 = vadd.f32 %v2298, %v2394
    %v2489 = vadd.f32 %v2322, %v2418
    %v2490 = vadd.f32 %v2346, %v2442
    %v2491 = vadd.f32 %v2370, %v2466
    %2492 = vmatpush.bf16.msra.mxu0 0
    %2493 = vmatpush.bf16.msra.mxu0 0
    %2494 = vmatpush.bf16.msra.mxu0 0
    %2495 = vmatpush.bf16.msra.mxu0 0
    %2496 = vmatpush.bf16.msra.mxu0 0
    %2497 = vmatpush.bf16.msra.mxu0 0
    %2498 = vmatpush.bf16.msra.mxu0 %v639
    %2499 = vmatpush.bf16.msra.mxu0 %v617
    %2500 = vmatmul.bf16.gmra.mxu0 %v2052
    %v2501 = vpop.f32.mrf.mxu0
    %v2502 = vadd.f32 0.0, %v2501
    %v2503 = vpop.f32.mrf.mxu0
    %v2504 = vadd.f32 0.0, %v2503
    %2505 = vmatmul.bf16.gmra.mxu0 %v2055
    %v2506 = vpop.f32.mrf.mxu0
    %v2507 = vadd.f32 0.0, %v2506
    %v2508 = vpop.f32.mrf.mxu0
    %v2509 = vadd.f32 0.0, %v2508
    %2510 = vmatmul.bf16.gmra.mxu0 %v2058
    %v2511 = vpop.f32.mrf.mxu0
    %v2512 = vadd.f32 0.0, %v2511
    %v2513 = vpop.f32.mrf.mxu0
    %v2514 = vadd.f32 0.0, %v2513
    %2515 = vdwg.mxu0
    %2516 = vmatpush.bf16.msra.mxu0 0
    %2517 = vmatpush.bf16.msra.mxu0 0
    %2518 = vmatpush.bf16.msra.mxu0 0
    %2519 = vmatpush.bf16.msra.mxu0 0
    %2520 = vmatpush.bf16.msra.mxu0 0
    %2521 = vmatpush.bf16.msra.mxu0 0
    %2522 = vmatpush.bf16.msra.mxu0 %v642
    %2523 = vmatpush.bf16.msra.mxu0 %v618
    %2524 = vmatmul.bf16.gmra.mxu0 %v2052
    %v2525 = vpop.f32.mrf.mxu0
    %v2526 = vadd.f32 0.0, %v2525
    %v2527 = vpop.f32.mrf.mxu0
    %v2528 = vadd.f32 0.0, %v2527
    %2529 = vmatmul.bf16.gmra.mxu0 %v2055
    %v2530 = vpop.f32.mrf.mxu0
    %v2531 = vadd.f32 0.0, %v2530
    %v2532 = vpop.f32.mrf.mxu0
    %v2533 = vadd.f32 0.0, %v2532
    %2534 = vmatmul.bf16.gmra.mxu0 %v2058
    %v2535 = vpop.f32.mrf.mxu0
    %v2536 = vadd.f32 0.0, %v2535
    %v2537 = vpop.f32.mrf.mxu0
    %v2538 = vadd.f32 0.0, %v2537
    %2539 = vdwg.mxu0
    %2540 = vmatpush.bf16.msra.mxu0 0
    %2541 = vmatpush.bf16.msra.mxu0 0
    %2542 = vmatpush.bf16.msra.mxu0 0
    %2543 = vmatpush.bf16.msra.mxu0 0
    %2544 = vmatpush.bf16.msra.mxu0 0
    %2545 = vmatpush.bf16.msra.mxu0 0
    %2546 = vmatpush.bf16.msra.mxu0 %v645
    %2547 = vmatpush.bf16.msra.mxu0 %v619
    %2548 = vmatmul.bf16.gmra.mxu0 %v2052
    %v2549 = vpop.f32.mrf.mxu0
    %v2550 = vadd.f32 0.0, %v2549
    %v2551 = vpop.f32.mrf.mxu0
    %v2552 = vadd.f32 0.0, %v2551
    %2553 = vmatmul.bf16.gmra.mxu0 %v2055
    %v2554 = vpop.f32.mrf.mxu0
    %v2555 = vadd.f32 0.0, %v2554
    %v2556 = vpop.f32.mrf.mxu0
    %v2557 = vadd.f32 0.0, %v2556
    %2558 = vmatmul.bf16.gmra.mxu0 %v2058
    %v2559 = vpop.f32.mrf.mxu0
    %v2560 = vadd.f32 0.0, %v2559
    %v2561 = vpop.f32.mrf.mxu0
    %v2562 = vadd.f32 0.0, %v2561
    %2563 = vdwg.mxu0
    %2564 = vmatpush.bf16.msra.mxu0 0
    %2565 = vmatpush.bf16.msra.mxu0 0
    %2566 = vmatpush.bf16.msra.mxu0 0
    %2567 = vmatpush.bf16.msra.mxu0 0
    %2568 = vmatpush.bf16.msra.mxu0 0
    %2569 = vmatpush.bf16.msra.mxu0 0
    %2570 = vmatpush.bf16.msra.mxu0 %v648
    %2571 = vmatpush.bf16.msra.mxu0 %v620
    %2572 = vmatmul.bf16.gmra.mxu0 %v2052
    %v2573 = vpop.f32.mrf.mxu0
    %v2574 = vadd.f32 0.0, %v2573
    %v2575 = vpop.f32.mrf.mxu0
    %v2576 = vadd.f32 0.0, %v2575
    %2577 = vmatmul.bf16.gmra.mxu0 %v2055
    %v2578 = vpop.f32.mrf.mxu0
    %v2579 = vadd.f32 0.0, %v2578
    %v2580 = vpop.f32.mrf.mxu0
    %v2581 = vadd.f32 0.0, %v2580
    %2582 = vmatmul.bf16.gmra.mxu0 %v2058
    %v2583 = vpop.f32.mrf.mxu0
    %v2584 = vadd.f32 0.0, %v2583
    %v2585 = vpop.f32.mrf.mxu0
    %v2586 = vadd.f32 0.0, %v2585
    %2587 = vdwg.mxu0
    %v2588 = vadd.f32 %v2468, %v2502
    %v2589 = vadd.f32 %v2469, %v2526
    %v2590 = vadd.f32 %v2470, %v2550
    %v2591 = vadd.f32 %v2471, %v2574
    %v2592 = vadd.f32 %v2472, %v2504
    %v2593 = vadd.f32 %v2473, %v2528
    %v2594 = vadd.f32 %v2474, %v2552
    %v2595 = vadd.f32 %v2475, %v2576
    %v2596 = vadd.f32 %v2476, %v2507
    %v2597 = vadd.f32 %v2477, %v2531
    %v2598 = vadd.f32 %v2478, %v2555
    %v2599 = vadd.f32 %v2479, %v2579
    %v2600 = vadd.f32 %v2480, %v2509
    %v2601 = vadd.f32 %v2481, %v2533
    %v2602 = vadd.f32 %v2482, %v2557
    %v2603 = vadd.f32 %v2483, %v2581
    %v2604 = vadd.f32 %v2484, %v2512
    %v2605 = vadd.f32 %v2485, %v2536
    %v2606 = vadd.f32 %v2486, %v2560
    %v2607 = vadd.f32 %v2487, %v2584
    %v2608 = vadd.f32 %v2488, %v2514
    %v2609 = vadd.f32 %v2489, %v2538
    %v2610 = vadd.f32 %v2490, %v2562
    %v2611 = vadd.f32 %v2491, %v2586
    %s2612 = scalar_lea.vmem %s0, 176
    %v2613 = vld [vmem:[%s2612] sm:$0xff]
    %v2614 = vld [vmem:[%s2612 + $0x8] sm:$0xff]
    %v2615 = vld [vmem:[%s2612 + $0x10] sm:$0xff]
    %v2616 = vld [vmem:[%s2612 + $0x18] sm:$0xff]
    %v2617 = vld [vmem:[%s2612 + $0x20] sm:$0xff]
    %v2618 = vld [vmem:[%s2612 + $0x28] sm:$0xff]
    %v2619 = vpack.c.bf16 %v2614, %v2613
    %v2620 = vpack.c.bf16 %v2616, %v2615
    %v2621 = vpack.c.bf16 %v2618, %v2617
    %v2623 = vsel %vm106, %v2619, 0
    %v2626 = vsel %vm106, %v2620, 0
    %v2629 = vsel %vm106, %v2621, 0
    %2631 = vmatpush.bf16.msra.mxu0 0
    %2632 = vmatpush.bf16.msra.mxu0 0
    %2633 = vmatpush.bf16.msra.mxu0 0
    %2634 = vmatpush.bf16.msra.mxu0 0
    %2635 = vmatpush.bf16.msra.mxu0 0
    %2636 = vmatpush.bf16.msra.mxu0 0
    %2637 = vmatpush.bf16.msra.mxu0 %v835
    %2638 = vmatpush.bf16.msra.mxu0 %v813
    %2639 = vmatmul.bf16.gmra.mxu0 %v2623
    %v2640 = vpop.f32.mrf.mxu0
    %v2641 = vadd.f32 0.0, %v2640
    %v2642 = vpop.f32.mrf.mxu0
    %v2643 = vadd.f32 0.0, %v2642
    %2644 = vmatmul.bf16.gmra.mxu0 %v2626
    %v2645 = vpop.f32.mrf.mxu0
    %v2646 = vadd.f32 0.0, %v2645
    %v2647 = vpop.f32.mrf.mxu0
    %v2648 = vadd.f32 0.0, %v2647
    %2649 = vmatmul.bf16.gmra.mxu0 %v2629
    %v2650 = vpop.f32.mrf.mxu0
    %v2651 = vadd.f32 0.0, %v2650
    %v2652 = vpop.f32.mrf.mxu0
    %v2653 = vadd.f32 0.0, %v2652
    %2654 = vdwg.mxu0
    %2655 = vmatpush.bf16.msra.mxu0 0
    %2656 = vmatpush.bf16.msra.mxu0 0
    %2657 = vmatpush.bf16.msra.mxu0 0
    %2658 = vmatpush.bf16.msra.mxu0 0
    %2659 = vmatpush.bf16.msra.mxu0 0
    %2660 = vmatpush.bf16.msra.mxu0 0
    %2661 = vmatpush.bf16.msra.mxu0 %v838
    %2662 = vmatpush.bf16.msra.mxu0 %v814
    %2663 = vmatmul.bf16.gmra.mxu0 %v2623
    %v2664 = vpop.f32.mrf.mxu0
    %v2665 = vadd.f32 0.0, %v2664
    %v2666 = vpop.f32.mrf.mxu0
    %v2667 = vadd.f32 0.0, %v2666
    %2668 = vmatmul.bf16.gmra.mxu0 %v2626
    %v2669 = vpop.f32.mrf.mxu0
    %v2670 = vadd.f32 0.0, %v2669
    %v2671 = vpop.f32.mrf.mxu0
    %v2672 = vadd.f32 0.0, %v2671
    %2673 = vmatmul.bf16.gmra.mxu0 %v2629
    %v2674 = vpop.f32.mrf.mxu0
    %v2675 = vadd.f32 0.0, %v2674
    %v2676 = vpop.f32.mrf.mxu0
    %v2677 = vadd.f32 0.0, %v2676
    %2678 = vdwg.mxu0
    %2679 = vmatpush.bf16.msra.mxu0 0
    %2680 = vmatpush.bf16.msra.mxu0 0
    %2681 = vmatpush.bf16.msra.mxu0 0
    %2682 = vmatpush.bf16.msra.mxu0 0
    %2683 = vmatpush.bf16.msra.mxu0 0
    %2684 = vmatpush.bf16.msra.mxu0 0
    %2685 = vmatpush.bf16.msra.mxu0 %v841
    %2686 = vmatpush.bf16.msra.mxu0 %v815
    %2687 = vmatmul.bf16.gmra.mxu0 %v2623
    %v2688 = vpop.f32.mrf.mxu0
    %v2689 = vadd.f32 0.0, %v2688
    %v2690 = vpop.f32.mrf.mxu0
    %v2691 = vadd.f32 0.0, %v2690
    %2692 = vmatmul.bf16.gmra.mxu0 %v2626
    %v2693 = vpop.f32.mrf.mxu0
    %v2694 = vadd.f32 0.0, %v2693
    %v2695 = vpop.f32.mrf.mxu0
    %v2696 = vadd.f32 0.0, %v2695
    %2697 = vmatmul.bf16.gmra.mxu0 %v2629
    %v2698 = vpop.f32.mrf.mxu0
    %v2699 = vadd.f32 0.0, %v2698
    %v2700 = vpop.f32.mrf.mxu0
    %v2701 = vadd.f32 0.0, %v2700
    %2702 = vdwg.mxu0
    %2703 = vmatpush.bf16.msra.mxu0 0
    %2704 = vmatpush.bf16.msra.mxu0 0
    %2705 = vmatpush.bf16.msra.mxu0 0
    %2706 = vmatpush.bf16.msra.mxu0 0
    %2707 = vmatpush.bf16.msra.mxu0 0
    %2708 = vmatpush.bf16.msra.mxu0 0
    %2709 = vmatpush.bf16.msra.mxu0 %v844
    %2710 = vmatpush.bf16.msra.mxu0 %v816
    %2711 = vmatmul.bf16.gmra.mxu0 %v2623
    %v2712 = vpop.f32.mrf.mxu0
    %v2713 = vadd.f32 0.0, %v2712
    %v2714 = vpop.f32.mrf.mxu0
    %v2715 = vadd.f32 0.0, %v2714
    %2716 = vmatmul.bf16.gmra.mxu0 %v2626
    %v2717 = vpop.f32.mrf.mxu0
    %v2718 = vadd.f32 0.0, %v2717
    %v2719 = vpop.f32.mrf.mxu0
    %v2720 = vadd.f32 0.0, %v2719
    %2721 = vmatmul.bf16.gmra.mxu0 %v2629
    %v2722 = vpop.f32.mrf.mxu0
    %v2723 = vadd.f32 0.0, %v2722
    %v2724 = vpop.f32.mrf.mxu0
    %v2725 = vadd.f32 0.0, %v2724
    %2726 = vdwg.mxu0
    %v2727 = vadd.f32 %v2588, %v2641
    %v2728 = vadd.f32 %v2589, %v2665
    %v2729 = vadd.f32 %v2590, %v2689
    %v2730 = vadd.f32 %v2591, %v2713
    %v2731 = vadd.f32 %v2592, %v2643
    %v2732 = vadd.f32 %v2593, %v2667
    %v2733 = vadd.f32 %v2594, %v2691
    %v2734 = vadd.f32 %v2595, %v2715
    %v2735 = vadd.f32 %v2596, %v2646
    %v2736 = vadd.f32 %v2597, %v2670
    %v2737 = vadd.f32 %v2598, %v2694
    %v2738 = vadd.f32 %v2599, %v2718
    %v2739 = vadd.f32 %v2600, %v2648
    %v2740 = vadd.f32 %v2601, %v2672
    %v2741 = vadd.f32 %v2602, %v2696
    %v2742 = vadd.f32 %v2603, %v2720
    %v2743 = vadd.f32 %v2604, %v2651
    %v2744 = vadd.f32 %v2605, %v2675
    %v2745 = vadd.f32 %v2606, %v2699
    %v2746 = vadd.f32 %v2607, %v2723
    %v2747 = vadd.f32 %v2608, %v2653
    %v2748 = vadd.f32 %v2609, %v2677
    %v2749 = vadd.f32 %v2610, %v2701
    %v2750 = vadd.f32 %v2611, %v2725
    %v2751 = vmax.f32 %v2156, %v2727
    %v2752 = vmax.f32 %v2157, %v2728
    %v2753 = vmax.f32 %v2158, %v2729
    %v2754 = vmax.f32 %v2159, %v2730
    %v2755 = vmax.f32 %v2160, %v2731
    %v2756 = vmax.f32 %v2161, %v2732
    %v2757 = vmax.f32 %v2162, %v2733
    %v2758 = vmax.f32 %v2163, %v2734
    %v2759 = vmax.f32 %v2164, %v2735
    %v2760 = vmax.f32 %v2165, %v2736
    %v2761 = vmax.f32 %v2166, %v2737
    %v2762 = vmax.f32 %v2167, %v2738
    %v2763 = vmax.f32 %v2168, %v2739
    %v2764 = vmax.f32 %v2169, %v2740
    %v2765 = vmax.f32 %v2170, %v2741
    %v2766 = vmax.f32 %v2171, %v2742
    %v2767 = vmax.f32 %v2172, %v2743
    %v2768 = vmax.f32 %v2173, %v2744
    %v2769 = vmax.f32 %v2174, %v2745
    %v2770 = vmax.f32 %v2175, %v2746
    %v2771 = vmax.f32 %v2176, %v2747
    %v2772 = vmax.f32 %v2177, %v2748
    %v2773 = vmax.f32 %v2178, %v2749
    %v2774 = vmax.f32 %v2179, %v2750
    %v2775 = vmax.f32 %v2751, %v2753
    %v2776 = vmax.f32 %v2752, %v2754
    %v2777 = vmax.f32 %v2755, %v2757
    %v2778 = vmax.f32 %v2756, %v2758
    %v2779 = vmax.f32 %v2759, %v2761
    %v2780 = vmax.f32 %v2760, %v2762
    %v2781 = vmax.f32 %v2763, %v2765
    %v2782 = vmax.f32 %v2764, %v2766
    %v2783 = vmax.f32 %v2767, %v2769
    %v2784 = vmax.f32 %v2768, %v2770
    %v2785 = vmax.f32 %v2771, %v2773
    %v2786 = vmax.f32 %v2772, %v2774
    %v2787 = vadd.f32 %v2775, %v1575
    %v2788 = vadd.f32 %v2776, %v1576
    %v2789 = vadd.f32 %v2777, %v1575
    %v2790 = vadd.f32 %v2778, %v1576
    %v2791 = vadd.f32 %v2779, %v1575
    %v2792 = vadd.f32 %v2780, %v1576
    %v2793 = vadd.f32 %v2781, %v1575
    %v2794 = vadd.f32 %v2782, %v1576
    %v2795 = vadd.f32 %v2783, %v1575
    %v2796 = vadd.f32 %v2784, %v1576
    %v2797 = vadd.f32 %v2785, %v1575
    %v2798 = vadd.f32 %v2786, %v1576
    %v2799 = vmax.f32 %v2787, 0.0
    %v2800 = vmax.f32 %v2788, 0.0
    %v2801 = vmax.f32 %v2789, 0.0
    %v2802 = vmax.f32 %v2790, 0.0
    %v2803 = vmax.f32 %v2791, 0.0
    %v2804 = vmax.f32 %v2792, 0.0
    %v2805 = vmax.f32 %v2793, 0.0
    %v2806 = vmax.f32 %v2794, 0.0
    %v2807 = vmax.f32 %v2795, 0.0
    %v2808 = vmax.f32 %v2796, 0.0
    %v2809 = vmax.f32 %v2797, 0.0
    %v2810 = vmax.f32 %v2798, 0.0
    %v2811 = vpack.c.bf16 %v2800, %v2799
    %v2812 = vpack.c.bf16 %v2802, %v2801
    %v2813 = vpack.c.bf16 %v2804, %v2803
    %v2814 = vpack.c.bf16 %v2806, %v2805
    %v2815 = vpack.c.bf16 %v2808, %v2807
    %v2816 = vpack.c.bf16 %v2810, %v2809
    %v2817 = vld [vmem:[%s3] sm:$0xff]
    %v2818 = vld [vmem:[%s3 + $0x8] sm:$0xff]
    %v2819 = vld [vmem:[%s3 + $0x10] sm:$0xff]
    %v2820 = vld [vmem:[%s3 + $0x18] sm:$0xff]
    %v2821 = vld [vmem:[%s3 + $0x20] sm:$0xff]
    %v2822 = vld [vmem:[%s3 + $0x28] sm:$0xff]
    %v2823 = vld [vmem:[%s3 + $0x30] sm:$0xff]
    %v2824 = vld [vmem:[%s3 + $0x38] sm:$0xff]
    %v2825 = vld [vmem:[%s3 + $0x40] sm:$0xff]
    %v2826 = vld [vmem:[%s3 + $0x48] sm:$0xff]
    %v2827 = vld [vmem:[%s3 + $0x50] sm:$0xff]
    %v2828 = vld [vmem:[%s3 + $0x58] sm:$0xff]
    %v2829 = vld [vmem:[%s3 + $0x60] sm:$0xff]
    %v2830 = vld [vmem:[%s3 + $0x68] sm:$0xff]
    %v2831 = vld [vmem:[%s3 + $0x70] sm:$0xff]
    %v2832 = vld [vmem:[%s3 + $0x78] sm:$0xff]
    %v2833 = vld [vmem:[%s3 + $0x80] sm:$0xff]
    %v2834 = vld [vmem:[%s3 + $0x88] sm:$0xff]
    %v2835 = vld [vmem:[%s3 + $0x90] sm:$0xff]
    %v2836 = vld [vmem:[%s3 + $0x98] sm:$0xff]
    %v2837 = vld [vmem:[%s3 + $0xa0] sm:$0xff]
    %v2838 = vld [vmem:[%s3 + $0xa8] sm:$0xff]
    %v2839 = vld [vmem:[%s3 + $0xb0] sm:$0xff]
    %v2840 = vld [vmem:[%s3 + $0xb8] sm:$0xff]
    %v2841 = vld [vmem:[%s3 + $0xc0] sm:$0xff]
    %v2842 = vld [vmem:[%s3 + $0xc8] sm:$0xff]
    %v2843 = vld [vmem:[%s3 + $0xd0] sm:$0xff]
    %v2844 = vld [vmem:[%s3 + $0xd8] sm:$0xff]
    %v2845 = vld [vmem:[%s3 + $0xe0] sm:$0xff]
    %v2846 = vld [vmem:[%s3 + $0xe8] sm:$0xff]
    %v2847 = vld [vmem:[%s3 + $0xf0] sm:$0xff]
    %v2848 = vld [vmem:[%s3 + $0xf8] sm:$0xff]
    %v2849 = vld [vmem:[%s3 + $0x100] sm:$0xff]
    %v2850 = vld [vmem:[%s3 + $0x108] sm:$0xff]
    %v2851 = vld [vmem:[%s3 + $0x110] sm:$0xff]
    %v2852 = vld [vmem:[%s3 + $0x118] sm:$0xff]
    %v2853 = vld [vmem:[%s3 + $0x120] sm:$0xff]
    %v2854 = vld [vmem:[%s3 + $0x128] sm:$0xff]
    %v2855 = vld [vmem:[%s3 + $0x130] sm:$0xff]
    %v2856 = vld [vmem:[%s3 + $0x138] sm:$0xff]
    %v2857 = vld [vmem:[%s3 + $0x140] sm:$0xff]
    %v2858 = vld [vmem:[%s3 + $0x148] sm:$0xff]
    %v2859 = vld [vmem:[%s3 + $0x150] sm:$0xff]
    %v2860 = vld [vmem:[%s3 + $0x158] sm:$0xff]
    %v2861 = vld [vmem:[%s3 + $0x160] sm:$0xff]
    %v2862 = vld [vmem:[%s3 + $0x168] sm:$0xff]
    %v2863 = vld [vmem:[%s3 + $0x170] sm:$0xff]
    %v2864 = vld [vmem:[%s3 + $0x178] sm:$0xff]
    %v2865 = vld [vmem:[%s3 + $0x180] sm:$0xff]
    %v2866 = vld [vmem:[%s3 + $0x188] sm:$0xff]
    %v2867 = vld [vmem:[%s3 + $0x190] sm:$0xff]
    %v2868 = vld [vmem:[%s3 + $0x198] sm:$0xff]
    %v2869 = vld [vmem:[%s3 + $0x1a0] sm:$0xff]
    %v2870 = vld [vmem:[%s3 + $0x1a8] sm:$0xff]
    %v2871 = vld [vmem:[%s3 + $0x1b0] sm:$0xff]
    %v2872 = vld [vmem:[%s3 + $0x1b8] sm:$0xff]
    %v2873 = vld [vmem:[%s3 + $0x1c0] sm:$0xff]
    %v2874 = vld [vmem:[%s3 + $0x1c8] sm:$0xff]
    %v2875 = vld [vmem:[%s3 + $0x1d0] sm:$0xff]
    %v2876 = vld [vmem:[%s3 + $0x1d8] sm:$0xff]
    %v2877 = vld [vmem:[%s3 + $0x1e0] sm:$0xff]
    %v2878 = vld [vmem:[%s3 + $0x1e8] sm:$0xff]
    %v2879 = vld [vmem:[%s3 + $0x1f0] sm:$0xff]
    %v2880 = vld [vmem:[%s3 + $0x1f8] sm:$0xff]
    %s2881 = scalar_lea.vmem %s3, 512
    %v2882 = vld [vmem:[%s2881] sm:$0xff]
    %v2883 = vld [vmem:[%s2881 + $0x8] sm:$0xff]
    %v2884 = vld [vmem:[%s2881 + $0x10] sm:$0xff]
    %v2885 = vld [vmem:[%s2881 + $0x18] sm:$0xff]
    %v2886 = vld [vmem:[%s2881 + $0x20] sm:$0xff]
    %v2887 = vld [vmem:[%s2881 + $0x28] sm:$0xff]
    %v2888 = vld [vmem:[%s2881 + $0x30] sm:$0xff]
    %v2889 = vld [vmem:[%s2881 + $0x38] sm:$0xff]
    %v2890 = vld [vmem:[%s2881 + $0x40] sm:$0xff]
    %v2891 = vld [vmem:[%s2881 + $0x48] sm:$0xff]
    %v2892 = vld [vmem:[%s2881 + $0x50] sm:$0xff]
    %v2893 = vld [vmem:[%s2881 + $0x58] sm:$0xff]
    %v2894 = vld [vmem:[%s2881 + $0x60] sm:$0xff]
    %v2895 = vld [vmem:[%s2881 + $0x68] sm:$0xff]
    %v2896 = vld [vmem:[%s2881 + $0x70] sm:$0xff]
    %v2897 = vld [vmem:[%s2881 + $0x78] sm:$0xff]
    %v2898 = vld [vmem:[%s2881 + $0x80] sm:$0xff]
    %v2899 = vld [vmem:[%s2881 + $0x88] sm:$0xff]
    %v2900 = vld [vmem:[%s2881 + $0x90] sm:$0xff]
    %v2901 = vld [vmem:[%s2881 + $0x98] sm:$0xff]
    %v2902 = vld [vmem:[%s2881 + $0xa0] sm:$0xff]
    %v2903 = vld [vmem:[%s2881 + $0xa8] sm:$0xff]
    %v2904 = vld [vmem:[%s2881 + $0xb0] sm:$0xff]
    %v2905 = vld [vmem:[%s2881 + $0xb8] sm:$0xff]
    %v2906 = vld [vmem:[%s2881 + $0xc0] sm:$0xff]
    %v2907 = vld [vmem:[%s2881 + $0xc8] sm:$0xff]
    %v2908 = vld [vmem:[%s2881 + $0xd0] sm:$0xff]
    %v2909 = vld [vmem:[%s2881 + $0xd8] sm:$0xff]
    %v2910 = vld [vmem:[%s2881 + $0xe0] sm:$0xff]
    %v2911 = vld [vmem:[%s2881 + $0xe8] sm:$0xff]
    %v2912 = vld [vmem:[%s2881 + $0xf0] sm:$0xff]
    %v2913 = vld [vmem:[%s2881 + $0xf8] sm:$0xff]
    %v2914 = vld [vmem:[%s2881 + $0x100] sm:$0xff]
    %v2915 = vld [vmem:[%s2881 + $0x108] sm:$0xff]
    %v2916 = vld [vmem:[%s2881 + $0x110] sm:$0xff]
    %v2917 = vld [vmem:[%s2881 + $0x118] sm:$0xff]
    %v2918 = vld [vmem:[%s2881 + $0x120] sm:$0xff]
    %v2919 = vld [vmem:[%s2881 + $0x128] sm:$0xff]
    %v2920 = vld [vmem:[%s2881 + $0x130] sm:$0xff]
    %v2921 = vld [vmem:[%s2881 + $0x138] sm:$0xff]
    %v2922 = vld [vmem:[%s2881 + $0x140] sm:$0xff]
    %v2923 = vld [vmem:[%s2881 + $0x148] sm:$0xff]
    %v2924 = vld [vmem:[%s2881 + $0x150] sm:$0xff]
    %v2925 = vld [vmem:[%s2881 + $0x158] sm:$0xff]
    %v2926 = vld [vmem:[%s2881 + $0x160] sm:$0xff]
    %v2927 = vld [vmem:[%s2881 + $0x168] sm:$0xff]
    %v2928 = vld [vmem:[%s2881 + $0x170] sm:$0xff]
    %v2929 = vld [vmem:[%s2881 + $0x178] sm:$0xff]
    %v2930 = vld [vmem:[%s2881 + $0x180] sm:$0xff]
    %v2931 = vld [vmem:[%s2881 + $0x188] sm:$0xff]
    %v2932 = vld [vmem:[%s2881 + $0x190] sm:$0xff]
    %v2933 = vld [vmem:[%s2881 + $0x198] sm:$0xff]
    %v2934 = vld [vmem:[%s2881 + $0x1a0] sm:$0xff]
    %v2935 = vld [vmem:[%s2881 + $0x1a8] sm:$0xff]
    %v2936 = vld [vmem:[%s2881 + $0x1b0] sm:$0xff]
    %v2937 = vld [vmem:[%s2881 + $0x1b8] sm:$0xff]
    %v2938 = vld [vmem:[%s2881 + $0x1c0] sm:$0xff]
    %v2939 = vld [vmem:[%s2881 + $0x1c8] sm:$0xff]
    %v2940 = vld [vmem:[%s2881 + $0x1d0] sm:$0xff]
    %v2941 = vld [vmem:[%s2881 + $0x1d8] sm:$0xff]
    %v2942 = vld [vmem:[%s2881 + $0x1e0] sm:$0xff]
    %v2943 = vld [vmem:[%s2881 + $0x1e8] sm:$0xff]
    %v2944 = vld [vmem:[%s2881 + $0x1f0] sm:$0xff]
    %v2945 = vld [vmem:[%s2881 + $0x1f8] sm:$0xff]
    %v2950 = vunpack.c.l.b16 %v2811
    %v2951 = vunpack.c.h.b16 %v2811
    %v2952 = vunpack.c.l.b16 %v2812
    %v2953 = vunpack.c.h.b16 %v2812
    %v2954 = vunpack.c.l.b16 %v2813
    %v2955 = vunpack.c.h.b16 %v2813
    %v2956 = vunpack.c.l.b16 %v2814
    %v2957 = vunpack.c.h.b16 %v2814
    %v2958 = vpack.c.b16 %v2952, %v2950
    %v2959 = vpack.c.b16 %v2953, %v2951
    %v2960 = vpack.c.b16 %v2956, %v2954
    %v2961 = vpack.c.b16 %v2957, %v2955
    %v3030 = vunpack.c.l.b16 %v2882
    %v3031 = vunpack.c.h.b16 %v2882
    %v3032 = vunpack.c.l.b16 %v2883
    %v3033 = vunpack.c.h.b16 %v2883
    %v3034 = vunpack.c.l.b16 %v2884
    %v3035 = vunpack.c.h.b16 %v2884
    %v3036 = vunpack.c.l.b16 %v2885
    %v3037 = vunpack.c.h.b16 %v2885
    %v3038 = vunpack.c.l.b16 %v2886
    %v3039 = vunpack.c.h.b16 %v2886
    %v3040 = vunpack.c.l.b16 %v2887
    %v3041 = vunpack.c.h.b16 %v2887
    %v3042 = vunpack.c.l.b16 %v2888
    %v3043 = vunpack.c.h.b16 %v2888
    %v3044 = vunpack.c.l.b16 %v2889
    %v3045 = vunpack.c.h.b16 %v2889
    %v3046 = vunpack.c.l.b16 %v2890
    %v3047 = vunpack.c.h.b16 %v2890
    %v3048 = vunpack.c.l.b16 %v2891
    %v3049 = vunpack.c.h.b16 %v2891
    %v3050 = vunpack.c.l.b16 %v2892
    %v3051 = vunpack.c.h.b16 %v2892
    %v3052 = vunpack.c.l.b16 %v2893
    %v3053 = vunpack.c.h.b16 %v2893
    %v3054 = vunpack.c.l.b16 %v2894
    %v3055 = vunpack.c.h.b16 %v2894
    %v3056 = vunpack.c.l.b16 %v2895
    %v3057 = vunpack.c.h.b16 %v2895
    %v3058 = vunpack.c.l.b16 %v2896
    %v3059 = vunpack.c.h.b16 %v2896
    %v3060 = vunpack.c.l.b16 %v2897
    %v3061 = vunpack.c.h.b16 %v2897
    %v3062 = vunpack.c.l.b16 %v2898
    %v3063 = vunpack.c.h.b16 %v2898
    %v3064 = vunpack.c.l.b16 %v2899
    %v3065 = vunpack.c.h.b16 %v2899
    %v3066 = vunpack.c.l.b16 %v2900
    %v3067 = vunpack.c.h.b16 %v2900
    %v3068 = vunpack.c.l.b16 %v2901
    %v3069 = vunpack.c.h.b16 %v2901
    %v3070 = vunpack.c.l.b16 %v2902
    %v3071 = vunpack.c.h.b16 %v2902
    %v3072 = vunpack.c.l.b16 %v2903
    %v3073 = vunpack.c.h.b16 %v2903
    %v3074 = vunpack.c.l.b16 %v2904
    %v3075 = vunpack.c.h.b16 %v2904
    %v3076 = vunpack.c.l.b16 %v2905
    %v3077 = vunpack.c.h.b16 %v2905
    %v3078 = vunpack.c.l.b16 %v2906
    %v3079 = vunpack.c.h.b16 %v2906
    %v3080 = vunpack.c.l.b16 %v2907
    %v3081 = vunpack.c.h.b16 %v2907
    %v3082 = vunpack.c.l.b16 %v2908
    %v3083 = vunpack.c.h.b16 %v2908
    %v3084 = vunpack.c.l.b16 %v2909
    %v3085 = vunpack.c.h.b16 %v2909
    %v3086 = vunpack.c.l.b16 %v2910
    %v3087 = vunpack.c.h.b16 %v2910
    %v3088 = vunpack.c.l.b16 %v2911
    %v3089 = vunpack.c.h.b16 %v2911
    %v3090 = vunpack.c.l.b16 %v2912
    %v3091 = vunpack.c.h.b16 %v2912
    %v3092 = vunpack.c.l.b16 %v2913
    %v3093 = vunpack.c.h.b16 %v2913
    %v3094 = vunpack.c.l.b16 %v2914
    %v3095 = vunpack.c.h.b16 %v2914
    %v3096 = vunpack.c.l.b16 %v2915
    %v3097 = vunpack.c.h.b16 %v2915
    %v3098 = vunpack.c.l.b16 %v2916
    %v3099 = vunpack.c.h.b16 %v2916
    %v3100 = vunpack.c.l.b16 %v2917
    %v3101 = vunpack.c.h.b16 %v2917
    %v3102 = vunpack.c.l.b16 %v2918
    %v3103 = vunpack.c.h.b16 %v2918
    %v3104 = vunpack.c.l.b16 %v2919
    %v3105 = vunpack.c.h.b16 %v2919
    %v3106 = vunpack.c.l.b16 %v2920
    %v3107 = vunpack.c.h.b16 %v2920
    %v3108 = vunpack.c.l.b16 %v2921
    %v3109 = vunpack.c.h.b16 %v2921
    %v3110 = vunpack.c.l.b16 %v2922
    %v3111 = vunpack.c.h.b16 %v2922
    %v3112 = vunpack.c.l.b16 %v2923
    %v3113 = vunpack.c.h.b16 %v2923
    %v3114 = vunpack.c.l.b16 %v2924
    %v3115 = vunpack.c.h.b16 %v2924
    %v3116 = vunpack.c.l.b16 %v2925
    %v3117 = vunpack.c.h.b16 %v2925
    %v3118 = vunpack.c.l.b16 %v2926
    %v3119 = vunpack.c.h.b16 %v2926
    %v3120 = vunpack.c.l.b16 %v2927
    %v3121 = vunpack.c.h.b16 %v2927
    %v3122 = vunpack.c.l.b16 %v2928
    %v3123 = vunpack.c.h.b16 %v2928
    %v3124 = vunpack.c.l.b16 %v2929
    %v3125 = vunpack.c.h.b16 %v2929
    %v3126 = vunpack.c.l.b16 %v2930
    %v3127 = vunpack.c.h.b16 %v2930
    %v3128 = vunpack.c.l.b16 %v2931
    %v3129 = vunpack.c.h.b16 %v2931
    %v3130 = vunpack.c.l.b16 %v2932
    %v3131 = vunpack.c.h.b16 %v2932
    %v3132 = vunpack.c.l.b16 %v2933
    %v3133 = vunpack.c.h.b16 %v2933
    %v3134 = vunpack.c.l.b16 %v2934
    %v3135 = vunpack.c.h.b16 %v2934
    %v3136 = vunpack.c.l.b16 %v2935
    %v3137 = vunpack.c.h.b16 %v2935
    %v3138 = vunpack.c.l.b16 %v2936
    %v3139 = vunpack.c.h.b16 %v2936
    %v3140 = vunpack.c.l.b16 %v2937
    %v3141 = vunpack.c.h.b16 %v2937
    %v3142 = vunpack.c.l.b16 %v2938
    %v3143 = vunpack.c.h.b16 %v2938
    %v3144 = vunpack.c.l.b16 %v2939
    %v3145 = vunpack.c.h.b16 %v2939
    %v3146 = vunpack.c.l.b16 %v2940
    %v3147 = vunpack.c.h.b16 %v2940
    %v3148 = vunpack.c.l.b16 %v2941
    %v3149 = vunpack.c.h.b16 %v2941
    %v3150 = vunpack.c.l.b16 %v2942
    %v3151 = vunpack.c.h.b16 %v2942
    %v3152 = vunpack.c.l.b16 %v2943
    %v3153 = vunpack.c.h.b16 %v2943
    %v3154 = vunpack.c.l.b16 %v2944
    %v3155 = vunpack.c.h.b16 %v2944
    %v3156 = vunpack.c.l.b16 %v2945
    %v3157 = vunpack.c.h.b16 %v2945
    %v3158 = vpack.c.b16 %v3034, %v3030
    %v3159 = vpack.c.b16 %v3035, %v3031
    %v3160 = vpack.c.b16 %v3036, %v3032
    %v3161 = vpack.c.b16 %v3037, %v3033
    %v3162 = vpack.c.b16 %v3042, %v3038
    %v3163 = vpack.c.b16 %v3043, %v3039
    %v3164 = vpack.c.b16 %v3044, %v3040
    %v3165 = vpack.c.b16 %v3045, %v3041
    %v3166 = vpack.c.b16 %v3050, %v3046
    %v3167 = vpack.c.b16 %v3051, %v3047
    %v3168 = vpack.c.b16 %v3052, %v3048
    %v3169 = vpack.c.b16 %v3053, %v3049
    %v3170 = vpack.c.b16 %v3058, %v3054
    %v3171 = vpack.c.b16 %v3059, %v3055
    %v3172 = vpack.c.b16 %v3060, %v3056
    %v3173 = vpack.c.b16 %v3061, %v3057
    %v3174 = vpack.c.b16 %v3066, %v3062
    %v3175 = vpack.c.b16 %v3067, %v3063
    %v3176 = vpack.c.b16 %v3068, %v3064
    %v3177 = vpack.c.b16 %v3069, %v3065
    %v3178 = vpack.c.b16 %v3074, %v3070
    %v3179 = vpack.c.b16 %v3075, %v3071
    %v3180 = vpack.c.b16 %v3076, %v3072
    %v3181 = vpack.c.b16 %v3077, %v3073
    %v3182 = vpack.c.b16 %v3082, %v3078
    %v3183 = vpack.c.b16 %v3083, %v3079
    %v3184 = vpack.c.b16 %v3084, %v3080
    %v3185 = vpack.c.b16 %v3085, %v3081
    %v3186 = vpack.c.b16 %v3090, %v3086
    %v3187 = vpack.c.b16 %v3091, %v3087
    %v3188 = vpack.c.b16 %v3092, %v3088
    %v3189 = vpack.c.b16 %v3093, %v3089
    %v3190 = vpack.c.b16 %v3098, %v3094
    %v3191 = vpack.c.b16 %v3099, %v3095
    %v3192 = vpack.c.b16 %v3100, %v3096
    %v3193 = vpack.c.b16 %v3101, %v3097
    %v3194 = vpack.c.b16 %v3106, %v3102
    %v3195 = vpack.c.b16 %v3107, %v3103
    %v3196 = vpack.c.b16 %v3108, %v3104
    %v3197 = vpack.c.b16 %v3109, %v3105
    %v3198 = vpack.c.b16 %v3114, %v3110
    %v3199 = vpack.c.b16 %v3115, %v3111
    %v3200 = vpack.c.b16 %v3116, %v3112
    %v3201 = vpack.c.b16 %v3117, %v3113
    %v3202 = vpack.c.b16 %v3122, %v3118
    %v3203 = vpack.c.b16 %v3123, %v3119
    %v3204 = vpack.c.b16 %v3124, %v3120
    %v3205 = vpack.c.b16 %v3125, %v3121
    %v3206 = vpack.c.b16 %v3130, %v3126
    %v3207 = vpack.c.b16 %v3131, %v3127
    %v3208 = vpack.c.b16 %v3132, %v3128
    %v3209 = vpack.c.b16 %v3133, %v3129
    %v3210 = vpack.c.b16 %v3138, %v3134
    %v3211 = vpack.c.b16 %v3139, %v3135
    %v3212 = vpack.c.b16 %v3140, %v3136
    %v3213 = vpack.c.b16 %v3141, %v3137
    %v3214 = vpack.c.b16 %v3146, %v3142
    %v3215 = vpack.c.b16 %v3147, %v3143
    %v3216 = vpack.c.b16 %v3148, %v3144
    %v3217 = vpack.c.b16 %v3149, %v3145
    %v3218 = vpack.c.b16 %v3154, %v3150
    %v3219 = vpack.c.b16 %v3155, %v3151
    %v3220 = vpack.c.b16 %v3156, %v3152
    %v3221 = vpack.c.b16 %v3157, %v3153
    %3286 = vmatpush.bf16.msra.mxu0 %v3186
    %3287 = vmatpush.bf16.msra.mxu0 %v3182
    %3288 = vmatpush.bf16.msra.mxu0 %v3178
    %3289 = vmatpush.bf16.msra.mxu0 %v3174
    %3290 = vmatpush.bf16.msra.mxu0 %v3170
    %3291 = vmatpush.bf16.msra.mxu0 %v3166
    %3292 = vmatpush.bf16.msra.mxu0 %v3162
    %3293 = vmatpush.bf16.msra.mxu0 %v3158
    %3294 = vmatmul.bf16.gmra.mxu0 %v2958
    %v3295 = vpop.f32.mrf.mxu0
    %v3296 = vadd.f32 0.0, %v3295
    %v3297 = vpop.f32.mrf.mxu0
    %v3298 = vadd.f32 0.0, %v3297
    %3299 = vmatmul.bf16.gmra.mxu0 %v2960
    %v3300 = vpop.f32.mrf.mxu0
    %v3301 = vadd.f32 0.0, %v3300
    %v3302 = vpop.f32.mrf.mxu0
    %v3303 = vadd.f32 0.0, %v3302
    %3304 = vdwg.mxu0
    %3305 = vmatpush.bf16.msra.mxu0 %v3218
    %3306 = vmatpush.bf16.msra.mxu0 %v3214
    %3307 = vmatpush.bf16.msra.mxu0 %v3210
    %3308 = vmatpush.bf16.msra.mxu0 %v3206
    %3309 = vmatpush.bf16.msra.mxu0 %v3202
    %3310 = vmatpush.bf16.msra.mxu0 %v3198
    %3311 = vmatpush.bf16.msra.mxu0 %v3194
    %3312 = vmatpush.bf16.msra.mxu0 %v3190
    %3313 = vmatmul.bf16.gmra.mxu0 %v2959
    %v3314 = vpop.f32.mrf.mxu0
    %v3315 = vadd.f32 %v3296, %v3314
    %v3316 = vpop.f32.mrf.mxu0
    %v3317 = vadd.f32 %v3298, %v3316
    %3318 = vmatmul.bf16.gmra.mxu0 %v2961
    %v3319 = vpop.f32.mrf.mxu0
    %v3320 = vadd.f32 %v3301, %v3319
    %v3321 = vpop.f32.mrf.mxu0
    %v3322 = vadd.f32 %v3303, %v3321
    %3323 = vdwg.mxu0
    %3324 = vmatpush.bf16.msra.mxu0 %v3187
    %3325 = vmatpush.bf16.msra.mxu0 %v3183
    %3326 = vmatpush.bf16.msra.mxu0 %v3179
    %3327 = vmatpush.bf16.msra.mxu0 %v3175
    %3328 = vmatpush.bf16.msra.mxu0 %v3171
    %3329 = vmatpush.bf16.msra.mxu0 %v3167
    %3330 = vmatpush.bf16.msra.mxu0 %v3163
    %3331 = vmatpush.bf16.msra.mxu0 %v3159
    %3332 = vmatmul.bf16.gmra.mxu0 %v2958
    %v3333 = vpop.f32.mrf.mxu0
    %v3334 = vadd.f32 0.0, %v3333
    %v3335 = vpop.f32.mrf.mxu0
    %v3336 = vadd.f32 0.0, %v3335
    %3337 = vmatmul.bf16.gmra.mxu0 %v2960
    %v3338 = vpop.f32.mrf.mxu0
    %v3339 = vadd.f32 0.0, %v3338
    %v3340 = vpop.f32.mrf.mxu0
    %v3341 = vadd.f32 0.0, %v3340
    %3342 = vdwg.mxu0
    %3343 = vmatpush.bf16.msra.mxu0 %v3219
    %3344 = vmatpush.bf16.msra.mxu0 %v3215
    %3345 = vmatpush.bf16.msra.mxu0 %v3211
    %3346 = vmatpush.bf16.msra.mxu0 %v3207
    %3347 = vmatpush.bf16.msra.mxu0 %v3203
    %3348 = vmatpush.bf16.msra.mxu0 %v3199
    %3349 = vmatpush.bf16.msra.mxu0 %v3195
    %3350 = vmatpush.bf16.msra.mxu0 %v3191
    %3351 = vmatmul.bf16.gmra.mxu0 %v2959
    %v3352 = vpop.f32.mrf.mxu0
    %v3353 = vadd.f32 %v3334, %v3352
    %v3354 = vpop.f32.mrf.mxu0
    %v3355 = vadd.f32 %v3336, %v3354
    %3356 = vmatmul.bf16.gmra.mxu0 %v2961
    %v3357 = vpop.f32.mrf.mxu0
    %v3358 = vadd.f32 %v3339, %v3357
    %v3359 = vpop.f32.mrf.mxu0
    %v3360 = vadd.f32 %v3341, %v3359
    %3361 = vdwg.mxu0
    %3362 = vmatpush.bf16.msra.mxu0 %v3188
    %3363 = vmatpush.bf16.msra.mxu0 %v3184
    %3364 = vmatpush.bf16.msra.mxu0 %v3180
    %3365 = vmatpush.bf16.msra.mxu0 %v3176
    %3366 = vmatpush.bf16.msra.mxu0 %v3172
    %3367 = vmatpush.bf16.msra.mxu0 %v3168
    %3368 = vmatpush.bf16.msra.mxu0 %v3164
    %3369 = vmatpush.bf16.msra.mxu0 %v3160
    %3370 = vmatmul.bf16.gmra.mxu0 %v2958
    %v3371 = vpop.f32.mrf.mxu0
    %v3372 = vadd.f32 0.0, %v3371
    %v3373 = vpop.f32.mrf.mxu0
    %v3374 = vadd.f32 0.0, %v3373
    %3375 = vmatmul.bf16.gmra.mxu0 %v2960
    %v3376 = vpop.f32.mrf.mxu0
    %v3377 = vadd.f32 0.0, %v3376
    %v3378 = vpop.f32.mrf.mxu0
    %v3379 = vadd.f32 0.0, %v3378
    %3380 = vdwg.mxu0
    %3381 = vmatpush.bf16.msra.mxu0 %v3220
    %3382 = vmatpush.bf16.msra.mxu0 %v3216
    %3383 = vmatpush.bf16.msra.mxu0 %v3212
    %3384 = vmatpush.bf16.msra.mxu0 %v3208
    %3385 = vmatpush.bf16.msra.mxu0 %v3204
    %3386 = vmatpush.bf16.msra.mxu0 %v3200
    %3387 = vmatpush.bf16.msra.mxu0 %v3196
    %3388 = vmatpush.bf16.msra.mxu0 %v3192
    %3389 = vmatmul.bf16.gmra.mxu0 %v2959
    %v3390 = vpop.f32.mrf.mxu0
    %v3391 = vadd.f32 %v3372, %v3390
    %v3392 = vpop.f32.mrf.mxu0
    %v3393 = vadd.f32 %v3374, %v3392
    %3394 = vmatmul.bf16.gmra.mxu0 %v2961
    %v3395 = vpop.f32.mrf.mxu0
    %v3396 = vadd.f32 %v3377, %v3395
    %v3397 = vpop.f32.mrf.mxu0
    %v3398 = vadd.f32 %v3379, %v3397
    %3399 = vdwg.mxu0
    %3400 = vmatpush.bf16.msra.mxu0 %v3189
    %3401 = vmatpush.bf16.msra.mxu0 %v3185
    %3402 = vmatpush.bf16.msra.mxu0 %v3181
    %3403 = vmatpush.bf16.msra.mxu0 %v3177
    %3404 = vmatpush.bf16.msra.mxu0 %v3173
    %3405 = vmatpush.bf16.msra.mxu0 %v3169
    %3406 = vmatpush.bf16.msra.mxu0 %v3165
    %3407 = vmatpush.bf16.msra.mxu0 %v3161
    %3408 = vmatmul.bf16.gmra.mxu0 %v2958
    %v3409 = vpop.f32.mrf.mxu0
    %v3410 = vadd.f32 0.0, %v3409
    %v3411 = vpop.f32.mrf.mxu0
    %v3412 = vadd.f32 0.0, %v3411
    %3413 = vmatmul.bf16.gmra.mxu0 %v2960
    %v3414 = vpop.f32.mrf.mxu0
    %v3415 = vadd.f32 0.0, %v3414
    %v3416 = vpop.f32.mrf.mxu0
    %v3417 = vadd.f32 0.0, %v3416
    %3418 = vdwg.mxu0
    %3419 = vmatpush.bf16.msra.mxu0 %v3221
    %3420 = vmatpush.bf16.msra.mxu0 %v3217
    %3421 = vmatpush.bf16.msra.mxu0 %v3213
    %3422 = vmatpush.bf16.msra.mxu0 %v3209
    %3423 = vmatpush.bf16.msra.mxu0 %v3205
    %3424 = vmatpush.bf16.msra.mxu0 %v3201
    %3425 = vmatpush.bf16.msra.mxu0 %v3197
    %3426 = vmatpush.bf16.msra.mxu0 %v3193
    %3427 = vmatmul.bf16.gmra.mxu0 %v2959
    %v3428 = vpop.f32.mrf.mxu0
    %v3429 = vadd.f32 %v3410, %v3428
    %v3430 = vpop.f32.mrf.mxu0
    %v3431 = vadd.f32 %v3412, %v3430
    %3432 = vmatmul.bf16.gmra.mxu0 %v2961
    %v3433 = vpop.f32.mrf.mxu0
    %v3434 = vadd.f32 %v3415, %v3433
    %v3435 = vpop.f32.mrf.mxu0
    %v3436 = vadd.f32 %v3417, %v3435
    %3437 = vdwg.mxu0
    %v3442 = vunpack.c.l.b16 %v1603
    %v3443 = vunpack.c.h.b16 %v1603
    %v3444 = vunpack.c.l.b16 %v1604
    %v3445 = vunpack.c.h.b16 %v1604
    %v3446 = vunpack.c.l.b16 %v1605
    %v3447 = vunpack.c.h.b16 %v1605
    %v3448 = vunpack.c.l.b16 %v1606
    %v3449 = vunpack.c.h.b16 %v1606
    %v3450 = vpack.c.b16 %v3444, %v3442
    %v3451 = vpack.c.b16 %v3445, %v3443
    %v3452 = vpack.c.b16 %v3448, %v3446
    %v3453 = vpack.c.b16 %v3449, %v3447
    %v3522 = vunpack.c.l.b16 %v2817
    %v3523 = vunpack.c.h.b16 %v2817
    %v3524 = vunpack.c.l.b16 %v2818
    %v3525 = vunpack.c.h.b16 %v2818
    %v3526 = vunpack.c.l.b16 %v2819
    %v3527 = vunpack.c.h.b16 %v2819
    %v3528 = vunpack.c.l.b16 %v2820
    %v3529 = vunpack.c.h.b16 %v2820
    %v3530 = vunpack.c.l.b16 %v2821
    %v3531 = vunpack.c.h.b16 %v2821
    %v3532 = vunpack.c.l.b16 %v2822
    %v3533 = vunpack.c.h.b16 %v2822
    %v3534 = vunpack.c.l.b16 %v2823
    %v3535 = vunpack.c.h.b16 %v2823
    %v3536 = vunpack.c.l.b16 %v2824
    %v3537 = vunpack.c.h.b16 %v2824
    %v3538 = vunpack.c.l.b16 %v2825
    %v3539 = vunpack.c.h.b16 %v2825
    %v3540 = vunpack.c.l.b16 %v2826
    %v3541 = vunpack.c.h.b16 %v2826
    %v3542 = vunpack.c.l.b16 %v2827
    %v3543 = vunpack.c.h.b16 %v2827
    %v3544 = vunpack.c.l.b16 %v2828
    %v3545 = vunpack.c.h.b16 %v2828
    %v3546 = vunpack.c.l.b16 %v2829
    %v3547 = vunpack.c.h.b16 %v2829
    %v3548 = vunpack.c.l.b16 %v2830
    %v3549 = vunpack.c.h.b16 %v2830
    %v3550 = vunpack.c.l.b16 %v2831
    %v3551 = vunpack.c.h.b16 %v2831
    %v3552 = vunpack.c.l.b16 %v2832
    %v3553 = vunpack.c.h.b16 %v2832
    %v3554 = vunpack.c.l.b16 %v2833
    %v3555 = vunpack.c.h.b16 %v2833
    %v3556 = vunpack.c.l.b16 %v2834
    %v3557 = vunpack.c.h.b16 %v2834
    %v3558 = vunpack.c.l.b16 %v2835
    %v3559 = vunpack.c.h.b16 %v2835
    %v3560 = vunpack.c.l.b16 %v2836
    %v3561 = vunpack.c.h.b16 %v2836
    %v3562 = vunpack.c.l.b16 %v2837
    %v3563 = vunpack.c.h.b16 %v2837
    %v3564 = vunpack.c.l.b16 %v2838
    %v3565 = vunpack.c.h.b16 %v2838
    %v3566 = vunpack.c.l.b16 %v2839
    %v3567 = vunpack.c.h.b16 %v2839
    %v3568 = vunpack.c.l.b16 %v2840
    %v3569 = vunpack.c.h.b16 %v2840
    %v3570 = vunpack.c.l.b16 %v2841
    %v3571 = vunpack.c.h.b16 %v2841
    %v3572 = vunpack.c.l.b16 %v2842
    %v3573 = vunpack.c.h.b16 %v2842
    %v3574 = vunpack.c.l.b16 %v2843
    %v3575 = vunpack.c.h.b16 %v2843
    %v3576 = vunpack.c.l.b16 %v2844
    %v3577 = vunpack.c.h.b16 %v2844
    %v3578 = vunpack.c.l.b16 %v2845
    %v3579 = vunpack.c.h.b16 %v2845
    %v3580 = vunpack.c.l.b16 %v2846
    %v3581 = vunpack.c.h.b16 %v2846
    %v3582 = vunpack.c.l.b16 %v2847
    %v3583 = vunpack.c.h.b16 %v2847
    %v3584 = vunpack.c.l.b16 %v2848
    %v3585 = vunpack.c.h.b16 %v2848
    %v3586 = vunpack.c.l.b16 %v2849
    %v3587 = vunpack.c.h.b16 %v2849
    %v3588 = vunpack.c.l.b16 %v2850
    %v3589 = vunpack.c.h.b16 %v2850
    %v3590 = vunpack.c.l.b16 %v2851
    %v3591 = vunpack.c.h.b16 %v2851
    %v3592 = vunpack.c.l.b16 %v2852
    %v3593 = vunpack.c.h.b16 %v2852
    %v3594 = vunpack.c.l.b16 %v2853
    %v3595 = vunpack.c.h.b16 %v2853
    %v3596 = vunpack.c.l.b16 %v2854
    %v3597 = vunpack.c.h.b16 %v2854
    %v3598 = vunpack.c.l.b16 %v2855
    %v3599 = vunpack.c.h.b16 %v2855
    %v3600 = vunpack.c.l.b16 %v2856
    %v3601 = vunpack.c.h.b16 %v2856
    %v3602 = vunpack.c.l.b16 %v2857
    %v3603 = vunpack.c.h.b16 %v2857
    %v3604 = vunpack.c.l.b16 %v2858
    %v3605 = vunpack.c.h.b16 %v2858
    %v3606 = vunpack.c.l.b16 %v2859
    %v3607 = vunpack.c.h.b16 %v2859
    %v3608 = vunpack.c.l.b16 %v2860
    %v3609 = vunpack.c.h.b16 %v2860
    %v3610 = vunpack.c.l.b16 %v2861
    %v3611 = vunpack.c.h.b16 %v2861
    %v3612 = vunpack.c.l.b16 %v2862
    %v3613 = vunpack.c.h.b16 %v2862
    %v3614 = vunpack.c.l.b16 %v2863
    %v3615 = vunpack.c.h.b16 %v2863
    %v3616 = vunpack.c.l.b16 %v2864
    %v3617 = vunpack.c.h.b16 %v2864
    %v3618 = vunpack.c.l.b16 %v2865
    %v3619 = vunpack.c.h.b16 %v2865
    %v3620 = vunpack.c.l.b16 %v2866
    %v3621 = vunpack.c.h.b16 %v2866
    %v3622 = vunpack.c.l.b16 %v2867
    %v3623 = vunpack.c.h.b16 %v2867
    %v3624 = vunpack.c.l.b16 %v2868
    %v3625 = vunpack.c.h.b16 %v2868
    %v3626 = vunpack.c.l.b16 %v2869
    %v3627 = vunpack.c.h.b16 %v2869
    %v3628 = vunpack.c.l.b16 %v2870
    %v3629 = vunpack.c.h.b16 %v2870
    %v3630 = vunpack.c.l.b16 %v2871
    %v3631 = vunpack.c.h.b16 %v2871
    %v3632 = vunpack.c.l.b16 %v2872
    %v3633 = vunpack.c.h.b16 %v2872
    %v3634 = vunpack.c.l.b16 %v2873
    %v3635 = vunpack.c.h.b16 %v2873
    %v3636 = vunpack.c.l.b16 %v2874
    %v3637 = vunpack.c.h.b16 %v2874
    %v3638 = vunpack.c.l.b16 %v2875
    %v3639 = vunpack.c.h.b16 %v2875
    %v3640 = vunpack.c.l.b16 %v2876
    %v3641 = vunpack.c.h.b16 %v2876
    %v3642 = vunpack.c.l.b16 %v2877
    %v3643 = vunpack.c.h.b16 %v2877
    %v3644 = vunpack.c.l.b16 %v2878
    %v3645 = vunpack.c.h.b16 %v2878
    %v3646 = vunpack.c.l.b16 %v2879
    %v3647 = vunpack.c.h.b16 %v2879
    %v3648 = vunpack.c.l.b16 %v2880
    %v3649 = vunpack.c.h.b16 %v2880
    %v3650 = vpack.c.b16 %v3526, %v3522
    %v3651 = vpack.c.b16 %v3527, %v3523
    %v3652 = vpack.c.b16 %v3528, %v3524
    %v3653 = vpack.c.b16 %v3529, %v3525
    %v3654 = vpack.c.b16 %v3534, %v3530
    %v3655 = vpack.c.b16 %v3535, %v3531
    %v3656 = vpack.c.b16 %v3536, %v3532
    %v3657 = vpack.c.b16 %v3537, %v3533
    %v3658 = vpack.c.b16 %v3542, %v3538
    %v3659 = vpack.c.b16 %v3543, %v3539
    %v3660 = vpack.c.b16 %v3544, %v3540
    %v3661 = vpack.c.b16 %v3545, %v3541
    %v3662 = vpack.c.b16 %v3550, %v3546
    %v3663 = vpack.c.b16 %v3551, %v3547
    %v3664 = vpack.c.b16 %v3552, %v3548
    %v3665 = vpack.c.b16 %v3553, %v3549
    %v3666 = vpack.c.b16 %v3558, %v3554
    %v3667 = vpack.c.b16 %v3559, %v3555
    %v3668 = vpack.c.b16 %v3560, %v3556
    %v3669 = vpack.c.b16 %v3561, %v3557
    %v3670 = vpack.c.b16 %v3566, %v3562
    %v3671 = vpack.c.b16 %v3567, %v3563
    %v3672 = vpack.c.b16 %v3568, %v3564
    %v3673 = vpack.c.b16 %v3569, %v3565
    %v3674 = vpack.c.b16 %v3574, %v3570
    %v3675 = vpack.c.b16 %v3575, %v3571
    %v3676 = vpack.c.b16 %v3576, %v3572
    %v3677 = vpack.c.b16 %v3577, %v3573
    %v3678 = vpack.c.b16 %v3582, %v3578
    %v3679 = vpack.c.b16 %v3583, %v3579
    %v3680 = vpack.c.b16 %v3584, %v3580
    %v3681 = vpack.c.b16 %v3585, %v3581
    %v3682 = vpack.c.b16 %v3590, %v3586
    %v3683 = vpack.c.b16 %v3591, %v3587
    %v3684 = vpack.c.b16 %v3592, %v3588
    %v3685 = vpack.c.b16 %v3593, %v3589
    %v3686 = vpack.c.b16 %v3598, %v3594
    %v3687 = vpack.c.b16 %v3599, %v3595
    %v3688 = vpack.c.b16 %v3600, %v3596
    %v3689 = vpack.c.b16 %v3601, %v3597
    %v3690 = vpack.c.b16 %v3606, %v3602
    %v3691 = vpack.c.b16 %v3607, %v3603
    %v3692 = vpack.c.b16 %v3608, %v3604
    %v3693 = vpack.c.b16 %v3609, %v3605
    %v3694 = vpack.c.b16 %v3614, %v3610
    %v3695 = vpack.c.b16 %v3615, %v3611
    %v3696 = vpack.c.b16 %v3616, %v3612
    %v3697 = vpack.c.b16 %v3617, %v3613
    %v3698 = vpack.c.b16 %v3622, %v3618
    %v3699 = vpack.c.b16 %v3623, %v3619
    %v3700 = vpack.c.b16 %v3624, %v3620
    %v3701 = vpack.c.b16 %v3625, %v3621
    %v3702 = vpack.c.b16 %v3630, %v3626
    %v3703 = vpack.c.b16 %v3631, %v3627
    %v3704 = vpack.c.b16 %v3632, %v3628
    %v3705 = vpack.c.b16 %v3633, %v3629
    %v3706 = vpack.c.b16 %v3638, %v3634
    %v3707 = vpack.c.b16 %v3639, %v3635
    %v3708 = vpack.c.b16 %v3640, %v3636
    %v3709 = vpack.c.b16 %v3641, %v3637
    %v3710 = vpack.c.b16 %v3646, %v3642
    %v3711 = vpack.c.b16 %v3647, %v3643
    %v3712 = vpack.c.b16 %v3648, %v3644
    %v3713 = vpack.c.b16 %v3649, %v3645
    %3778 = vmatpush.bf16.msra.mxu0 %v3678
    %3779 = vmatpush.bf16.msra.mxu0 %v3674
    %3780 = vmatpush.bf16.msra.mxu0 %v3670
    %3781 = vmatpush.bf16.msra.mxu0 %v3666
    %3782 = vmatpush.bf16.msra.mxu0 %v3662
    %3783 = vmatpush.bf16.msra.mxu0 %v3658
    %3784 = vmatpush.bf16.msra.mxu0 %v3654
    %3785 = vmatpush.bf16.msra.mxu0 %v3650
    %3786 = vmatmul.bf16.gmra.mxu0 %v3450
    %v3787 = vpop.f32.mrf.mxu0
    %v3788 = vadd.f32 %v3315, %v3787
    %v3789 = vpop.f32.mrf.mxu0
    %v3790 = vadd.f32 %v3317, %v3789
    %3791 = vmatmul.bf16.gmra.mxu0 %v3452
    %v3792 = vpop.f32.mrf.mxu0
    %v3793 = vadd.f32 %v3320, %v3792
    %v3794 = vpop.f32.mrf.mxu0
    %v3795 = vadd.f32 %v3322, %v3794
    %3796 = vdwg.mxu0
    %3797 = vmatpush.bf16.msra.mxu0 %v3710
    %3798 = vmatpush.bf16.msra.mxu0 %v3706
    %3799 = vmatpush.bf16.msra.mxu0 %v3702
    %3800 = vmatpush.bf16.msra.mxu0 %v3698
    %3801 = vmatpush.bf16.msra.mxu0 %v3694
    %3802 = vmatpush.bf16.msra.mxu0 %v3690
    %3803 = vmatpush.bf16.msra.mxu0 %v3686
    %3804 = vmatpush.bf16.msra.mxu0 %v3682
    %3805 = vmatmul.bf16.gmra.mxu0 %v3451
    %v3806 = vpop.f32.mrf.mxu0
    %v3807 = vadd.f32 %v3788, %v3806
    %v3808 = vpop.f32.mrf.mxu0
    %v3809 = vadd.f32 %v3790, %v3808
    %3810 = vmatmul.bf16.gmra.mxu0 %v3453
    %v3811 = vpop.f32.mrf.mxu0
    %v3812 = vadd.f32 %v3793, %v3811
    %v3813 = vpop.f32.mrf.mxu0
    %v3814 = vadd.f32 %v3795, %v3813
    %3815 = vdwg.mxu0
    %3816 = vmatpush.bf16.msra.mxu0 %v3679
    %3817 = vmatpush.bf16.msra.mxu0 %v3675
    %3818 = vmatpush.bf16.msra.mxu0 %v3671
    %3819 = vmatpush.bf16.msra.mxu0 %v3667
    %3820 = vmatpush.bf16.msra.mxu0 %v3663
    %3821 = vmatpush.bf16.msra.mxu0 %v3659
    %3822 = vmatpush.bf16.msra.mxu0 %v3655
    %3823 = vmatpush.bf16.msra.mxu0 %v3651
    %3824 = vmatmul.bf16.gmra.mxu0 %v3450
    %v3825 = vpop.f32.mrf.mxu0
    %v3826 = vadd.f32 %v3353, %v3825
    %v3827 = vpop.f32.mrf.mxu0
    %v3828 = vadd.f32 %v3355, %v3827
    %3829 = vmatmul.bf16.gmra.mxu0 %v3452
    %v3830 = vpop.f32.mrf.mxu0
    %v3831 = vadd.f32 %v3358, %v3830
    %v3832 = vpop.f32.mrf.mxu0
    %v3833 = vadd.f32 %v3360, %v3832
    %3834 = vdwg.mxu0
    %3835 = vmatpush.bf16.msra.mxu0 %v3711
    %3836 = vmatpush.bf16.msra.mxu0 %v3707
    %3837 = vmatpush.bf16.msra.mxu0 %v3703
    %3838 = vmatpush.bf16.msra.mxu0 %v3699
    %3839 = vmatpush.bf16.msra.mxu0 %v3695
    %3840 = vmatpush.bf16.msra.mxu0 %v3691
    %3841 = vmatpush.bf16.msra.mxu0 %v3687
    %3842 = vmatpush.bf16.msra.mxu0 %v3683
    %3843 = vmatmul.bf16.gmra.mxu0 %v3451
    %v3844 = vpop.f32.mrf.mxu0
    %v3845 = vadd.f32 %v3826, %v3844
    %v3846 = vpop.f32.mrf.mxu0
    %v3847 = vadd.f32 %v3828, %v3846
    %3848 = vmatmul.bf16.gmra.mxu0 %v3453
    %v3849 = vpop.f32.mrf.mxu0
    %v3850 = vadd.f32 %v3831, %v3849
    %v3851 = vpop.f32.mrf.mxu0
    %v3852 = vadd.f32 %v3833, %v3851
    %3853 = vdwg.mxu0
    %3854 = vmatpush.bf16.msra.mxu0 %v3680
    %3855 = vmatpush.bf16.msra.mxu0 %v3676
    %3856 = vmatpush.bf16.msra.mxu0 %v3672
    %3857 = vmatpush.bf16.msra.mxu0 %v3668
    %3858 = vmatpush.bf16.msra.mxu0 %v3664
    %3859 = vmatpush.bf16.msra.mxu0 %v3660
    %3860 = vmatpush.bf16.msra.mxu0 %v3656
    %3861 = vmatpush.bf16.msra.mxu0 %v3652
    %3862 = vmatmul.bf16.gmra.mxu0 %v3450
    %v3863 = vpop.f32.mrf.mxu0
    %v3864 = vadd.f32 %v3391, %v3863
    %v3865 = vpop.f32.mrf.mxu0
    %v3866 = vadd.f32 %v3393, %v3865
    %3867 = vmatmul.bf16.gmra.mxu0 %v3452
    %v3868 = vpop.f32.mrf.mxu0
    %v3869 = vadd.f32 %v3396, %v3868
    %v3870 = vpop.f32.mrf.mxu0
    %v3871 = vadd.f32 %v3398, %v3870
    %3872 = vdwg.mxu0
    %3873 = vmatpush.bf16.msra.mxu0 %v3712
    %3874 = vmatpush.bf16.msra.mxu0 %v3708
    %3875 = vmatpush.bf16.msra.mxu0 %v3704
    %3876 = vmatpush.bf16.msra.mxu0 %v3700
    %3877 = vmatpush.bf16.msra.mxu0 %v3696
    %3878 = vmatpush.bf16.msra.mxu0 %v3692
    %3879 = vmatpush.bf16.msra.mxu0 %v3688
    %3880 = vmatpush.bf16.msra.mxu0 %v3684
    %3881 = vmatmul.bf16.gmra.mxu0 %v3451
    %v3882 = vpop.f32.mrf.mxu0
    %v3883 = vadd.f32 %v3864, %v3882
    %v3884 = vpop.f32.mrf.mxu0
    %v3885 = vadd.f32 %v3866, %v3884
    %3886 = vmatmul.bf16.gmra.mxu0 %v3453
    %v3887 = vpop.f32.mrf.mxu0
    %v3888 = vadd.f32 %v3869, %v3887
    %v3889 = vpop.f32.mrf.mxu0
    %v3890 = vadd.f32 %v3871, %v3889
    %3891 = vdwg.mxu0
    %3892 = vmatpush.bf16.msra.mxu0 %v3681
    %3893 = vmatpush.bf16.msra.mxu0 %v3677
    %3894 = vmatpush.bf16.msra.mxu0 %v3673
    %3895 = vmatpush.bf16.msra.mxu0 %v3669
    %3896 = vmatpush.bf16.msra.mxu0 %v3665
    %3897 = vmatpush.bf16.msra.mxu0 %v3661
    %3898 = vmatpush.bf16.msra.mxu0 %v3657
    %3899 = vmatpush.bf16.msra.mxu0 %v3653
    %3900 = vmatmul.bf16.gmra.mxu0 %v3450
    %v3901 = vpop.f32.mrf.mxu0
    %v3902 = vadd.f32 %v3429, %v3901
    %v3903 = vpop.f32.mrf.mxu0
    %v3904 = vadd.f32 %v3431, %v3903
    %3905 = vmatmul.bf16.gmra.mxu0 %v3452
    %v3906 = vpop.f32.mrf.mxu0
    %v3907 = vadd.f32 %v3434, %v3906
    %v3908 = vpop.f32.mrf.mxu0
    %v3909 = vadd.f32 %v3436, %v3908
    %3910 = vdwg.mxu0
    %3911 = vmatpush.bf16.msra.mxu0 %v3713
    %3912 = vmatpush.bf16.msra.mxu0 %v3709
    %3913 = vmatpush.bf16.msra.mxu0 %v3705
    %3914 = vmatpush.bf16.msra.mxu0 %v3701
    %3915 = vmatpush.bf16.msra.mxu0 %v3697
    %3916 = vmatpush.bf16.msra.mxu0 %v3693
    %3917 = vmatpush.bf16.msra.mxu0 %v3689
    %3918 = vmatpush.bf16.msra.mxu0 %v3685
    %3919 = vmatmul.bf16.gmra.mxu0 %v3451
    %v3920 = vpop.f32.mrf.mxu0
    %v3921 = vadd.f32 %v3902, %v3920
    %v3922 = vpop.f32.mrf.mxu0
    %v3923 = vadd.f32 %v3904, %v3922
    %3924 = vmatmul.bf16.gmra.mxu0 %v3453
    %v3925 = vpop.f32.mrf.mxu0
    %v3926 = vadd.f32 %v3907, %v3925
    %v3927 = vpop.f32.mrf.mxu0
    %v3928 = vadd.f32 %v3909, %v3927
    %3929 = vdwg.mxu0
    %s3930 = scalar_lea.vmem %s3, 1024
    %v3931 = vld [vmem:[%s3930] sm:$0xff]
    %v3932 = vld [vmem:[%s3930 + $0x8] sm:$0xff]
    %v3933 = vld [vmem:[%s3930 + $0x10] sm:$0xff]
    %v3934 = vld [vmem:[%s3930 + $0x18] sm:$0xff]
    %v3935 = vld [vmem:[%s3930 + $0x20] sm:$0xff]
    %v3936 = vld [vmem:[%s3930 + $0x28] sm:$0xff]
    %v3937 = vld [vmem:[%s3930 + $0x30] sm:$0xff]
    %v3938 = vld [vmem:[%s3930 + $0x38] sm:$0xff]
    %v3939 = vld [vmem:[%s3930 + $0x40] sm:$0xff]
    %v3940 = vld [vmem:[%s3930 + $0x48] sm:$0xff]
    %v3941 = vld [vmem:[%s3930 + $0x50] sm:$0xff]
    %v3942 = vld [vmem:[%s3930 + $0x58] sm:$0xff]
    %v3943 = vld [vmem:[%s3930 + $0x60] sm:$0xff]
    %v3944 = vld [vmem:[%s3930 + $0x68] sm:$0xff]
    %v3945 = vld [vmem:[%s3930 + $0x70] sm:$0xff]
    %v3946 = vld [vmem:[%s3930 + $0x78] sm:$0xff]
    %v3947 = vld [vmem:[%s3930 + $0x80] sm:$0xff]
    %v3948 = vld [vmem:[%s3930 + $0x88] sm:$0xff]
    %v3949 = vld [vmem:[%s3930 + $0x90] sm:$0xff]
    %v3950 = vld [vmem:[%s3930 + $0x98] sm:$0xff]
    %v3951 = vld [vmem:[%s3930 + $0xa0] sm:$0xff]
    %v3952 = vld [vmem:[%s3930 + $0xa8] sm:$0xff]
    %v3953 = vld [vmem:[%s3930 + $0xb0] sm:$0xff]
    %v3954 = vld [vmem:[%s3930 + $0xb8] sm:$0xff]
    %v3955 = vld [vmem:[%s3930 + $0xc0] sm:$0xff]
    %v3956 = vld [vmem:[%s3930 + $0xc8] sm:$0xff]
    %v3957 = vld [vmem:[%s3930 + $0xd0] sm:$0xff]
    %v3958 = vld [vmem:[%s3930 + $0xd8] sm:$0xff]
    %v3959 = vld [vmem:[%s3930 + $0xe0] sm:$0xff]
    %v3960 = vld [vmem:[%s3930 + $0xe8] sm:$0xff]
    %v3961 = vld [vmem:[%s3930 + $0xf0] sm:$0xff]
    %v3962 = vld [vmem:[%s3930 + $0xf8] sm:$0xff]
    %v3963 = vld [vmem:[%s3930 + $0x100] sm:$0xff]
    %v3964 = vld [vmem:[%s3930 + $0x108] sm:$0xff]
    %v3965 = vld [vmem:[%s3930 + $0x110] sm:$0xff]
    %v3966 = vld [vmem:[%s3930 + $0x118] sm:$0xff]
    %v3967 = vld [vmem:[%s3930 + $0x120] sm:$0xff]
    %v3968 = vld [vmem:[%s3930 + $0x128] sm:$0xff]
    %v3969 = vld [vmem:[%s3930 + $0x130] sm:$0xff]
    %v3970 = vld [vmem:[%s3930 + $0x138] sm:$0xff]
    %v3971 = vld [vmem:[%s3930 + $0x140] sm:$0xff]
    %v3972 = vld [vmem:[%s3930 + $0x148] sm:$0xff]
    %v3973 = vld [vmem:[%s3930 + $0x150] sm:$0xff]
    %v3974 = vld [vmem:[%s3930 + $0x158] sm:$0xff]
    %v3975 = vld [vmem:[%s3930 + $0x160] sm:$0xff]
    %v3976 = vld [vmem:[%s3930 + $0x168] sm:$0xff]
    %v3977 = vld [vmem:[%s3930 + $0x170] sm:$0xff]
    %v3978 = vld [vmem:[%s3930 + $0x178] sm:$0xff]
    %v3979 = vld [vmem:[%s3930 + $0x180] sm:$0xff]
    %v3980 = vld [vmem:[%s3930 + $0x188] sm:$0xff]
    %v3981 = vld [vmem:[%s3930 + $0x190] sm:$0xff]
    %v3982 = vld [vmem:[%s3930 + $0x198] sm:$0xff]
    %v3983 = vld [vmem:[%s3930 + $0x1a0] sm:$0xff]
    %v3984 = vld [vmem:[%s3930 + $0x1a8] sm:$0xff]
    %v3985 = vld [vmem:[%s3930 + $0x1b0] sm:$0xff]
    %v3986 = vld [vmem:[%s3930 + $0x1b8] sm:$0xff]
    %v3987 = vld [vmem:[%s3930 + $0x1c0] sm:$0xff]
    %v3988 = vld [vmem:[%s3930 + $0x1c8] sm:$0xff]
    %v3989 = vld [vmem:[%s3930 + $0x1d0] sm:$0xff]
    %v3990 = vld [vmem:[%s3930 + $0x1d8] sm:$0xff]
    %v3991 = vld [vmem:[%s3930 + $0x1e0] sm:$0xff]
    %v3992 = vld [vmem:[%s3930 + $0x1e8] sm:$0xff]
    %v3993 = vld [vmem:[%s3930 + $0x1f0] sm:$0xff]
    %v3994 = vld [vmem:[%s3930 + $0x1f8] sm:$0xff]
    %v3996 = vunpack.c.l.b16 %v1607
    %v3997 = vunpack.c.h.b16 %v1607
    %v3998 = vpack.c.b16 %v3446, %v3444
    %v3999 = vpack.c.b16 %v3447, %v3445
    %v4000 = vpack.c.b16 %v3996, %v3448
    %v4001 = vpack.c.b16 %v3997, %v3449
    %v4070 = vunpack.c.l.b16 %v3931
    %v4071 = vunpack.c.h.b16 %v3931
    %v4072 = vunpack.c.l.b16 %v3932
    %v4073 = vunpack.c.h.b16 %v3932
    %v4074 = vunpack.c.l.b16 %v3933
    %v4075 = vunpack.c.h.b16 %v3933
    %v4076 = vunpack.c.l.b16 %v3934
    %v4077 = vunpack.c.h.b16 %v3934
    %v4078 = vunpack.c.l.b16 %v3935
    %v4079 = vunpack.c.h.b16 %v3935
    %v4080 = vunpack.c.l.b16 %v3936
    %v4081 = vunpack.c.h.b16 %v3936
    %v4082 = vunpack.c.l.b16 %v3937
    %v4083 = vunpack.c.h.b16 %v3937
    %v4084 = vunpack.c.l.b16 %v3938
    %v4085 = vunpack.c.h.b16 %v3938
    %v4086 = vunpack.c.l.b16 %v3939
    %v4087 = vunpack.c.h.b16 %v3939
    %v4088 = vunpack.c.l.b16 %v3940
    %v4089 = vunpack.c.h.b16 %v3940
    %v4090 = vunpack.c.l.b16 %v3941
    %v4091 = vunpack.c.h.b16 %v3941
    %v4092 = vunpack.c.l.b16 %v3942
    %v4093 = vunpack.c.h.b16 %v3942
    %v4094 = vunpack.c.l.b16 %v3943
    %v4095 = vunpack.c.h.b16 %v3943
    %v4096 = vunpack.c.l.b16 %v3944
    %v4097 = vunpack.c.h.b16 %v3944
    %v4098 = vunpack.c.l.b16 %v3945
    %v4099 = vunpack.c.h.b16 %v3945
    %v4100 = vunpack.c.l.b16 %v3946
    %v4101 = vunpack.c.h.b16 %v3946
    %v4102 = vunpack.c.l.b16 %v3947
    %v4103 = vunpack.c.h.b16 %v3947
    %v4104 = vunpack.c.l.b16 %v3948
    %v4105 = vunpack.c.h.b16 %v3948
    %v4106 = vunpack.c.l.b16 %v3949
    %v4107 = vunpack.c.h.b16 %v3949
    %v4108 = vunpack.c.l.b16 %v3950
    %v4109 = vunpack.c.h.b16 %v3950
    %v4110 = vunpack.c.l.b16 %v3951
    %v4111 = vunpack.c.h.b16 %v3951
    %v4112 = vunpack.c.l.b16 %v3952
    %v4113 = vunpack.c.h.b16 %v3952
    %v4114 = vunpack.c.l.b16 %v3953
    %v4115 = vunpack.c.h.b16 %v3953
    %v4116 = vunpack.c.l.b16 %v3954
    %v4117 = vunpack.c.h.b16 %v3954
    %v4118 = vunpack.c.l.b16 %v3955
    %v4119 = vunpack.c.h.b16 %v3955
    %v4120 = vunpack.c.l.b16 %v3956
    %v4121 = vunpack.c.h.b16 %v3956
    %v4122 = vunpack.c.l.b16 %v3957
    %v4123 = vunpack.c.h.b16 %v3957
    %v4124 = vunpack.c.l.b16 %v3958
    %v4125 = vunpack.c.h.b16 %v3958
    %v4126 = vunpack.c.l.b16 %v3959
    %v4127 = vunpack.c.h.b16 %v3959
    %v4128 = vunpack.c.l.b16 %v3960
    %v4129 = vunpack.c.h.b16 %v3960
    %v4130 = vunpack.c.l.b16 %v3961
    %v4131 = vunpack.c.h.b16 %v3961
    %v4132 = vunpack.c.l.b16 %v3962
    %v4133 = vunpack.c.h.b16 %v3962
    %v4134 = vunpack.c.l.b16 %v3963
    %v4135 = vunpack.c.h.b16 %v3963
    %v4136 = vunpack.c.l.b16 %v3964
    %v4137 = vunpack.c.h.b16 %v3964
    %v4138 = vunpack.c.l.b16 %v3965
    %v4139 = vunpack.c.h.b16 %v3965
    %v4140 = vunpack.c.l.b16 %v3966
    %v4141 = vunpack.c.h.b16 %v3966
    %v4142 = vunpack.c.l.b16 %v3967
    %v4143 = vunpack.c.h.b16 %v3967
    %v4144 = vunpack.c.l.b16 %v3968
    %v4145 = vunpack.c.h.b16 %v3968
    %v4146 = vunpack.c.l.b16 %v3969
    %v4147 = vunpack.c.h.b16 %v3969
    %v4148 = vunpack.c.l.b16 %v3970
    %v4149 = vunpack.c.h.b16 %v3970
    %v4150 = vunpack.c.l.b16 %v3971
    %v4151 = vunpack.c.h.b16 %v3971
    %v4152 = vunpack.c.l.b16 %v3972
    %v4153 = vunpack.c.h.b16 %v3972
    %v4154 = vunpack.c.l.b16 %v3973
    %v4155 = vunpack.c.h.b16 %v3973
    %v4156 = vunpack.c.l.b16 %v3974
    %v4157 = vunpack.c.h.b16 %v3974
    %v4158 = vunpack.c.l.b16 %v3975
    %v4159 = vunpack.c.h.b16 %v3975
    %v4160 = vunpack.c.l.b16 %v3976
    %v4161 = vunpack.c.h.b16 %v3976
    %v4162 = vunpack.c.l.b16 %v3977
    %v4163 = vunpack.c.h.b16 %v3977
    %v4164 = vunpack.c.l.b16 %v3978
    %v4165 = vunpack.c.h.b16 %v3978
    %v4166 = vunpack.c.l.b16 %v3979
    %v4167 = vunpack.c.h.b16 %v3979
    %v4168 = vunpack.c.l.b16 %v3980
    %v4169 = vunpack.c.h.b16 %v3980
    %v4170 = vunpack.c.l.b16 %v3981
    %v4171 = vunpack.c.h.b16 %v3981
    %v4172 = vunpack.c.l.b16 %v3982
    %v4173 = vunpack.c.h.b16 %v3982
    %v4174 = vunpack.c.l.b16 %v3983
    %v4175 = vunpack.c.h.b16 %v3983
    %v4176 = vunpack.c.l.b16 %v3984
    %v4177 = vunpack.c.h.b16 %v3984
    %v4178 = vunpack.c.l.b16 %v3985
    %v4179 = vunpack.c.h.b16 %v3985
    %v4180 = vunpack.c.l.b16 %v3986
    %v4181 = vunpack.c.h.b16 %v3986
    %v4182 = vunpack.c.l.b16 %v3987
    %v4183 = vunpack.c.h.b16 %v3987
    %v4184 = vunpack.c.l.b16 %v3988
    %v4185 = vunpack.c.h.b16 %v3988
    %v4186 = vunpack.c.l.b16 %v3989
    %v4187 = vunpack.c.h.b16 %v3989
    %v4188 = vunpack.c.l.b16 %v3990
    %v4189 = vunpack.c.h.b16 %v3990
    %v4190 = vunpack.c.l.b16 %v3991
    %v4191 = vunpack.c.h.b16 %v3991
    %v4192 = vunpack.c.l.b16 %v3992
    %v4193 = vunpack.c.h.b16 %v3992
    %v4194 = vunpack.c.l.b16 %v3993
    %v4195 = vunpack.c.h.b16 %v3993
    %v4196 = vunpack.c.l.b16 %v3994
    %v4197 = vunpack.c.h.b16 %v3994
    %v4198 = vpack.c.b16 %v4074, %v4070
    %v4199 = vpack.c.b16 %v4075, %v4071
    %v4200 = vpack.c.b16 %v4076, %v4072
    %v4201 = vpack.c.b16 %v4077, %v4073
    %v4202 = vpack.c.b16 %v4082, %v4078
    %v4203 = vpack.c.b16 %v4083, %v4079
    %v4204 = vpack.c.b16 %v4084, %v4080
    %v4205 = vpack.c.b16 %v4085, %v4081
    %v4206 = vpack.c.b16 %v4090, %v4086
    %v4207 = vpack.c.b16 %v4091, %v4087
    %v4208 = vpack.c.b16 %v4092, %v4088
    %v4209 = vpack.c.b16 %v4093, %v4089
    %v4210 = vpack.c.b16 %v4098, %v4094
    %v4211 = vpack.c.b16 %v4099, %v4095
    %v4212 = vpack.c.b16 %v4100, %v4096
    %v4213 = vpack.c.b16 %v4101, %v4097
    %v4214 = vpack.c.b16 %v4106, %v4102
    %v4215 = vpack.c.b16 %v4107, %v4103
    %v4216 = vpack.c.b16 %v4108, %v4104
    %v4217 = vpack.c.b16 %v4109, %v4105
    %v4218 = vpack.c.b16 %v4114, %v4110
    %v4219 = vpack.c.b16 %v4115, %v4111
    %v4220 = vpack.c.b16 %v4116, %v4112
    %v4221 = vpack.c.b16 %v4117, %v4113
    %v4222 = vpack.c.b16 %v4122, %v4118
    %v4223 = vpack.c.b16 %v4123, %v4119
    %v4224 = vpack.c.b16 %v4124, %v4120
    %v4225 = vpack.c.b16 %v4125, %v4121
    %v4226 = vpack.c.b16 %v4130, %v4126
    %v4227 = vpack.c.b16 %v4131, %v4127
    %v4228 = vpack.c.b16 %v4132, %v4128
    %v4229 = vpack.c.b16 %v4133, %v4129
    %v4230 = vpack.c.b16 %v4138, %v4134
    %v4231 = vpack.c.b16 %v4139, %v4135
    %v4232 = vpack.c.b16 %v4140, %v4136
    %v4233 = vpack.c.b16 %v4141, %v4137
    %v4234 = vpack.c.b16 %v4146, %v4142
    %v4235 = vpack.c.b16 %v4147, %v4143
    %v4236 = vpack.c.b16 %v4148, %v4144
    %v4237 = vpack.c.b16 %v4149, %v4145
    %v4238 = vpack.c.b16 %v4154, %v4150
    %v4239 = vpack.c.b16 %v4155, %v4151
    %v4240 = vpack.c.b16 %v4156, %v4152
    %v4241 = vpack.c.b16 %v4157, %v4153
    %v4242 = vpack.c.b16 %v4162, %v4158
    %v4243 = vpack.c.b16 %v4163, %v4159
    %v4244 = vpack.c.b16 %v4164, %v4160
    %v4245 = vpack.c.b16 %v4165, %v4161
    %v4246 = vpack.c.b16 %v4170, %v4166
    %v4247 = vpack.c.b16 %v4171, %v4167
    %v4248 = vpack.c.b16 %v4172, %v4168
    %v4249 = vpack.c.b16 %v4173, %v4169
    %v4250 = vpack.c.b16 %v4178, %v4174
    %v4251 = vpack.c.b16 %v4179, %v4175
    %v4252 = vpack.c.b16 %v4180, %v4176
    %v4253 = vpack.c.b16 %v4181, %v4177
    %v4254 = vpack.c.b16 %v4186, %v4182
    %v4255 = vpack.c.b16 %v4187, %v4183
    %v4256 = vpack.c.b16 %v4188, %v4184
    %v4257 = vpack.c.b16 %v4189, %v4185
    %v4258 = vpack.c.b16 %v4194, %v4190
    %v4259 = vpack.c.b16 %v4195, %v4191
    %v4260 = vpack.c.b16 %v4196, %v4192
    %v4261 = vpack.c.b16 %v4197, %v4193
    %4326 = vmatpush.bf16.msra.mxu0 %v4226
    %4327 = vmatpush.bf16.msra.mxu0 %v4222
    %4328 = vmatpush.bf16.msra.mxu0 %v4218
    %4329 = vmatpush.bf16.msra.mxu0 %v4214
    %4330 = vmatpush.bf16.msra.mxu0 %v4210
    %4331 = vmatpush.bf16.msra.mxu0 %v4206
    %4332 = vmatpush.bf16.msra.mxu0 %v4202
    %4333 = vmatpush.bf16.msra.mxu0 %v4198
    %4334 = vmatmul.bf16.gmra.mxu0 %v3998
    %v4335 = vpop.f32.mrf.mxu0
    %v4336 = vadd.f32 0.0, %v4335
    %v4337 = vpop.f32.mrf.mxu0
    %v4338 = vadd.f32 0.0, %v4337
    %4339 = vmatmul.bf16.gmra.mxu0 %v4000
    %v4340 = vpop.f32.mrf.mxu0
    %v4341 = vadd.f32 0.0, %v4340
    %v4342 = vpop.f32.mrf.mxu0
    %v4343 = vadd.f32 0.0, %v4342
    %4344 = vdwg.mxu0
    %4345 = vmatpush.bf16.msra.mxu0 %v4258
    %4346 = vmatpush.bf16.msra.mxu0 %v4254
    %4347 = vmatpush.bf16.msra.mxu0 %v4250
    %4348 = vmatpush.bf16.msra.mxu0 %v4246
    %4349 = vmatpush.bf16.msra.mxu0 %v4242
    %4350 = vmatpush.bf16.msra.mxu0 %v4238
    %4351 = vmatpush.bf16.msra.mxu0 %v4234
    %4352 = vmatpush.bf16.msra.mxu0 %v4230
    %4353 = vmatmul.bf16.gmra.mxu0 %v3999
    %v4354 = vpop.f32.mrf.mxu0
    %v4355 = vadd.f32 %v4336, %v4354
    %v4356 = vpop.f32.mrf.mxu0
    %v4357 = vadd.f32 %v4338, %v4356
    %4358 = vmatmul.bf16.gmra.mxu0 %v4001
    %v4359 = vpop.f32.mrf.mxu0
    %v4360 = vadd.f32 %v4341, %v4359
    %v4361 = vpop.f32.mrf.mxu0
    %v4362 = vadd.f32 %v4343, %v4361
    %4363 = vdwg.mxu0
    %4364 = vmatpush.bf16.msra.mxu0 %v4227
    %4365 = vmatpush.bf16.msra.mxu0 %v4223
    %4366 = vmatpush.bf16.msra.mxu0 %v4219
    %4367 = vmatpush.bf16.msra.mxu0 %v4215
    %4368 = vmatpush.bf16.msra.mxu0 %v4211
    %4369 = vmatpush.bf16.msra.mxu0 %v4207
    %4370 = vmatpush.bf16.msra.mxu0 %v4203
    %4371 = vmatpush.bf16.msra.mxu0 %v4199
    %4372 = vmatmul.bf16.gmra.mxu0 %v3998
    %v4373 = vpop.f32.mrf.mxu0
    %v4374 = vadd.f32 0.0, %v4373
    %v4375 = vpop.f32.mrf.mxu0
    %v4376 = vadd.f32 0.0, %v4375
    %4377 = vmatmul.bf16.gmra.mxu0 %v4000
    %v4378 = vpop.f32.mrf.mxu0
    %v4379 = vadd.f32 0.0, %v4378
    %v4380 = vpop.f32.mrf.mxu0
    %v4381 = vadd.f32 0.0, %v4380
    %4382 = vdwg.mxu0
    %4383 = vmatpush.bf16.msra.mxu0 %v4259
    %4384 = vmatpush.bf16.msra.mxu0 %v4255
    %4385 = vmatpush.bf16.msra.mxu0 %v4251
    %4386 = vmatpush.bf16.msra.mxu0 %v4247
    %4387 = vmatpush.bf16.msra.mxu0 %v4243
    %4388 = vmatpush.bf16.msra.mxu0 %v4239
    %4389 = vmatpush.bf16.msra.mxu0 %v4235
    %4390 = vmatpush.bf16.msra.mxu0 %v4231
    %4391 = vmatmul.bf16.gmra.mxu0 %v3999
    %v4392 = vpop.f32.mrf.mxu0
    %v4393 = vadd.f32 %v4374, %v4392
    %v4394 = vpop.f32.mrf.mxu0
    %v4395 = vadd.f32 %v4376, %v4394
    %4396 = vmatmul.bf16.gmra.mxu0 %v4001
    %v4397 = vpop.f32.mrf.mxu0
    %v4398 = vadd.f32 %v4379, %v4397
    %v4399 = vpop.f32.mrf.mxu0
    %v4400 = vadd.f32 %v4381, %v4399
    %4401 = vdwg.mxu0
    %4402 = vmatpush.bf16.msra.mxu0 %v4228
    %4403 = vmatpush.bf16.msra.mxu0 %v4224
    %4404 = vmatpush.bf16.msra.mxu0 %v4220
    %4405 = vmatpush.bf16.msra.mxu0 %v4216
    %4406 = vmatpush.bf16.msra.mxu0 %v4212
    %4407 = vmatpush.bf16.msra.mxu0 %v4208
    %4408 = vmatpush.bf16.msra.mxu0 %v4204
    %4409 = vmatpush.bf16.msra.mxu0 %v4200
    %4410 = vmatmul.bf16.gmra.mxu0 %v3998
    %v4411 = vpop.f32.mrf.mxu0
    %v4412 = vadd.f32 0.0, %v4411
    %v4413 = vpop.f32.mrf.mxu0
    %v4414 = vadd.f32 0.0, %v4413
    %4415 = vmatmul.bf16.gmra.mxu0 %v4000
    %v4416 = vpop.f32.mrf.mxu0
    %v4417 = vadd.f32 0.0, %v4416
    %v4418 = vpop.f32.mrf.mxu0
    %v4419 = vadd.f32 0.0, %v4418
    %4420 = vdwg.mxu0
    %4421 = vmatpush.bf16.msra.mxu0 %v4260
    %4422 = vmatpush.bf16.msra.mxu0 %v4256
    %4423 = vmatpush.bf16.msra.mxu0 %v4252
    %4424 = vmatpush.bf16.msra.mxu0 %v4248
    %4425 = vmatpush.bf16.msra.mxu0 %v4244
    %4426 = vmatpush.bf16.msra.mxu0 %v4240
    %4427 = vmatpush.bf16.msra.mxu0 %v4236
    %4428 = vmatpush.bf16.msra.mxu0 %v4232
    %4429 = vmatmul.bf16.gmra.mxu0 %v3999
    %v4430 = vpop.f32.mrf.mxu0
    %v4431 = vadd.f32 %v4412, %v4430
    %v4432 = vpop.f32.mrf.mxu0
    %v4433 = vadd.f32 %v4414, %v4432
    %4434 = vmatmul.bf16.gmra.mxu0 %v4001
    %v4435 = vpop.f32.mrf.mxu0
    %v4436 = vadd.f32 %v4417, %v4435
    %v4437 = vpop.f32.mrf.mxu0
    %v4438 = vadd.f32 %v4419, %v4437
    %4439 = vdwg.mxu0
    %4440 = vmatpush.bf16.msra.mxu0 %v4229
    %4441 = vmatpush.bf16.msra.mxu0 %v4225
    %4442 = vmatpush.bf16.msra.mxu0 %v4221
    %4443 = vmatpush.bf16.msra.mxu0 %v4217
    %4444 = vmatpush.bf16.msra.mxu0 %v4213
    %4445 = vmatpush.bf16.msra.mxu0 %v4209
    %4446 = vmatpush.bf16.msra.mxu0 %v4205
    %4447 = vmatpush.bf16.msra.mxu0 %v4201
    %4448 = vmatmul.bf16.gmra.mxu0 %v3998
    %v4449 = vpop.f32.mrf.mxu0
    %v4450 = vadd.f32 0.0, %v4449
    %v4451 = vpop.f32.mrf.mxu0
    %v4452 = vadd.f32 0.0, %v4451
    %4453 = vmatmul.bf16.gmra.mxu0 %v4000
    %v4454 = vpop.f32.mrf.mxu0
    %v4455 = vadd.f32 0.0, %v4454
    %v4456 = vpop.f32.mrf.mxu0
    %v4457 = vadd.f32 0.0, %v4456
    %4458 = vdwg.mxu0
    %4459 = vmatpush.bf16.msra.mxu0 %v4261
    %4460 = vmatpush.bf16.msra.mxu0 %v4257
    %4461 = vmatpush.bf16.msra.mxu0 %v4253
    %4462 = vmatpush.bf16.msra.mxu0 %v4249
    %4463 = vmatpush.bf16.msra.mxu0 %v4245
    %4464 = vmatpush.bf16.msra.mxu0 %v4241
    %4465 = vmatpush.bf16.msra.mxu0 %v4237
    %4466 = vmatpush.bf16.msra.mxu0 %v4233
    %4467 = vmatmul.bf16.gmra.mxu0 %v3999
    %v4468 = vpop.f32.mrf.mxu0
    %v4469 = vadd.f32 %v4450, %v4468
    %v4470 = vpop.f32.mrf.mxu0
    %v4471 = vadd.f32 %v4452, %v4470
    %4472 = vmatmul.bf16.gmra.mxu0 %v4001
    %v4473 = vpop.f32.mrf.mxu0
    %v4474 = vadd.f32 %v4455, %v4473
    %v4475 = vpop.f32.mrf.mxu0
    %v4476 = vadd.f32 %v4457, %v4475
    %4477 = vdwg.mxu0
    %v4478 = vadd.f32 %v3807, %v4355
    %v4479 = vadd.f32 %v3845, %v4393
    %v4480 = vadd.f32 %v3883, %v4431
    %v4481 = vadd.f32 %v3921, %v4469
    %v4482 = vadd.f32 %v3809, %v4357
    %v4483 = vadd.f32 %v3847, %v4395
    %v4484 = vadd.f32 %v3885, %v4433
    %v4485 = vadd.f32 %v3923, %v4471
    %v4486 = vadd.f32 %v3812, %v4360
    %v4487 = vadd.f32 %v3850, %v4398
    %v4488 = vadd.f32 %v3888, %v4436
    %v4489 = vadd.f32 %v3926, %v4474
    %v4490 = vadd.f32 %v3814, %v4362
    %v4491 = vadd.f32 %v3852, %v4400
    %v4492 = vadd.f32 %v3890, %v4438
    %v4493 = vadd.f32 %v3928, %v4476
    %s4494 = scalar_lea.vmem %s3, 1536
    %v4495 = vld [vmem:[%s4494] sm:$0xff]
    %v4496 = vld [vmem:[%s4494 + $0x8] sm:$0xff]
    %v4497 = vld [vmem:[%s4494 + $0x10] sm:$0xff]
    %v4498 = vld [vmem:[%s4494 + $0x18] sm:$0xff]
    %v4499 = vld [vmem:[%s4494 + $0x20] sm:$0xff]
    %v4500 = vld [vmem:[%s4494 + $0x28] sm:$0xff]
    %v4501 = vld [vmem:[%s4494 + $0x30] sm:$0xff]
    %v4502 = vld [vmem:[%s4494 + $0x38] sm:$0xff]
    %v4503 = vld [vmem:[%s4494 + $0x40] sm:$0xff]
    %v4504 = vld [vmem:[%s4494 + $0x48] sm:$0xff]
    %v4505 = vld [vmem:[%s4494 + $0x50] sm:$0xff]
    %v4506 = vld [vmem:[%s4494 + $0x58] sm:$0xff]
    %v4507 = vld [vmem:[%s4494 + $0x60] sm:$0xff]
    %v4508 = vld [vmem:[%s4494 + $0x68] sm:$0xff]
    %v4509 = vld [vmem:[%s4494 + $0x70] sm:$0xff]
    %v4510 = vld [vmem:[%s4494 + $0x78] sm:$0xff]
    %v4511 = vld [vmem:[%s4494 + $0x80] sm:$0xff]
    %v4512 = vld [vmem:[%s4494 + $0x88] sm:$0xff]
    %v4513 = vld [vmem:[%s4494 + $0x90] sm:$0xff]
    %v4514 = vld [vmem:[%s4494 + $0x98] sm:$0xff]
    %v4515 = vld [vmem:[%s4494 + $0xa0] sm:$0xff]
    %v4516 = vld [vmem:[%s4494 + $0xa8] sm:$0xff]
    %v4517 = vld [vmem:[%s4494 + $0xb0] sm:$0xff]
    %v4518 = vld [vmem:[%s4494 + $0xb8] sm:$0xff]
    %v4519 = vld [vmem:[%s4494 + $0xc0] sm:$0xff]
    %v4520 = vld [vmem:[%s4494 + $0xc8] sm:$0xff]
    %v4521 = vld [vmem:[%s4494 + $0xd0] sm:$0xff]
    %v4522 = vld [vmem:[%s4494 + $0xd8] sm:$0xff]
    %v4523 = vld [vmem:[%s4494 + $0xe0] sm:$0xff]
    %v4524 = vld [vmem:[%s4494 + $0xe8] sm:$0xff]
    %v4525 = vld [vmem:[%s4494 + $0xf0] sm:$0xff]
    %v4526 = vld [vmem:[%s4494 + $0xf8] sm:$0xff]
    %v4527 = vld [vmem:[%s4494 + $0x100] sm:$0xff]
    %v4528 = vld [vmem:[%s4494 + $0x108] sm:$0xff]
    %v4529 = vld [vmem:[%s4494 + $0x110] sm:$0xff]
    %v4530 = vld [vmem:[%s4494 + $0x118] sm:$0xff]
    %v4531 = vld [vmem:[%s4494 + $0x120] sm:$0xff]
    %v4532 = vld [vmem:[%s4494 + $0x128] sm:$0xff]
    %v4533 = vld [vmem:[%s4494 + $0x130] sm:$0xff]
    %v4534 = vld [vmem:[%s4494 + $0x138] sm:$0xff]
    %v4535 = vld [vmem:[%s4494 + $0x140] sm:$0xff]
    %v4536 = vld [vmem:[%s4494 + $0x148] sm:$0xff]
    %v4537 = vld [vmem:[%s4494 + $0x150] sm:$0xff]
    %v4538 = vld [vmem:[%s4494 + $0x158] sm:$0xff]
    %v4539 = vld [vmem:[%s4494 + $0x160] sm:$0xff]
    %v4540 = vld [vmem:[%s4494 + $0x168] sm:$0xff]
    %v4541 = vld [vmem:[%s4494 + $0x170] sm:$0xff]
    %v4542 = vld [vmem:[%s4494 + $0x178] sm:$0xff]
    %v4543 = vld [vmem:[%s4494 + $0x180] sm:$0xff]
    %v4544 = vld [vmem:[%s4494 + $0x188] sm:$0xff]
    %v4545 = vld [vmem:[%s4494 + $0x190] sm:$0xff]
    %v4546 = vld [vmem:[%s4494 + $0x198] sm:$0xff]
    %v4547 = vld [vmem:[%s4494 + $0x1a0] sm:$0xff]
    %v4548 = vld [vmem:[%s4494 + $0x1a8] sm:$0xff]
    %v4549 = vld [vmem:[%s4494 + $0x1b0] sm:$0xff]
    %v4550 = vld [vmem:[%s4494 + $0x1b8] sm:$0xff]
    %v4551 = vld [vmem:[%s4494 + $0x1c0] sm:$0xff]
    %v4552 = vld [vmem:[%s4494 + $0x1c8] sm:$0xff]
    %v4553 = vld [vmem:[%s4494 + $0x1d0] sm:$0xff]
    %v4554 = vld [vmem:[%s4494 + $0x1d8] sm:$0xff]
    %v4555 = vld [vmem:[%s4494 + $0x1e0] sm:$0xff]
    %v4556 = vld [vmem:[%s4494 + $0x1e8] sm:$0xff]
    %v4557 = vld [vmem:[%s4494 + $0x1f0] sm:$0xff]
    %v4558 = vld [vmem:[%s4494 + $0x1f8] sm:$0xff]
    %v4560 = vunpack.c.l.b16 %v2815
    %v4561 = vunpack.c.h.b16 %v2815
    %v4562 = vpack.c.b16 %v2954, %v2952
    %v4563 = vpack.c.b16 %v2955, %v2953
    %v4564 = vpack.c.b16 %v4560, %v2956
    %v4565 = vpack.c.b16 %v4561, %v2957
    %v4634 = vunpack.c.l.b16 %v4495
    %v4635 = vunpack.c.h.b16 %v4495
    %v4636 = vunpack.c.l.b16 %v4496
    %v4637 = vunpack.c.h.b16 %v4496
    %v4638 = vunpack.c.l.b16 %v4497
    %v4639 = vunpack.c.h.b16 %v4497
    %v4640 = vunpack.c.l.b16 %v4498
    %v4641 = vunpack.c.h.b16 %v4498
    %v4642 = vunpack.c.l.b16 %v4499
    %v4643 = vunpack.c.h.b16 %v4499
    %v4644 = vunpack.c.l.b16 %v4500
    %v4645 = vunpack.c.h.b16 %v4500
    %v4646 = vunpack.c.l.b16 %v4501
    %v4647 = vunpack.c.h.b16 %v4501
    %v4648 = vunpack.c.l.b16 %v4502
    %v4649 = vunpack.c.h.b16 %v4502
    %v4650 = vunpack.c.l.b16 %v4503
    %v4651 = vunpack.c.h.b16 %v4503
    %v4652 = vunpack.c.l.b16 %v4504
    %v4653 = vunpack.c.h.b16 %v4504
    %v4654 = vunpack.c.l.b16 %v4505
    %v4655 = vunpack.c.h.b16 %v4505
    %v4656 = vunpack.c.l.b16 %v4506
    %v4657 = vunpack.c.h.b16 %v4506
    %v4658 = vunpack.c.l.b16 %v4507
    %v4659 = vunpack.c.h.b16 %v4507
    %v4660 = vunpack.c.l.b16 %v4508
    %v4661 = vunpack.c.h.b16 %v4508
    %v4662 = vunpack.c.l.b16 %v4509
    %v4663 = vunpack.c.h.b16 %v4509
    %v4664 = vunpack.c.l.b16 %v4510
    %v4665 = vunpack.c.h.b16 %v4510
    %v4666 = vunpack.c.l.b16 %v4511
    %v4667 = vunpack.c.h.b16 %v4511
    %v4668 = vunpack.c.l.b16 %v4512
    %v4669 = vunpack.c.h.b16 %v4512
    %v4670 = vunpack.c.l.b16 %v4513
    %v4671 = vunpack.c.h.b16 %v4513
    %v4672 = vunpack.c.l.b16 %v4514
    %v4673 = vunpack.c.h.b16 %v4514
    %v4674 = vunpack.c.l.b16 %v4515
    %v4675 = vunpack.c.h.b16 %v4515
    %v4676 = vunpack.c.l.b16 %v4516
    %v4677 = vunpack.c.h.b16 %v4516
    %v4678 = vunpack.c.l.b16 %v4517
    %v4679 = vunpack.c.h.b16 %v4517
    %v4680 = vunpack.c.l.b16 %v4518
    %v4681 = vunpack.c.h.b16 %v4518
    %v4682 = vunpack.c.l.b16 %v4519
    %v4683 = vunpack.c.h.b16 %v4519
    %v4684 = vunpack.c.l.b16 %v4520
    %v4685 = vunpack.c.h.b16 %v4520
    %v4686 = vunpack.c.l.b16 %v4521
    %v4687 = vunpack.c.h.b16 %v4521
    %v4688 = vunpack.c.l.b16 %v4522
    %v4689 = vunpack.c.h.b16 %v4522
    %v4690 = vunpack.c.l.b16 %v4523
    %v4691 = vunpack.c.h.b16 %v4523
    %v4692 = vunpack.c.l.b16 %v4524
    %v4693 = vunpack.c.h.b16 %v4524
    %v4694 = vunpack.c.l.b16 %v4525
    %v4695 = vunpack.c.h.b16 %v4525
    %v4696 = vunpack.c.l.b16 %v4526
    %v4697 = vunpack.c.h.b16 %v4526
    %v4698 = vunpack.c.l.b16 %v4527
    %v4699 = vunpack.c.h.b16 %v4527
    %v4700 = vunpack.c.l.b16 %v4528
    %v4701 = vunpack.c.h.b16 %v4528
    %v4702 = vunpack.c.l.b16 %v4529
    %v4703 = vunpack.c.h.b16 %v4529
    %v4704 = vunpack.c.l.b16 %v4530
    %v4705 = vunpack.c.h.b16 %v4530
    %v4706 = vunpack.c.l.b16 %v4531
    %v4707 = vunpack.c.h.b16 %v4531
    %v4708 = vunpack.c.l.b16 %v4532
    %v4709 = vunpack.c.h.b16 %v4532
    %v4710 = vunpack.c.l.b16 %v4533
    %v4711 = vunpack.c.h.b16 %v4533
    %v4712 = vunpack.c.l.b16 %v4534
    %v4713 = vunpack.c.h.b16 %v4534
    %v4714 = vunpack.c.l.b16 %v4535
    %v4715 = vunpack.c.h.b16 %v4535
    %v4716 = vunpack.c.l.b16 %v4536
    %v4717 = vunpack.c.h.b16 %v4536
    %v4718 = vunpack.c.l.b16 %v4537
    %v4719 = vunpack.c.h.b16 %v4537
    %v4720 = vunpack.c.l.b16 %v4538
    %v4721 = vunpack.c.h.b16 %v4538
    %v4722 = vunpack.c.l.b16 %v4539
    %v4723 = vunpack.c.h.b16 %v4539
    %v4724 = vunpack.c.l.b16 %v4540
    %v4725 = vunpack.c.h.b16 %v4540
    %v4726 = vunpack.c.l.b16 %v4541
    %v4727 = vunpack.c.h.b16 %v4541
    %v4728 = vunpack.c.l.b16 %v4542
    %v4729 = vunpack.c.h.b16 %v4542
    %v4730 = vunpack.c.l.b16 %v4543
    %v4731 = vunpack.c.h.b16 %v4543
    %v4732 = vunpack.c.l.b16 %v4544
    %v4733 = vunpack.c.h.b16 %v4544
    %v4734 = vunpack.c.l.b16 %v4545
    %v4735 = vunpack.c.h.b16 %v4545
    %v4736 = vunpack.c.l.b16 %v4546
    %v4737 = vunpack.c.h.b16 %v4546
    %v4738 = vunpack.c.l.b16 %v4547
    %v4739 = vunpack.c.h.b16 %v4547
    %v4740 = vunpack.c.l.b16 %v4548
    %v4741 = vunpack.c.h.b16 %v4548
    %v4742 = vunpack.c.l.b16 %v4549
    %v4743 = vunpack.c.h.b16 %v4549
    %v4744 = vunpack.c.l.b16 %v4550
    %v4745 = vunpack.c.h.b16 %v4550
    %v4746 = vunpack.c.l.b16 %v4551
    %v4747 = vunpack.c.h.b16 %v4551
    %v4748 = vunpack.c.l.b16 %v4552
    %v4749 = vunpack.c.h.b16 %v4552
    %v4750 = vunpack.c.l.b16 %v4553
    %v4751 = vunpack.c.h.b16 %v4553
    %v4752 = vunpack.c.l.b16 %v4554
    %v4753 = vunpack.c.h.b16 %v4554
    %v4754 = vunpack.c.l.b16 %v4555
    %v4755 = vunpack.c.h.b16 %v4555
    %v4756 = vunpack.c.l.b16 %v4556
    %v4757 = vunpack.c.h.b16 %v4556
    %v4758 = vunpack.c.l.b16 %v4557
    %v4759 = vunpack.c.h.b16 %v4557
    %v4760 = vunpack.c.l.b16 %v4558
    %v4761 = vunpack.c.h.b16 %v4558
    %v4762 = vpack.c.b16 %v4638, %v4634
    %v4763 = vpack.c.b16 %v4639, %v4635
    %v4764 = vpack.c.b16 %v4640, %v4636
    %v4765 = vpack.c.b16 %v4641, %v4637
    %v4766 = vpack.c.b16 %v4646, %v4642
    %v4767 = vpack.c.b16 %v4647, %v4643
    %v4768 = vpack.c.b16 %v4648, %v4644
    %v4769 = vpack.c.b16 %v4649, %v4645
    %v4770 = vpack.c.b16 %v4654, %v4650
    %v4771 = vpack.c.b16 %v4655, %v4651
    %v4772 = vpack.c.b16 %v4656, %v4652
    %v4773 = vpack.c.b16 %v4657, %v4653
    %v4774 = vpack.c.b16 %v4662, %v4658
    %v4775 = vpack.c.b16 %v4663, %v4659
    %v4776 = vpack.c.b16 %v4664, %v4660
    %v4777 = vpack.c.b16 %v4665, %v4661
    %v4778 = vpack.c.b16 %v4670, %v4666
    %v4779 = vpack.c.b16 %v4671, %v4667
    %v4780 = vpack.c.b16 %v4672, %v4668
    %v4781 = vpack.c.b16 %v4673, %v4669
    %v4782 = vpack.c.b16 %v4678, %v4674
    %v4783 = vpack.c.b16 %v4679, %v4675
    %v4784 = vpack.c.b16 %v4680, %v4676
    %v4785 = vpack.c.b16 %v4681, %v4677
    %v4786 = vpack.c.b16 %v4686, %v4682
    %v4787 = vpack.c.b16 %v4687, %v4683
    %v4788 = vpack.c.b16 %v4688, %v4684
    %v4789 = vpack.c.b16 %v4689, %v4685
    %v4790 = vpack.c.b16 %v4694, %v4690
    %v4791 = vpack.c.b16 %v4695, %v4691
    %v4792 = vpack.c.b16 %v4696, %v4692
    %v4793 = vpack.c.b16 %v4697, %v4693
    %v4794 = vpack.c.b16 %v4702, %v4698
    %v4795 = vpack.c.b16 %v4703, %v4699
    %v4796 = vpack.c.b16 %v4704, %v4700
    %v4797 = vpack.c.b16 %v4705, %v4701
    %v4798 = vpack.c.b16 %v4710, %v4706
    %v4799 = vpack.c.b16 %v4711, %v4707
    %v4800 = vpack.c.b16 %v4712, %v4708
    %v4801 = vpack.c.b16 %v4713, %v4709
    %v4802 = vpack.c.b16 %v4718, %v4714
    %v4803 = vpack.c.b16 %v4719, %v4715
    %v4804 = vpack.c.b16 %v4720, %v4716
    %v4805 = vpack.c.b16 %v4721, %v4717
    %v4806 = vpack.c.b16 %v4726, %v4722
    %v4807 = vpack.c.b16 %v4727, %v4723
    %v4808 = vpack.c.b16 %v4728, %v4724
    %v4809 = vpack.c.b16 %v4729, %v4725
    %v4810 = vpack.c.b16 %v4734, %v4730
    %v4811 = vpack.c.b16 %v4735, %v4731
    %v4812 = vpack.c.b16 %v4736, %v4732
    %v4813 = vpack.c.b16 %v4737, %v4733
    %v4814 = vpack.c.b16 %v4742, %v4738
    %v4815 = vpack.c.b16 %v4743, %v4739
    %v4816 = vpack.c.b16 %v4744, %v4740
    %v4817 = vpack.c.b16 %v4745, %v4741
    %v4818 = vpack.c.b16 %v4750, %v4746
    %v4819 = vpack.c.b16 %v4751, %v4747
    %v4820 = vpack.c.b16 %v4752, %v4748
    %v4821 = vpack.c.b16 %v4753, %v4749
    %v4822 = vpack.c.b16 %v4758, %v4754
    %v4823 = vpack.c.b16 %v4759, %v4755
    %v4824 = vpack.c.b16 %v4760, %v4756
    %v4825 = vpack.c.b16 %v4761, %v4757
    %4890 = vmatpush.bf16.msra.mxu0 %v4790
    %4891 = vmatpush.bf16.msra.mxu0 %v4786
    %4892 = vmatpush.bf16.msra.mxu0 %v4782
    %4893 = vmatpush.bf16.msra.mxu0 %v4778
    %4894 = vmatpush.bf16.msra.mxu0 %v4774
    %4895 = vmatpush.bf16.msra.mxu0 %v4770
    %4896 = vmatpush.bf16.msra.mxu0 %v4766
    %4897 = vmatpush.bf16.msra.mxu0 %v4762
    %4898 = vmatmul.bf16.gmra.mxu0 %v4562
    %v4899 = vpop.f32.mrf.mxu0
    %v4900 = vadd.f32 0.0, %v4899
    %v4901 = vpop.f32.mrf.mxu0
    %v4902 = vadd.f32 0.0, %v4901
    %4903 = vmatmul.bf16.gmra.mxu0 %v4564
    %v4904 = vpop.f32.mrf.mxu0
    %v4905 = vadd.f32 0.0, %v4904
    %v4906 = vpop.f32.mrf.mxu0
    %v4907 = vadd.f32 0.0, %v4906
    %4908 = vdwg.mxu0
    %4909 = vmatpush.bf16.msra.mxu0 %v4822
    %4910 = vmatpush.bf16.msra.mxu0 %v4818
    %4911 = vmatpush.bf16.msra.mxu0 %v4814
    %4912 = vmatpush.bf16.msra.mxu0 %v4810
    %4913 = vmatpush.bf16.msra.mxu0 %v4806
    %4914 = vmatpush.bf16.msra.mxu0 %v4802
    %4915 = vmatpush.bf16.msra.mxu0 %v4798
    %4916 = vmatpush.bf16.msra.mxu0 %v4794
    %4917 = vmatmul.bf16.gmra.mxu0 %v4563
    %v4918 = vpop.f32.mrf.mxu0
    %v4919 = vadd.f32 %v4900, %v4918
    %v4920 = vpop.f32.mrf.mxu0
    %v4921 = vadd.f32 %v4902, %v4920
    %4922 = vmatmul.bf16.gmra.mxu0 %v4565
    %v4923 = vpop.f32.mrf.mxu0
    %v4924 = vadd.f32 %v4905, %v4923
    %v4925 = vpop.f32.mrf.mxu0
    %v4926 = vadd.f32 %v4907, %v4925
    %4927 = vdwg.mxu0
    %4928 = vmatpush.bf16.msra.mxu0 %v4791
    %4929 = vmatpush.bf16.msra.mxu0 %v4787
    %4930 = vmatpush.bf16.msra.mxu0 %v4783
    %4931 = vmatpush.bf16.msra.mxu0 %v4779
    %4932 = vmatpush.bf16.msra.mxu0 %v4775
    %4933 = vmatpush.bf16.msra.mxu0 %v4771
    %4934 = vmatpush.bf16.msra.mxu0 %v4767
    %4935 = vmatpush.bf16.msra.mxu0 %v4763
    %4936 = vmatmul.bf16.gmra.mxu0 %v4562
    %v4937 = vpop.f32.mrf.mxu0
    %v4938 = vadd.f32 0.0, %v4937
    %v4939 = vpop.f32.mrf.mxu0
    %v4940 = vadd.f32 0.0, %v4939
    %4941 = vmatmul.bf16.gmra.mxu0 %v4564
    %v4942 = vpop.f32.mrf.mxu0
    %v4943 = vadd.f32 0.0, %v4942
    %v4944 = vpop.f32.mrf.mxu0
    %v4945 = vadd.f32 0.0, %v4944
    %4946 = vdwg.mxu0
    %4947 = vmatpush.bf16.msra.mxu0 %v4823
    %4948 = vmatpush.bf16.msra.mxu0 %v4819
    %4949 = vmatpush.bf16.msra.mxu0 %v4815
    %4950 = vmatpush.bf16.msra.mxu0 %v4811
    %4951 = vmatpush.bf16.msra.mxu0 %v4807
    %4952 = vmatpush.bf16.msra.mxu0 %v4803
    %4953 = vmatpush.bf16.msra.mxu0 %v4799
    %4954 = vmatpush.bf16.msra.mxu0 %v4795
    %4955 = vmatmul.bf16.gmra.mxu0 %v4563
    %v4956 = vpop.f32.mrf.mxu0
    %v4957 = vadd.f32 %v4938, %v4956
    %v4958 = vpop.f32.mrf.mxu0
    %v4959 = vadd.f32 %v4940, %v4958
    %4960 = vmatmul.bf16.gmra.mxu0 %v4565
    %v4961 = vpop.f32.mrf.mxu0
    %v4962 = vadd.f32 %v4943, %v4961
    %v4963 = vpop.f32.mrf.mxu0
    %v4964 = vadd.f32 %v4945, %v4963
    %4965 = vdwg.mxu0
    %4966 = vmatpush.bf16.msra.mxu0 %v4792
    %4967 = vmatpush.bf16.msra.mxu0 %v4788
    %4968 = vmatpush.bf16.msra.mxu0 %v4784
    %4969 = vmatpush.bf16.msra.mxu0 %v4780
    %4970 = vmatpush.bf16.msra.mxu0 %v4776
    %4971 = vmatpush.bf16.msra.mxu0 %v4772
    %4972 = vmatpush.bf16.msra.mxu0 %v4768
    %4973 = vmatpush.bf16.msra.mxu0 %v4764
    %4974 = vmatmul.bf16.gmra.mxu0 %v4562
    %v4975 = vpop.f32.mrf.mxu0
    %v4976 = vadd.f32 0.0, %v4975
    %v4977 = vpop.f32.mrf.mxu0
    %v4978 = vadd.f32 0.0, %v4977
    %4979 = vmatmul.bf16.gmra.mxu0 %v4564
    %v4980 = vpop.f32.mrf.mxu0
    %v4981 = vadd.f32 0.0, %v4980
    %v4982 = vpop.f32.mrf.mxu0
    %v4983 = vadd.f32 0.0, %v4982
    %4984 = vdwg.mxu0
    %4985 = vmatpush.bf16.msra.mxu0 %v4824
    %4986 = vmatpush.bf16.msra.mxu0 %v4820
    %4987 = vmatpush.bf16.msra.mxu0 %v4816
    %4988 = vmatpush.bf16.msra.mxu0 %v4812
    %4989 = vmatpush.bf16.msra.mxu0 %v4808
    %4990 = vmatpush.bf16.msra.mxu0 %v4804
    %4991 = vmatpush.bf16.msra.mxu0 %v4800
    %4992 = vmatpush.bf16.msra.mxu0 %v4796
    %4993 = vmatmul.bf16.gmra.mxu0 %v4563
    %v4994 = vpop.f32.mrf.mxu0
    %v4995 = vadd.f32 %v4976, %v4994
    %v4996 = vpop.f32.mrf.mxu0
    %v4997 = vadd.f32 %v4978, %v4996
    %4998 = vmatmul.bf16.gmra.mxu0 %v4565
    %v4999 = vpop.f32.mrf.mxu0
    %v5000 = vadd.f32 %v4981, %v4999
    %v5001 = vpop.f32.mrf.mxu0
    %v5002 = vadd.f32 %v4983, %v5001
    %5003 = vdwg.mxu0
    %5004 = vmatpush.bf16.msra.mxu0 %v4793
    %5005 = vmatpush.bf16.msra.mxu0 %v4789
    %5006 = vmatpush.bf16.msra.mxu0 %v4785
    %5007 = vmatpush.bf16.msra.mxu0 %v4781
    %5008 = vmatpush.bf16.msra.mxu0 %v4777
    %5009 = vmatpush.bf16.msra.mxu0 %v4773
    %5010 = vmatpush.bf16.msra.mxu0 %v4769
    %5011 = vmatpush.bf16.msra.mxu0 %v4765
    %5012 = vmatmul.bf16.gmra.mxu0 %v4562
    %v5013 = vpop.f32.mrf.mxu0
    %v5014 = vadd.f32 0.0, %v5013
    %v5015 = vpop.f32.mrf.mxu0
    %v5016 = vadd.f32 0.0, %v5015
    %5017 = vmatmul.bf16.gmra.mxu0 %v4564
    %v5018 = vpop.f32.mrf.mxu0
    %v5019 = vadd.f32 0.0, %v5018
    %v5020 = vpop.f32.mrf.mxu0
    %v5021 = vadd.f32 0.0, %v5020
    %5022 = vdwg.mxu0
    %5023 = vmatpush.bf16.msra.mxu0 %v4825
    %5024 = vmatpush.bf16.msra.mxu0 %v4821
    %5025 = vmatpush.bf16.msra.mxu0 %v4817
    %5026 = vmatpush.bf16.msra.mxu0 %v4813
    %5027 = vmatpush.bf16.msra.mxu0 %v4809
    %5028 = vmatpush.bf16.msra.mxu0 %v4805
    %5029 = vmatpush.bf16.msra.mxu0 %v4801
    %5030 = vmatpush.bf16.msra.mxu0 %v4797
    %5031 = vmatmul.bf16.gmra.mxu0 %v4563
    %v5032 = vpop.f32.mrf.mxu0
    %v5033 = vadd.f32 %v5014, %v5032
    %v5034 = vpop.f32.mrf.mxu0
    %v5035 = vadd.f32 %v5016, %v5034
    %5036 = vmatmul.bf16.gmra.mxu0 %v4565
    %v5037 = vpop.f32.mrf.mxu0
    %v5038 = vadd.f32 %v5019, %v5037
    %v5039 = vpop.f32.mrf.mxu0
    %v5040 = vadd.f32 %v5021, %v5039
    %5041 = vdwg.mxu0
    %v5042 = vadd.f32 %v4478, %v4919
    %v5043 = vadd.f32 %v4479, %v4957
    %v5044 = vadd.f32 %v4480, %v4995
    %v5045 = vadd.f32 %v4481, %v5033
    %v5046 = vadd.f32 %v4482, %v4921
    %v5047 = vadd.f32 %v4483, %v4959
    %v5048 = vadd.f32 %v4484, %v4997
    %v5049 = vadd.f32 %v4485, %v5035
    %v5050 = vadd.f32 %v4486, %v4924
    %v5051 = vadd.f32 %v4487, %v4962
    %v5052 = vadd.f32 %v4488, %v5000
    %v5053 = vadd.f32 %v4489, %v5038
    %v5054 = vadd.f32 %v4490, %v4926
    %v5055 = vadd.f32 %v4491, %v4964
    %v5056 = vadd.f32 %v4492, %v5002
    %v5057 = vadd.f32 %v4493, %v5040
    %s5058 = scalar_lea.vmem %s3, 2048
    %v5059 = vld [vmem:[%s5058] sm:$0xff]
    %v5060 = vld [vmem:[%s5058 + $0x8] sm:$0xff]
    %v5061 = vld [vmem:[%s5058 + $0x10] sm:$0xff]
    %v5062 = vld [vmem:[%s5058 + $0x18] sm:$0xff]
    %v5063 = vld [vmem:[%s5058 + $0x20] sm:$0xff]
    %v5064 = vld [vmem:[%s5058 + $0x28] sm:$0xff]
    %v5065 = vld [vmem:[%s5058 + $0x30] sm:$0xff]
    %v5066 = vld [vmem:[%s5058 + $0x38] sm:$0xff]
    %v5067 = vld [vmem:[%s5058 + $0x40] sm:$0xff]
    %v5068 = vld [vmem:[%s5058 + $0x48] sm:$0xff]
    %v5069 = vld [vmem:[%s5058 + $0x50] sm:$0xff]
    %v5070 = vld [vmem:[%s5058 + $0x58] sm:$0xff]
    %v5071 = vld [vmem:[%s5058 + $0x60] sm:$0xff]
    %v5072 = vld [vmem:[%s5058 + $0x68] sm:$0xff]
    %v5073 = vld [vmem:[%s5058 + $0x70] sm:$0xff]
    %v5074 = vld [vmem:[%s5058 + $0x78] sm:$0xff]
    %v5075 = vld [vmem:[%s5058 + $0x80] sm:$0xff]
    %v5076 = vld [vmem:[%s5058 + $0x88] sm:$0xff]
    %v5077 = vld [vmem:[%s5058 + $0x90] sm:$0xff]
    %v5078 = vld [vmem:[%s5058 + $0x98] sm:$0xff]
    %v5079 = vld [vmem:[%s5058 + $0xa0] sm:$0xff]
    %v5080 = vld [vmem:[%s5058 + $0xa8] sm:$0xff]
    %v5081 = vld [vmem:[%s5058 + $0xb0] sm:$0xff]
    %v5082 = vld [vmem:[%s5058 + $0xb8] sm:$0xff]
    %v5083 = vld [vmem:[%s5058 + $0xc0] sm:$0xff]
    %v5084 = vld [vmem:[%s5058 + $0xc8] sm:$0xff]
    %v5085 = vld [vmem:[%s5058 + $0xd0] sm:$0xff]
    %v5086 = vld [vmem:[%s5058 + $0xd8] sm:$0xff]
    %v5087 = vld [vmem:[%s5058 + $0xe0] sm:$0xff]
    %v5088 = vld [vmem:[%s5058 + $0xe8] sm:$0xff]
    %v5089 = vld [vmem:[%s5058 + $0xf0] sm:$0xff]
    %v5090 = vld [vmem:[%s5058 + $0xf8] sm:$0xff]
    %v5091 = vld [vmem:[%s5058 + $0x100] sm:$0xff]
    %v5092 = vld [vmem:[%s5058 + $0x108] sm:$0xff]
    %v5093 = vld [vmem:[%s5058 + $0x110] sm:$0xff]
    %v5094 = vld [vmem:[%s5058 + $0x118] sm:$0xff]
    %v5095 = vld [vmem:[%s5058 + $0x120] sm:$0xff]
    %v5096 = vld [vmem:[%s5058 + $0x128] sm:$0xff]
    %v5097 = vld [vmem:[%s5058 + $0x130] sm:$0xff]
    %v5098 = vld [vmem:[%s5058 + $0x138] sm:$0xff]
    %v5099 = vld [vmem:[%s5058 + $0x140] sm:$0xff]
    %v5100 = vld [vmem:[%s5058 + $0x148] sm:$0xff]
    %v5101 = vld [vmem:[%s5058 + $0x150] sm:$0xff]
    %v5102 = vld [vmem:[%s5058 + $0x158] sm:$0xff]
    %v5103 = vld [vmem:[%s5058 + $0x160] sm:$0xff]
    %v5104 = vld [vmem:[%s5058 + $0x168] sm:$0xff]
    %v5105 = vld [vmem:[%s5058 + $0x170] sm:$0xff]
    %v5106 = vld [vmem:[%s5058 + $0x178] sm:$0xff]
    %v5107 = vld [vmem:[%s5058 + $0x180] sm:$0xff]
    %v5108 = vld [vmem:[%s5058 + $0x188] sm:$0xff]
    %v5109 = vld [vmem:[%s5058 + $0x190] sm:$0xff]
    %v5110 = vld [vmem:[%s5058 + $0x198] sm:$0xff]
    %v5111 = vld [vmem:[%s5058 + $0x1a0] sm:$0xff]
    %v5112 = vld [vmem:[%s5058 + $0x1a8] sm:$0xff]
    %v5113 = vld [vmem:[%s5058 + $0x1b0] sm:$0xff]
    %v5114 = vld [vmem:[%s5058 + $0x1b8] sm:$0xff]
    %v5115 = vld [vmem:[%s5058 + $0x1c0] sm:$0xff]
    %v5116 = vld [vmem:[%s5058 + $0x1c8] sm:$0xff]
    %v5117 = vld [vmem:[%s5058 + $0x1d0] sm:$0xff]
    %v5118 = vld [vmem:[%s5058 + $0x1d8] sm:$0xff]
    %v5119 = vld [vmem:[%s5058 + $0x1e0] sm:$0xff]
    %v5120 = vld [vmem:[%s5058 + $0x1e8] sm:$0xff]
    %v5121 = vld [vmem:[%s5058 + $0x1f0] sm:$0xff]
    %v5122 = vld [vmem:[%s5058 + $0x1f8] sm:$0xff]
    %v5124 = vunpack.c.l.b16 %v1608
    %v5125 = vunpack.c.h.b16 %v1608
    %v5126 = vpack.c.b16 %v5124, %v3996
    %v5127 = vpack.c.b16 %v5125, %v3997
    %v5194 = vunpack.c.l.b16 %v5059
    %v5195 = vunpack.c.h.b16 %v5059
    %v5196 = vunpack.c.l.b16 %v5060
    %v5197 = vunpack.c.h.b16 %v5060
    %v5198 = vunpack.c.l.b16 %v5061
    %v5199 = vunpack.c.h.b16 %v5061
    %v5200 = vunpack.c.l.b16 %v5062
    %v5201 = vunpack.c.h.b16 %v5062
    %v5202 = vunpack.c.l.b16 %v5063
    %v5203 = vunpack.c.h.b16 %v5063
    %v5204 = vunpack.c.l.b16 %v5064
    %v5205 = vunpack.c.h.b16 %v5064
    %v5206 = vunpack.c.l.b16 %v5065
    %v5207 = vunpack.c.h.b16 %v5065
    %v5208 = vunpack.c.l.b16 %v5066
    %v5209 = vunpack.c.h.b16 %v5066
    %v5210 = vunpack.c.l.b16 %v5067
    %v5211 = vunpack.c.h.b16 %v5067
    %v5212 = vunpack.c.l.b16 %v5068
    %v5213 = vunpack.c.h.b16 %v5068
    %v5214 = vunpack.c.l.b16 %v5069
    %v5215 = vunpack.c.h.b16 %v5069
    %v5216 = vunpack.c.l.b16 %v5070
    %v5217 = vunpack.c.h.b16 %v5070
    %v5218 = vunpack.c.l.b16 %v5071
    %v5219 = vunpack.c.h.b16 %v5071
    %v5220 = vunpack.c.l.b16 %v5072
    %v5221 = vunpack.c.h.b16 %v5072
    %v5222 = vunpack.c.l.b16 %v5073
    %v5223 = vunpack.c.h.b16 %v5073
    %v5224 = vunpack.c.l.b16 %v5074
    %v5225 = vunpack.c.h.b16 %v5074
    %v5226 = vunpack.c.l.b16 %v5075
    %v5227 = vunpack.c.h.b16 %v5075
    %v5228 = vunpack.c.l.b16 %v5076
    %v5229 = vunpack.c.h.b16 %v5076
    %v5230 = vunpack.c.l.b16 %v5077
    %v5231 = vunpack.c.h.b16 %v5077
    %v5232 = vunpack.c.l.b16 %v5078
    %v5233 = vunpack.c.h.b16 %v5078
    %v5234 = vunpack.c.l.b16 %v5079
    %v5235 = vunpack.c.h.b16 %v5079
    %v5236 = vunpack.c.l.b16 %v5080
    %v5237 = vunpack.c.h.b16 %v5080
    %v5238 = vunpack.c.l.b16 %v5081
    %v5239 = vunpack.c.h.b16 %v5081
    %v5240 = vunpack.c.l.b16 %v5082
    %v5241 = vunpack.c.h.b16 %v5082
    %v5242 = vunpack.c.l.b16 %v5083
    %v5243 = vunpack.c.h.b16 %v5083
    %v5244 = vunpack.c.l.b16 %v5084
    %v5245 = vunpack.c.h.b16 %v5084
    %v5246 = vunpack.c.l.b16 %v5085
    %v5247 = vunpack.c.h.b16 %v5085
    %v5248 = vunpack.c.l.b16 %v5086
    %v5249 = vunpack.c.h.b16 %v5086
    %v5250 = vunpack.c.l.b16 %v5087
    %v5251 = vunpack.c.h.b16 %v5087
    %v5252 = vunpack.c.l.b16 %v5088
    %v5253 = vunpack.c.h.b16 %v5088
    %v5254 = vunpack.c.l.b16 %v5089
    %v5255 = vunpack.c.h.b16 %v5089
    %v5256 = vunpack.c.l.b16 %v5090
    %v5257 = vunpack.c.h.b16 %v5090
    %v5258 = vunpack.c.l.b16 %v5091
    %v5259 = vunpack.c.h.b16 %v5091
    %v5260 = vunpack.c.l.b16 %v5092
    %v5261 = vunpack.c.h.b16 %v5092
    %v5262 = vunpack.c.l.b16 %v5093
    %v5263 = vunpack.c.h.b16 %v5093
    %v5264 = vunpack.c.l.b16 %v5094
    %v5265 = vunpack.c.h.b16 %v5094
    %v5266 = vunpack.c.l.b16 %v5095
    %v5267 = vunpack.c.h.b16 %v5095
    %v5268 = vunpack.c.l.b16 %v5096
    %v5269 = vunpack.c.h.b16 %v5096
    %v5270 = vunpack.c.l.b16 %v5097
    %v5271 = vunpack.c.h.b16 %v5097
    %v5272 = vunpack.c.l.b16 %v5098
    %v5273 = vunpack.c.h.b16 %v5098
    %v5274 = vunpack.c.l.b16 %v5099
    %v5275 = vunpack.c.h.b16 %v5099
    %v5276 = vunpack.c.l.b16 %v5100
    %v5277 = vunpack.c.h.b16 %v5100
    %v5278 = vunpack.c.l.b16 %v5101
    %v5279 = vunpack.c.h.b16 %v5101
    %v5280 = vunpack.c.l.b16 %v5102
    %v5281 = vunpack.c.h.b16 %v5102
    %v5282 = vunpack.c.l.b16 %v5103
    %v5283 = vunpack.c.h.b16 %v5103
    %v5284 = vunpack.c.l.b16 %v5104
    %v5285 = vunpack.c.h.b16 %v5104
    %v5286 = vunpack.c.l.b16 %v5105
    %v5287 = vunpack.c.h.b16 %v5105
    %v5288 = vunpack.c.l.b16 %v5106
    %v5289 = vunpack.c.h.b16 %v5106
    %v5290 = vunpack.c.l.b16 %v5107
    %v5291 = vunpack.c.h.b16 %v5107
    %v5292 = vunpack.c.l.b16 %v5108
    %v5293 = vunpack.c.h.b16 %v5108
    %v5294 = vunpack.c.l.b16 %v5109
    %v5295 = vunpack.c.h.b16 %v5109
    %v5296 = vunpack.c.l.b16 %v5110
    %v5297 = vunpack.c.h.b16 %v5110
    %v5298 = vunpack.c.l.b16 %v5111
    %v5299 = vunpack.c.h.b16 %v5111
    %v5300 = vunpack.c.l.b16 %v5112
    %v5301 = vunpack.c.h.b16 %v5112
    %v5302 = vunpack.c.l.b16 %v5113
    %v5303 = vunpack.c.h.b16 %v5113
    %v5304 = vunpack.c.l.b16 %v5114
    %v5305 = vunpack.c.h.b16 %v5114
    %v5306 = vunpack.c.l.b16 %v5115
    %v5307 = vunpack.c.h.b16 %v5115
    %v5308 = vunpack.c.l.b16 %v5116
    %v5309 = vunpack.c.h.b16 %v5116
    %v5310 = vunpack.c.l.b16 %v5117
    %v5311 = vunpack.c.h.b16 %v5117
    %v5312 = vunpack.c.l.b16 %v5118
    %v5313 = vunpack.c.h.b16 %v5118
    %v5314 = vunpack.c.l.b16 %v5119
    %v5315 = vunpack.c.h.b16 %v5119
    %v5316 = vunpack.c.l.b16 %v5120
    %v5317 = vunpack.c.h.b16 %v5120
    %v5318 = vunpack.c.l.b16 %v5121
    %v5319 = vunpack.c.h.b16 %v5121
    %v5320 = vunpack.c.l.b16 %v5122
    %v5321 = vunpack.c.h.b16 %v5122
    %v5322 = vpack.c.b16 %v5198, %v5194
    %v5323 = vpack.c.b16 %v5199, %v5195
    %v5324 = vpack.c.b16 %v5200, %v5196
    %v5325 = vpack.c.b16 %v5201, %v5197
    %v5326 = vpack.c.b16 %v5206, %v5202
    %v5327 = vpack.c.b16 %v5207, %v5203
    %v5328 = vpack.c.b16 %v5208, %v5204
    %v5329 = vpack.c.b16 %v5209, %v5205
    %v5330 = vpack.c.b16 %v5214, %v5210
    %v5331 = vpack.c.b16 %v5215, %v5211
    %v5332 = vpack.c.b16 %v5216, %v5212
    %v5333 = vpack.c.b16 %v5217, %v5213
    %v5334 = vpack.c.b16 %v5222, %v5218
    %v5335 = vpack.c.b16 %v5223, %v5219
    %v5336 = vpack.c.b16 %v5224, %v5220
    %v5337 = vpack.c.b16 %v5225, %v5221
    %v5338 = vpack.c.b16 %v5230, %v5226
    %v5339 = vpack.c.b16 %v5231, %v5227
    %v5340 = vpack.c.b16 %v5232, %v5228
    %v5341 = vpack.c.b16 %v5233, %v5229
    %v5342 = vpack.c.b16 %v5238, %v5234
    %v5343 = vpack.c.b16 %v5239, %v5235
    %v5344 = vpack.c.b16 %v5240, %v5236
    %v5345 = vpack.c.b16 %v5241, %v5237
    %v5346 = vpack.c.b16 %v5246, %v5242
    %v5347 = vpack.c.b16 %v5247, %v5243
    %v5348 = vpack.c.b16 %v5248, %v5244
    %v5349 = vpack.c.b16 %v5249, %v5245
    %v5350 = vpack.c.b16 %v5254, %v5250
    %v5351 = vpack.c.b16 %v5255, %v5251
    %v5352 = vpack.c.b16 %v5256, %v5252
    %v5353 = vpack.c.b16 %v5257, %v5253
    %v5354 = vpack.c.b16 %v5262, %v5258
    %v5355 = vpack.c.b16 %v5263, %v5259
    %v5356 = vpack.c.b16 %v5264, %v5260
    %v5357 = vpack.c.b16 %v5265, %v5261
    %v5358 = vpack.c.b16 %v5270, %v5266
    %v5359 = vpack.c.b16 %v5271, %v5267
    %v5360 = vpack.c.b16 %v5272, %v5268
    %v5361 = vpack.c.b16 %v5273, %v5269
    %v5362 = vpack.c.b16 %v5278, %v5274
    %v5363 = vpack.c.b16 %v5279, %v5275
    %v5364 = vpack.c.b16 %v5280, %v5276
    %v5365 = vpack.c.b16 %v5281, %v5277
    %v5366 = vpack.c.b16 %v5286, %v5282
    %v5367 = vpack.c.b16 %v5287, %v5283
    %v5368 = vpack.c.b16 %v5288, %v5284
    %v5369 = vpack.c.b16 %v5289, %v5285
    %v5370 = vpack.c.b16 %v5294, %v5290
    %v5371 = vpack.c.b16 %v5295, %v5291
    %v5372 = vpack.c.b16 %v5296, %v5292
    %v5373 = vpack.c.b16 %v5297, %v5293
    %v5374 = vpack.c.b16 %v5302, %v5298
    %v5375 = vpack.c.b16 %v5303, %v5299
    %v5376 = vpack.c.b16 %v5304, %v5300
    %v5377 = vpack.c.b16 %v5305, %v5301
    %v5378 = vpack.c.b16 %v5310, %v5306
    %v5379 = vpack.c.b16 %v5311, %v5307
    %v5380 = vpack.c.b16 %v5312, %v5308
    %v5381 = vpack.c.b16 %v5313, %v5309
    %v5382 = vpack.c.b16 %v5318, %v5314
    %v5383 = vpack.c.b16 %v5319, %v5315
    %v5384 = vpack.c.b16 %v5320, %v5316
    %v5385 = vpack.c.b16 %v5321, %v5317
    %5450 = vmatpush.bf16.msra.mxu0 %v5350
    %5451 = vmatpush.bf16.msra.mxu0 %v5346
    %5452 = vmatpush.bf16.msra.mxu0 %v5342
    %5453 = vmatpush.bf16.msra.mxu0 %v5338
    %5454 = vmatpush.bf16.msra.mxu0 %v5334
    %5455 = vmatpush.bf16.msra.mxu0 %v5330
    %5456 = vmatpush.bf16.msra.mxu0 %v5326
    %5457 = vmatpush.bf16.msra.mxu0 %v5322
    %5458 = vmatmul.bf16.gmra.mxu0 %v3452
    %v5459 = vpop.f32.mrf.mxu0
    %v5460 = vadd.f32 0.0, %v5459
    %v5461 = vpop.f32.mrf.mxu0
    %v5462 = vadd.f32 0.0, %v5461
    %5463 = vmatmul.bf16.gmra.mxu0 %v5126
    %v5464 = vpop.f32.mrf.mxu0
    %v5465 = vadd.f32 0.0, %v5464
    %v5466 = vpop.f32.mrf.mxu0
    %v5467 = vadd.f32 0.0, %v5466
    %5468 = vdwg.mxu0
    %5469 = vmatpush.bf16.msra.mxu0 %v5382
    %5470 = vmatpush.bf16.msra.mxu0 %v5378
    %5471 = vmatpush.bf16.msra.mxu0 %v5374
    %5472 = vmatpush.bf16.msra.mxu0 %v5370
    %5473 = vmatpush.bf16.msra.mxu0 %v5366
    %5474 = vmatpush.bf16.msra.mxu0 %v5362
    %5475 = vmatpush.bf16.msra.mxu0 %v5358
    %5476 = vmatpush.bf16.msra.mxu0 %v5354
    %5477 = vmatmul.bf16.gmra.mxu0 %v3453
    %v5478 = vpop.f32.mrf.mxu0
    %v5479 = vadd.f32 %v5460, %v5478
    %v5480 = vpop.f32.mrf.mxu0
    %v5481 = vadd.f32 %v5462, %v5480
    %5482 = vmatmul.bf16.gmra.mxu0 %v5127
    %v5483 = vpop.f32.mrf.mxu0
    %v5484 = vadd.f32 %v5465, %v5483
    %v5485 = vpop.f32.mrf.mxu0
    %v5486 = vadd.f32 %v5467, %v5485
    %5487 = vdwg.mxu0
    %5488 = vmatpush.bf16.msra.mxu0 %v5351
    %5489 = vmatpush.bf16.msra.mxu0 %v5347
    %5490 = vmatpush.bf16.msra.mxu0 %v5343
    %5491 = vmatpush.bf16.msra.mxu0 %v5339
    %5492 = vmatpush.bf16.msra.mxu0 %v5335
    %5493 = vmatpush.bf16.msra.mxu0 %v5331
    %5494 = vmatpush.bf16.msra.mxu0 %v5327
    %5495 = vmatpush.bf16.msra.mxu0 %v5323
    %5496 = vmatmul.bf16.gmra.mxu0 %v3452
    %v5497 = vpop.f32.mrf.mxu0
    %v5498 = vadd.f32 0.0, %v5497
    %v5499 = vpop.f32.mrf.mxu0
    %v5500 = vadd.f32 0.0, %v5499
    %5501 = vmatmul.bf16.gmra.mxu0 %v5126
    %v5502 = vpop.f32.mrf.mxu0
    %v5503 = vadd.f32 0.0, %v5502
    %v5504 = vpop.f32.mrf.mxu0
    %v5505 = vadd.f32 0.0, %v5504
    %5506 = vdwg.mxu0
    %5507 = vmatpush.bf16.msra.mxu0 %v5383
    %5508 = vmatpush.bf16.msra.mxu0 %v5379
    %5509 = vmatpush.bf16.msra.mxu0 %v5375
    %5510 = vmatpush.bf16.msra.mxu0 %v5371
    %5511 = vmatpush.bf16.msra.mxu0 %v5367
    %5512 = vmatpush.bf16.msra.mxu0 %v5363
    %5513 = vmatpush.bf16.msra.mxu0 %v5359
    %5514 = vmatpush.bf16.msra.mxu0 %v5355
    %5515 = vmatmul.bf16.gmra.mxu0 %v3453
    %v5516 = vpop.f32.mrf.mxu0
    %v5517 = vadd.f32 %v5498, %v5516
    %v5518 = vpop.f32.mrf.mxu0
    %v5519 = vadd.f32 %v5500, %v5518
    %5520 = vmatmul.bf16.gmra.mxu0 %v5127
    %v5521 = vpop.f32.mrf.mxu0
    %v5522 = vadd.f32 %v5503, %v5521
    %v5523 = vpop.f32.mrf.mxu0
    %v5524 = vadd.f32 %v5505, %v5523
    %5525 = vdwg.mxu0
    %5526 = vmatpush.bf16.msra.mxu0 %v5352
    %5527 = vmatpush.bf16.msra.mxu0 %v5348
    %5528 = vmatpush.bf16.msra.mxu0 %v5344
    %5529 = vmatpush.bf16.msra.mxu0 %v5340
    %5530 = vmatpush.bf16.msra.mxu0 %v5336
    %5531 = vmatpush.bf16.msra.mxu0 %v5332
    %5532 = vmatpush.bf16.msra.mxu0 %v5328
    %5533 = vmatpush.bf16.msra.mxu0 %v5324
    %5534 = vmatmul.bf16.gmra.mxu0 %v3452
    %v5535 = vpop.f32.mrf.mxu0
    %v5536 = vadd.f32 0.0, %v5535
    %v5537 = vpop.f32.mrf.mxu0
    %v5538 = vadd.f32 0.0, %v5537
    %5539 = vmatmul.bf16.gmra.mxu0 %v5126
    %v5540 = vpop.f32.mrf.mxu0
    %v5541 = vadd.f32 0.0, %v5540
    %v5542 = vpop.f32.mrf.mxu0
    %v5543 = vadd.f32 0.0, %v5542
    %5544 = vdwg.mxu0
    %5545 = vmatpush.bf16.msra.mxu0 %v5384
    %5546 = vmatpush.bf16.msra.mxu0 %v5380
    %5547 = vmatpush.bf16.msra.mxu0 %v5376
    %5548 = vmatpush.bf16.msra.mxu0 %v5372
    %5549 = vmatpush.bf16.msra.mxu0 %v5368
    %5550 = vmatpush.bf16.msra.mxu0 %v5364
    %5551 = vmatpush.bf16.msra.mxu0 %v5360
    %5552 = vmatpush.bf16.msra.mxu0 %v5356
    %5553 = vmatmul.bf16.gmra.mxu0 %v3453
    %v5554 = vpop.f32.mrf.mxu0
    %v5555 = vadd.f32 %v5536, %v5554
    %v5556 = vpop.f32.mrf.mxu0
    %v5557 = vadd.f32 %v5538, %v5556
    %5558 = vmatmul.bf16.gmra.mxu0 %v5127
    %v5559 = vpop.f32.mrf.mxu0
    %v5560 = vadd.f32 %v5541, %v5559
    %v5561 = vpop.f32.mrf.mxu0
    %v5562 = vadd.f32 %v5543, %v5561
    %5563 = vdwg.mxu0
    %5564 = vmatpush.bf16.msra.mxu0 %v5353
    %5565 = vmatpush.bf16.msra.mxu0 %v5349
    %5566 = vmatpush.bf16.msra.mxu0 %v5345
    %5567 = vmatpush.bf16.msra.mxu0 %v5341
    %5568 = vmatpush.bf16.msra.mxu0 %v5337
    %5569 = vmatpush.bf16.msra.mxu0 %v5333
    %5570 = vmatpush.bf16.msra.mxu0 %v5329
    %5571 = vmatpush.bf16.msra.mxu0 %v5325
    %5572 = vmatmul.bf16.gmra.mxu0 %v3452
    %v5573 = vpop.f32.mrf.mxu0
    %v5574 = vadd.f32 0.0, %v5573
    %v5575 = vpop.f32.mrf.mxu0
    %v5576 = vadd.f32 0.0, %v5575
    %5577 = vmatmul.bf16.gmra.mxu0 %v5126
    %v5578 = vpop.f32.mrf.mxu0
    %v5579 = vadd.f32 0.0, %v5578
    %v5580 = vpop.f32.mrf.mxu0
    %v5581 = vadd.f32 0.0, %v5580
    %5582 = vdwg.mxu0
    %5583 = vmatpush.bf16.msra.mxu0 %v5385
    %5584 = vmatpush.bf16.msra.mxu0 %v5381
    %5585 = vmatpush.bf16.msra.mxu0 %v5377
    %5586 = vmatpush.bf16.msra.mxu0 %v5373
    %5587 = vmatpush.bf16.msra.mxu0 %v5369
    %5588 = vmatpush.bf16.msra.mxu0 %v5365
    %5589 = vmatpush.bf16.msra.mxu0 %v5361
    %5590 = vmatpush.bf16.msra.mxu0 %v5357
    %5591 = vmatmul.bf16.gmra.mxu0 %v3453
    %v5592 = vpop.f32.mrf.mxu0
    %v5593 = vadd.f32 %v5574, %v5592
    %v5594 = vpop.f32.mrf.mxu0
    %v5595 = vadd.f32 %v5576, %v5594
    %5596 = vmatmul.bf16.gmra.mxu0 %v5127
    %v5597 = vpop.f32.mrf.mxu0
    %v5598 = vadd.f32 %v5579, %v5597
    %v5599 = vpop.f32.mrf.mxu0
    %v5600 = vadd.f32 %v5581, %v5599
    %5601 = vdwg.mxu0
    %v5602 = vadd.f32 %v5042, %v5479
    %v5603 = vadd.f32 %v5043, %v5517
    %v5604 = vadd.f32 %v5044, %v5555
    %v5605 = vadd.f32 %v5045, %v5593
    %v5606 = vadd.f32 %v5046, %v5481
    %v5607 = vadd.f32 %v5047, %v5519
    %v5608 = vadd.f32 %v5048, %v5557
    %v5609 = vadd.f32 %v5049, %v5595
    %v5610 = vadd.f32 %v5050, %v5484
    %v5611 = vadd.f32 %v5051, %v5522
    %v5612 = vadd.f32 %v5052, %v5560
    %v5613 = vadd.f32 %v5053, %v5598
    %v5614 = vadd.f32 %v5054, %v5486
    %v5615 = vadd.f32 %v5055, %v5524
    %v5616 = vadd.f32 %v5056, %v5562
    %v5617 = vadd.f32 %v5057, %v5600
    %5618 = vmatpush.bf16.msra.mxu0 %v3186
    %5619 = vmatpush.bf16.msra.mxu0 %v3182
    %5620 = vmatpush.bf16.msra.mxu0 %v3178
    %5621 = vmatpush.bf16.msra.mxu0 %v3174
    %5622 = vmatpush.bf16.msra.mxu0 %v3170
    %5623 = vmatpush.bf16.msra.mxu0 %v3166
    %5624 = vmatpush.bf16.msra.mxu0 %v3162
    %5625 = vmatpush.bf16.msra.mxu0 %v3158
    %5626 = vmatmul.bf16.gmra.mxu0 %v3998
    %v5627 = vpop.f32.mrf.mxu0
    %v5628 = vadd.f32 0.0, %v5627
    %v5629 = vpop.f32.mrf.mxu0
    %v5630 = vadd.f32 0.0, %v5629
    %5631 = vmatmul.bf16.gmra.mxu0 %v4000
    %v5632 = vpop.f32.mrf.mxu0
    %v5633 = vadd.f32 0.0, %v5632
    %v5634 = vpop.f32.mrf.mxu0
    %v5635 = vadd.f32 0.0, %v5634
    %5636 = vdwg.mxu0
    %5637 = vmatpush.bf16.msra.mxu0 %v3218
    %5638 = vmatpush.bf16.msra.mxu0 %v3214
    %5639 = vmatpush.bf16.msra.mxu0 %v3210
    %5640 = vmatpush.bf16.msra.mxu0 %v3206
    %5641 = vmatpush.bf16.msra.mxu0 %v3202
    %5642 = vmatpush.bf16.msra.mxu0 %v3198
    %5643 = vmatpush.bf16.msra.mxu0 %v3194
    %5644 = vmatpush.bf16.msra.mxu0 %v3190
    %5645 = vmatmul.bf16.gmra.mxu0 %v3999
    %v5646 = vpop.f32.mrf.mxu0
    %v5647 = vadd.f32 %v5628, %v5646
    %v5648 = vpop.f32.mrf.mxu0
    %v5649 = vadd.f32 %v5630, %v5648
    %5650 = vmatmul.bf16.gmra.mxu0 %v4001
    %v5651 = vpop.f32.mrf.mxu0
    %v5652 = vadd.f32 %v5633, %v5651
    %v5653 = vpop.f32.mrf.mxu0
    %v5654 = vadd.f32 %v5635, %v5653
    %5655 = vdwg.mxu0
    %5656 = vmatpush.bf16.msra.mxu0 %v3187
    %5657 = vmatpush.bf16.msra.mxu0 %v3183
    %5658 = vmatpush.bf16.msra.mxu0 %v3179
    %5659 = vmatpush.bf16.msra.mxu0 %v3175
    %5660 = vmatpush.bf16.msra.mxu0 %v3171
    %5661 = vmatpush.bf16.msra.mxu0 %v3167
    %5662 = vmatpush.bf16.msra.mxu0 %v3163
    %5663 = vmatpush.bf16.msra.mxu0 %v3159
    %5664 = vmatmul.bf16.gmra.mxu0 %v3998
    %v5665 = vpop.f32.mrf.mxu0
    %v5666 = vadd.f32 0.0, %v5665
    %v5667 = vpop.f32.mrf.mxu0
    %v5668 = vadd.f32 0.0, %v5667
    %5669 = vmatmul.bf16.gmra.mxu0 %v4000
    %v5670 = vpop.f32.mrf.mxu0
    %v5671 = vadd.f32 0.0, %v5670
    %v5672 = vpop.f32.mrf.mxu0
    %v5673 = vadd.f32 0.0, %v5672
    %5674 = vdwg.mxu0
    %5675 = vmatpush.bf16.msra.mxu0 %v3219
    %5676 = vmatpush.bf16.msra.mxu0 %v3215
    %5677 = vmatpush.bf16.msra.mxu0 %v3211
    %5678 = vmatpush.bf16.msra.mxu0 %v3207
    %5679 = vmatpush.bf16.msra.mxu0 %v3203
    %5680 = vmatpush.bf16.msra.mxu0 %v3199
    %5681 = vmatpush.bf16.msra.mxu0 %v3195
    %5682 = vmatpush.bf16.msra.mxu0 %v3191
    %5683 = vmatmul.bf16.gmra.mxu0 %v3999
    %v5684 = vpop.f32.mrf.mxu0
    %v5685 = vadd.f32 %v5666, %v5684
    %v5686 = vpop.f32.mrf.mxu0
    %v5687 = vadd.f32 %v5668, %v5686
    %5688 = vmatmul.bf16.gmra.mxu0 %v4001
    %v5689 = vpop.f32.mrf.mxu0
    %v5690 = vadd.f32 %v5671, %v5689
    %v5691 = vpop.f32.mrf.mxu0
    %v5692 = vadd.f32 %v5673, %v5691
    %5693 = vdwg.mxu0
    %5694 = vmatpush.bf16.msra.mxu0 %v3188
    %5695 = vmatpush.bf16.msra.mxu0 %v3184
    %5696 = vmatpush.bf16.msra.mxu0 %v3180
    %5697 = vmatpush.bf16.msra.mxu0 %v3176
    %5698 = vmatpush.bf16.msra.mxu0 %v3172
    %5699 = vmatpush.bf16.msra.mxu0 %v3168
    %5700 = vmatpush.bf16.msra.mxu0 %v3164
    %5701 = vmatpush.bf16.msra.mxu0 %v3160
    %5702 = vmatmul.bf16.gmra.mxu0 %v3998
    %v5703 = vpop.f32.mrf.mxu0
    %v5704 = vadd.f32 0.0, %v5703
    %v5705 = vpop.f32.mrf.mxu0
    %v5706 = vadd.f32 0.0, %v5705
    %5707 = vmatmul.bf16.gmra.mxu0 %v4000
    %v5708 = vpop.f32.mrf.mxu0
    %v5709 = vadd.f32 0.0, %v5708
    %v5710 = vpop.f32.mrf.mxu0
    %v5711 = vadd.f32 0.0, %v5710
    %5712 = vdwg.mxu0
    %5713 = vmatpush.bf16.msra.mxu0 %v3220
    %5714 = vmatpush.bf16.msra.mxu0 %v3216
    %5715 = vmatpush.bf16.msra.mxu0 %v3212
    %5716 = vmatpush.bf16.msra.mxu0 %v3208
    %5717 = vmatpush.bf16.msra.mxu0 %v3204
    %5718 = vmatpush.bf16.msra.mxu0 %v3200
    %5719 = vmatpush.bf16.msra.mxu0 %v3196
    %5720 = vmatpush.bf16.msra.mxu0 %v3192
    %5721 = vmatmul.bf16.gmra.mxu0 %v3999
    %v5722 = vpop.f32.mrf.mxu0
    %v5723 = vadd.f32 %v5704, %v5722
    %v5724 = vpop.f32.mrf.mxu0
    %v5725 = vadd.f32 %v5706, %v5724
    %5726 = vmatmul.bf16.gmra.mxu0 %v4001
    %v5727 = vpop.f32.mrf.mxu0
    %v5728 = vadd.f32 %v5709, %v5727
    %v5729 = vpop.f32.mrf.mxu0
    %v5730 = vadd.f32 %v5711, %v5729
    %5731 = vdwg.mxu0
    %5732 = vmatpush.bf16.msra.mxu0 %v3189
    %5733 = vmatpush.bf16.msra.mxu0 %v3185
    %5734 = vmatpush.bf16.msra.mxu0 %v3181
    %5735 = vmatpush.bf16.msra.mxu0 %v3177
    %5736 = vmatpush.bf16.msra.mxu0 %v3173
    %5737 = vmatpush.bf16.msra.mxu0 %v3169
    %5738 = vmatpush.bf16.msra.mxu0 %v3165
    %5739 = vmatpush.bf16.msra.mxu0 %v3161
    %5740 = vmatmul.bf16.gmra.mxu0 %v3998
    %v5741 = vpop.f32.mrf.mxu0
    %v5742 = vadd.f32 0.0, %v5741
    %v5743 = vpop.f32.mrf.mxu0
    %v5744 = vadd.f32 0.0, %v5743
    %5745 = vmatmul.bf16.gmra.mxu0 %v4000
    %v5746 = vpop.f32.mrf.mxu0
    %v5747 = vadd.f32 0.0, %v5746
    %v5748 = vpop.f32.mrf.mxu0
    %v5749 = vadd.f32 0.0, %v5748
    %5750 = vdwg.mxu0
    %5751 = vmatpush.bf16.msra.mxu0 %v3221
    %5752 = vmatpush.bf16.msra.mxu0 %v3217
    %5753 = vmatpush.bf16.msra.mxu0 %v3213
    %5754 = vmatpush.bf16.msra.mxu0 %v3209
    %5755 = vmatpush.bf16.msra.mxu0 %v3205
    %5756 = vmatpush.bf16.msra.mxu0 %v3201
    %5757 = vmatpush.bf16.msra.mxu0 %v3197
    %5758 = vmatpush.bf16.msra.mxu0 %v3193
    %5759 = vmatmul.bf16.gmra.mxu0 %v3999
    %v5760 = vpop.f32.mrf.mxu0
    %v5761 = vadd.f32 %v5742, %v5760
    %v5762 = vpop.f32.mrf.mxu0
    %v5763 = vadd.f32 %v5744, %v5762
    %5764 = vmatmul.bf16.gmra.mxu0 %v4001
    %v5765 = vpop.f32.mrf.mxu0
    %v5766 = vadd.f32 %v5747, %v5765
    %v5767 = vpop.f32.mrf.mxu0
    %v5768 = vadd.f32 %v5749, %v5767
    %5769 = vdwg.mxu0
    %5770 = vmatpush.bf16.msra.mxu0 %v3678
    %5771 = vmatpush.bf16.msra.mxu0 %v3674
    %5772 = vmatpush.bf16.msra.mxu0 %v3670
    %5773 = vmatpush.bf16.msra.mxu0 %v3666
    %5774 = vmatpush.bf16.msra.mxu0 %v3662
    %5775 = vmatpush.bf16.msra.mxu0 %v3658
    %5776 = vmatpush.bf16.msra.mxu0 %v3654
    %5777 = vmatpush.bf16.msra.mxu0 %v3650
    %5778 = vmatmul.bf16.gmra.mxu0 %v2958
    %v5779 = vpop.f32.mrf.mxu0
    %v5780 = vadd.f32 %v5647, %v5779
    %v5781 = vpop.f32.mrf.mxu0
    %v5782 = vadd.f32 %v5649, %v5781
    %5783 = vmatmul.bf16.gmra.mxu0 %v2960
    %v5784 = vpop.f32.mrf.mxu0
    %v5785 = vadd.f32 %v5652, %v5784
    %v5786 = vpop.f32.mrf.mxu0
    %v5787 = vadd.f32 %v5654, %v5786
    %5788 = vdwg.mxu0
    %5789 = vmatpush.bf16.msra.mxu0 %v3710
    %5790 = vmatpush.bf16.msra.mxu0 %v3706
    %5791 = vmatpush.bf16.msra.mxu0 %v3702
    %5792 = vmatpush.bf16.msra.mxu0 %v3698
    %5793 = vmatpush.bf16.msra.mxu0 %v3694
    %5794 = vmatpush.bf16.msra.mxu0 %v3690
    %5795 = vmatpush.bf16.msra.mxu0 %v3686
    %5796 = vmatpush.bf16.msra.mxu0 %v3682
    %5797 = vmatmul.bf16.gmra.mxu0 %v2959
    %v5798 = vpop.f32.mrf.mxu0
    %v5799 = vadd.f32 %v5780, %v5798
    %v5800 = vpop.f32.mrf.mxu0
    %v5801 = vadd.f32 %v5782, %v5800
    %5802 = vmatmul.bf16.gmra.mxu0 %v2961
    %v5803 = vpop.f32.mrf.mxu0
    %v5804 = vadd.f32 %v5785, %v5803
    %v5805 = vpop.f32.mrf.mxu0
    %v5806 = vadd.f32 %v5787, %v5805
    %5807 = vdwg.mxu0
    %5808 = vmatpush.bf16.msra.mxu0 %v3679
    %5809 = vmatpush.bf16.msra.mxu0 %v3675
    %5810 = vmatpush.bf16.msra.mxu0 %v3671
    %5811 = vmatpush.bf16.msra.mxu0 %v3667
    %5812 = vmatpush.bf16.msra.mxu0 %v3663
    %5813 = vmatpush.bf16.msra.mxu0 %v3659
    %5814 = vmatpush.bf16.msra.mxu0 %v3655
    %5815 = vmatpush.bf16.msra.mxu0 %v3651
    %5816 = vmatmul.bf16.gmra.mxu0 %v2958
    %v5817 = vpop.f32.mrf.mxu0
    %v5818 = vadd.f32 %v5685, %v5817
    %v5819 = vpop.f32.mrf.mxu0
    %v5820 = vadd.f32 %v5687, %v5819
    %5821 = vmatmul.bf16.gmra.mxu0 %v2960
    %v5822 = vpop.f32.mrf.mxu0
    %v5823 = vadd.f32 %v5690, %v5822
    %v5824 = vpop.f32.mrf.mxu0
    %v5825 = vadd.f32 %v5692, %v5824
    %5826 = vdwg.mxu0
    %5827 = vmatpush.bf16.msra.mxu0 %v3711
    %5828 = vmatpush.bf16.msra.mxu0 %v3707
    %5829 = vmatpush.bf16.msra.mxu0 %v3703
    %5830 = vmatpush.bf16.msra.mxu0 %v3699
    %5831 = vmatpush.bf16.msra.mxu0 %v3695
    %5832 = vmatpush.bf16.msra.mxu0 %v3691
    %5833 = vmatpush.bf16.msra.mxu0 %v3687
    %5834 = vmatpush.bf16.msra.mxu0 %v3683
    %5835 = vmatmul.bf16.gmra.mxu0 %v2959
    %v5836 = vpop.f32.mrf.mxu0
    %v5837 = vadd.f32 %v5818, %v5836
    %v5838 = vpop.f32.mrf.mxu0
    %v5839 = vadd.f32 %v5820, %v5838
    %5840 = vmatmul.bf16.gmra.mxu0 %v2961
    %v5841 = vpop.f32.mrf.mxu0
    %v5842 = vadd.f32 %v5823, %v5841
    %v5843 = vpop.f32.mrf.mxu0
    %v5844 = vadd.f32 %v5825, %v5843
    %5845 = vdwg.mxu0
    %5846 = vmatpush.bf16.msra.mxu0 %v3680
    %5847 = vmatpush.bf16.msra.mxu0 %v3676
    %5848 = vmatpush.bf16.msra.mxu0 %v3672
    %5849 = vmatpush.bf16.msra.mxu0 %v3668
    %5850 = vmatpush.bf16.msra.mxu0 %v3664
    %5851 = vmatpush.bf16.msra.mxu0 %v3660
    %5852 = vmatpush.bf16.msra.mxu0 %v3656
    %5853 = vmatpush.bf16.msra.mxu0 %v3652
    %5854 = vmatmul.bf16.gmra.mxu0 %v2958
    %v5855 = vpop.f32.mrf.mxu0
    %v5856 = vadd.f32 %v5723, %v5855
    %v5857 = vpop.f32.mrf.mxu0
    %v5858 = vadd.f32 %v5725, %v5857
    %5859 = vmatmul.bf16.gmra.mxu0 %v2960
    %v5860 = vpop.f32.mrf.mxu0
    %v5861 = vadd.f32 %v5728, %v5860
    %v5862 = vpop.f32.mrf.mxu0
    %v5863 = vadd.f32 %v5730, %v5862
    %5864 = vdwg.mxu0
    %5865 = vmatpush.bf16.msra.mxu0 %v3712
    %5866 = vmatpush.bf16.msra.mxu0 %v3708
    %5867 = vmatpush.bf16.msra.mxu0 %v3704
    %5868 = vmatpush.bf16.msra.mxu0 %v3700
    %5869 = vmatpush.bf16.msra.mxu0 %v3696
    %5870 = vmatpush.bf16.msra.mxu0 %v3692
    %5871 = vmatpush.bf16.msra.mxu0 %v3688
    %5872 = vmatpush.bf16.msra.mxu0 %v3684
    %5873 = vmatmul.bf16.gmra.mxu0 %v2959
    %v5874 = vpop.f32.mrf.mxu0
    %v5875 = vadd.f32 %v5856, %v5874
    %v5876 = vpop.f32.mrf.mxu0
    %v5877 = vadd.f32 %v5858, %v5876
    %5878 = vmatmul.bf16.gmra.mxu0 %v2961
    %v5879 = vpop.f32.mrf.mxu0
    %v5880 = vadd.f32 %v5861, %v5879
    %v5881 = vpop.f32.mrf.mxu0
    %v5882 = vadd.f32 %v5863, %v5881
    %5883 = vdwg.mxu0
    %5884 = vmatpush.bf16.msra.mxu0 %v3681
    %5885 = vmatpush.bf16.msra.mxu0 %v3677
    %5886 = vmatpush.bf16.msra.mxu0 %v3673
    %5887 = vmatpush.bf16.msra.mxu0 %v3669
    %5888 = vmatpush.bf16.msra.mxu0 %v3665
    %5889 = vmatpush.bf16.msra.mxu0 %v3661
    %5890 = vmatpush.bf16.msra.mxu0 %v3657
    %5891 = vmatpush.bf16.msra.mxu0 %v3653
    %5892 = vmatmul.bf16.gmra.mxu0 %v2958
    %v5893 = vpop.f32.mrf.mxu0
    %v5894 = vadd.f32 %v5761, %v5893
    %v5895 = vpop.f32.mrf.mxu0
    %v5896 = vadd.f32 %v5763, %v5895
    %5897 = vmatmul.bf16.gmra.mxu0 %v2960
    %v5898 = vpop.f32.mrf.mxu0
    %v5899 = vadd.f32 %v5766, %v5898
    %v5900 = vpop.f32.mrf.mxu0
    %v5901 = vadd.f32 %v5768, %v5900
    %5902 = vdwg.mxu0
    %5903 = vmatpush.bf16.msra.mxu0 %v3713
    %5904 = vmatpush.bf16.msra.mxu0 %v3709
    %5905 = vmatpush.bf16.msra.mxu0 %v3705
    %5906 = vmatpush.bf16.msra.mxu0 %v3701
    %5907 = vmatpush.bf16.msra.mxu0 %v3697
    %5908 = vmatpush.bf16.msra.mxu0 %v3693
    %5909 = vmatpush.bf16.msra.mxu0 %v3689
    %5910 = vmatpush.bf16.msra.mxu0 %v3685
    %5911 = vmatmul.bf16.gmra.mxu0 %v2959
    %v5912 = vpop.f32.mrf.mxu0
    %v5913 = vadd.f32 %v5894, %v5912
    %v5914 = vpop.f32.mrf.mxu0
    %v5915 = vadd.f32 %v5896, %v5914
    %5916 = vmatmul.bf16.gmra.mxu0 %v2961
    %v5917 = vpop.f32.mrf.mxu0
    %v5918 = vadd.f32 %v5899, %v5917
    %v5919 = vpop.f32.mrf.mxu0
    %v5920 = vadd.f32 %v5901, %v5919
    %5921 = vdwg.mxu0
    %5922 = vmatpush.bf16.msra.mxu0 %v4226
    %5923 = vmatpush.bf16.msra.mxu0 %v4222
    %5924 = vmatpush.bf16.msra.mxu0 %v4218
    %5925 = vmatpush.bf16.msra.mxu0 %v4214
    %5926 = vmatpush.bf16.msra.mxu0 %v4210
    %5927 = vmatpush.bf16.msra.mxu0 %v4206
    %5928 = vmatpush.bf16.msra.mxu0 %v4202
    %5929 = vmatpush.bf16.msra.mxu0 %v4198
    %5930 = vmatmul.bf16.gmra.mxu0 %v4562
    %v5931 = vpop.f32.mrf.mxu0
    %v5932 = vadd.f32 0.0, %v5931
    %v5933 = vpop.f32.mrf.mxu0
    %v5934 = vadd.f32 0.0, %v5933
    %5935 = vmatmul.bf16.gmra.mxu0 %v4564
    %v5936 = vpop.f32.mrf.mxu0
    %v5937 = vadd.f32 0.0, %v5936
    %v5938 = vpop.f32.mrf.mxu0
    %v5939 = vadd.f32 0.0, %v5938
    %5940 = vdwg.mxu0
    %5941 = vmatpush.bf16.msra.mxu0 %v4258
    %5942 = vmatpush.bf16.msra.mxu0 %v4254
    %5943 = vmatpush.bf16.msra.mxu0 %v4250
    %5944 = vmatpush.bf16.msra.mxu0 %v4246
    %5945 = vmatpush.bf16.msra.mxu0 %v4242
    %5946 = vmatpush.bf16.msra.mxu0 %v4238
    %5947 = vmatpush.bf16.msra.mxu0 %v4234
    %5948 = vmatpush.bf16.msra.mxu0 %v4230
    %5949 = vmatmul.bf16.gmra.mxu0 %v4563
    %v5950 = vpop.f32.mrf.mxu0
    %v5951 = vadd.f32 %v5932, %v5950
    %v5952 = vpop.f32.mrf.mxu0
    %v5953 = vadd.f32 %v5934, %v5952
    %5954 = vmatmul.bf16.gmra.mxu0 %v4565
    %v5955 = vpop.f32.mrf.mxu0
    %v5956 = vadd.f32 %v5937, %v5955
    %v5957 = vpop.f32.mrf.mxu0
    %v5958 = vadd.f32 %v5939, %v5957
    %5959 = vdwg.mxu0
    %5960 = vmatpush.bf16.msra.mxu0 %v4227
    %5961 = vmatpush.bf16.msra.mxu0 %v4223
    %5962 = vmatpush.bf16.msra.mxu0 %v4219
    %5963 = vmatpush.bf16.msra.mxu0 %v4215
    %5964 = vmatpush.bf16.msra.mxu0 %v4211
    %5965 = vmatpush.bf16.msra.mxu0 %v4207
    %5966 = vmatpush.bf16.msra.mxu0 %v4203
    %5967 = vmatpush.bf16.msra.mxu0 %v4199
    %5968 = vmatmul.bf16.gmra.mxu0 %v4562
    %v5969 = vpop.f32.mrf.mxu0
    %v5970 = vadd.f32 0.0, %v5969
    %v5971 = vpop.f32.mrf.mxu0
    %v5972 = vadd.f32 0.0, %v5971
    %5973 = vmatmul.bf16.gmra.mxu0 %v4564
    %v5974 = vpop.f32.mrf.mxu0
    %v5975 = vadd.f32 0.0, %v5974
    %v5976 = vpop.f32.mrf.mxu0
    %v5977 = vadd.f32 0.0, %v5976
    %5978 = vdwg.mxu0
    %5979 = vmatpush.bf16.msra.mxu0 %v4259
    %5980 = vmatpush.bf16.msra.mxu0 %v4255
    %5981 = vmatpush.bf16.msra.mxu0 %v4251
    %5982 = vmatpush.bf16.msra.mxu0 %v4247
    %5983 = vmatpush.bf16.msra.mxu0 %v4243
    %5984 = vmatpush.bf16.msra.mxu0 %v4239
    %5985 = vmatpush.bf16.msra.mxu0 %v4235
    %5986 = vmatpush.bf16.msra.mxu0 %v4231
    %5987 = vmatmul.bf16.gmra.mxu0 %v4563
    %v5988 = vpop.f32.mrf.mxu0
    %v5989 = vadd.f32 %v5970, %v5988
    %v5990 = vpop.f32.mrf.mxu0
    %v5991 = vadd.f32 %v5972, %v5990
    %5992 = vmatmul.bf16.gmra.mxu0 %v4565
    %v5993 = vpop.f32.mrf.mxu0
    %v5994 = vadd.f32 %v5975, %v5993
    %v5995 = vpop.f32.mrf.mxu0
    %v5996 = vadd.f32 %v5977, %v5995
    %5997 = vdwg.mxu0
    %5998 = vmatpush.bf16.msra.mxu0 %v4228
    %5999 = vmatpush.bf16.msra.mxu0 %v4224
    %6000 = vmatpush.bf16.msra.mxu0 %v4220
    %6001 = vmatpush.bf16.msra.mxu0 %v4216
    %6002 = vmatpush.bf16.msra.mxu0 %v4212
    %6003 = vmatpush.bf16.msra.mxu0 %v4208
    %6004 = vmatpush.bf16.msra.mxu0 %v4204
    %6005 = vmatpush.bf16.msra.mxu0 %v4200
    %6006 = vmatmul.bf16.gmra.mxu0 %v4562
    %v6007 = vpop.f32.mrf.mxu0
    %v6008 = vadd.f32 0.0, %v6007
    %v6009 = vpop.f32.mrf.mxu0
    %v6010 = vadd.f32 0.0, %v6009
    %6011 = vmatmul.bf16.gmra.mxu0 %v4564
    %v6012 = vpop.f32.mrf.mxu0
    %v6013 = vadd.f32 0.0, %v6012
    %v6014 = vpop.f32.mrf.mxu0
    %v6015 = vadd.f32 0.0, %v6014
    %6016 = vdwg.mxu0
    %6017 = vmatpush.bf16.msra.mxu0 %v4260
    %6018 = vmatpush.bf16.msra.mxu0 %v4256
    %6019 = vmatpush.bf16.msra.mxu0 %v4252
    %6020 = vmatpush.bf16.msra.mxu0 %v4248
    %6021 = vmatpush.bf16.msra.mxu0 %v4244
    %6022 = vmatpush.bf16.msra.mxu0 %v4240
    %6023 = vmatpush.bf16.msra.mxu0 %v4236
    %6024 = vmatpush.bf16.msra.mxu0 %v4232
    %6025 = vmatmul.bf16.gmra.mxu0 %v4563
    %v6026 = vpop.f32.mrf.mxu0
    %v6027 = vadd.f32 %v6008, %v6026
    %v6028 = vpop.f32.mrf.mxu0
    %v6029 = vadd.f32 %v6010, %v6028
    %6030 = vmatmul.bf16.gmra.mxu0 %v4565
    %v6031 = vpop.f32.mrf.mxu0
    %v6032 = vadd.f32 %v6013, %v6031
    %v6033 = vpop.f32.mrf.mxu0
    %v6034 = vadd.f32 %v6015, %v6033
    %6035 = vdwg.mxu0
    %6036 = vmatpush.bf16.msra.mxu0 %v4229
    %6037 = vmatpush.bf16.msra.mxu0 %v4225
    %6038 = vmatpush.bf16.msra.mxu0 %v4221
    %6039 = vmatpush.bf16.msra.mxu0 %v4217
    %6040 = vmatpush.bf16.msra.mxu0 %v4213
    %6041 = vmatpush.bf16.msra.mxu0 %v4209
    %6042 = vmatpush.bf16.msra.mxu0 %v4205
    %6043 = vmatpush.bf16.msra.mxu0 %v4201
    %6044 = vmatmul.bf16.gmra.mxu0 %v4562
    %v6045 = vpop.f32.mrf.mxu0
    %v6046 = vadd.f32 0.0, %v6045
    %v6047 = vpop.f32.mrf.mxu0
    %v6048 = vadd.f32 0.0, %v6047
    %6049 = vmatmul.bf16.gmra.mxu0 %v4564
    %v6050 = vpop.f32.mrf.mxu0
    %v6051 = vadd.f32 0.0, %v6050
    %v6052 = vpop.f32.mrf.mxu0
    %v6053 = vadd.f32 0.0, %v6052
    %6054 = vdwg.mxu0
    %6055 = vmatpush.bf16.msra.mxu0 %v4261
    %6056 = vmatpush.bf16.msra.mxu0 %v4257
    %6057 = vmatpush.bf16.msra.mxu0 %v4253
    %6058 = vmatpush.bf16.msra.mxu0 %v4249
    %6059 = vmatpush.bf16.msra.mxu0 %v4245
    %6060 = vmatpush.bf16.msra.mxu0 %v4241
    %6061 = vmatpush.bf16.msra.mxu0 %v4237
    %6062 = vmatpush.bf16.msra.mxu0 %v4233
    %6063 = vmatmul.bf16.gmra.mxu0 %v4563
    %v6064 = vpop.f32.mrf.mxu0
    %v6065 = vadd.f32 %v6046, %v6064
    %v6066 = vpop.f32.mrf.mxu0
    %v6067 = vadd.f32 %v6048, %v6066
    %6068 = vmatmul.bf16.gmra.mxu0 %v4565
    %v6069 = vpop.f32.mrf.mxu0
    %v6070 = vadd.f32 %v6051, %v6069
    %v6071 = vpop.f32.mrf.mxu0
    %v6072 = vadd.f32 %v6053, %v6071
    %6073 = vdwg.mxu0
    %v6074 = vadd.f32 %v5799, %v5951
    %v6075 = vadd.f32 %v5837, %v5989
    %v6076 = vadd.f32 %v5875, %v6027
    %v6077 = vadd.f32 %v5913, %v6065
    %v6078 = vadd.f32 %v5801, %v5953
    %v6079 = vadd.f32 %v5839, %v5991
    %v6080 = vadd.f32 %v5877, %v6029
    %v6081 = vadd.f32 %v5915, %v6067
    %v6082 = vadd.f32 %v5804, %v5956
    %v6083 = vadd.f32 %v5842, %v5994
    %v6084 = vadd.f32 %v5880, %v6032
    %v6085 = vadd.f32 %v5918, %v6070
    %v6086 = vadd.f32 %v5806, %v5958
    %v6087 = vadd.f32 %v5844, %v5996
    %v6088 = vadd.f32 %v5882, %v6034
    %v6089 = vadd.f32 %v5920, %v6072
    %6090 = vmatpush.bf16.msra.mxu0 %v4790
    %6091 = vmatpush.bf16.msra.mxu0 %v4786
    %6092 = vmatpush.bf16.msra.mxu0 %v4782
    %6093 = vmatpush.bf16.msra.mxu0 %v4778
    %6094 = vmatpush.bf16.msra.mxu0 %v4774
    %6095 = vmatpush.bf16.msra.mxu0 %v4770
    %6096 = vmatpush.bf16.msra.mxu0 %v4766
    %6097 = vmatpush.bf16.msra.mxu0 %v4762
    %6098 = vmatmul.bf16.gmra.mxu0 %v3452
    %v6099 = vpop.f32.mrf.mxu0
    %v6100 = vadd.f32 0.0, %v6099
    %v6101 = vpop.f32.mrf.mxu0
    %v6102 = vadd.f32 0.0, %v6101
    %6103 = vmatmul.bf16.gmra.mxu0 %v5126
    %v6104 = vpop.f32.mrf.mxu0
    %v6105 = vadd.f32 0.0, %v6104
    %v6106 = vpop.f32.mrf.mxu0
    %v6107 = vadd.f32 0.0, %v6106
    %6108 = vdwg.mxu0
    %6109 = vmatpush.bf16.msra.mxu0 %v4822
    %6110 = vmatpush.bf16.msra.mxu0 %v4818
    %6111 = vmatpush.bf16.msra.mxu0 %v4814
    %6112 = vmatpush.bf16.msra.mxu0 %v4810
    %6113 = vmatpush.bf16.msra.mxu0 %v4806
    %6114 = vmatpush.bf16.msra.mxu0 %v4802
    %6115 = vmatpush.bf16.msra.mxu0 %v4798
    %6116 = vmatpush.bf16.msra.mxu0 %v4794
    %6117 = vmatmul.bf16.gmra.mxu0 %v3453
    %v6118 = vpop.f32.mrf.mxu0
    %v6119 = vadd.f32 %v6100, %v6118
    %v6120 = vpop.f32.mrf.mxu0
    %v6121 = vadd.f32 %v6102, %v6120
    %6122 = vmatmul.bf16.gmra.mxu0 %v5127
    %v6123 = vpop.f32.mrf.mxu0
    %v6124 = vadd.f32 %v6105, %v6123
    %v6125 = vpop.f32.mrf.mxu0
    %v6126 = vadd.f32 %v6107, %v6125
    %6127 = vdwg.mxu0
    %6128 = vmatpush.bf16.msra.mxu0 %v4791
    %6129 = vmatpush.bf16.msra.mxu0 %v4787
    %6130 = vmatpush.bf16.msra.mxu0 %v4783
    %6131 = vmatpush.bf16.msra.mxu0 %v4779
    %6132 = vmatpush.bf16.msra.mxu0 %v4775
    %6133 = vmatpush.bf16.msra.mxu0 %v4771
    %6134 = vmatpush.bf16.msra.mxu0 %v4767
    %6135 = vmatpush.bf16.msra.mxu0 %v4763
    %6136 = vmatmul.bf16.gmra.mxu0 %v3452
    %v6137 = vpop.f32.mrf.mxu0
    %v6138 = vadd.f32 0.0, %v6137
    %v6139 = vpop.f32.mrf.mxu0
    %v6140 = vadd.f32 0.0, %v6139
    %6141 = vmatmul.bf16.gmra.mxu0 %v5126
    %v6142 = vpop.f32.mrf.mxu0
    %v6143 = vadd.f32 0.0, %v6142
    %v6144 = vpop.f32.mrf.mxu0
    %v6145 = vadd.f32 0.0, %v6144
    %6146 = vdwg.mxu0
    %6147 = vmatpush.bf16.msra.mxu0 %v4823
    %6148 = vmatpush.bf16.msra.mxu0 %v4819
    %6149 = vmatpush.bf16.msra.mxu0 %v4815
    %6150 = vmatpush.bf16.msra.mxu0 %v4811
    %6151 = vmatpush.bf16.msra.mxu0 %v4807
    %6152 = vmatpush.bf16.msra.mxu0 %v4803
    %6153 = vmatpush.bf16.msra.mxu0 %v4799
    %6154 = vmatpush.bf16.msra.mxu0 %v4795
    %6155 = vmatmul.bf16.gmra.mxu0 %v3453
    %v6156 = vpop.f32.mrf.mxu0
    %v6157 = vadd.f32 %v6138, %v6156
    %v6158 = vpop.f32.mrf.mxu0
    %v6159 = vadd.f32 %v6140, %v6158
    %6160 = vmatmul.bf16.gmra.mxu0 %v5127
    %v6161 = vpop.f32.mrf.mxu0
    %v6162 = vadd.f32 %v6143, %v6161
    %v6163 = vpop.f32.mrf.mxu0
    %v6164 = vadd.f32 %v6145, %v6163
    %6165 = vdwg.mxu0
    %6166 = vmatpush.bf16.msra.mxu0 %v4792
    %6167 = vmatpush.bf16.msra.mxu0 %v4788
    %6168 = vmatpush.bf16.msra.mxu0 %v4784
    %6169 = vmatpush.bf16.msra.mxu0 %v4780
    %6170 = vmatpush.bf16.msra.mxu0 %v4776
    %6171 = vmatpush.bf16.msra.mxu0 %v4772
    %6172 = vmatpush.bf16.msra.mxu0 %v4768
    %6173 = vmatpush.bf16.msra.mxu0 %v4764
    %6174 = vmatmul.bf16.gmra.mxu0 %v3452
    %v6175 = vpop.f32.mrf.mxu0
    %v6176 = vadd.f32 0.0, %v6175
    %v6177 = vpop.f32.mrf.mxu0
    %v6178 = vadd.f32 0.0, %v6177
    %6179 = vmatmul.bf16.gmra.mxu0 %v5126
    %v6180 = vpop.f32.mrf.mxu0
    %v6181 = vadd.f32 0.0, %v6180
    %v6182 = vpop.f32.mrf.mxu0
    %v6183 = vadd.f32 0.0, %v6182
    %6184 = vdwg.mxu0
    %6185 = vmatpush.bf16.msra.mxu0 %v4824
    %6186 = vmatpush.bf16.msra.mxu0 %v4820
    %6187 = vmatpush.bf16.msra.mxu0 %v4816
    %6188 = vmatpush.bf16.msra.mxu0 %v4812
    %6189 = vmatpush.bf16.msra.mxu0 %v4808
    %6190 = vmatpush.bf16.msra.mxu0 %v4804
    %6191 = vmatpush.bf16.msra.mxu0 %v4800
    %6192 = vmatpush.bf16.msra.mxu0 %v4796
    %6193 = vmatmul.bf16.gmra.mxu0 %v3453
    %v6194 = vpop.f32.mrf.mxu0
    %v6195 = vadd.f32 %v6176, %v6194
    %v6196 = vpop.f32.mrf.mxu0
    %v6197 = vadd.f32 %v6178, %v6196
    %6198 = vmatmul.bf16.gmra.mxu0 %v5127
    %v6199 = vpop.f32.mrf.mxu0
    %v6200 = vadd.f32 %v6181, %v6199
    %v6201 = vpop.f32.mrf.mxu0
    %v6202 = vadd.f32 %v6183, %v6201
    %6203 = vdwg.mxu0
    %6204 = vmatpush.bf16.msra.mxu0 %v4793
    %6205 = vmatpush.bf16.msra.mxu0 %v4789
    %6206 = vmatpush.bf16.msra.mxu0 %v4785
    %6207 = vmatpush.bf16.msra.mxu0 %v4781
    %6208 = vmatpush.bf16.msra.mxu0 %v4777
    %6209 = vmatpush.bf16.msra.mxu0 %v4773
    %6210 = vmatpush.bf16.msra.mxu0 %v4769
    %6211 = vmatpush.bf16.msra.mxu0 %v4765
    %6212 = vmatmul.bf16.gmra.mxu0 %v3452
    %v6213 = vpop.f32.mrf.mxu0
    %v6214 = vadd.f32 0.0, %v6213
    %v6215 = vpop.f32.mrf.mxu0
    %v6216 = vadd.f32 0.0, %v6215
    %6217 = vmatmul.bf16.gmra.mxu0 %v5126
    %v6218 = vpop.f32.mrf.mxu0
    %v6219 = vadd.f32 0.0, %v6218
    %v6220 = vpop.f32.mrf.mxu0
    %v6221 = vadd.f32 0.0, %v6220
    %6222 = vdwg.mxu0
    %6223 = vmatpush.bf16.msra.mxu0 %v4825
    %6224 = vmatpush.bf16.msra.mxu0 %v4821
    %6225 = vmatpush.bf16.msra.mxu0 %v4817
    %6226 = vmatpush.bf16.msra.mxu0 %v4813
    %6227 = vmatpush.bf16.msra.mxu0 %v4809
    %6228 = vmatpush.bf16.msra.mxu0 %v4805
    %6229 = vmatpush.bf16.msra.mxu0 %v4801
    %6230 = vmatpush.bf16.msra.mxu0 %v4797
    %6231 = vmatmul.bf16.gmra.mxu0 %v3453
    %v6232 = vpop.f32.mrf.mxu0
    %v6233 = vadd.f32 %v6214, %v6232
    %v6234 = vpop.f32.mrf.mxu0
    %v6235 = vadd.f32 %v6216, %v6234
    %6236 = vmatmul.bf16.gmra.mxu0 %v5127
    %v6237 = vpop.f32.mrf.mxu0
    %v6238 = vadd.f32 %v6219, %v6237
    %v6239 = vpop.f32.mrf.mxu0
    %v6240 = vadd.f32 %v6221, %v6239
    %6241 = vdwg.mxu0
    %v6242 = vadd.f32 %v6074, %v6119
    %v6243 = vadd.f32 %v6075, %v6157
    %v6244 = vadd.f32 %v6076, %v6195
    %v6245 = vadd.f32 %v6077, %v6233
    %v6246 = vadd.f32 %v6078, %v6121
    %v6247 = vadd.f32 %v6079, %v6159
    %v6248 = vadd.f32 %v6080, %v6197
    %v6249 = vadd.f32 %v6081, %v6235
    %v6250 = vadd.f32 %v6082, %v6124
    %v6251 = vadd.f32 %v6083, %v6162
    %v6252 = vadd.f32 %v6084, %v6200
    %v6253 = vadd.f32 %v6085, %v6238
    %v6254 = vadd.f32 %v6086, %v6126
    %v6255 = vadd.f32 %v6087, %v6164
    %v6256 = vadd.f32 %v6088, %v6202
    %v6257 = vadd.f32 %v6089, %v6240
    %v6259 = vunpack.c.l.b16 %v2816
    %v6260 = vunpack.c.h.b16 %v2816
    %v6261 = vpack.c.b16 %v6259, %v4560
    %v6262 = vpack.c.b16 %v6260, %v4561
    %6265 = vmatpush.bf16.msra.mxu0 %v5350
    %6266 = vmatpush.bf16.msra.mxu0 %v5346
    %6267 = vmatpush.bf16.msra.mxu0 %v5342
    %6268 = vmatpush.bf16.msra.mxu0 %v5338
    %6269 = vmatpush.bf16.msra.mxu0 %v5334
    %6270 = vmatpush.bf16.msra.mxu0 %v5330
    %6271 = vmatpush.bf16.msra.mxu0 %v5326
    %6272 = vmatpush.bf16.msra.mxu0 %v5322
    %6273 = vmatmul.bf16.gmra.mxu0 %v2960
    %v6274 = vpop.f32.mrf.mxu0
    %v6275 = vadd.f32 0.0, %v6274
    %v6276 = vpop.f32.mrf.mxu0
    %v6277 = vadd.f32 0.0, %v6276
    %6278 = vmatmul.bf16.gmra.mxu0 %v6261
    %v6279 = vpop.f32.mrf.mxu0
    %v6280 = vadd.f32 0.0, %v6279
    %v6281 = vpop.f32.mrf.mxu0
    %v6282 = vadd.f32 0.0, %v6281
    %6283 = vdwg.mxu0
    %6284 = vmatpush.bf16.msra.mxu0 %v5382
    %6285 = vmatpush.bf16.msra.mxu0 %v5378
    %6286 = vmatpush.bf16.msra.mxu0 %v5374
    %6287 = vmatpush.bf16.msra.mxu0 %v5370
    %6288 = vmatpush.bf16.msra.mxu0 %v5366
    %6289 = vmatpush.bf16.msra.mxu0 %v5362
    %6290 = vmatpush.bf16.msra.mxu0 %v5358
    %6291 = vmatpush.bf16.msra.mxu0 %v5354
    %6292 = vmatmul.bf16.gmra.mxu0 %v2961
    %v6293 = vpop.f32.mrf.mxu0
    %v6294 = vadd.f32 %v6275, %v6293
    %v6295 = vpop.f32.mrf.mxu0
    %v6296 = vadd.f32 %v6277, %v6295
    %6297 = vmatmul.bf16.gmra.mxu0 %v6262
    %v6298 = vpop.f32.mrf.mxu0
    %v6299 = vadd.f32 %v6280, %v6298
    %v6300 = vpop.f32.mrf.mxu0
    %v6301 = vadd.f32 %v6282, %v6300
    %6302 = vdwg.mxu0
    %6303 = vmatpush.bf16.msra.mxu0 %v5351
    %6304 = vmatpush.bf16.msra.mxu0 %v5347
    %6305 = vmatpush.bf16.msra.mxu0 %v5343
    %6306 = vmatpush.bf16.msra.mxu0 %v5339
    %6307 = vmatpush.bf16.msra.mxu0 %v5335
    %6308 = vmatpush.bf16.msra.mxu0 %v5331
    %6309 = vmatpush.bf16.msra.mxu0 %v5327
    %6310 = vmatpush.bf16.msra.mxu0 %v5323
    %6311 = vmatmul.bf16.gmra.mxu0 %v2960
    %v6312 = vpop.f32.mrf.mxu0
    %v6313 = vadd.f32 0.0, %v6312
    %v6314 = vpop.f32.mrf.mxu0
    %v6315 = vadd.f32 0.0, %v6314
    %6316 = vmatmul.bf16.gmra.mxu0 %v6261
    %v6317 = vpop.f32.mrf.mxu0
    %v6318 = vadd.f32 0.0, %v6317
    %v6319 = vpop.f32.mrf.mxu0
    %v6320 = vadd.f32 0.0, %v6319
    %6321 = vdwg.mxu0
    %6322 = vmatpush.bf16.msra.mxu0 %v5383
    %6323 = vmatpush.bf16.msra.mxu0 %v5379
    %6324 = vmatpush.bf16.msra.mxu0 %v5375
    %6325 = vmatpush.bf16.msra.mxu0 %v5371
    %6326 = vmatpush.bf16.msra.mxu0 %v5367
    %6327 = vmatpush.bf16.msra.mxu0 %v5363
    %6328 = vmatpush.bf16.msra.mxu0 %v5359
    %6329 = vmatpush.bf16.msra.mxu0 %v5355
    %6330 = vmatmul.bf16.gmra.mxu0 %v2961
    %v6331 = vpop.f32.mrf.mxu0
    %v6332 = vadd.f32 %v6313, %v6331
    %v6333 = vpop.f32.mrf.mxu0
    %v6334 = vadd.f32 %v6315, %v6333
    %6335 = vmatmul.bf16.gmra.mxu0 %v6262
    %v6336 = vpop.f32.mrf.mxu0
    %v6337 = vadd.f32 %v6318, %v6336
    %v6338 = vpop.f32.mrf.mxu0
    %v6339 = vadd.f32 %v6320, %v6338
    %6340 = vdwg.mxu0
    %6341 = vmatpush.bf16.msra.mxu0 %v5352
    %6342 = vmatpush.bf16.msra.mxu0 %v5348
    %6343 = vmatpush.bf16.msra.mxu0 %v5344
    %6344 = vmatpush.bf16.msra.mxu0 %v5340
    %6345 = vmatpush.bf16.msra.mxu0 %v5336
    %6346 = vmatpush.bf16.msra.mxu0 %v5332
    %6347 = vmatpush.bf16.msra.mxu0 %v5328
    %6348 = vmatpush.bf16.msra.mxu0 %v5324
    %6349 = vmatmul.bf16.gmra.mxu0 %v2960
    %v6350 = vpop.f32.mrf.mxu0
    %v6351 = vadd.f32 0.0, %v6350
    %v6352 = vpop.f32.mrf.mxu0
    %v6353 = vadd.f32 0.0, %v6352
    %6354 = vmatmul.bf16.gmra.mxu0 %v6261
    %v6355 = vpop.f32.mrf.mxu0
    %v6356 = vadd.f32 0.0, %v6355
    %v6357 = vpop.f32.mrf.mxu0
    %v6358 = vadd.f32 0.0, %v6357
    %6359 = vdwg.mxu0
    %6360 = vmatpush.bf16.msra.mxu0 %v5384
    %6361 = vmatpush.bf16.msra.mxu0 %v5380
    %6362 = vmatpush.bf16.msra.mxu0 %v5376
    %6363 = vmatpush.bf16.msra.mxu0 %v5372
    %6364 = vmatpush.bf16.msra.mxu0 %v5368
    %6365 = vmatpush.bf16.msra.mxu0 %v5364
    %6366 = vmatpush.bf16.msra.mxu0 %v5360
    %6367 = vmatpush.bf16.msra.mxu0 %v5356
    %6368 = vmatmul.bf16.gmra.mxu0 %v2961
    %v6369 = vpop.f32.mrf.mxu0
    %v6370 = vadd.f32 %v6351, %v6369
    %v6371 = vpop.f32.mrf.mxu0
    %v6372 = vadd.f32 %v6353, %v6371
    %6373 = vmatmul.bf16.gmra.mxu0 %v6262
    %v6374 = vpop.f32.mrf.mxu0
    %v6375 = vadd.f32 %v6356, %v6374
    %v6376 = vpop.f32.mrf.mxu0
    %v6377 = vadd.f32 %v6358, %v6376
    %6378 = vdwg.mxu0
    %6379 = vmatpush.bf16.msra.mxu0 %v5353
    %6380 = vmatpush.bf16.msra.mxu0 %v5349
    %6381 = vmatpush.bf16.msra.mxu0 %v5345
    %6382 = vmatpush.bf16.msra.mxu0 %v5341
    %6383 = vmatpush.bf16.msra.mxu0 %v5337
    %6384 = vmatpush.bf16.msra.mxu0 %v5333
    %6385 = vmatpush.bf16.msra.mxu0 %v5329
    %6386 = vmatpush.bf16.msra.mxu0 %v5325
    %6387 = vmatmul.bf16.gmra.mxu0 %v2960
    %v6388 = vpop.f32.mrf.mxu0
    %v6389 = vadd.f32 0.0, %v6388
    %v6390 = vpop.f32.mrf.mxu0
    %v6391 = vadd.f32 0.0, %v6390
    %6392 = vmatmul.bf16.gmra.mxu0 %v6261
    %v6393 = vpop.f32.mrf.mxu0
    %v6394 = vadd.f32 0.0, %v6393
    %v6395 = vpop.f32.mrf.mxu0
    %v6396 = vadd.f32 0.0, %v6395
    %6397 = vdwg.mxu0
    %6398 = vmatpush.bf16.msra.mxu0 %v5385
    %6399 = vmatpush.bf16.msra.mxu0 %v5381
    %6400 = vmatpush.bf16.msra.mxu0 %v5377
    %6401 = vmatpush.bf16.msra.mxu0 %v5373
    %6402 = vmatpush.bf16.msra.mxu0 %v5369
    %6403 = vmatpush.bf16.msra.mxu0 %v5365
    %6404 = vmatpush.bf16.msra.mxu0 %v5361
    %6405 = vmatpush.bf16.msra.mxu0 %v5357
    %6406 = vmatmul.bf16.gmra.mxu0 %v2961
    %v6407 = vpop.f32.mrf.mxu0
    %v6408 = vadd.f32 %v6389, %v6407
    %v6409 = vpop.f32.mrf.mxu0
    %v6410 = vadd.f32 %v6391, %v6409
    %6411 = vmatmul.bf16.gmra.mxu0 %v6262
    %v6412 = vpop.f32.mrf.mxu0
    %v6413 = vadd.f32 %v6394, %v6412
    %v6414 = vpop.f32.mrf.mxu0
    %v6415 = vadd.f32 %v6396, %v6414
    %6416 = vdwg.mxu0
    %v6417 = vadd.f32 %v6242, %v6294
    %v6418 = vadd.f32 %v6243, %v6332
    %v6419 = vadd.f32 %v6244, %v6370
    %v6420 = vadd.f32 %v6245, %v6408
    %v6421 = vadd.f32 %v6246, %v6296
    %v6422 = vadd.f32 %v6247, %v6334
    %v6423 = vadd.f32 %v6248, %v6372
    %v6424 = vadd.f32 %v6249, %v6410
    %v6425 = vadd.f32 %v6250, %v6299
    %v6426 = vadd.f32 %v6251, %v6337
    %v6427 = vadd.f32 %v6252, %v6375
    %v6428 = vadd.f32 %v6253, %v6413
    %v6429 = vadd.f32 %v6254, %v6301
    %v6430 = vadd.f32 %v6255, %v6339
    %v6431 = vadd.f32 %v6256, %v6377
    %v6432 = vadd.f32 %v6257, %v6415
    %v6433 = vmax.f32 %v5602, %v6417
    %v6434 = vmax.f32 %v5603, %v6418
    %v6435 = vmax.f32 %v5604, %v6419
    %v6436 = vmax.f32 %v5605, %v6420
    %v6437 = vmax.f32 %v5606, %v6421
    %v6438 = vmax.f32 %v5607, %v6422
    %v6439 = vmax.f32 %v5608, %v6423
    %v6440 = vmax.f32 %v5609, %v6424
    %v6441 = vmax.f32 %v5610, %v6425
    %v6442 = vmax.f32 %v5611, %v6426
    %v6443 = vmax.f32 %v5612, %v6427
    %v6444 = vmax.f32 %v5613, %v6428
    %v6445 = vmax.f32 %v5614, %v6429
    %v6446 = vmax.f32 %v5615, %v6430
    %v6447 = vmax.f32 %v5616, %v6431
    %v6448 = vmax.f32 %v5617, %v6432
    %v6449 = vmax.f32 %v6433, %v6435
    %v6450 = vmax.f32 %v6434, %v6436
    %v6451 = vmax.f32 %v6437, %v6439
    %v6452 = vmax.f32 %v6438, %v6440
    %v6453 = vmax.f32 %v6441, %v6443
    %v6454 = vmax.f32 %v6442, %v6444
    %v6455 = vmax.f32 %v6445, %v6447
    %v6456 = vmax.f32 %v6446, %v6448
    %v6457 = vld [vmem:[%s4] sm:$0x3]
    %v6459 = vperm.slane %v6457, 0
    %v6460 = vperm.slane %v6457, 1
    %v6463 = vadd.f32 %v6449, %v6459
    %v6464 = vadd.f32 %v6450, %v6460
    %v6465 = vadd.f32 %v6451, %v6459
    %v6466 = vadd.f32 %v6452, %v6460
    %v6467 = vadd.f32 %v6453, %v6459
    %v6468 = vadd.f32 %v6454, %v6460
    %v6469 = vadd.f32 %v6455, %v6459
    %v6470 = vadd.f32 %v6456, %v6460
    %v6471 = vmax.f32 %v6463, 0.0
    %v6472 = vmax.f32 %v6464, 0.0
    %v6473 = vmax.f32 %v6465, 0.0
    %v6474 = vmax.f32 %v6466, 0.0
    %v6475 = vmax.f32 %v6467, 0.0
    %v6476 = vmax.f32 %v6468, 0.0
    %v6477 = vmax.f32 %v6469, 0.0
    %v6478 = vmax.f32 %v6470, 0.0
    %v6479 = vpack.c.bf16 %v6472, %v6471
    %v6480 = vpack.c.bf16 %v6474, %v6473
    %v6481 = vpack.c.bf16 %v6476, %v6475
    %v6482 = vpack.c.bf16 %v6478, %v6477
    %v6483 = vld [vmem:[%s5] sm:$0xff]
    %v6484 = vld [vmem:[%s5 + $0x8] sm:$0xff]
    %v6485 = vld [vmem:[%s5 + $0x10] sm:$0xff]
    %v6486 = vld [vmem:[%s5 + $0x18] sm:$0xff]
    %v6487 = vld [vmem:[%s5 + $0x20] sm:$0xff]
    %v6488 = vld [vmem:[%s5 + $0x28] sm:$0xff]
    %v6489 = vld [vmem:[%s5 + $0x30] sm:$0xff]
    %v6490 = vld [vmem:[%s5 + $0x38] sm:$0xff]
    %v6491 = vld [vmem:[%s5 + $0x40] sm:$0xff]
    %v6492 = vld [vmem:[%s5 + $0x48] sm:$0xff]
    %v6493 = vld [vmem:[%s5 + $0x50] sm:$0xff]
    %v6494 = vld [vmem:[%s5 + $0x58] sm:$0xff]
    %v6495 = vld [vmem:[%s5 + $0x60] sm:$0xff]
    %v6496 = vld [vmem:[%s5 + $0x68] sm:$0xff]
    %v6497 = vld [vmem:[%s5 + $0x70] sm:$0xff]
    %v6498 = vld [vmem:[%s5 + $0x78] sm:$0xff]
    %v6499 = vld [vmem:[%s5 + $0x80] sm:$0xff]
    %v6500 = vld [vmem:[%s5 + $0x88] sm:$0xff]
    %v6501 = vld [vmem:[%s5 + $0x90] sm:$0xff]
    %v6502 = vld [vmem:[%s5 + $0x98] sm:$0xff]
    %v6503 = vld [vmem:[%s5 + $0xa0] sm:$0xff]
    %v6504 = vld [vmem:[%s5 + $0xa8] sm:$0xff]
    %v6505 = vld [vmem:[%s5 + $0xb0] sm:$0xff]
    %v6506 = vld [vmem:[%s5 + $0xb8] sm:$0xff]
    %v6507 = vld [vmem:[%s5 + $0xc0] sm:$0xff]
    %v6508 = vld [vmem:[%s5 + $0xc8] sm:$0xff]
    %v6509 = vld [vmem:[%s5 + $0xd0] sm:$0xff]
    %v6510 = vld [vmem:[%s5 + $0xd8] sm:$0xff]
    %v6511 = vld [vmem:[%s5 + $0xe0] sm:$0xff]
    %v6512 = vld [vmem:[%s5 + $0xe8] sm:$0xff]
    %v6513 = vld [vmem:[%s5 + $0xf0] sm:$0xff]
    %v6514 = vld [vmem:[%s5 + $0xf8] sm:$0xff]
    %v6515 = vld [vmem:[%s5 + $0x100] sm:$0xff]
    %v6516 = vld [vmem:[%s5 + $0x108] sm:$0xff]
    %v6517 = vld [vmem:[%s5 + $0x110] sm:$0xff]
    %v6518 = vld [vmem:[%s5 + $0x118] sm:$0xff]
    %v6519 = vld [vmem:[%s5 + $0x120] sm:$0xff]
    %v6520 = vld [vmem:[%s5 + $0x128] sm:$0xff]
    %v6521 = vld [vmem:[%s5 + $0x130] sm:$0xff]
    %v6522 = vld [vmem:[%s5 + $0x138] sm:$0xff]
    %v6523 = vld [vmem:[%s5 + $0x140] sm:$0xff]
    %v6524 = vld [vmem:[%s5 + $0x148] sm:$0xff]
    %v6525 = vld [vmem:[%s5 + $0x150] sm:$0xff]
    %v6526 = vld [vmem:[%s5 + $0x158] sm:$0xff]
    %v6527 = vld [vmem:[%s5 + $0x160] sm:$0xff]
    %v6528 = vld [vmem:[%s5 + $0x168] sm:$0xff]
    %v6529 = vld [vmem:[%s5 + $0x170] sm:$0xff]
    %v6530 = vld [vmem:[%s5 + $0x178] sm:$0xff]
    %v6531 = vld [vmem:[%s5 + $0x180] sm:$0xff]
    %v6532 = vld [vmem:[%s5 + $0x188] sm:$0xff]
    %v6533 = vld [vmem:[%s5 + $0x190] sm:$0xff]
    %v6534 = vld [vmem:[%s5 + $0x198] sm:$0xff]
    %v6535 = vld [vmem:[%s5 + $0x1a0] sm:$0xff]
    %v6536 = vld [vmem:[%s5 + $0x1a8] sm:$0xff]
    %v6537 = vld [vmem:[%s5 + $0x1b0] sm:$0xff]
    %v6538 = vld [vmem:[%s5 + $0x1b8] sm:$0xff]
    %v6539 = vld [vmem:[%s5 + $0x1c0] sm:$0xff]
    %v6540 = vld [vmem:[%s5 + $0x1c8] sm:$0xff]
    %v6541 = vld [vmem:[%s5 + $0x1d0] sm:$0xff]
    %v6542 = vld [vmem:[%s5 + $0x1d8] sm:$0xff]
    %v6543 = vld [vmem:[%s5 + $0x1e0] sm:$0xff]
    %v6544 = vld [vmem:[%s5 + $0x1e8] sm:$0xff]
    %v6545 = vld [vmem:[%s5 + $0x1f0] sm:$0xff]
    %v6546 = vld [vmem:[%s5 + $0x1f8] sm:$0xff]
    %s6547 = scalar_lea.vmem %s5, 512
    %v6548 = vld [vmem:[%s6547] sm:$0xff]
    %v6549 = vld [vmem:[%s6547 + $0x8] sm:$0xff]
    %v6550 = vld [vmem:[%s6547 + $0x10] sm:$0xff]
    %v6551 = vld [vmem:[%s6547 + $0x18] sm:$0xff]
    %v6552 = vld [vmem:[%s6547 + $0x20] sm:$0xff]
    %v6553 = vld [vmem:[%s6547 + $0x28] sm:$0xff]
    %v6554 = vld [vmem:[%s6547 + $0x30] sm:$0xff]
    %v6555 = vld [vmem:[%s6547 + $0x38] sm:$0xff]
    %v6556 = vld [vmem:[%s6547 + $0x40] sm:$0xff]
    %v6557 = vld [vmem:[%s6547 + $0x48] sm:$0xff]
    %v6558 = vld [vmem:[%s6547 + $0x50] sm:$0xff]
    %v6559 = vld [vmem:[%s6547 + $0x58] sm:$0xff]
    %v6560 = vld [vmem:[%s6547 + $0x60] sm:$0xff]
    %v6561 = vld [vmem:[%s6547 + $0x68] sm:$0xff]
    %v6562 = vld [vmem:[%s6547 + $0x70] sm:$0xff]
    %v6563 = vld [vmem:[%s6547 + $0x78] sm:$0xff]
    %v6564 = vld [vmem:[%s6547 + $0x80] sm:$0xff]
    %v6565 = vld [vmem:[%s6547 + $0x88] sm:$0xff]
    %v6566 = vld [vmem:[%s6547 + $0x90] sm:$0xff]
    %v6567 = vld [vmem:[%s6547 + $0x98] sm:$0xff]
    %v6568 = vld [vmem:[%s6547 + $0xa0] sm:$0xff]
    %v6569 = vld [vmem:[%s6547 + $0xa8] sm:$0xff]
    %v6570 = vld [vmem:[%s6547 + $0xb0] sm:$0xff]
    %v6571 = vld [vmem:[%s6547 + $0xb8] sm:$0xff]
    %v6572 = vld [vmem:[%s6547 + $0xc0] sm:$0xff]
    %v6573 = vld [vmem:[%s6547 + $0xc8] sm:$0xff]
    %v6574 = vld [vmem:[%s6547 + $0xd0] sm:$0xff]
    %v6575 = vld [vmem:[%s6547 + $0xd8] sm:$0xff]
    %v6576 = vld [vmem:[%s6547 + $0xe0] sm:$0xff]
    %v6577 = vld [vmem:[%s6547 + $0xe8] sm:$0xff]
    %v6578 = vld [vmem:[%s6547 + $0xf0] sm:$0xff]
    %v6579 = vld [vmem:[%s6547 + $0xf8] sm:$0xff]
    %v6580 = vld [vmem:[%s6547 + $0x100] sm:$0xff]
    %v6581 = vld [vmem:[%s6547 + $0x108] sm:$0xff]
    %v6582 = vld [vmem:[%s6547 + $0x110] sm:$0xff]
    %v6583 = vld [vmem:[%s6547 + $0x118] sm:$0xff]
    %v6584 = vld [vmem:[%s6547 + $0x120] sm:$0xff]
    %v6585 = vld [vmem:[%s6547 + $0x128] sm:$0xff]
    %v6586 = vld [vmem:[%s6547 + $0x130] sm:$0xff]
    %v6587 = vld [vmem:[%s6547 + $0x138] sm:$0xff]
    %v6588 = vld [vmem:[%s6547 + $0x140] sm:$0xff]
    %v6589 = vld [vmem:[%s6547 + $0x148] sm:$0xff]
    %v6590 = vld [vmem:[%s6547 + $0x150] sm:$0xff]
    %v6591 = vld [vmem:[%s6547 + $0x158] sm:$0xff]
    %v6592 = vld [vmem:[%s6547 + $0x160] sm:$0xff]
    %v6593 = vld [vmem:[%s6547 + $0x168] sm:$0xff]
    %v6594 = vld [vmem:[%s6547 + $0x170] sm:$0xff]
    %v6595 = vld [vmem:[%s6547 + $0x178] sm:$0xff]
    %v6596 = vld [vmem:[%s6547 + $0x180] sm:$0xff]
    %v6597 = vld [vmem:[%s6547 + $0x188] sm:$0xff]
    %v6598 = vld [vmem:[%s6547 + $0x190] sm:$0xff]
    %v6599 = vld [vmem:[%s6547 + $0x198] sm:$0xff]
    %v6600 = vld [vmem:[%s6547 + $0x1a0] sm:$0xff]
    %v6601 = vld [vmem:[%s6547 + $0x1a8] sm:$0xff]
    %v6602 = vld [vmem:[%s6547 + $0x1b0] sm:$0xff]
    %v6603 = vld [vmem:[%s6547 + $0x1b8] sm:$0xff]
    %v6604 = vld [vmem:[%s6547 + $0x1c0] sm:$0xff]
    %v6605 = vld [vmem:[%s6547 + $0x1c8] sm:$0xff]
    %v6606 = vld [vmem:[%s6547 + $0x1d0] sm:$0xff]
    %v6607 = vld [vmem:[%s6547 + $0x1d8] sm:$0xff]
    %v6608 = vld [vmem:[%s6547 + $0x1e0] sm:$0xff]
    %v6609 = vld [vmem:[%s6547 + $0x1e8] sm:$0xff]
    %v6610 = vld [vmem:[%s6547 + $0x1f0] sm:$0xff]
    %v6611 = vld [vmem:[%s6547 + $0x1f8] sm:$0xff]
    %v6613 = vunpack.c.l.b16 %v6480
    %v6614 = vunpack.c.h.b16 %v6480
    %v6615 = vpack.c.b16 %v6613, %v6613
    %v6616 = vpack.c.b16 %v6614, %v6614
    %v6683 = vunpack.c.l.b16 %v6548
    %v6684 = vunpack.c.h.b16 %v6548
    %v6685 = vunpack.c.l.b16 %v6549
    %v6686 = vunpack.c.h.b16 %v6549
    %v6687 = vunpack.c.l.b16 %v6550
    %v6688 = vunpack.c.h.b16 %v6550
    %v6689 = vunpack.c.l.b16 %v6551
    %v6690 = vunpack.c.h.b16 %v6551
    %v6691 = vunpack.c.l.b16 %v6552
    %v6692 = vunpack.c.h.b16 %v6552
    %v6693 = vunpack.c.l.b16 %v6553
    %v6694 = vunpack.c.h.b16 %v6553
    %v6695 = vunpack.c.l.b16 %v6554
    %v6696 = vunpack.c.h.b16 %v6554
    %v6697 = vunpack.c.l.b16 %v6555
    %v6698 = vunpack.c.h.b16 %v6555
    %v6699 = vunpack.c.l.b16 %v6556
    %v6700 = vunpack.c.h.b16 %v6556
    %v6701 = vunpack.c.l.b16 %v6557
    %v6702 = vunpack.c.h.b16 %v6557
    %v6703 = vunpack.c.l.b16 %v6558
    %v6704 = vunpack.c.h.b16 %v6558
    %v6705 = vunpack.c.l.b16 %v6559
    %v6706 = vunpack.c.h.b16 %v6559
    %v6707 = vunpack.c.l.b16 %v6560
    %v6708 = vunpack.c.h.b16 %v6560
    %v6709 = vunpack.c.l.b16 %v6561
    %v6710 = vunpack.c.h.b16 %v6561
    %v6711 = vunpack.c.l.b16 %v6562
    %v6712 = vunpack.c.h.b16 %v6562
    %v6713 = vunpack.c.l.b16 %v6563
    %v6714 = vunpack.c.h.b16 %v6563
    %v6715 = vunpack.c.l.b16 %v6564
    %v6716 = vunpack.c.h.b16 %v6564
    %v6717 = vunpack.c.l.b16 %v6565
    %v6718 = vunpack.c.h.b16 %v6565
    %v6719 = vunpack.c.l.b16 %v6566
    %v6720 = vunpack.c.h.b16 %v6566
    %v6721 = vunpack.c.l.b16 %v6567
    %v6722 = vunpack.c.h.b16 %v6567
    %v6723 = vunpack.c.l.b16 %v6568
    %v6724 = vunpack.c.h.b16 %v6568
    %v6725 = vunpack.c.l.b16 %v6569
    %v6726 = vunpack.c.h.b16 %v6569
    %v6727 = vunpack.c.l.b16 %v6570
    %v6728 = vunpack.c.h.b16 %v6570
    %v6729 = vunpack.c.l.b16 %v6571
    %v6730 = vunpack.c.h.b16 %v6571
    %v6731 = vunpack.c.l.b16 %v6572
    %v6732 = vunpack.c.h.b16 %v6572
    %v6733 = vunpack.c.l.b16 %v6573
    %v6734 = vunpack.c.h.b16 %v6573
    %v6735 = vunpack.c.l.b16 %v6574
    %v6736 = vunpack.c.h.b16 %v6574
    %v6737 = vunpack.c.l.b16 %v6575
    %v6738 = vunpack.c.h.b16 %v6575
    %v6739 = vunpack.c.l.b16 %v6576
    %v6740 = vunpack.c.h.b16 %v6576
    %v6741 = vunpack.c.l.b16 %v6577
    %v6742 = vunpack.c.h.b16 %v6577
    %v6743 = vunpack.c.l.b16 %v6578
    %v6744 = vunpack.c.h.b16 %v6578
    %v6745 = vunpack.c.l.b16 %v6579
    %v6746 = vunpack.c.h.b16 %v6579
    %v6747 = vunpack.c.l.b16 %v6580
    %v6748 = vunpack.c.h.b16 %v6580
    %v6749 = vunpack.c.l.b16 %v6581
    %v6750 = vunpack.c.h.b16 %v6581
    %v6751 = vunpack.c.l.b16 %v6582
    %v6752 = vunpack.c.h.b16 %v6582
    %v6753 = vunpack.c.l.b16 %v6583
    %v6754 = vunpack.c.h.b16 %v6583
    %v6755 = vunpack.c.l.b16 %v6584
    %v6756 = vunpack.c.h.b16 %v6584
    %v6757 = vunpack.c.l.b16 %v6585
    %v6758 = vunpack.c.h.b16 %v6585
    %v6759 = vunpack.c.l.b16 %v6586
    %v6760 = vunpack.c.h.b16 %v6586
    %v6761 = vunpack.c.l.b16 %v6587
    %v6762 = vunpack.c.h.b16 %v6587
    %v6763 = vunpack.c.l.b16 %v6588
    %v6764 = vunpack.c.h.b16 %v6588
    %v6765 = vunpack.c.l.b16 %v6589
    %v6766 = vunpack.c.h.b16 %v6589
    %v6767 = vunpack.c.l.b16 %v6590
    %v6768 = vunpack.c.h.b16 %v6590
    %v6769 = vunpack.c.l.b16 %v6591
    %v6770 = vunpack.c.h.b16 %v6591
    %v6771 = vunpack.c.l.b16 %v6592
    %v6772 = vunpack.c.h.b16 %v6592
    %v6773 = vunpack.c.l.b16 %v6593
    %v6774 = vunpack.c.h.b16 %v6593
    %v6775 = vunpack.c.l.b16 %v6594
    %v6776 = vunpack.c.h.b16 %v6594
    %v6777 = vunpack.c.l.b16 %v6595
    %v6778 = vunpack.c.h.b16 %v6595
    %v6779 = vunpack.c.l.b16 %v6596
    %v6780 = vunpack.c.h.b16 %v6596
    %v6781 = vunpack.c.l.b16 %v6597
    %v6782 = vunpack.c.h.b16 %v6597
    %v6783 = vunpack.c.l.b16 %v6598
    %v6784 = vunpack.c.h.b16 %v6598
    %v6785 = vunpack.c.l.b16 %v6599
    %v6786 = vunpack.c.h.b16 %v6599
    %v6787 = vunpack.c.l.b16 %v6600
    %v6788 = vunpack.c.h.b16 %v6600
    %v6789 = vunpack.c.l.b16 %v6601
    %v6790 = vunpack.c.h.b16 %v6601
    %v6791 = vunpack.c.l.b16 %v6602
    %v6792 = vunpack.c.h.b16 %v6602
    %v6793 = vunpack.c.l.b16 %v6603
    %v6794 = vunpack.c.h.b16 %v6603
    %v6795 = vunpack.c.l.b16 %v6604
    %v6796 = vunpack.c.h.b16 %v6604
    %v6797 = vunpack.c.l.b16 %v6605
    %v6798 = vunpack.c.h.b16 %v6605
    %v6799 = vunpack.c.l.b16 %v6606
    %v6800 = vunpack.c.h.b16 %v6606
    %v6801 = vunpack.c.l.b16 %v6607
    %v6802 = vunpack.c.h.b16 %v6607
    %v6803 = vunpack.c.l.b16 %v6608
    %v6804 = vunpack.c.h.b16 %v6608
    %v6805 = vunpack.c.l.b16 %v6609
    %v6806 = vunpack.c.h.b16 %v6609
    %v6807 = vunpack.c.l.b16 %v6610
    %v6808 = vunpack.c.h.b16 %v6610
    %v6809 = vunpack.c.l.b16 %v6611
    %v6810 = vunpack.c.h.b16 %v6611
    %v6811 = vpack.c.b16 %v6687, %v6683
    %v6812 = vpack.c.b16 %v6688, %v6684
    %v6813 = vpack.c.b16 %v6689, %v6685
    %v6814 = vpack.c.b16 %v6690, %v6686
    %v6815 = vpack.c.b16 %v6695, %v6691
    %v6816 = vpack.c.b16 %v6696, %v6692
    %v6817 = vpack.c.b16 %v6697, %v6693
    %v6818 = vpack.c.b16 %v6698, %v6694
    %v6819 = vpack.c.b16 %v6703, %v6699
    %v6820 = vpack.c.b16 %v6704, %v6700
    %v6821 = vpack.c.b16 %v6705, %v6701
    %v6822 = vpack.c.b16 %v6706, %v6702
    %v6823 = vpack.c.b16 %v6711, %v6707
    %v6824 = vpack.c.b16 %v6712, %v6708
    %v6825 = vpack.c.b16 %v6713, %v6709
    %v6826 = vpack.c.b16 %v6714, %v6710
    %v6827 = vpack.c.b16 %v6719, %v6715
    %v6828 = vpack.c.b16 %v6720, %v6716
    %v6829 = vpack.c.b16 %v6721, %v6717
    %v6830 = vpack.c.b16 %v6722, %v6718
    %v6831 = vpack.c.b16 %v6727, %v6723
    %v6832 = vpack.c.b16 %v6728, %v6724
    %v6833 = vpack.c.b16 %v6729, %v6725
    %v6834 = vpack.c.b16 %v6730, %v6726
    %v6835 = vpack.c.b16 %v6735, %v6731
    %v6836 = vpack.c.b16 %v6736, %v6732
    %v6837 = vpack.c.b16 %v6737, %v6733
    %v6838 = vpack.c.b16 %v6738, %v6734
    %v6839 = vpack.c.b16 %v6743, %v6739
    %v6840 = vpack.c.b16 %v6744, %v6740
    %v6841 = vpack.c.b16 %v6745, %v6741
    %v6842 = vpack.c.b16 %v6746, %v6742
    %v6843 = vpack.c.b16 %v6751, %v6747
    %v6844 = vpack.c.b16 %v6752, %v6748
    %v6845 = vpack.c.b16 %v6753, %v6749
    %v6846 = vpack.c.b16 %v6754, %v6750
    %v6847 = vpack.c.b16 %v6759, %v6755
    %v6848 = vpack.c.b16 %v6760, %v6756
    %v6849 = vpack.c.b16 %v6761, %v6757
    %v6850 = vpack.c.b16 %v6762, %v6758
    %v6851 = vpack.c.b16 %v6767, %v6763
    %v6852 = vpack.c.b16 %v6768, %v6764
    %v6853 = vpack.c.b16 %v6769, %v6765
    %v6854 = vpack.c.b16 %v6770, %v6766
    %v6855 = vpack.c.b16 %v6775, %v6771
    %v6856 = vpack.c.b16 %v6776, %v6772
    %v6857 = vpack.c.b16 %v6777, %v6773
    %v6858 = vpack.c.b16 %v6778, %v6774
    %v6859 = vpack.c.b16 %v6783, %v6779
    %v6860 = vpack.c.b16 %v6784, %v6780
    %v6861 = vpack.c.b16 %v6785, %v6781
    %v6862 = vpack.c.b16 %v6786, %v6782
    %v6863 = vpack.c.b16 %v6791, %v6787
    %v6864 = vpack.c.b16 %v6792, %v6788
    %v6865 = vpack.c.b16 %v6793, %v6789
    %v6866 = vpack.c.b16 %v6794, %v6790
    %v6867 = vpack.c.b16 %v6799, %v6795
    %v6868 = vpack.c.b16 %v6800, %v6796
    %v6869 = vpack.c.b16 %v6801, %v6797
    %v6870 = vpack.c.b16 %v6802, %v6798
    %v6871 = vpack.c.b16 %v6807, %v6803
    %v6872 = vpack.c.b16 %v6808, %v6804
    %v6873 = vpack.c.b16 %v6809, %v6805
    %v6874 = vpack.c.b16 %v6810, %v6806
    %6939 = vmatpush.bf16.msra.mxu0 %v6839
    %6940 = vmatpush.bf16.msra.mxu0 %v6835
    %6941 = vmatpush.bf16.msra.mxu0 %v6831
    %6942 = vmatpush.bf16.msra.mxu0 %v6827
    %6943 = vmatpush.bf16.msra.mxu0 %v6823
    %6944 = vmatpush.bf16.msra.mxu0 %v6819
    %6945 = vmatpush.bf16.msra.mxu0 %v6815
    %6946 = vmatpush.bf16.msra.mxu0 %v6811
    %6947 = vmatmul.bf16.gmra.mxu0 %v6615
    %v6948 = vpop.f32.mrf.mxu0
    %v6949 = vadd.f32 0.0, %v6948
    %v6950 = vpop.f32.mrf.mxu0
    %6951 = vdwg.mxu0
    %6952 = vmatpush.bf16.msra.mxu0 %v6871
    %6953 = vmatpush.bf16.msra.mxu0 %v6867
    %6954 = vmatpush.bf16.msra.mxu0 %v6863
    %6955 = vmatpush.bf16.msra.mxu0 %v6859
    %6956 = vmatpush.bf16.msra.mxu0 %v6855
    %6957 = vmatpush.bf16.msra.mxu0 %v6851
    %6958 = vmatpush.bf16.msra.mxu0 %v6847
    %6959 = vmatpush.bf16.msra.mxu0 %v6843
    %6960 = vmatmul.bf16.gmra.mxu0 %v6616
    %v6961 = vpop.f32.mrf.mxu0
    %v6962 = vadd.f32 %v6949, %v6961
    %v6963 = vpop.f32.mrf.mxu0
    %6964 = vdwg.mxu0
    %6965 = vmatpush.bf16.msra.mxu0 %v6840
    %6966 = vmatpush.bf16.msra.mxu0 %v6836
    %6967 = vmatpush.bf16.msra.mxu0 %v6832
    %6968 = vmatpush.bf16.msra.mxu0 %v6828
    %6969 = vmatpush.bf16.msra.mxu0 %v6824
    %6970 = vmatpush.bf16.msra.mxu0 %v6820
    %6971 = vmatpush.bf16.msra.mxu0 %v6816
    %6972 = vmatpush.bf16.msra.mxu0 %v6812
    %6973 = vmatmul.bf16.gmra.mxu0 %v6615
    %v6974 = vpop.f32.mrf.mxu0
    %v6975 = vadd.f32 0.0, %v6974
    %v6976 = vpop.f32.mrf.mxu0
    %6977 = vdwg.mxu0
    %6978 = vmatpush.bf16.msra.mxu0 %v6872
    %6979 = vmatpush.bf16.msra.mxu0 %v6868
    %6980 = vmatpush.bf16.msra.mxu0 %v6864
    %6981 = vmatpush.bf16.msra.mxu0 %v6860
    %6982 = vmatpush.bf16.msra.mxu0 %v6856
    %6983 = vmatpush.bf16.msra.mxu0 %v6852
    %6984 = vmatpush.bf16.msra.mxu0 %v6848
    %6985 = vmatpush.bf16.msra.mxu0 %v6844
    %6986 = vmatmul.bf16.gmra.mxu0 %v6616
    %v6987 = vpop.f32.mrf.mxu0
    %v6988 = vadd.f32 %v6975, %v6987
    %v6989 = vpop.f32.mrf.mxu0
    %6990 = vdwg.mxu0
    %6991 = vmatpush.bf16.msra.mxu0 %v6841
    %6992 = vmatpush.bf16.msra.mxu0 %v6837
    %6993 = vmatpush.bf16.msra.mxu0 %v6833
    %6994 = vmatpush.bf16.msra.mxu0 %v6829
    %6995 = vmatpush.bf16.msra.mxu0 %v6825
    %6996 = vmatpush.bf16.msra.mxu0 %v6821
    %6997 = vmatpush.bf16.msra.mxu0 %v6817
    %6998 = vmatpush.bf16.msra.mxu0 %v6813
    %6999 = vmatmul.bf16.gmra.mxu0 %v6615
    %v7000 = vpop.f32.mrf.mxu0
    %v7001 = vadd.f32 0.0, %v7000
    %v7002 = vpop.f32.mrf.mxu0
    %7003 = vdwg.mxu0
    %7004 = vmatpush.bf16.msra.mxu0 %v6873
    %7005 = vmatpush.bf16.msra.mxu0 %v6869
    %7006 = vmatpush.bf16.msra.mxu0 %v6865
    %7007 = vmatpush.bf16.msra.mxu0 %v6861
    %7008 = vmatpush.bf16.msra.mxu0 %v6857
    %7009 = vmatpush.bf16.msra.mxu0 %v6853
    %7010 = vmatpush.bf16.msra.mxu0 %v6849
    %7011 = vmatpush.bf16.msra.mxu0 %v6845
    %7012 = vmatmul.bf16.gmra.mxu0 %v6616
    %v7013 = vpop.f32.mrf.mxu0
    %v7014 = vadd.f32 %v7001, %v7013
    %v7015 = vpop.f32.mrf.mxu0
    %7016 = vdwg.mxu0
    %7017 = vmatpush.bf16.msra.mxu0 %v6842
    %7018 = vmatpush.bf16.msra.mxu0 %v6838
    %7019 = vmatpush.bf16.msra.mxu0 %v6834
    %7020 = vmatpush.bf16.msra.mxu0 %v6830
    %7021 = vmatpush.bf16.msra.mxu0 %v6826
    %7022 = vmatpush.bf16.msra.mxu0 %v6822
    %7023 = vmatpush.bf16.msra.mxu0 %v6818
    %7024 = vmatpush.bf16.msra.mxu0 %v6814
    %7025 = vmatmul.bf16.gmra.mxu0 %v6615
    %v7026 = vpop.f32.mrf.mxu0
    %v7027 = vadd.f32 0.0, %v7026
    %v7028 = vpop.f32.mrf.mxu0
    %7029 = vdwg.mxu0
    %7030 = vmatpush.bf16.msra.mxu0 %v6874
    %7031 = vmatpush.bf16.msra.mxu0 %v6870
    %7032 = vmatpush.bf16.msra.mxu0 %v6866
    %7033 = vmatpush.bf16.msra.mxu0 %v6862
    %7034 = vmatpush.bf16.msra.mxu0 %v6858
    %7035 = vmatpush.bf16.msra.mxu0 %v6854
    %7036 = vmatpush.bf16.msra.mxu0 %v6850
    %7037 = vmatpush.bf16.msra.mxu0 %v6846
    %7038 = vmatmul.bf16.gmra.mxu0 %v6616
    %v7039 = vpop.f32.mrf.mxu0
    %v7040 = vadd.f32 %v7027, %v7039
    %v7041 = vpop.f32.mrf.mxu0
    %7042 = vdwg.mxu0
    %v7044 = vunpack.c.l.b16 %v6479
    %v7045 = vunpack.c.h.b16 %v6479
    %v7046 = vpack.c.b16 %v7044, %v7044
    %v7047 = vpack.c.b16 %v7045, %v7045
    %v7114 = vunpack.c.l.b16 %v6483
    %v7115 = vunpack.c.h.b16 %v6483
    %v7116 = vunpack.c.l.b16 %v6484
    %v7117 = vunpack.c.h.b16 %v6484
    %v7118 = vunpack.c.l.b16 %v6485
    %v7119 = vunpack.c.h.b16 %v6485
    %v7120 = vunpack.c.l.b16 %v6486
    %v7121 = vunpack.c.h.b16 %v6486
    %v7122 = vunpack.c.l.b16 %v6487
    %v7123 = vunpack.c.h.b16 %v6487
    %v7124 = vunpack.c.l.b16 %v6488
    %v7125 = vunpack.c.h.b16 %v6488
    %v7126 = vunpack.c.l.b16 %v6489
    %v7127 = vunpack.c.h.b16 %v6489
    %v7128 = vunpack.c.l.b16 %v6490
    %v7129 = vunpack.c.h.b16 %v6490
    %v7130 = vunpack.c.l.b16 %v6491
    %v7131 = vunpack.c.h.b16 %v6491
    %v7132 = vunpack.c.l.b16 %v6492
    %v7133 = vunpack.c.h.b16 %v6492
    %v7134 = vunpack.c.l.b16 %v6493
    %v7135 = vunpack.c.h.b16 %v6493
    %v7136 = vunpack.c.l.b16 %v6494
    %v7137 = vunpack.c.h.b16 %v6494
    %v7138 = vunpack.c.l.b16 %v6495
    %v7139 = vunpack.c.h.b16 %v6495
    %v7140 = vunpack.c.l.b16 %v6496
    %v7141 = vunpack.c.h.b16 %v6496
    %v7142 = vunpack.c.l.b16 %v6497
    %v7143 = vunpack.c.h.b16 %v6497
    %v7144 = vunpack.c.l.b16 %v6498
    %v7145 = vunpack.c.h.b16 %v6498
    %v7146 = vunpack.c.l.b16 %v6499
    %v7147 = vunpack.c.h.b16 %v6499
    %v7148 = vunpack.c.l.b16 %v6500
    %v7149 = vunpack.c.h.b16 %v6500
    %v7150 = vunpack.c.l.b16 %v6501
    %v7151 = vunpack.c.h.b16 %v6501
    %v7152 = vunpack.c.l.b16 %v6502
    %v7153 = vunpack.c.h.b16 %v6502
    %v7154 = vunpack.c.l.b16 %v6503
    %v7155 = vunpack.c.h.b16 %v6503
    %v7156 = vunpack.c.l.b16 %v6504
    %v7157 = vunpack.c.h.b16 %v6504
    %v7158 = vunpack.c.l.b16 %v6505
    %v7159 = vunpack.c.h.b16 %v6505
    %v7160 = vunpack.c.l.b16 %v6506
    %v7161 = vunpack.c.h.b16 %v6506
    %v7162 = vunpack.c.l.b16 %v6507
    %v7163 = vunpack.c.h.b16 %v6507
    %v7164 = vunpack.c.l.b16 %v6508
    %v7165 = vunpack.c.h.b16 %v6508
    %v7166 = vunpack.c.l.b16 %v6509
    %v7167 = vunpack.c.h.b16 %v6509
    %v7168 = vunpack.c.l.b16 %v6510
    %v7169 = vunpack.c.h.b16 %v6510
    %v7170 = vunpack.c.l.b16 %v6511
    %v7171 = vunpack.c.h.b16 %v6511
    %v7172 = vunpack.c.l.b16 %v6512
    %v7173 = vunpack.c.h.b16 %v6512
    %v7174 = vunpack.c.l.b16 %v6513
    %v7175 = vunpack.c.h.b16 %v6513
    %v7176 = vunpack.c.l.b16 %v6514
    %v7177 = vunpack.c.h.b16 %v6514
    %v7178 = vunpack.c.l.b16 %v6515
    %v7179 = vunpack.c.h.b16 %v6515
    %v7180 = vunpack.c.l.b16 %v6516
    %v7181 = vunpack.c.h.b16 %v6516
    %v7182 = vunpack.c.l.b16 %v6517
    %v7183 = vunpack.c.h.b16 %v6517
    %v7184 = vunpack.c.l.b16 %v6518
    %v7185 = vunpack.c.h.b16 %v6518
    %v7186 = vunpack.c.l.b16 %v6519
    %v7187 = vunpack.c.h.b16 %v6519
    %v7188 = vunpack.c.l.b16 %v6520
    %v7189 = vunpack.c.h.b16 %v6520
    %v7190 = vunpack.c.l.b16 %v6521
    %v7191 = vunpack.c.h.b16 %v6521
    %v7192 = vunpack.c.l.b16 %v6522
    %v7193 = vunpack.c.h.b16 %v6522
    %v7194 = vunpack.c.l.b16 %v6523
    %v7195 = vunpack.c.h.b16 %v6523
    %v7196 = vunpack.c.l.b16 %v6524
    %v7197 = vunpack.c.h.b16 %v6524
    %v7198 = vunpack.c.l.b16 %v6525
    %v7199 = vunpack.c.h.b16 %v6525
    %v7200 = vunpack.c.l.b16 %v6526
    %v7201 = vunpack.c.h.b16 %v6526
    %v7202 = vunpack.c.l.b16 %v6527
    %v7203 = vunpack.c.h.b16 %v6527
    %v7204 = vunpack.c.l.b16 %v6528
    %v7205 = vunpack.c.h.b16 %v6528
    %v7206 = vunpack.c.l.b16 %v6529
    %v7207 = vunpack.c.h.b16 %v6529
    %v7208 = vunpack.c.l.b16 %v6530
    %v7209 = vunpack.c.h.b16 %v6530
    %v7210 = vunpack.c.l.b16 %v6531
    %v7211 = vunpack.c.h.b16 %v6531
    %v7212 = vunpack.c.l.b16 %v6532
    %v7213 = vunpack.c.h.b16 %v6532
    %v7214 = vunpack.c.l.b16 %v6533
    %v7215 = vunpack.c.h.b16 %v6533
    %v7216 = vunpack.c.l.b16 %v6534
    %v7217 = vunpack.c.h.b16 %v6534
    %v7218 = vunpack.c.l.b16 %v6535
    %v7219 = vunpack.c.h.b16 %v6535
    %v7220 = vunpack.c.l.b16 %v6536
    %v7221 = vunpack.c.h.b16 %v6536
    %v7222 = vunpack.c.l.b16 %v6537
    %v7223 = vunpack.c.h.b16 %v6537
    %v7224 = vunpack.c.l.b16 %v6538
    %v7225 = vunpack.c.h.b16 %v6538
    %v7226 = vunpack.c.l.b16 %v6539
    %v7227 = vunpack.c.h.b16 %v6539
    %v7228 = vunpack.c.l.b16 %v6540
    %v7229 = vunpack.c.h.b16 %v6540
    %v7230 = vunpack.c.l.b16 %v6541
    %v7231 = vunpack.c.h.b16 %v6541
    %v7232 = vunpack.c.l.b16 %v6542
    %v7233 = vunpack.c.h.b16 %v6542
    %v7234 = vunpack.c.l.b16 %v6543
    %v7235 = vunpack.c.h.b16 %v6543
    %v7236 = vunpack.c.l.b16 %v6544
    %v7237 = vunpack.c.h.b16 %v6544
    %v7238 = vunpack.c.l.b16 %v6545
    %v7239 = vunpack.c.h.b16 %v6545
    %v7240 = vunpack.c.l.b16 %v6546
    %v7241 = vunpack.c.h.b16 %v6546
    %v7242 = vpack.c.b16 %v7118, %v7114
    %v7243 = vpack.c.b16 %v7119, %v7115
    %v7244 = vpack.c.b16 %v7120, %v7116
    %v7245 = vpack.c.b16 %v7121, %v7117
    %v7246 = vpack.c.b16 %v7126, %v7122
    %v7247 = vpack.c.b16 %v7127, %v7123
    %v7248 = vpack.c.b16 %v7128, %v7124
    %v7249 = vpack.c.b16 %v7129, %v7125
    %v7250 = vpack.c.b16 %v7134, %v7130
    %v7251 = vpack.c.b16 %v7135, %v7131
    %v7252 = vpack.c.b16 %v7136, %v7132
    %v7253 = vpack.c.b16 %v7137, %v7133
    %v7254 = vpack.c.b16 %v7142, %v7138
    %v7255 = vpack.c.b16 %v7143, %v7139
    %v7256 = vpack.c.b16 %v7144, %v7140
    %v7257 = vpack.c.b16 %v7145, %v7141
    %v7258 = vpack.c.b16 %v7150, %v7146
    %v7259 = vpack.c.b16 %v7151, %v7147
    %v7260 = vpack.c.b16 %v7152, %v7148
    %v7261 = vpack.c.b16 %v7153, %v7149
    %v7262 = vpack.c.b16 %v7158, %v7154
    %v7263 = vpack.c.b16 %v7159, %v7155
    %v7264 = vpack.c.b16 %v7160, %v7156
    %v7265 = vpack.c.b16 %v7161, %v7157
    %v7266 = vpack.c.b16 %v7166, %v7162
    %v7267 = vpack.c.b16 %v7167, %v7163
    %v7268 = vpack.c.b16 %v7168, %v7164
    %v7269 = vpack.c.b16 %v7169, %v7165
    %v7270 = vpack.c.b16 %v7174, %v7170
    %v7271 = vpack.c.b16 %v7175, %v7171
    %v7272 = vpack.c.b16 %v7176, %v7172
    %v7273 = vpack.c.b16 %v7177, %v7173
    %v7274 = vpack.c.b16 %v7182, %v7178
    %v7275 = vpack.c.b16 %v7183, %v7179
    %v7276 = vpack.c.b16 %v7184, %v7180
    %v7277 = vpack.c.b16 %v7185, %v7181
    %v7278 = vpack.c.b16 %v7190, %v7186
    %v7279 = vpack.c.b16 %v7191, %v7187
    %v7280 = vpack.c.b16 %v7192, %v7188
    %v7281 = vpack.c.b16 %v7193, %v7189
    %v7282 = vpack.c.b16 %v7198, %v7194
    %v7283 = vpack.c.b16 %v7199, %v7195
    %v7284 = vpack.c.b16 %v7200, %v7196
    %v7285 = vpack.c.b16 %v7201, %v7197
    %v7286 = vpack.c.b16 %v7206, %v7202
    %v7287 = vpack.c.b16 %v7207, %v7203
    %v7288 = vpack.c.b16 %v7208, %v7204
    %v7289 = vpack.c.b16 %v7209, %v7205
    %v7290 = vpack.c.b16 %v7214, %v7210
    %v7291 = vpack.c.b16 %v7215, %v7211
    %v7292 = vpack.c.b16 %v7216, %v7212
    %v7293 = vpack.c.b16 %v7217, %v7213
    %v7294 = vpack.c.b16 %v7222, %v7218
    %v7295 = vpack.c.b16 %v7223, %v7219
    %v7296 = vpack.c.b16 %v7224, %v7220
    %v7297 = vpack.c.b16 %v7225, %v7221
    %v7298 = vpack.c.b16 %v7230, %v7226
    %v7299 = vpack.c.b16 %v7231, %v7227
    %v7300 = vpack.c.b16 %v7232, %v7228
    %v7301 = vpack.c.b16 %v7233, %v7229
    %v7302 = vpack.c.b16 %v7238, %v7234
    %v7303 = vpack.c.b16 %v7239, %v7235
    %v7304 = vpack.c.b16 %v7240, %v7236
    %v7305 = vpack.c.b16 %v7241, %v7237
    %7370 = vmatpush.bf16.msra.mxu0 %v7270
    %7371 = vmatpush.bf16.msra.mxu0 %v7266
    %7372 = vmatpush.bf16.msra.mxu0 %v7262
    %7373 = vmatpush.bf16.msra.mxu0 %v7258
    %7374 = vmatpush.bf16.msra.mxu0 %v7254
    %7375 = vmatpush.bf16.msra.mxu0 %v7250
    %7376 = vmatpush.bf16.msra.mxu0 %v7246
    %7377 = vmatpush.bf16.msra.mxu0 %v7242
    %7378 = vmatmul.bf16.gmra.mxu0 %v7046
    %v7379 = vpop.f32.mrf.mxu0
    %v7380 = vadd.f32 %v6962, %v7379
    %v7381 = vpop.f32.mrf.mxu0
    %7382 = vdwg.mxu0
    %7383 = vmatpush.bf16.msra.mxu0 %v7302
    %7384 = vmatpush.bf16.msra.mxu0 %v7298
    %7385 = vmatpush.bf16.msra.mxu0 %v7294
    %7386 = vmatpush.bf16.msra.mxu0 %v7290
    %7387 = vmatpush.bf16.msra.mxu0 %v7286
    %7388 = vmatpush.bf16.msra.mxu0 %v7282
    %7389 = vmatpush.bf16.msra.mxu0 %v7278
    %7390 = vmatpush.bf16.msra.mxu0 %v7274
    %7391 = vmatmul.bf16.gmra.mxu0 %v7047
    %v7392 = vpop.f32.mrf.mxu0
    %v7393 = vadd.f32 %v7380, %v7392
    %v7394 = vpop.f32.mrf.mxu0
    %7395 = vdwg.mxu0
    %7396 = vmatpush.bf16.msra.mxu0 %v7271
    %7397 = vmatpush.bf16.msra.mxu0 %v7267
    %7398 = vmatpush.bf16.msra.mxu0 %v7263
    %7399 = vmatpush.bf16.msra.mxu0 %v7259
    %7400 = vmatpush.bf16.msra.mxu0 %v7255
    %7401 = vmatpush.bf16.msra.mxu0 %v7251
    %7402 = vmatpush.bf16.msra.mxu0 %v7247
    %7403 = vmatpush.bf16.msra.mxu0 %v7243
    %7404 = vmatmul.bf16.gmra.mxu0 %v7046
    %v7405 = vpop.f32.mrf.mxu0
    %v7406 = vadd.f32 %v6988, %v7405
    %v7407 = vpop.f32.mrf.mxu0
    %7408 = vdwg.mxu0
    %7409 = vmatpush.bf16.msra.mxu0 %v7303
    %7410 = vmatpush.bf16.msra.mxu0 %v7299
    %7411 = vmatpush.bf16.msra.mxu0 %v7295
    %7412 = vmatpush.bf16.msra.mxu0 %v7291
    %7413 = vmatpush.bf16.msra.mxu0 %v7287
    %7414 = vmatpush.bf16.msra.mxu0 %v7283
    %7415 = vmatpush.bf16.msra.mxu0 %v7279
    %7416 = vmatpush.bf16.msra.mxu0 %v7275
    %7417 = vmatmul.bf16.gmra.mxu0 %v7047
    %v7418 = vpop.f32.mrf.mxu0
    %v7419 = vadd.f32 %v7406, %v7418
    %v7420 = vpop.f32.mrf.mxu0
    %7421 = vdwg.mxu0
    %7422 = vmatpush.bf16.msra.mxu0 %v7272
    %7423 = vmatpush.bf16.msra.mxu0 %v7268
    %7424 = vmatpush.bf16.msra.mxu0 %v7264
    %7425 = vmatpush.bf16.msra.mxu0 %v7260
    %7426 = vmatpush.bf16.msra.mxu0 %v7256
    %7427 = vmatpush.bf16.msra.mxu0 %v7252
    %7428 = vmatpush.bf16.msra.mxu0 %v7248
    %7429 = vmatpush.bf16.msra.mxu0 %v7244
    %7430 = vmatmul.bf16.gmra.mxu0 %v7046
    %v7431 = vpop.f32.mrf.mxu0
    %v7432 = vadd.f32 %v7014, %v7431
    %v7433 = vpop.f32.mrf.mxu0
    %7434 = vdwg.mxu0
    %7435 = vmatpush.bf16.msra.mxu0 %v7304
    %7436 = vmatpush.bf16.msra.mxu0 %v7300
    %7437 = vmatpush.bf16.msra.mxu0 %v7296
    %7438 = vmatpush.bf16.msra.mxu0 %v7292
    %7439 = vmatpush.bf16.msra.mxu0 %v7288
    %7440 = vmatpush.bf16.msra.mxu0 %v7284
    %7441 = vmatpush.bf16.msra.mxu0 %v7280
    %7442 = vmatpush.bf16.msra.mxu0 %v7276
    %7443 = vmatmul.bf16.gmra.mxu0 %v7047
    %v7444 = vpop.f32.mrf.mxu0
    %v7445 = vadd.f32 %v7432, %v7444
    %v7446 = vpop.f32.mrf.mxu0
    %7447 = vdwg.mxu0
    %7448 = vmatpush.bf16.msra.mxu0 %v7273
    %7449 = vmatpush.bf16.msra.mxu0 %v7269
    %7450 = vmatpush.bf16.msra.mxu0 %v7265
    %7451 = vmatpush.bf16.msra.mxu0 %v7261
    %7452 = vmatpush.bf16.msra.mxu0 %v7257
    %7453 = vmatpush.bf16.msra.mxu0 %v7253
    %7454 = vmatpush.bf16.msra.mxu0 %v7249
    %7455 = vmatpush.bf16.msra.mxu0 %v7245
    %7456 = vmatmul.bf16.gmra.mxu0 %v7046
    %v7457 = vpop.f32.mrf.mxu0
    %v7458 = vadd.f32 %v7040, %v7457
    %v7459 = vpop.f32.mrf.mxu0
    %7460 = vdwg.mxu0
    %7461 = vmatpush.bf16.msra.mxu0 %v7305
    %7462 = vmatpush.bf16.msra.mxu0 %v7301
    %7463 = vmatpush.bf16.msra.mxu0 %v7297
    %7464 = vmatpush.bf16.msra.mxu0 %v7293
    %7465 = vmatpush.bf16.msra.mxu0 %v7289
    %7466 = vmatpush.bf16.msra.mxu0 %v7285
    %7467 = vmatpush.bf16.msra.mxu0 %v7281
    %7468 = vmatpush.bf16.msra.mxu0 %v7277
    %7469 = vmatmul.bf16.gmra.mxu0 %v7047
    %v7470 = vpop.f32.mrf.mxu0
    %v7471 = vadd.f32 %v7458, %v7470
    %v7472 = vpop.f32.mrf.mxu0
    %7473 = vdwg.mxu0
    %s7474 = scalar_lea.vmem %s5, 1024
    %v7475 = vld [vmem:[%s7474] sm:$0xff]
    %v7476 = vld [vmem:[%s7474 + $0x8] sm:$0xff]
    %v7477 = vld [vmem:[%s7474 + $0x10] sm:$0xff]
    %v7478 = vld [vmem:[%s7474 + $0x18] sm:$0xff]
    %v7479 = vld [vmem:[%s7474 + $0x20] sm:$0xff]
    %v7480 = vld [vmem:[%s7474 + $0x28] sm:$0xff]
    %v7481 = vld [vmem:[%s7474 + $0x30] sm:$0xff]
    %v7482 = vld [vmem:[%s7474 + $0x38] sm:$0xff]
    %v7483 = vld [vmem:[%s7474 + $0x40] sm:$0xff]
    %v7484 = vld [vmem:[%s7474 + $0x48] sm:$0xff]
    %v7485 = vld [vmem:[%s7474 + $0x50] sm:$0xff]
    %v7486 = vld [vmem:[%s7474 + $0x58] sm:$0xff]
    %v7487 = vld [vmem:[%s7474 + $0x60] sm:$0xff]
    %v7488 = vld [vmem:[%s7474 + $0x68] sm:$0xff]
    %v7489 = vld [vmem:[%s7474 + $0x70] sm:$0xff]
    %v7490 = vld [vmem:[%s7474 + $0x78] sm:$0xff]
    %v7491 = vld [vmem:[%s7474 + $0x80] sm:$0xff]
    %v7492 = vld [vmem:[%s7474 + $0x88] sm:$0xff]
    %v7493 = vld [vmem:[%s7474 + $0x90] sm:$0xff]
    %v7494 = vld [vmem:[%s7474 + $0x98] sm:$0xff]
    %v7495 = vld [vmem:[%s7474 + $0xa0] sm:$0xff]
    %v7496 = vld [vmem:[%s7474 + $0xa8] sm:$0xff]
    %v7497 = vld [vmem:[%s7474 + $0xb0] sm:$0xff]
    %v7498 = vld [vmem:[%s7474 + $0xb8] sm:$0xff]
    %v7499 = vld [vmem:[%s7474 + $0xc0] sm:$0xff]
    %v7500 = vld [vmem:[%s7474 + $0xc8] sm:$0xff]
    %v7501 = vld [vmem:[%s7474 + $0xd0] sm:$0xff]
    %v7502 = vld [vmem:[%s7474 + $0xd8] sm:$0xff]
    %v7503 = vld [vmem:[%s7474 + $0xe0] sm:$0xff]
    %v7504 = vld [vmem:[%s7474 + $0xe8] sm:$0xff]
    %v7505 = vld [vmem:[%s7474 + $0xf0] sm:$0xff]
    %v7506 = vld [vmem:[%s7474 + $0xf8] sm:$0xff]
    %v7507 = vld [vmem:[%s7474 + $0x100] sm:$0xff]
    %v7508 = vld [vmem:[%s7474 + $0x108] sm:$0xff]
    %v7509 = vld [vmem:[%s7474 + $0x110] sm:$0xff]
    %v7510 = vld [vmem:[%s7474 + $0x118] sm:$0xff]
    %v7511 = vld [vmem:[%s7474 + $0x120] sm:$0xff]
    %v7512 = vld [vmem:[%s7474 + $0x128] sm:$0xff]
    %v7513 = vld [vmem:[%s7474 + $0x130] sm:$0xff]
    %v7514 = vld [vmem:[%s7474 + $0x138] sm:$0xff]
    %v7515 = vld [vmem:[%s7474 + $0x140] sm:$0xff]
    %v7516 = vld [vmem:[%s7474 + $0x148] sm:$0xff]
    %v7517 = vld [vmem:[%s7474 + $0x150] sm:$0xff]
    %v7518 = vld [vmem:[%s7474 + $0x158] sm:$0xff]
    %v7519 = vld [vmem:[%s7474 + $0x160] sm:$0xff]
    %v7520 = vld [vmem:[%s7474 + $0x168] sm:$0xff]
    %v7521 = vld [vmem:[%s7474 + $0x170] sm:$0xff]
    %v7522 = vld [vmem:[%s7474 + $0x178] sm:$0xff]
    %v7523 = vld [vmem:[%s7474 + $0x180] sm:$0xff]
    %v7524 = vld [vmem:[%s7474 + $0x188] sm:$0xff]
    %v7525 = vld [vmem:[%s7474 + $0x190] sm:$0xff]
    %v7526 = vld [vmem:[%s7474 + $0x198] sm:$0xff]
    %v7527 = vld [vmem:[%s7474 + $0x1a0] sm:$0xff]
    %v7528 = vld [vmem:[%s7474 + $0x1a8] sm:$0xff]
    %v7529 = vld [vmem:[%s7474 + $0x1b0] sm:$0xff]
    %v7530 = vld [vmem:[%s7474 + $0x1b8] sm:$0xff]
    %v7531 = vld [vmem:[%s7474 + $0x1c0] sm:$0xff]
    %v7532 = vld [vmem:[%s7474 + $0x1c8] sm:$0xff]
    %v7533 = vld [vmem:[%s7474 + $0x1d0] sm:$0xff]
    %v7534 = vld [vmem:[%s7474 + $0x1d8] sm:$0xff]
    %v7535 = vld [vmem:[%s7474 + $0x1e0] sm:$0xff]
    %v7536 = vld [vmem:[%s7474 + $0x1e8] sm:$0xff]
    %v7537 = vld [vmem:[%s7474 + $0x1f0] sm:$0xff]
    %v7538 = vld [vmem:[%s7474 + $0x1f8] sm:$0xff]
    %v7540 = vunpack.c.l.b16 %v6481
    %v7541 = vunpack.c.h.b16 %v6481
    %v7542 = vpack.c.b16 %v7540, %v7540
    %v7543 = vpack.c.b16 %v7541, %v7541
    %v7610 = vunpack.c.l.b16 %v7475
    %v7611 = vunpack.c.h.b16 %v7475
    %v7612 = vunpack.c.l.b16 %v7476
    %v7613 = vunpack.c.h.b16 %v7476
    %v7614 = vunpack.c.l.b16 %v7477
    %v7615 = vunpack.c.h.b16 %v7477
    %v7616 = vunpack.c.l.b16 %v7478
    %v7617 = vunpack.c.h.b16 %v7478
    %v7618 = vunpack.c.l.b16 %v7479
    %v7619 = vunpack.c.h.b16 %v7479
    %v7620 = vunpack.c.l.b16 %v7480
    %v7621 = vunpack.c.h.b16 %v7480
    %v7622 = vunpack.c.l.b16 %v7481
    %v7623 = vunpack.c.h.b16 %v7481
    %v7624 = vunpack.c.l.b16 %v7482
    %v7625 = vunpack.c.h.b16 %v7482
    %v7626 = vunpack.c.l.b16 %v7483
    %v7627 = vunpack.c.h.b16 %v7483
    %v7628 = vunpack.c.l.b16 %v7484
    %v7629 = vunpack.c.h.b16 %v7484
    %v7630 = vunpack.c.l.b16 %v7485
    %v7631 = vunpack.c.h.b16 %v7485
    %v7632 = vunpack.c.l.b16 %v7486
    %v7633 = vunpack.c.h.b16 %v7486
    %v7634 = vunpack.c.l.b16 %v7487
    %v7635 = vunpack.c.h.b16 %v7487
    %v7636 = vunpack.c.l.b16 %v7488
    %v7637 = vunpack.c.h.b16 %v7488
    %v7638 = vunpack.c.l.b16 %v7489
    %v7639 = vunpack.c.h.b16 %v7489
    %v7640 = vunpack.c.l.b16 %v7490
    %v7641 = vunpack.c.h.b16 %v7490
    %v7642 = vunpack.c.l.b16 %v7491
    %v7643 = vunpack.c.h.b16 %v7491
    %v7644 = vunpack.c.l.b16 %v7492
    %v7645 = vunpack.c.h.b16 %v7492
    %v7646 = vunpack.c.l.b16 %v7493
    %v7647 = vunpack.c.h.b16 %v7493
    %v7648 = vunpack.c.l.b16 %v7494
    %v7649 = vunpack.c.h.b16 %v7494
    %v7650 = vunpack.c.l.b16 %v7495
    %v7651 = vunpack.c.h.b16 %v7495
    %v7652 = vunpack.c.l.b16 %v7496
    %v7653 = vunpack.c.h.b16 %v7496
    %v7654 = vunpack.c.l.b16 %v7497
    %v7655 = vunpack.c.h.b16 %v7497
    %v7656 = vunpack.c.l.b16 %v7498
    %v7657 = vunpack.c.h.b16 %v7498
    %v7658 = vunpack.c.l.b16 %v7499
    %v7659 = vunpack.c.h.b16 %v7499
    %v7660 = vunpack.c.l.b16 %v7500
    %v7661 = vunpack.c.h.b16 %v7500
    %v7662 = vunpack.c.l.b16 %v7501
    %v7663 = vunpack.c.h.b16 %v7501
    %v7664 = vunpack.c.l.b16 %v7502
    %v7665 = vunpack.c.h.b16 %v7502
    %v7666 = vunpack.c.l.b16 %v7503
    %v7667 = vunpack.c.h.b16 %v7503
    %v7668 = vunpack.c.l.b16 %v7504
    %v7669 = vunpack.c.h.b16 %v7504
    %v7670 = vunpack.c.l.b16 %v7505
    %v7671 = vunpack.c.h.b16 %v7505
    %v7672 = vunpack.c.l.b16 %v7506
    %v7673 = vunpack.c.h.b16 %v7506
    %v7674 = vunpack.c.l.b16 %v7507
    %v7675 = vunpack.c.h.b16 %v7507
    %v7676 = vunpack.c.l.b16 %v7508
    %v7677 = vunpack.c.h.b16 %v7508
    %v7678 = vunpack.c.l.b16 %v7509
    %v7679 = vunpack.c.h.b16 %v7509
    %v7680 = vunpack.c.l.b16 %v7510
    %v7681 = vunpack.c.h.b16 %v7510
    %v7682 = vunpack.c.l.b16 %v7511
    %v7683 = vunpack.c.h.b16 %v7511
    %v7684 = vunpack.c.l.b16 %v7512
    %v7685 = vunpack.c.h.b16 %v7512
    %v7686 = vunpack.c.l.b16 %v7513
    %v7687 = vunpack.c.h.b16 %v7513
    %v7688 = vunpack.c.l.b16 %v7514
    %v7689 = vunpack.c.h.b16 %v7514
    %v7690 = vunpack.c.l.b16 %v7515
    %v7691 = vunpack.c.h.b16 %v7515
    %v7692 = vunpack.c.l.b16 %v7516
    %v7693 = vunpack.c.h.b16 %v7516
    %v7694 = vunpack.c.l.b16 %v7517
    %v7695 = vunpack.c.h.b16 %v7517
    %v7696 = vunpack.c.l.b16 %v7518
    %v7697 = vunpack.c.h.b16 %v7518
    %v7698 = vunpack.c.l.b16 %v7519
    %v7699 = vunpack.c.h.b16 %v7519
    %v7700 = vunpack.c.l.b16 %v7520
    %v7701 = vunpack.c.h.b16 %v7520
    %v7702 = vunpack.c.l.b16 %v7521
    %v7703 = vunpack.c.h.b16 %v7521
    %v7704 = vunpack.c.l.b16 %v7522
    %v7705 = vunpack.c.h.b16 %v7522
    %v7706 = vunpack.c.l.b16 %v7523
    %v7707 = vunpack.c.h.b16 %v7523
    %v7708 = vunpack.c.l.b16 %v7524
    %v7709 = vunpack.c.h.b16 %v7524
    %v7710 = vunpack.c.l.b16 %v7525
    %v7711 = vunpack.c.h.b16 %v7525
    %v7712 = vunpack.c.l.b16 %v7526
    %v7713 = vunpack.c.h.b16 %v7526
    %v7714 = vunpack.c.l.b16 %v7527
    %v7715 = vunpack.c.h.b16 %v7527
    %v7716 = vunpack.c.l.b16 %v7528
    %v7717 = vunpack.c.h.b16 %v7528
    %v7718 = vunpack.c.l.b16 %v7529
    %v7719 = vunpack.c.h.b16 %v7529
    %v7720 = vunpack.c.l.b16 %v7530
    %v7721 = vunpack.c.h.b16 %v7530
    %v7722 = vunpack.c.l.b16 %v7531
    %v7723 = vunpack.c.h.b16 %v7531
    %v7724 = vunpack.c.l.b16 %v7532
    %v7725 = vunpack.c.h.b16 %v7532
    %v7726 = vunpack.c.l.b16 %v7533
    %v7727 = vunpack.c.h.b16 %v7533
    %v7728 = vunpack.c.l.b16 %v7534
    %v7729 = vunpack.c.h.b16 %v7534
    %v7730 = vunpack.c.l.b16 %v7535
    %v7731 = vunpack.c.h.b16 %v7535
    %v7732 = vunpack.c.l.b16 %v7536
    %v7733 = vunpack.c.h.b16 %v7536
    %v7734 = vunpack.c.l.b16 %v7537
    %v7735 = vunpack.c.h.b16 %v7537
    %v7736 = vunpack.c.l.b16 %v7538
    %v7737 = vunpack.c.h.b16 %v7538
    %v7738 = vpack.c.b16 %v7614, %v7610
    %v7739 = vpack.c.b16 %v7615, %v7611
    %v7740 = vpack.c.b16 %v7616, %v7612
    %v7741 = vpack.c.b16 %v7617, %v7613
    %v7742 = vpack.c.b16 %v7622, %v7618
    %v7743 = vpack.c.b16 %v7623, %v7619
    %v7744 = vpack.c.b16 %v7624, %v7620
    %v7745 = vpack.c.b16 %v7625, %v7621
    %v7746 = vpack.c.b16 %v7630, %v7626
    %v7747 = vpack.c.b16 %v7631, %v7627
    %v7748 = vpack.c.b16 %v7632, %v7628
    %v7749 = vpack.c.b16 %v7633, %v7629
    %v7750 = vpack.c.b16 %v7638, %v7634
    %v7751 = vpack.c.b16 %v7639, %v7635
    %v7752 = vpack.c.b16 %v7640, %v7636
    %v7753 = vpack.c.b16 %v7641, %v7637
    %v7754 = vpack.c.b16 %v7646, %v7642
    %v7755 = vpack.c.b16 %v7647, %v7643
    %v7756 = vpack.c.b16 %v7648, %v7644
    %v7757 = vpack.c.b16 %v7649, %v7645
    %v7758 = vpack.c.b16 %v7654, %v7650
    %v7759 = vpack.c.b16 %v7655, %v7651
    %v7760 = vpack.c.b16 %v7656, %v7652
    %v7761 = vpack.c.b16 %v7657, %v7653
    %v7762 = vpack.c.b16 %v7662, %v7658
    %v7763 = vpack.c.b16 %v7663, %v7659
    %v7764 = vpack.c.b16 %v7664, %v7660
    %v7765 = vpack.c.b16 %v7665, %v7661
    %v7766 = vpack.c.b16 %v7670, %v7666
    %v7767 = vpack.c.b16 %v7671, %v7667
    %v7768 = vpack.c.b16 %v7672, %v7668
    %v7769 = vpack.c.b16 %v7673, %v7669
    %v7770 = vpack.c.b16 %v7678, %v7674
    %v7771 = vpack.c.b16 %v7679, %v7675
    %v7772 = vpack.c.b16 %v7680, %v7676
    %v7773 = vpack.c.b16 %v7681, %v7677
    %v7774 = vpack.c.b16 %v7686, %v7682
    %v7775 = vpack.c.b16 %v7687, %v7683
    %v7776 = vpack.c.b16 %v7688, %v7684
    %v7777 = vpack.c.b16 %v7689, %v7685
    %v7778 = vpack.c.b16 %v7694, %v7690
    %v7779 = vpack.c.b16 %v7695, %v7691
    %v7780 = vpack.c.b16 %v7696, %v7692
    %v7781 = vpack.c.b16 %v7697, %v7693
    %v7782 = vpack.c.b16 %v7702, %v7698
    %v7783 = vpack.c.b16 %v7703, %v7699
    %v7784 = vpack.c.b16 %v7704, %v7700
    %v7785 = vpack.c.b16 %v7705, %v7701
    %v7786 = vpack.c.b16 %v7710, %v7706
    %v7787 = vpack.c.b16 %v7711, %v7707
    %v7788 = vpack.c.b16 %v7712, %v7708
    %v7789 = vpack.c.b16 %v7713, %v7709
    %v7790 = vpack.c.b16 %v7718, %v7714
    %v7791 = vpack.c.b16 %v7719, %v7715
    %v7792 = vpack.c.b16 %v7720, %v7716
    %v7793 = vpack.c.b16 %v7721, %v7717
    %v7794 = vpack.c.b16 %v7726, %v7722
    %v7795 = vpack.c.b16 %v7727, %v7723
    %v7796 = vpack.c.b16 %v7728, %v7724
    %v7797 = vpack.c.b16 %v7729, %v7725
    %v7798 = vpack.c.b16 %v7734, %v7730
    %v7799 = vpack.c.b16 %v7735, %v7731
    %v7800 = vpack.c.b16 %v7736, %v7732
    %v7801 = vpack.c.b16 %v7737, %v7733
    %7866 = vmatpush.bf16.msra.mxu0 %v7766
    %7867 = vmatpush.bf16.msra.mxu0 %v7762
    %7868 = vmatpush.bf16.msra.mxu0 %v7758
    %7869 = vmatpush.bf16.msra.mxu0 %v7754
    %7870 = vmatpush.bf16.msra.mxu0 %v7750
    %7871 = vmatpush.bf16.msra.mxu0 %v7746
    %7872 = vmatpush.bf16.msra.mxu0 %v7742
    %7873 = vmatpush.bf16.msra.mxu0 %v7738
    %7874 = vmatmul.bf16.gmra.mxu0 %v7542
    %v7875 = vpop.f32.mrf.mxu0
    %v7876 = vadd.f32 0.0, %v7875
    %v7877 = vpop.f32.mrf.mxu0
    %7878 = vdwg.mxu0
    %7879 = vmatpush.bf16.msra.mxu0 %v7798
    %7880 = vmatpush.bf16.msra.mxu0 %v7794
    %7881 = vmatpush.bf16.msra.mxu0 %v7790
    %7882 = vmatpush.bf16.msra.mxu0 %v7786
    %7883 = vmatpush.bf16.msra.mxu0 %v7782
    %7884 = vmatpush.bf16.msra.mxu0 %v7778
    %7885 = vmatpush.bf16.msra.mxu0 %v7774
    %7886 = vmatpush.bf16.msra.mxu0 %v7770
    %7887 = vmatmul.bf16.gmra.mxu0 %v7543
    %v7888 = vpop.f32.mrf.mxu0
    %v7889 = vadd.f32 %v7876, %v7888
    %v7890 = vpop.f32.mrf.mxu0
    %7891 = vdwg.mxu0
    %7892 = vmatpush.bf16.msra.mxu0 %v7767
    %7893 = vmatpush.bf16.msra.mxu0 %v7763
    %7894 = vmatpush.bf16.msra.mxu0 %v7759
    %7895 = vmatpush.bf16.msra.mxu0 %v7755
    %7896 = vmatpush.bf16.msra.mxu0 %v7751
    %7897 = vmatpush.bf16.msra.mxu0 %v7747
    %7898 = vmatpush.bf16.msra.mxu0 %v7743
    %7899 = vmatpush.bf16.msra.mxu0 %v7739
    %7900 = vmatmul.bf16.gmra.mxu0 %v7542
    %v7901 = vpop.f32.mrf.mxu0
    %v7902 = vadd.f32 0.0, %v7901
    %v7903 = vpop.f32.mrf.mxu0
    %7904 = vdwg.mxu0
    %7905 = vmatpush.bf16.msra.mxu0 %v7799
    %7906 = vmatpush.bf16.msra.mxu0 %v7795
    %7907 = vmatpush.bf16.msra.mxu0 %v7791
    %7908 = vmatpush.bf16.msra.mxu0 %v7787
    %7909 = vmatpush.bf16.msra.mxu0 %v7783
    %7910 = vmatpush.bf16.msra.mxu0 %v7779
    %7911 = vmatpush.bf16.msra.mxu0 %v7775
    %7912 = vmatpush.bf16.msra.mxu0 %v7771
    %7913 = vmatmul.bf16.gmra.mxu0 %v7543
    %v7914 = vpop.f32.mrf.mxu0
    %v7915 = vadd.f32 %v7902, %v7914
    %v7916 = vpop.f32.mrf.mxu0
    %7917 = vdwg.mxu0
    %7918 = vmatpush.bf16.msra.mxu0 %v7768
    %7919 = vmatpush.bf16.msra.mxu0 %v7764
    %7920 = vmatpush.bf16.msra.mxu0 %v7760
    %7921 = vmatpush.bf16.msra.mxu0 %v7756
    %7922 = vmatpush.bf16.msra.mxu0 %v7752
    %7923 = vmatpush.bf16.msra.mxu0 %v7748
    %7924 = vmatpush.bf16.msra.mxu0 %v7744
    %7925 = vmatpush.bf16.msra.mxu0 %v7740
    %7926 = vmatmul.bf16.gmra.mxu0 %v7542
    %v7927 = vpop.f32.mrf.mxu0
    %v7928 = vadd.f32 0.0, %v7927
    %v7929 = vpop.f32.mrf.mxu0
    %7930 = vdwg.mxu0
    %7931 = vmatpush.bf16.msra.mxu0 %v7800
    %7932 = vmatpush.bf16.msra.mxu0 %v7796
    %7933 = vmatpush.bf16.msra.mxu0 %v7792
    %7934 = vmatpush.bf16.msra.mxu0 %v7788
    %7935 = vmatpush.bf16.msra.mxu0 %v7784
    %7936 = vmatpush.bf16.msra.mxu0 %v7780
    %7937 = vmatpush.bf16.msra.mxu0 %v7776
    %7938 = vmatpush.bf16.msra.mxu0 %v7772
    %7939 = vmatmul.bf16.gmra.mxu0 %v7543
    %v7940 = vpop.f32.mrf.mxu0
    %v7941 = vadd.f32 %v7928, %v7940
    %v7942 = vpop.f32.mrf.mxu0
    %7943 = vdwg.mxu0
    %7944 = vmatpush.bf16.msra.mxu0 %v7769
    %7945 = vmatpush.bf16.msra.mxu0 %v7765
    %7946 = vmatpush.bf16.msra.mxu0 %v7761
    %7947 = vmatpush.bf16.msra.mxu0 %v7757
    %7948 = vmatpush.bf16.msra.mxu0 %v7753
    %7949 = vmatpush.bf16.msra.mxu0 %v7749
    %7950 = vmatpush.bf16.msra.mxu0 %v7745
    %7951 = vmatpush.bf16.msra.mxu0 %v7741
    %7952 = vmatmul.bf16.gmra.mxu0 %v7542
    %v7953 = vpop.f32.mrf.mxu0
    %v7954 = vadd.f32 0.0, %v7953
    %v7955 = vpop.f32.mrf.mxu0
    %7956 = vdwg.mxu0
    %7957 = vmatpush.bf16.msra.mxu0 %v7801
    %7958 = vmatpush.bf16.msra.mxu0 %v7797
    %7959 = vmatpush.bf16.msra.mxu0 %v7793
    %7960 = vmatpush.bf16.msra.mxu0 %v7789
    %7961 = vmatpush.bf16.msra.mxu0 %v7785
    %7962 = vmatpush.bf16.msra.mxu0 %v7781
    %7963 = vmatpush.bf16.msra.mxu0 %v7777
    %7964 = vmatpush.bf16.msra.mxu0 %v7773
    %7965 = vmatmul.bf16.gmra.mxu0 %v7543
    %v7966 = vpop.f32.mrf.mxu0
    %v7967 = vadd.f32 %v7954, %v7966
    %v7968 = vpop.f32.mrf.mxu0
    %7969 = vdwg.mxu0
    %v7970 = vadd.f32 %v7393, %v7889
    %v7971 = vadd.f32 %v7419, %v7915
    %v7972 = vadd.f32 %v7445, %v7941
    %v7973 = vadd.f32 %v7471, %v7967
    %s7974 = scalar_lea.vmem %s5, 1536
    %v7975 = vld [vmem:[%s7974] sm:$0xff]
    %v7976 = vld [vmem:[%s7974 + $0x8] sm:$0xff]
    %v7977 = vld [vmem:[%s7974 + $0x10] sm:$0xff]
    %v7978 = vld [vmem:[%s7974 + $0x18] sm:$0xff]
    %v7979 = vld [vmem:[%s7974 + $0x20] sm:$0xff]
    %v7980 = vld [vmem:[%s7974 + $0x28] sm:$0xff]
    %v7981 = vld [vmem:[%s7974 + $0x30] sm:$0xff]
    %v7982 = vld [vmem:[%s7974 + $0x38] sm:$0xff]
    %v7983 = vld [vmem:[%s7974 + $0x40] sm:$0xff]
    %v7984 = vld [vmem:[%s7974 + $0x48] sm:$0xff]
    %v7985 = vld [vmem:[%s7974 + $0x50] sm:$0xff]
    %v7986 = vld [vmem:[%s7974 + $0x58] sm:$0xff]
    %v7987 = vld [vmem:[%s7974 + $0x60] sm:$0xff]
    %v7988 = vld [vmem:[%s7974 + $0x68] sm:$0xff]
    %v7989 = vld [vmem:[%s7974 + $0x70] sm:$0xff]
    %v7990 = vld [vmem:[%s7974 + $0x78] sm:$0xff]
    %v7991 = vld [vmem:[%s7974 + $0x80] sm:$0xff]
    %v7992 = vld [vmem:[%s7974 + $0x88] sm:$0xff]
    %v7993 = vld [vmem:[%s7974 + $0x90] sm:$0xff]
    %v7994 = vld [vmem:[%s7974 + $0x98] sm:$0xff]
    %v7995 = vld [vmem:[%s7974 + $0xa0] sm:$0xff]
    %v7996 = vld [vmem:[%s7974 + $0xa8] sm:$0xff]
    %v7997 = vld [vmem:[%s7974 + $0xb0] sm:$0xff]
    %v7998 = vld [vmem:[%s7974 + $0xb8] sm:$0xff]
    %v7999 = vld [vmem:[%s7974 + $0xc0] sm:$0xff]
    %v8000 = vld [vmem:[%s7974 + $0xc8] sm:$0xff]
    %v8001 = vld [vmem:[%s7974 + $0xd0] sm:$0xff]
    %v8002 = vld [vmem:[%s7974 + $0xd8] sm:$0xff]
    %v8003 = vld [vmem:[%s7974 + $0xe0] sm:$0xff]
    %v8004 = vld [vmem:[%s7974 + $0xe8] sm:$0xff]
    %v8005 = vld [vmem:[%s7974 + $0xf0] sm:$0xff]
    %v8006 = vld [vmem:[%s7974 + $0xf8] sm:$0xff]
    %v8007 = vld [vmem:[%s7974 + $0x100] sm:$0xff]
    %v8008 = vld [vmem:[%s7974 + $0x108] sm:$0xff]
    %v8009 = vld [vmem:[%s7974 + $0x110] sm:$0xff]
    %v8010 = vld [vmem:[%s7974 + $0x118] sm:$0xff]
    %v8011 = vld [vmem:[%s7974 + $0x120] sm:$0xff]
    %v8012 = vld [vmem:[%s7974 + $0x128] sm:$0xff]
    %v8013 = vld [vmem:[%s7974 + $0x130] sm:$0xff]
    %v8014 = vld [vmem:[%s7974 + $0x138] sm:$0xff]
    %v8015 = vld [vmem:[%s7974 + $0x140] sm:$0xff]
    %v8016 = vld [vmem:[%s7974 + $0x148] sm:$0xff]
    %v8017 = vld [vmem:[%s7974 + $0x150] sm:$0xff]
    %v8018 = vld [vmem:[%s7974 + $0x158] sm:$0xff]
    %v8019 = vld [vmem:[%s7974 + $0x160] sm:$0xff]
    %v8020 = vld [vmem:[%s7974 + $0x168] sm:$0xff]
    %v8021 = vld [vmem:[%s7974 + $0x170] sm:$0xff]
    %v8022 = vld [vmem:[%s7974 + $0x178] sm:$0xff]
    %v8023 = vld [vmem:[%s7974 + $0x180] sm:$0xff]
    %v8024 = vld [vmem:[%s7974 + $0x188] sm:$0xff]
    %v8025 = vld [vmem:[%s7974 + $0x190] sm:$0xff]
    %v8026 = vld [vmem:[%s7974 + $0x198] sm:$0xff]
    %v8027 = vld [vmem:[%s7974 + $0x1a0] sm:$0xff]
    %v8028 = vld [vmem:[%s7974 + $0x1a8] sm:$0xff]
    %v8029 = vld [vmem:[%s7974 + $0x1b0] sm:$0xff]
    %v8030 = vld [vmem:[%s7974 + $0x1b8] sm:$0xff]
    %v8031 = vld [vmem:[%s7974 + $0x1c0] sm:$0xff]
    %v8032 = vld [vmem:[%s7974 + $0x1c8] sm:$0xff]
    %v8033 = vld [vmem:[%s7974 + $0x1d0] sm:$0xff]
    %v8034 = vld [vmem:[%s7974 + $0x1d8] sm:$0xff]
    %v8035 = vld [vmem:[%s7974 + $0x1e0] sm:$0xff]
    %v8036 = vld [vmem:[%s7974 + $0x1e8] sm:$0xff]
    %v8037 = vld [vmem:[%s7974 + $0x1f0] sm:$0xff]
    %v8038 = vld [vmem:[%s7974 + $0x1f8] sm:$0xff]
    %v8040 = vunpack.c.l.b16 %v6482
    %v8041 = vunpack.c.h.b16 %v6482
    %v8042 = vpack.c.b16 %v8040, %v8040
    %v8043 = vpack.c.b16 %v8041, %v8041
    %v8110 = vunpack.c.l.b16 %v7975
    %v8111 = vunpack.c.h.b16 %v7975
    %v8112 = vunpack.c.l.b16 %v7976
    %v8113 = vunpack.c.h.b16 %v7976
    %v8114 = vunpack.c.l.b16 %v7977
    %v8115 = vunpack.c.h.b16 %v7977
    %v8116 = vunpack.c.l.b16 %v7978
    %v8117 = vunpack.c.h.b16 %v7978
    %v8118 = vunpack.c.l.b16 %v7979
    %v8119 = vunpack.c.h.b16 %v7979
    %v8120 = vunpack.c.l.b16 %v7980
    %v8121 = vunpack.c.h.b16 %v7980
    %v8122 = vunpack.c.l.b16 %v7981
    %v8123 = vunpack.c.h.b16 %v7981
    %v8124 = vunpack.c.l.b16 %v7982
    %v8125 = vunpack.c.h.b16 %v7982
    %v8126 = vunpack.c.l.b16 %v7983
    %v8127 = vunpack.c.h.b16 %v7983
    %v8128 = vunpack.c.l.b16 %v7984
    %v8129 = vunpack.c.h.b16 %v7984
    %v8130 = vunpack.c.l.b16 %v7985
    %v8131 = vunpack.c.h.b16 %v7985
    %v8132 = vunpack.c.l.b16 %v7986
    %v8133 = vunpack.c.h.b16 %v7986
    %v8134 = vunpack.c.l.b16 %v7987
    %v8135 = vunpack.c.h.b16 %v7987
    %v8136 = vunpack.c.l.b16 %v7988
    %v8137 = vunpack.c.h.b16 %v7988
    %v8138 = vunpack.c.l.b16 %v7989
    %v8139 = vunpack.c.h.b16 %v7989
    %v8140 = vunpack.c.l.b16 %v7990
    %v8141 = vunpack.c.h.b16 %v7990
    %v8142 = vunpack.c.l.b16 %v7991
    %v8143 = vunpack.c.h.b16 %v7991
    %v8144 = vunpack.c.l.b16 %v7992
    %v8145 = vunpack.c.h.b16 %v7992
    %v8146 = vunpack.c.l.b16 %v7993
    %v8147 = vunpack.c.h.b16 %v7993
    %v8148 = vunpack.c.l.b16 %v7994
    %v8149 = vunpack.c.h.b16 %v7994
    %v8150 = vunpack.c.l.b16 %v7995
    %v8151 = vunpack.c.h.b16 %v7995
    %v8152 = vunpack.c.l.b16 %v7996
    %v8153 = vunpack.c.h.b16 %v7996
    %v8154 = vunpack.c.l.b16 %v7997
    %v8155 = vunpack.c.h.b16 %v7997
    %v8156 = vunpack.c.l.b16 %v7998
    %v8157 = vunpack.c.h.b16 %v7998
    %v8158 = vunpack.c.l.b16 %v7999
    %v8159 = vunpack.c.h.b16 %v7999
    %v8160 = vunpack.c.l.b16 %v8000
    %v8161 = vunpack.c.h.b16 %v8000
    %v8162 = vunpack.c.l.b16 %v8001
    %v8163 = vunpack.c.h.b16 %v8001
    %v8164 = vunpack.c.l.b16 %v8002
    %v8165 = vunpack.c.h.b16 %v8002
    %v8166 = vunpack.c.l.b16 %v8003
    %v8167 = vunpack.c.h.b16 %v8003
    %v8168 = vunpack.c.l.b16 %v8004
    %v8169 = vunpack.c.h.b16 %v8004
    %v8170 = vunpack.c.l.b16 %v8005
    %v8171 = vunpack.c.h.b16 %v8005
    %v8172 = vunpack.c.l.b16 %v8006
    %v8173 = vunpack.c.h.b16 %v8006
    %v8174 = vunpack.c.l.b16 %v8007
    %v8175 = vunpack.c.h.b16 %v8007
    %v8176 = vunpack.c.l.b16 %v8008
    %v8177 = vunpack.c.h.b16 %v8008
    %v8178 = vunpack.c.l.b16 %v8009
    %v8179 = vunpack.c.h.b16 %v8009
    %v8180 = vunpack.c.l.b16 %v8010
    %v8181 = vunpack.c.h.b16 %v8010
    %v8182 = vunpack.c.l.b16 %v8011
    %v8183 = vunpack.c.h.b16 %v8011
    %v8184 = vunpack.c.l.b16 %v8012
    %v8185 = vunpack.c.h.b16 %v8012
    %v8186 = vunpack.c.l.b16 %v8013
    %v8187 = vunpack.c.h.b16 %v8013
    %v8188 = vunpack.c.l.b16 %v8014
    %v8189 = vunpack.c.h.b16 %v8014
    %v8190 = vunpack.c.l.b16 %v8015
    %v8191 = vunpack.c.h.b16 %v8015
    %v8192 = vunpack.c.l.b16 %v8016
    %v8193 = vunpack.c.h.b16 %v8016
    %v8194 = vunpack.c.l.b16 %v8017
    %v8195 = vunpack.c.h.b16 %v8017
    %v8196 = vunpack.c.l.b16 %v8018
    %v8197 = vunpack.c.h.b16 %v8018
    %v8198 = vunpack.c.l.b16 %v8019
    %v8199 = vunpack.c.h.b16 %v8019
    %v8200 = vunpack.c.l.b16 %v8020
    %v8201 = vunpack.c.h.b16 %v8020
    %v8202 = vunpack.c.l.b16 %v8021
    %v8203 = vunpack.c.h.b16 %v8021
    %v8204 = vunpack.c.l.b16 %v8022
    %v8205 = vunpack.c.h.b16 %v8022
    %v8206 = vunpack.c.l.b16 %v8023
    %v8207 = vunpack.c.h.b16 %v8023
    %v8208 = vunpack.c.l.b16 %v8024
    %v8209 = vunpack.c.h.b16 %v8024
    %v8210 = vunpack.c.l.b16 %v8025
    %v8211 = vunpack.c.h.b16 %v8025
    %v8212 = vunpack.c.l.b16 %v8026
    %v8213 = vunpack.c.h.b16 %v8026
    %v8214 = vunpack.c.l.b16 %v8027
    %v8215 = vunpack.c.h.b16 %v8027
    %v8216 = vunpack.c.l.b16 %v8028
    %v8217 = vunpack.c.h.b16 %v8028
    %v8218 = vunpack.c.l.b16 %v8029
    %v8219 = vunpack.c.h.b16 %v8029
    %v8220 = vunpack.c.l.b16 %v8030
    %v8221 = vunpack.c.h.b16 %v8030
    %v8222 = vunpack.c.l.b16 %v8031
    %v8223 = vunpack.c.h.b16 %v8031
    %v8224 = vunpack.c.l.b16 %v8032
    %v8225 = vunpack.c.h.b16 %v8032
    %v8226 = vunpack.c.l.b16 %v8033
    %v8227 = vunpack.c.h.b16 %v8033
    %v8228 = vunpack.c.l.b16 %v8034
    %v8229 = vunpack.c.h.b16 %v8034
    %v8230 = vunpack.c.l.b16 %v8035
    %v8231 = vunpack.c.h.b16 %v8035
    %v8232 = vunpack.c.l.b16 %v8036
    %v8233 = vunpack.c.h.b16 %v8036
    %v8234 = vunpack.c.l.b16 %v8037
    %v8235 = vunpack.c.h.b16 %v8037
    %v8236 = vunpack.c.l.b16 %v8038
    %v8237 = vunpack.c.h.b16 %v8038
    %v8238 = vpack.c.b16 %v8114, %v8110
    %v8239 = vpack.c.b16 %v8115, %v8111
    %v8240 = vpack.c.b16 %v8116, %v8112
    %v8241 = vpack.c.b16 %v8117, %v8113
    %v8242 = vpack.c.b16 %v8122, %v8118
    %v8243 = vpack.c.b16 %v8123, %v8119
    %v8244 = vpack.c.b16 %v8124, %v8120
    %v8245 = vpack.c.b16 %v8125, %v8121
    %v8246 = vpack.c.b16 %v8130, %v8126
    %v8247 = vpack.c.b16 %v8131, %v8127
    %v8248 = vpack.c.b16 %v8132, %v8128
    %v8249 = vpack.c.b16 %v8133, %v8129
    %v8250 = vpack.c.b16 %v8138, %v8134
    %v8251 = vpack.c.b16 %v8139, %v8135
    %v8252 = vpack.c.b16 %v8140, %v8136
    %v8253 = vpack.c.b16 %v8141, %v8137
    %v8254 = vpack.c.b16 %v8146, %v8142
    %v8255 = vpack.c.b16 %v8147, %v8143
    %v8256 = vpack.c.b16 %v8148, %v8144
    %v8257 = vpack.c.b16 %v8149, %v8145
    %v8258 = vpack.c.b16 %v8154, %v8150
    %v8259 = vpack.c.b16 %v8155, %v8151
    %v8260 = vpack.c.b16 %v8156, %v8152
    %v8261 = vpack.c.b16 %v8157, %v8153
    %v8262 = vpack.c.b16 %v8162, %v8158
    %v8263 = vpack.c.b16 %v8163, %v8159
    %v8264 = vpack.c.b16 %v8164, %v8160
    %v8265 = vpack.c.b16 %v8165, %v8161
    %v8266 = vpack.c.b16 %v8170, %v8166
    %v8267 = vpack.c.b16 %v8171, %v8167
    %v8268 = vpack.c.b16 %v8172, %v8168
    %v8269 = vpack.c.b16 %v8173, %v8169
    %v8270 = vpack.c.b16 %v8178, %v8174
    %v8271 = vpack.c.b16 %v8179, %v8175
    %v8272 = vpack.c.b16 %v8180, %v8176
    %v8273 = vpack.c.b16 %v8181, %v8177
    %v8274 = vpack.c.b16 %v8186, %v8182
    %v8275 = vpack.c.b16 %v8187, %v8183
    %v8276 = vpack.c.b16 %v8188, %v8184
    %v8277 = vpack.c.b16 %v8189, %v8185
    %v8278 = vpack.c.b16 %v8194, %v8190
    %v8279 = vpack.c.b16 %v8195, %v8191
    %v8280 = vpack.c.b16 %v8196, %v8192
    %v8281 = vpack.c.b16 %v8197, %v8193
    %v8282 = vpack.c.b16 %v8202, %v8198
    %v8283 = vpack.c.b16 %v8203, %v8199
    %v8284 = vpack.c.b16 %v8204, %v8200
    %v8285 = vpack.c.b16 %v8205, %v8201
    %v8286 = vpack.c.b16 %v8210, %v8206
    %v8287 = vpack.c.b16 %v8211, %v8207
    %v8288 = vpack.c.b16 %v8212, %v8208
    %v8289 = vpack.c.b16 %v8213, %v8209
    %v8290 = vpack.c.b16 %v8218, %v8214
    %v8291 = vpack.c.b16 %v8219, %v8215
    %v8292 = vpack.c.b16 %v8220, %v8216
    %v8293 = vpack.c.b16 %v8221, %v8217
    %v8294 = vpack.c.b16 %v8226, %v8222
    %v8295 = vpack.c.b16 %v8227, %v8223
    %v8296 = vpack.c.b16 %v8228, %v8224
    %v8297 = vpack.c.b16 %v8229, %v8225
    %v8298 = vpack.c.b16 %v8234, %v8230
    %v8299 = vpack.c.b16 %v8235, %v8231
    %v8300 = vpack.c.b16 %v8236, %v8232
    %v8301 = vpack.c.b16 %v8237, %v8233
    %8366 = vmatpush.bf16.msra.mxu0 %v8266
    %8367 = vmatpush.bf16.msra.mxu0 %v8262
    %8368 = vmatpush.bf16.msra.mxu0 %v8258
    %8369 = vmatpush.bf16.msra.mxu0 %v8254
    %8370 = vmatpush.bf16.msra.mxu0 %v8250
    %8371 = vmatpush.bf16.msra.mxu0 %v8246
    %8372 = vmatpush.bf16.msra.mxu0 %v8242
    %8373 = vmatpush.bf16.msra.mxu0 %v8238
    %8374 = vmatmul.bf16.gmra.mxu0 %v8042
    %v8375 = vpop.f32.mrf.mxu0
    %v8376 = vadd.f32 0.0, %v8375
    %v8377 = vpop.f32.mrf.mxu0
    %8378 = vdwg.mxu0
    %8379 = vmatpush.bf16.msra.mxu0 %v8298
    %8380 = vmatpush.bf16.msra.mxu0 %v8294
    %8381 = vmatpush.bf16.msra.mxu0 %v8290
    %8382 = vmatpush.bf16.msra.mxu0 %v8286
    %8383 = vmatpush.bf16.msra.mxu0 %v8282
    %8384 = vmatpush.bf16.msra.mxu0 %v8278
    %8385 = vmatpush.bf16.msra.mxu0 %v8274
    %8386 = vmatpush.bf16.msra.mxu0 %v8270
    %8387 = vmatmul.bf16.gmra.mxu0 %v8043
    %v8388 = vpop.f32.mrf.mxu0
    %v8389 = vadd.f32 %v8376, %v8388
    %v8390 = vpop.f32.mrf.mxu0
    %8391 = vdwg.mxu0
    %8392 = vmatpush.bf16.msra.mxu0 %v8267
    %8393 = vmatpush.bf16.msra.mxu0 %v8263
    %8394 = vmatpush.bf16.msra.mxu0 %v8259
    %8395 = vmatpush.bf16.msra.mxu0 %v8255
    %8396 = vmatpush.bf16.msra.mxu0 %v8251
    %8397 = vmatpush.bf16.msra.mxu0 %v8247
    %8398 = vmatpush.bf16.msra.mxu0 %v8243
    %8399 = vmatpush.bf16.msra.mxu0 %v8239
    %8400 = vmatmul.bf16.gmra.mxu0 %v8042
    %v8401 = vpop.f32.mrf.mxu0
    %v8402 = vadd.f32 0.0, %v8401
    %v8403 = vpop.f32.mrf.mxu0
    %8404 = vdwg.mxu0
    %8405 = vmatpush.bf16.msra.mxu0 %v8299
    %8406 = vmatpush.bf16.msra.mxu0 %v8295
    %8407 = vmatpush.bf16.msra.mxu0 %v8291
    %8408 = vmatpush.bf16.msra.mxu0 %v8287
    %8409 = vmatpush.bf16.msra.mxu0 %v8283
    %8410 = vmatpush.bf16.msra.mxu0 %v8279
    %8411 = vmatpush.bf16.msra.mxu0 %v8275
    %8412 = vmatpush.bf16.msra.mxu0 %v8271
    %8413 = vmatmul.bf16.gmra.mxu0 %v8043
    %v8414 = vpop.f32.mrf.mxu0
    %v8415 = vadd.f32 %v8402, %v8414
    %v8416 = vpop.f32.mrf.mxu0
    %8417 = vdwg.mxu0
    %8418 = vmatpush.bf16.msra.mxu0 %v8268
    %8419 = vmatpush.bf16.msra.mxu0 %v8264
    %8420 = vmatpush.bf16.msra.mxu0 %v8260
    %8421 = vmatpush.bf16.msra.mxu0 %v8256
    %8422 = vmatpush.bf16.msra.mxu0 %v8252
    %8423 = vmatpush.bf16.msra.mxu0 %v8248
    %8424 = vmatpush.bf16.msra.mxu0 %v8244
    %8425 = vmatpush.bf16.msra.mxu0 %v8240
    %8426 = vmatmul.bf16.gmra.mxu0 %v8042
    %v8427 = vpop.f32.mrf.mxu0
    %v8428 = vadd.f32 0.0, %v8427
    %v8429 = vpop.f32.mrf.mxu0
    %8430 = vdwg.mxu0
    %8431 = vmatpush.bf16.msra.mxu0 %v8300
    %8432 = vmatpush.bf16.msra.mxu0 %v8296
    %8433 = vmatpush.bf16.msra.mxu0 %v8292
    %8434 = vmatpush.bf16.msra.mxu0 %v8288
    %8435 = vmatpush.bf16.msra.mxu0 %v8284
    %8436 = vmatpush.bf16.msra.mxu0 %v8280
    %8437 = vmatpush.bf16.msra.mxu0 %v8276
    %8438 = vmatpush.bf16.msra.mxu0 %v8272
    %8439 = vmatmul.bf16.gmra.mxu0 %v8043
    %v8440 = vpop.f32.mrf.mxu0
    %v8441 = vadd.f32 %v8428, %v8440
    %v8442 = vpop.f32.mrf.mxu0
    %8443 = vdwg.mxu0
    %8444 = vmatpush.bf16.msra.mxu0 %v8269
    %8445 = vmatpush.bf16.msra.mxu0 %v8265
    %8446 = vmatpush.bf16.msra.mxu0 %v8261
    %8447 = vmatpush.bf16.msra.mxu0 %v8257
    %8448 = vmatpush.bf16.msra.mxu0 %v8253
    %8449 = vmatpush.bf16.msra.mxu0 %v8249
    %8450 = vmatpush.bf16.msra.mxu0 %v8245
    %8451 = vmatpush.bf16.msra.mxu0 %v8241
    %8452 = vmatmul.bf16.gmra.mxu0 %v8042
    %v8453 = vpop.f32.mrf.mxu0
    %v8454 = vadd.f32 0.0, %v8453
    %v8455 = vpop.f32.mrf.mxu0
    %8456 = vdwg.mxu0
    %8457 = vmatpush.bf16.msra.mxu0 %v8301
    %8458 = vmatpush.bf16.msra.mxu0 %v8297
    %8459 = vmatpush.bf16.msra.mxu0 %v8293
    %8460 = vmatpush.bf16.msra.mxu0 %v8289
    %8461 = vmatpush.bf16.msra.mxu0 %v8285
    %8462 = vmatpush.bf16.msra.mxu0 %v8281
    %8463 = vmatpush.bf16.msra.mxu0 %v8277
    %8464 = vmatpush.bf16.msra.mxu0 %v8273
    %8465 = vmatmul.bf16.gmra.mxu0 %v8043
    %v8466 = vpop.f32.mrf.mxu0
    %v8467 = vadd.f32 %v8454, %v8466
    %v8468 = vpop.f32.mrf.mxu0
    %8469 = vdwg.mxu0
    %v8470 = vadd.f32 %v7970, %v8389
    %v8471 = vadd.f32 %v7971, %v8415
    %v8472 = vadd.f32 %v7972, %v8441
    %v8473 = vadd.f32 %v7973, %v8467
    %v8474 = vld [vmem:[%s6] sm:$0xf]
    %v8476 = vperm.slane %v8474, 0
    %v8477 = vperm.slane %v8474, 1
    %v8478 = vperm.slane %v8474, 2
    %v8479 = vperm.slane %v8474, 3
    %v8484 = vadd.f32 %v8470, %v8476
    %v8485 = vadd.f32 %v8471, %v8477
    %v8486 = vadd.f32 %v8472, %v8478
    %v8487 = vadd.f32 %v8473, %v8479
    %v8488 = vmax.f32 %v8484, 0.0
    %v8489 = vmax.f32 %v8485, 0.0
    %v8490 = vmax.f32 %v8486, 0.0
    %v8491 = vmax.f32 %v8487, 0.0
    %v8492 = vpack.c.bf16 %v8488, %v8488
    %v8493 = vpack.c.bf16 %v8489, %v8489
    %v8494 = vpack.c.bf16 %v8490, %v8490
    %v8495 = vpack.c.bf16 %v8491, %v8491
    %v8496 = vld [vmem:[%s7] sm:$0xf]
    %v8497 = vld [vmem:[%s7 + $0x4] sm:$0xf]
    %v8498 = vld [vmem:[%s7 + $0x8] sm:$0xf]
    %v8499 = vld [vmem:[%s7 + $0xc] sm:$0xf]
    %v8500 = vld [vmem:[%s7 + $0x10] sm:$0xf]
    %v8501 = vld [vmem:[%s7 + $0x14] sm:$0xf]
    %v8502 = vld [vmem:[%s7 + $0x18] sm:$0xf]
    %v8503 = vld [vmem:[%s7 + $0x1c] sm:$0xf]
    %v8504 = vld [vmem:[%s7 + $0x20] sm:$0xf]
    %v8505 = vld [vmem:[%s7 + $0x24] sm:$0xf]
    %v8506 = vld [vmem:[%s7 + $0x28] sm:$0xf]
    %v8507 = vld [vmem:[%s7 + $0x2c] sm:$0xf]
    %v8508 = vld [vmem:[%s7 + $0x30] sm:$0xf]
    %v8509 = vld [vmem:[%s7 + $0x34] sm:$0xf]
    %v8510 = vld [vmem:[%s7 + $0x38] sm:$0xf]
    %v8511 = vld [vmem:[%s7 + $0x3c] sm:$0xf]
    %v8512 = vld [vmem:[%s7 + $0x40] sm:$0xf]
    %v8513 = vld [vmem:[%s7 + $0x44] sm:$0xf]
    %v8514 = vld [vmem:[%s7 + $0x48] sm:$0xf]
    %v8515 = vld [vmem:[%s7 + $0x4c] sm:$0xf]
    %v8516 = vld [vmem:[%s7 + $0x50] sm:$0xf]
    %v8517 = vld [vmem:[%s7 + $0x54] sm:$0xf]
    %v8518 = vld [vmem:[%s7 + $0x58] sm:$0xf]
    %v8519 = vld [vmem:[%s7 + $0x5c] sm:$0xf]
    %v8520 = vld [vmem:[%s7 + $0x60] sm:$0xf]
    %v8521 = vld [vmem:[%s7 + $0x64] sm:$0xf]
    %v8522 = vld [vmem:[%s7 + $0x68] sm:$0xf]
    %v8523 = vld [vmem:[%s7 + $0x6c] sm:$0xf]
    %v8524 = vld [vmem:[%s7 + $0x70] sm:$0xf]
    %v8525 = vld [vmem:[%s7 + $0x74] sm:$0xf]
    %v8526 = vld [vmem:[%s7 + $0x78] sm:$0xf]
    %v8527 = vld [vmem:[%s7 + $0x7c] sm:$0xf]
    %v8528 = vld [vmem:[%s7 + $0x80] sm:$0xf]
    %v8529 = vld [vmem:[%s7 + $0x84] sm:$0xf]
    %v8530 = vld [vmem:[%s7 + $0x88] sm:$0xf]
    %v8531 = vld [vmem:[%s7 + $0x8c] sm:$0xf]
    %v8532 = vld [vmem:[%s7 + $0x90] sm:$0xf]
    %v8533 = vld [vmem:[%s7 + $0x94] sm:$0xf]
    %v8534 = vld [vmem:[%s7 + $0x98] sm:$0xf]
    %v8535 = vld [vmem:[%s7 + $0x9c] sm:$0xf]
    %v8536 = vld [vmem:[%s7 + $0xa0] sm:$0xf]
    %v8537 = vld [vmem:[%s7 + $0xa4] sm:$0xf]
    %v8538 = vld [vmem:[%s7 + $0xa8] sm:$0xf]
    %v8539 = vld [vmem:[%s7 + $0xac] sm:$0xf]
    %v8540 = vld [vmem:[%s7 + $0xb0] sm:$0xf]
    %v8541 = vld [vmem:[%s7 + $0xb4] sm:$0xf]
    %v8542 = vld [vmem:[%s7 + $0xb8] sm:$0xf]
    %v8543 = vld [vmem:[%s7 + $0xbc] sm:$0xf]
    %v8544 = vld [vmem:[%s7 + $0xc0] sm:$0xf]
    %v8545 = vld [vmem:[%s7 + $0xc4] sm:$0xf]
    %v8546 = vld [vmem:[%s7 + $0xc8] sm:$0xf]
    %v8547 = vld [vmem:[%s7 + $0xcc] sm:$0xf]
    %v8548 = vld [vmem:[%s7 + $0xd0] sm:$0xf]
    %v8549 = vld [vmem:[%s7 + $0xd4] sm:$0xf]
    %v8550 = vld [vmem:[%s7 + $0xd8] sm:$0xf]
    %v8551 = vld [vmem:[%s7 + $0xdc] sm:$0xf]
    %v8552 = vld [vmem:[%s7 + $0xe0] sm:$0xf]
    %v8553 = vld [vmem:[%s7 + $0xe4] sm:$0xf]
    %v8554 = vld [vmem:[%s7 + $0xe8] sm:$0xf]
    %v8555 = vld [vmem:[%s7 + $0xec] sm:$0xf]
    %v8556 = vld [vmem:[%s7 + $0xf0] sm:$0xf]
    %v8557 = vld [vmem:[%s7 + $0xf4] sm:$0xf]
    %v8558 = vld [vmem:[%s7 + $0xf8] sm:$0x3]
    %v8559 = vld [vmem:[%s8] sm:$0x1]
    %v8561 = vperm.slane %v8559, 0
    %v8626 = vunpack.c.l.b16 %v8496
    %v8627 = vunpack.c.l.b16 %v8497
    %v8628 = vunpack.c.l.b16 %v8498
    %v8629 = vunpack.c.l.b16 %v8499
    %v8630 = vunpack.c.l.b16 %v8500
    %v8631 = vunpack.c.l.b16 %v8501
    %v8632 = vunpack.c.l.b16 %v8502
    %v8633 = vunpack.c.l.b16 %v8503
    %v8634 = vunpack.c.l.b16 %v8504
    %v8635 = vunpack.c.l.b16 %v8505
    %v8636 = vunpack.c.l.b16 %v8506
    %v8637 = vunpack.c.l.b16 %v8507
    %v8638 = vunpack.c.l.b16 %v8508
    %v8639 = vunpack.c.l.b16 %v8509
    %v8640 = vunpack.c.l.b16 %v8510
    %v8641 = vunpack.c.l.b16 %v8511
    %v8642 = vunpack.c.l.b16 %v8512
    %v8643 = vunpack.c.l.b16 %v8513
    %v8644 = vunpack.c.l.b16 %v8514
    %v8645 = vunpack.c.l.b16 %v8515
    %v8646 = vunpack.c.l.b16 %v8516
    %v8647 = vunpack.c.l.b16 %v8517
    %v8648 = vunpack.c.l.b16 %v8518
    %v8649 = vunpack.c.l.b16 %v8519
    %v8650 = vunpack.c.l.b16 %v8520
    %v8651 = vunpack.c.l.b16 %v8521
    %v8652 = vunpack.c.l.b16 %v8522
    %v8653 = vunpack.c.l.b16 %v8523
    %v8654 = vunpack.c.l.b16 %v8524
    %v8655 = vunpack.c.l.b16 %v8525
    %v8656 = vunpack.c.l.b16 %v8526
    %v8657 = vunpack.c.l.b16 %v8527
    %v8658 = vunpack.c.l.b16 %v8528
    %v8659 = vunpack.c.l.b16 %v8529
    %v8660 = vunpack.c.l.b16 %v8530
    %v8661 = vunpack.c.l.b16 %v8531
    %v8662 = vunpack.c.l.b16 %v8532
    %v8663 = vunpack.c.l.b16 %v8533
    %v8664 = vunpack.c.l.b16 %v8534
    %v8665 = vunpack.c.l.b16 %v8535
    %v8666 = vunpack.c.l.b16 %v8536
    %v8667 = vunpack.c.l.b16 %v8537
    %v8668 = vunpack.c.l.b16 %v8538
    %v8669 = vunpack.c.l.b16 %v8539
    %v8670 = vunpack.c.l.b16 %v8540
    %v8671 = vunpack.c.l.b16 %v8541
    %v8672 = vunpack.c.l.b16 %v8542
    %v8673 = vunpack.c.l.b16 %v8543
    %v8674 = vunpack.c.l.b16 %v8544
    %v8675 = vunpack.c.l.b16 %v8545
    %v8676 = vunpack.c.l.b16 %v8546
    %v8677 = vunpack.c.l.b16 %v8547
    %v8678 = vunpack.c.l.b16 %v8548
    %v8679 = vunpack.c.l.b16 %v8549
    %v8680 = vunpack.c.l.b16 %v8550
    %v8681 = vunpack.c.l.b16 %v8551
    %v8682 = vunpack.c.l.b16 %v8552
    %v8683 = vunpack.c.l.b16 %v8553
    %v8684 = vunpack.c.l.b16 %v8554
    %v8685 = vunpack.c.l.b16 %v8555
    %v8686 = vunpack.c.l.b16 %v8556
    %v8687 = vunpack.c.l.b16 %v8557
    %v8688 = vunpack.c.l.b16 %v8558
    %v8689 = vpack.c.b16 %v8627, %v8626
    %v8690 = vpack.c.b16 %v8629, %v8628
    %v8691 = vpack.c.b16 %v8631, %v8630
    %v8692 = vpack.c.b16 %v8633, %v8632
    %v8693 = vpack.c.b16 %v8635, %v8634
    %v8694 = vpack.c.b16 %v8637, %v8636
    %v8695 = vpack.c.b16 %v8639, %v8638
    %v8696 = vpack.c.b16 %v8641, %v8640
    %v8697 = vpack.c.b16 %v8643, %v8642
    %v8698 = vpack.c.b16 %v8645, %v8644
    %v8699 = vpack.c.b16 %v8647, %v8646
    %v8700 = vpack.c.b16 %v8649, %v8648
    %v8701 = vpack.c.b16 %v8651, %v8650
    %v8702 = vpack.c.b16 %v8653, %v8652
    %v8703 = vpack.c.b16 %v8655, %v8654
    %v8704 = vpack.c.b16 %v8657, %v8656
    %v8705 = vpack.c.b16 %v8659, %v8658
    %v8706 = vpack.c.b16 %v8661, %v8660
    %v8707 = vpack.c.b16 %v8663, %v8662
    %v8708 = vpack.c.b16 %v8665, %v8664
    %v8709 = vpack.c.b16 %v8667, %v8666
    %v8710 = vpack.c.b16 %v8669, %v8668
    %v8711 = vpack.c.b16 %v8671, %v8670
    %v8712 = vpack.c.b16 %v8673, %v8672
    %v8713 = vpack.c.b16 %v8675, %v8674
    %v8714 = vpack.c.b16 %v8677, %v8676
    %v8715 = vpack.c.b16 %v8679, %v8678
    %v8716 = vpack.c.b16 %v8681, %v8680
    %v8717 = vpack.c.b16 %v8683, %v8682
    %v8718 = vpack.c.b16 %v8685, %v8684
    %v8719 = vpack.c.b16 %v8687, %v8686
    %v8720 = vpack.c.b16 %v8688, %v8688
    %vm8752 = vcmask 949248
    %v8754 = vsel %vm8752, %v8495, 0
    %vm8756 = vcmask 1041408
    %v8758 = vsel %vm8756, %v8720, 0
    %8760 = vmatpush.bf16.msra.mxu0 %v8696
    %8761 = vmatpush.bf16.msra.mxu0 %v8695
    %8762 = vmatpush.bf16.msra.mxu0 %v8694
    %8763 = vmatpush.bf16.msra.mxu0 %v8693
    %8764 = vmatpush.bf16.msra.mxu0 %v8692
    %8765 = vmatpush.bf16.msra.mxu0 %v8691
    %8766 = vmatpush.bf16.msra.mxu0 %v8690
    %8767 = vmatpush.bf16.msra.mxu0 %v8689
    %8768 = vmatmul.bf16.gmra.mxu0 %v8492
    %v8769 = vpop.f32.mrf.mxu0
    %v8770 = vadd.f32 %v8561, %v8769
    %v8771 = vpop.f32.mrf.mxu0
    %8772 = vdwg.mxu0
    %8773 = vmatpush.bf16.msra.mxu0 %v8704
    %8774 = vmatpush.bf16.msra.mxu0 %v8703
    %8775 = vmatpush.bf16.msra.mxu0 %v8702
    %8776 = vmatpush.bf16.msra.mxu0 %v8701
    %8777 = vmatpush.bf16.msra.mxu0 %v8700
    %8778 = vmatpush.bf16.msra.mxu0 %v8699
    %8779 = vmatpush.bf16.msra.mxu0 %v8698
    %8780 = vmatpush.bf16.msra.mxu0 %v8697
    %8781 = vmatmul.bf16.gmra.mxu0 %v8493
    %v8782 = vpop.f32.mrf.mxu0
    %v8783 = vadd.f32 %v8770, %v8782
    %v8784 = vpop.f32.mrf.mxu0
    %8785 = vdwg.mxu0
    %8786 = vmatpush.bf16.msra.mxu0 %v8712
    %8787 = vmatpush.bf16.msra.mxu0 %v8711
    %8788 = vmatpush.bf16.msra.mxu0 %v8710
    %8789 = vmatpush.bf16.msra.mxu0 %v8709
    %8790 = vmatpush.bf16.msra.mxu0 %v8708
    %8791 = vmatpush.bf16.msra.mxu0 %v8707
    %8792 = vmatpush.bf16.msra.mxu0 %v8706
    %8793 = vmatpush.bf16.msra.mxu0 %v8705
    %8794 = vmatmul.bf16.gmra.mxu0 %v8494
    %v8795 = vpop.f32.mrf.mxu0
    %v8796 = vadd.f32 %v8783, %v8795
    %v8797 = vpop.f32.mrf.mxu0
    %8798 = vdwg.mxu0
    %8799 = vmatpush.bf16.msra.mxu0 %v8758
    %8800 = vmatpush.bf16.msra.mxu0 %v8719
    %8801 = vmatpush.bf16.msra.mxu0 %v8718
    %8802 = vmatpush.bf16.msra.mxu0 %v8717
    %8803 = vmatpush.bf16.msra.mxu0 %v8716
    %8804 = vmatpush.bf16.msra.mxu0 %v8715
    %8805 = vmatpush.bf16.msra.mxu0 %v8714
    %8806 = vmatpush.bf16.msra.mxu0 %v8713
    %8807 = vmatmul.bf16.gmra.mxu0 %v8754
    %v8808 = vpop.f32.mrf.mxu0
    %v8809 = vadd.f32 %v8796, %v8808
    %v8810 = vpop.f32.mrf.mxu0
    %8811 = vdwg.mxu0
    %vm8812 = vcmask 80896
    %8813 = vst.msk [vmem:[#allocation2] sm:$0xff] %vm8812, %v8809
    // Predicated region
    $region38: #{net_forward.1} parent=1 // pred_check
      _
    $region39: #{net_forward.1} parent=1 // pred_check_branch
      %8815 = sbr.rel (0) target = $region41
    $region40: #{net_forward.1} parent=1 // pred_region
      %8817 = vsyncadd [#allocation3], 0
      %s8819 = sshll.u32 [#allocation2], 4
      %s8820 = int_to_ptr.vmem [resolvable:$true] %s8819
      %s8821 = sshll.u32 %s9, 4
      %s8822 = int_to_ptr.hbm [resolvable:$true] %s8821
      %8824 = dma.vmem_to_hbm [thread:$0]  %s8820, 128, %s8822, [#allocation3]
    $region41: #{net_forward.1} parent=1 // pred_fallthru
      _
    // Predicated region
    $region42: #{net_forward.1} parent=1 // pred_check
      _
    $region43: #{net_forward.1} parent=1 // pred_check_branch
      %8826 = sbr.rel (0) target = $region45
    $region44: #{net_forward.1} parent=1 // pred_region
      %8828 = dma.done [#allocation3], 128
    $region45: #{net_forward.1} parent=1 // pred_fallthru
      _
    %8829 = vsyncpa [#allocation3], 1

</llo_original>
